<compile_context>
chip_gen: v7x
topology: tpu7x:2x2x1
jax: 0.10.0
libtpu: 0.0.40
codegen_flags: <defaults>
</compile_context>

<pallas_src>
import functools
import math

import numpy as np

import jax
import jax.numpy as jnp
from jax.experimental import pallas as pl
from jax.experimental.pallas import tpu as pltpu

_EPS = 1e-5


# ----------------------------------------------------------------------------
# Small constant matrices built at trace time (numpy, f32).
# ----------------------------------------------------------------------------
def _decimate_matrix(l_in):
    """(l_in, l_in//2) 0/1 selection matrix implementing x[..., ::2]."""
    l_half = l_in // 2
    m = np.zeros((l_in, l_half), np.float32)
    m[2 * np.arange(l_half), np.arange(l_half)] = 1.0
    return m


def _upsample_matrix(l_in):
    """(l_in, 2*l_in): F.interpolate(scale_factor=2, 'linear', align_corners=True)."""
    l_out = 2 * l_in
    m = np.zeros((l_in, l_out), np.float32)
    if l_in == 1:
        m[0, :] = 1.0
    else:
        pos = np.arange(l_out) * (l_in - 1) / (l_out - 1)
        lo = np.clip(np.floor(pos).astype(np.int64), 0, l_in - 2)
        frac = (pos - lo).astype(np.float32)
        cols = np.arange(l_out)
        m[lo, cols] += 1.0 - frac
        m[lo + 1, cols] += frac
    return m


def _im2col_w(w):
    """(C_out, C_in, K) torch conv weight -> (C_out, K*C_in), k-major."""
    c_out, c_in, k = w.shape
    return jnp.transpose(w, (0, 2, 1)).reshape(c_out, k * c_in)


# ----------------------------------------------------------------------------
# In-kernel building blocks.  Activations are (C, B*L) f32 with per-batch
# segments; padded conv inputs live in scratch refs shaped (C_in, B*(L+2*pad)).
# ----------------------------------------------------------------------------
def _gather_window(s_ref, k, l_out, seg, batch):
    """Window k of every batch segment, concatenated along lanes: (C, B*l_out)."""
    parts = [s_ref[:, b * seg + k: b * seg + k + l_out] for b in range(batch)]
    return parts[0] if batch == 1 else jnp.concatenate(parts, axis=1)


def _conv_im2col(s_ref, w_ref, *, k_size, l_out, pad, batch):
    """Conv1d as ONE bf16 MXU matmul: (C_out, K*C_in) x (K*C_in, B*l_out)."""
    seg = l_out + 2 * pad
    blocks = [_gather_window(s_ref, k, l_out, seg, batch) for k in range(k_size)]
    rhs = blocks[0] if k_size == 1 else jnp.concatenate(blocks, axis=0)
    return jnp.dot(w_ref[...], rhs.astype(jnp.bfloat16),
                   preferred_element_type=jnp.float32)          # (C_out, B*l_out) f32


def _conv_cin1(s_ref, w_ref, *, k_size, l_out, pad, batch):
    """First encoder layer (C_in == 1): K VPU broadcast-FMAs, MXU stays free."""
    seg = l_out + 2 * pad
    acc = None
    for k in range(k_size):
        xk = _gather_window(s_ref, k, l_out, seg, batch)        # (1, B*l_out)
        term = w_ref[:, k:k + 1] * xk                           # (C_out, B*l_out)
        acc = term if acc is None else acc + term
    return acc


def _bias_bn_leaky(y, aff_ref, *, n, slope):
    """bias + training-mode BatchNorm1d (single-pass batch stats) + LeakyReLU."""
    bias = aff_ref[:, 0:1]                                      # (C, 1)
    gamma = aff_ref[:, 1:2]
    beta = aff_ref[:, 2:3]
    y = y + bias
    inv_n = 1.0 / float(n)
    s1 = jnp.sum(y, axis=1, keepdims=True)
    s2 = jnp.sum(y * y, axis=1, keepdims=True)
    mu = s1 * inv_n
    var = jnp.maximum(s2 * inv_n - mu * mu, 0.0)
    scale = jax.lax.rsqrt(var + _EPS) * gamma
    shift = beta - mu * scale
    z = y * scale + shift
    return jnp.where(z > 0, z, slope * z)


def _store_rows(act, dst_ref, row0, *, l_len, pad, batch):
    """Write (C, B*l_len) activation into the valid region of a padded scratch."""
    c = act.shape[0]
    seg = l_len + 2 * pad
    for b in range(batch):
        dst_ref[row0:row0 + c, b * seg + pad: b * seg + pad + l_len] = (
            act[:, b * l_len:(b + 1) * l_len])


def _decimate_into(act, dec_ref, dst_ref, *, l_in, pad, batch):
    """x[..., ::2] via a bf16 0/1 selection matrix, stored into the next scratch."""
    l_half = l_in // 2
    seg = l_half + 2 * pad
    dec = dec_ref[...]
    for b in range(batch):
        src = act[:, b * l_in:(b + 1) * l_in].astype(jnp.bfloat16)
        d = jnp.dot(src, dec, preferred_element_type=jnp.float32)
        dst_ref[:, b * seg + pad: b * seg + pad + l_half] = d


def _upsample_into(act, up_ref, dst_ref, row0, *, l_in, pad, batch):
    """linear x2 upsample (align_corners=True) via an f32 matrix, into a scratch."""
    c = act.shape[0]
    l_up = 2 * l_in
    seg = l_up + 2 * pad
    up = up_ref[...]
    for b in range(batch):
        src = act[:, b * l_in:(b + 1) * l_in]
        u = jnp.dot(src, up, preferred_element_type=jnp.float32)
        dst_ref[row0:row0 + c, b * seg + pad: b * seg + pad + l_up] = u


# ----------------------------------------------------------------------------
# The fused whole-network kernel.
# ----------------------------------------------------------------------------
def _unet_kernel(
    # ---- inputs
    x_ref,
    e0_w_ref, e0_aff_ref,
    e1_w_ref, e1_aff_ref,
    e2_w_ref, e2_aff_ref,
    mid_w_ref, mid_aff_ref,
    d0_w_ref, d0_aff_ref,
    d1_w_ref, d1_aff_ref,
    d2_w_ref, d2_aff_ref,
    out_w_ref, out_b_ref,
    dec0_ref, dec1_ref, dec2_ref,
    up_m_ref, up_d0_ref, up_d1_ref,
    # ---- output
    o_ref,
    # ---- VMEM scratch (padded per-layer conv inputs, (C_in, B*(L+2p)))
    s_e0, s_e1, s_e2, s_mid, s_d0, s_d1, s_d2,
    *, batch, length,
):
    l0, l1, l2, l3 = length, length // 2, length // 4, length // 8

    # Establish conv zero-padding once: zeroed scratch + valid-region stores.
    for s in (s_e0, s_e1, s_e2, s_mid, s_d0, s_d1, s_d2):
        s[...] = jnp.zeros(s.shape, s.dtype)

    x = x_ref[...]                                               # (1, B*l0) f32
    _store_rows(x, s_e0, 0, l_len=l0, pad=7, batch=batch)

    # encoder 0: Conv1d(1->24, k=15, p=7) + BN + LeakyReLU(0.01)    [VPU path]
    y = _conv_cin1(s_e0, e0_w_ref, k_size=15, l_out=l0, pad=7, batch=batch)
    e0 = _bias_bn_leaky(y, e0_aff_ref, n=batch * l0, slope=0.01)
    _store_rows(e0, s_d2, 48, l_len=l0, pad=2, batch=batch)      # skip -> decoder 2
    _decimate_into(e0, dec0_ref, s_e1, l_in=l0, pad=7, batch=batch)

    # encoder 1: Conv1d(24->48, k=15, p=7) + BN + LeakyReLU(0.01)
    y = _conv_im2col(s_e1, e1_w_ref, k_size=15, l_out=l1, pad=7, batch=batch)
    e1 = _bias_bn_leaky(y, e1_aff_ref, n=batch * l1, slope=0.01)
    _store_rows(e1, s_d1, 64, l_len=l1, pad=2, batch=batch)      # skip -> decoder 1
    _decimate_into(e1, dec1_ref, s_e2, l_in=l1, pad=7, batch=batch)

    # encoder 2: Conv1d(48->64, k=15, p=7) + BN + LeakyReLU(0.01)
    y = _conv_im2col(s_e2, e2_w_ref, k_size=15, l_out=l2, pad=7, batch=batch)
    e2 = _bias_bn_leaky(y, e2_aff_ref, n=batch * l2, slope=0.01)
    _store_rows(e2, s_d0, 64, l_len=l2, pad=2, batch=batch)      # skip -> decoder 0
    _decimate_into(e2, dec2_ref, s_mid, l_in=l2, pad=7, batch=batch)

    # middle: Conv1d(64->64, k=15, p=7) + BN + LeakyReLU(0.2)
    y = _conv_im2col(s_mid, mid_w_ref, k_size=15, l_out=l3, pad=7, batch=batch)
    m = _bias_bn_leaky(y, mid_aff_ref, n=batch * l3, slope=0.2)
    _upsample_into(m, up_m_ref, s_d0, 0, l_in=l3, pad=2, batch=batch)

    # decoder 0: concat([up(m), e2]) fused in s_d0, Conv1d(128->64, k=5, p=2)
    y = _conv_im2col(s_d0, d0_w_ref, k_size=5, l_out=l2, pad=2, batch=batch)
    d0 = _bias_bn_leaky(y, d0_aff_ref, n=batch * l2, slope=0.01)
    _upsample_into(d0, up_d0_ref, s_d1, 0, l_in=l2, pad=2, batch=batch)

    # decoder 1: concat([up(d0), e1]) fused in s_d1, Conv1d(112->48, k=5, p=2)
    y = _conv_im2col(s_d1, d1_w_ref, k_size=5, l_out=l1, pad=2, batch=batch)
    d1 = _bias_bn_leaky(y, d1_aff_ref, n=batch * l1, slope=0.01)
    _upsample_into(d1, up_d1_ref, s_d2, 0, l_in=l1, pad=2, batch=batch)

    # decoder 2: concat([up(d1), e0]) fused in s_d2, Conv1d(72->24, k=5, p=2)
    y = _conv_im2col(s_d2, d2_w_ref, k_size=5, l_out=l0, pad=2, batch=batch)
    d2 = _bias_bn_leaky(y, d2_aff_ref, n=batch * l0, slope=0.01)

    # out: Conv1d(25->1, k=1) over concat([d2, x]) (split weight) + Tanh
    y_out = jnp.dot(out_w_ref[:, 0:24], d2, preferred_element_type=jnp.float32)
    y_out = y_out + out_w_ref[:, 24:25] * x + out_b_ref[...]
    o_ref[...] = jnp.tanh(y_out)                                 # (1, B*l0), single store


# ----------------------------------------------------------------------------
# Parameters (deterministic, PyTorch-default-style init)
# ----------------------------------------------------------------------------
def _conv_params(key, c_out, c_in, k):
    k1, k2 = jax.random.split(key)
    bound = 1.0 / math.sqrt(c_in * k)
    w = jax.random.uniform(k1, (c_out, c_in, k), jnp.float32, -bound, bound)
    b = jax.random.uniform(k2, (c_out,), jnp.float32, -bound, bound)
    return w, b


def init_params(key):
    enc_in, enc_out = [1, 24, 48], [24, 48, 64]
    dec_in, dec_out = [128, 112, 72], [64, 48, 24]
    params = {"enc": [], "dec": []}
    keys = jax.random.split(key, 8)

    for i in range(3):
        w, b = _conv_params(keys[i], enc_out[i], enc_in[i], 15)
        params["enc"].append(dict(w=w, b=b,
                                  g=jnp.ones((enc_out[i],), jnp.float32),
                                  beta=jnp.zeros((enc_out[i],), jnp.float32)))
    w, b = _conv_params(keys[3], 64, 64, 15)
    params["mid"] = dict(w=w, b=b,
                         g=jnp.ones((64,), jnp.float32),
                         beta=jnp.zeros((64,), jnp.float32))
    for i in range(3):
        w, b = _conv_params(keys[4 + i], dec_out[i], dec_in[i], 5)
        params["dec"].append(dict(w=w, b=b,
                                  g=jnp.ones((dec_out[i],), jnp.float32),
                                  beta=jnp.zeros((dec_out[i],), jnp.float32)))
    w, b = _conv_params(keys[7], 1, 25, 1)
    params["out"] = dict(w=w, b=b)
    return params


# ----------------------------------------------------------------------------
# Forward pass (mirrors ModeltransCompare.forward) — one pallas_call total.
# ----------------------------------------------------------------------------
def _padded_vmem_bytes(shape, dtype):
    dt = np.dtype(dtype)
    sub = {4: 8, 2: 16, 1: 32}.get(dt.itemsize, 8)
    rows = int(np.prod(shape[:-1])) if len(shape) > 1 else 1
    cols = int(shape[-1])
    return (-(-rows // sub) * sub) * (-(-cols // 128) * 128) * dt.itemsize


def model_forward(params, x):
    batch, c_in, length = x.shape
    assert c_in == 1 and length % 8 == 0, (c_in, length)
    f32, bf16 = jnp.float32, jnp.bfloat16
    l0, l1, l2, l3 = length, length // 2, length // 4, length // 8

    enc, dec, mid, out = params["enc"], params["dec"], params["mid"], params["out"]

    def aff(p):   # (C, 3) = [bias, gamma, beta]
        return jnp.stack([p["b"], p["g"], p["beta"]], axis=1).astype(f32)

    e0_w = enc[0]["w"][:, 0, :].astype(f32)                   # (24, 15)  VPU path
    e1_w = _im2col_w(enc[1]["w"]).astype(bf16)                # (48, 360)
    e2_w = _im2col_w(enc[2]["w"]).astype(bf16)                # (64, 720)
    mid_w = _im2col_w(mid["w"]).astype(bf16)                  # (64, 960)
    d_w = [_im2col_w(dec[i]["w"]).astype(bf16) for i in range(3)]  # fused up+skip
    out_w = out["w"][:, :, 0].astype(f32)                     # (1, 25)  [d2 | x]
    out_b = out["b"].reshape(1, 1).astype(f32)

    # 0/1 decimation matrices are exact in bf16; upsample matrices stay f32.
    dec0 = jnp.asarray(_decimate_matrix(l0)).astype(bf16)
    dec1 = jnp.asarray(_decimate_matrix(l1)).astype(bf16)
    dec2 = jnp.asarray(_decimate_matrix(l2)).astype(bf16)
    up_m = jnp.asarray(_upsample_matrix(l3))
    up_d0 = jnp.asarray(_upsample_matrix(l2))
    up_d1 = jnp.asarray(_upsample_matrix(l1))

    x2 = x.astype(f32).reshape(1, batch * length)             # (1, B*L)

    scratch_defs = [
        ((1, batch * (l0 + 14)), f32),      # s_e0
        ((24, batch * (l1 + 14)), f32),     # s_e1
        ((48, batch * (l2 + 14)), f32),     # s_e2
        ((64, batch * (l3 + 14)), f32),     # s_mid
        ((128, batch * (l2 + 4)), f32),     # s_d0  (rows: 0:64 up(m), 64:128 e2)
        ((112, batch * (l1 + 4)), f32),     # s_d1  (rows: 0:64 up(d0), 64:112 e1)
        ((72, batch * (l0 + 4)), f32),      # s_d2  (rows: 0:48 up(d1), 48:72 e0)
    ]
    scratch = [pltpu.VMEM(sh, dt) for sh, dt in scratch_defs]

    args = (x2,
            e0_w, aff(enc[0]), e1_w, aff(enc[1]), e2_w, aff(enc[2]),
            mid_w, aff(mid),
            d_w[0], aff(dec[0]), d_w[1], aff(dec[1]), d_w[2], aff(dec[2]),
            out_w, out_b,
            dec0, dec1, dec2, up_m, up_d0, up_d1)

    # Explicit scoped-VMEM budget: real scratch + operands + output, x4 margin
    # for in-kernel temporaries, clamped to sane chip limits.
    est = sum(_padded_vmem_bytes(a.shape, a.dtype) for a in args)
    est += sum(_padded_vmem_bytes(sh, dt) for sh, dt in scratch_defs)
    est += _padded_vmem_bytes((1, batch * length), f32)
    vmem_limit = int(min(64 * 2 ** 20, max(32 * 2 ** 20, 4 * est)))

    vmem = pl.BlockSpec(memory_space=pltpu.MemorySpace.VMEM)
    kernel = functools.partial(_unet_kernel, batch=batch, length=length)

    # TODO(synk): grid over batch / L-tiles ("parallel") + two-pass BN stats is
    # needed for large inputs and to use v7x's second TensorCore.
    out2 = pl.pallas_call(
        kernel,
        out_shape=jax.ShapeDtypeStruct((1, batch * length), f32),
        in_specs=[vmem] * len(args),
        out_specs=vmem,
        scratch_shapes=scratch,
        compiler_params=pltpu.CompilerParams(vmem_limit_bytes=vmem_limit),
    )(*args)
    return out2.reshape(batch, 1, length)


if __name__ == "__main__":
    key = jax.random.PRNGKey(0)
    k_param, k_x = jax.random.split(key)
    params = init_params(k_param)

    # small input consistent with the model: (batch=2, channels=1, length=16)
    # (length divisible by 2**n_layers = 8 so the U-Net skip shapes line up)
    x = jax.random.normal(k_x, (2, 1, 16), dtype=jnp.float32)

    out = jax.block_until_ready(model_forward(params, x))

    assert out.shape == (2, 1, 16), out.shape
    assert bool(jnp.all(jnp.isfinite(out)))
    print("KERNEL_OK")
</pallas_src>

<mosaic_0001>
module attributes {stable_mosaic.version = 11 : i64} {
  func.func @_unet_kernel(%arg0: memref<1x32xf32, #tpu.memory_space<vmem>>, %arg1: memref<24x15xf32, #tpu.memory_space<vmem>>, %arg2: memref<24x3xf32, #tpu.memory_space<vmem>>, %arg3: memref<48x360xbf16, #tpu.memory_space<vmem>>, %arg4: memref<48x3xf32, #tpu.memory_space<vmem>>, %arg5: memref<64x720xbf16, #tpu.memory_space<vmem>>, %arg6: memref<64x3xf32, #tpu.memory_space<vmem>>, %arg7: memref<64x960xbf16, #tpu.memory_space<vmem>>, %arg8: memref<64x3xf32, #tpu.memory_space<vmem>>, %arg9: memref<64x640xbf16, #tpu.memory_space<vmem>>, %arg10: memref<64x3xf32, #tpu.memory_space<vmem>>, %arg11: memref<48x560xbf16, #tpu.memory_space<vmem>>, %arg12: memref<48x3xf32, #tpu.memory_space<vmem>>, %arg13: memref<24x360xbf16, #tpu.memory_space<vmem>>, %arg14: memref<24x3xf32, #tpu.memory_space<vmem>>, %arg15: memref<1x25xf32, #tpu.memory_space<vmem>>, %arg16: memref<1x1xf32, #tpu.memory_space<vmem>>, %arg17: memref<16x8xbf16, #tpu.memory_space<vmem>>, %arg18: memref<8x4xbf16, #tpu.memory_space<vmem>>, %arg19: memref<4x2xbf16, #tpu.memory_space<vmem>>, %arg20: memref<2x4xf32, #tpu.memory_space<vmem>>, %arg21: memref<4x8xf32, #tpu.memory_space<vmem>>, %arg22: memref<8x16xf32, #tpu.memory_space<vmem>>, %arg23: memref<1x32xf32, #tpu.memory_space<vmem>>, %arg24: memref<1x60xf32, #tpu.memory_space<vmem>>, %arg25: memref<24x44xf32, #tpu.memory_space<vmem>>, %arg26: memref<48x36xf32, #tpu.memory_space<vmem>>, %arg27: memref<64x32xf32, #tpu.memory_space<vmem>>, %arg28: memref<128x16xf32, #tpu.memory_space<vmem>>, %arg29: memref<112x24xf32, #tpu.memory_space<vmem>>, %arg30: memref<72x40xf32, #tpu.memory_space<vmem>>) attributes {dimension_semantics = [], scalar_prefetch = 0 : i64, scratch_operands = 7 : i64, tpu.core_type = #tpu.core_type<tc>} {
    %cst = arith.constant 0.000000e+00 : f32
    %0 = vector.broadcast %cst : f32 to vector<1x60xf32>
    %c0 = arith.constant 0 : index
    %c0_0 = arith.constant 0 : index
    %1 = vector.load %arg24[%c0, %c0_0] : memref<1x60xf32, #tpu.memory_space<vmem>>, vector<1x60xf32>
    tpu.vector_store %arg24[%c0, %c0_0], %0 {strides = array<i32>} : memref<1x60xf32, #tpu.memory_space<vmem>>, vector<1x60xf32>,
    %cst_1 = arith.constant 0.000000e+00 : f32
    %2 = vector.broadcast %cst_1 : f32 to vector<24x44xf32>
    %c0_2 = arith.constant 0 : index
    %c0_3 = arith.constant 0 : index
    %3 = vector.load %arg25[%c0_2, %c0_3] : memref<24x44xf32, #tpu.memory_space<vmem>>, vector<24x44xf32>
    tpu.vector_store %arg25[%c0_2, %c0_3], %2 {strides = array<i32>} : memref<24x44xf32, #tpu.memory_space<vmem>>, vector<24x44xf32>,
    %cst_4 = arith.constant 0.000000e+00 : f32
    %4 = vector.broadcast %cst_4 : f32 to vector<48x36xf32>
    %c0_5 = arith.constant 0 : index
    %c0_6 = arith.constant 0 : index
    %5 = vector.load %arg26[%c0_5, %c0_6] : memref<48x36xf32, #tpu.memory_space<vmem>>, vector<48x36xf32>
    tpu.vector_store %arg26[%c0_5, %c0_6], %4 {strides = array<i32>} : memref<48x36xf32, #tpu.memory_space<vmem>>, vector<48x36xf32>,
    %cst_7 = arith.constant 0.000000e+00 : f32
    %6 = vector.broadcast %cst_7 : f32 to vector<64x32xf32>
    %c0_8 = arith.constant 0 : index
    %c0_9 = arith.constant 0 : index
    %7 = vector.load %arg27[%c0_8, %c0_9] : memref<64x32xf32, #tpu.memory_space<vmem>>, vector<64x32xf32>
    tpu.vector_store %arg27[%c0_8, %c0_9], %6 {strides = array<i32>} : memref<64x32xf32, #tpu.memory_space<vmem>>, vector<64x32xf32>,
    %cst_10 = arith.constant 0.000000e+00 : f32
    %8 = vector.broadcast %cst_10 : f32 to vector<128x16xf32>
    %c0_11 = arith.constant 0 : index
    %c0_12 = arith.constant 0 : index
    %9 = vector.load %arg28[%c0_11, %c0_12] : memref<128x16xf32, #tpu.memory_space<vmem>>, vector<128x16xf32>
    tpu.vector_store %arg28[%c0_11, %c0_12], %8 {strides = array<i32>} : memref<128x16xf32, #tpu.memory_space<vmem>>, vector<128x16xf32>,
    %cst_13 = arith.constant 0.000000e+00 : f32
    %10 = vector.broadcast %cst_13 : f32 to vector<112x24xf32>
    %c0_14 = arith.constant 0 : index
    %c0_15 = arith.constant 0 : index
    %11 = vector.load %arg29[%c0_14, %c0_15] : memref<112x24xf32, #tpu.memory_space<vmem>>, vector<112x24xf32>
    tpu.vector_store %arg29[%c0_14, %c0_15], %10 {strides = array<i32>} : memref<112x24xf32, #tpu.memory_space<vmem>>, vector<112x24xf32>,
    %cst_16 = arith.constant 0.000000e+00 : f32
    %12 = vector.broadcast %cst_16 : f32 to vector<72x40xf32>
    %c0_17 = arith.constant 0 : index
    %c0_18 = arith.constant 0 : index
    %13 = vector.load %arg30[%c0_17, %c0_18] : memref<72x40xf32, #tpu.memory_space<vmem>>, vector<72x40xf32>
    tpu.vector_store %arg30[%c0_17, %c0_18], %12 {strides = array<i32>} : memref<72x40xf32, #tpu.memory_space<vmem>>, vector<72x40xf32>,
    %c0_19 = arith.constant 0 : index
    %c0_20 = arith.constant 0 : index
    %14 = vector.load %arg0[%c0_19, %c0_20] : memref<1x32xf32, #tpu.memory_space<vmem>>, vector<1x32xf32>
    %15 = vector.extract_strided_slice %14 {offsets = [0, 0], sizes = [1, 16], strides = [1, 1]} : vector<1x32xf32> to vector<1x16xf32>
    %c0_21 = arith.constant 0 : index
    %c7 = arith.constant 7 : index
    %16 = vector.load %arg24[%c0_21, %c7] : memref<1x60xf32, #tpu.memory_space<vmem>>, vector<1x16xf32>
    tpu.vector_store %arg24[%c0_21, %c7], %15 {strides = array<i32>} : memref<1x60xf32, #tpu.memory_space<vmem>>, vector<1x16xf32>,
    %17 = vector.extract_strided_slice %14 {offsets = [0, 16], sizes = [1, 16], strides = [1, 1]} : vector<1x32xf32> to vector<1x16xf32>
    %c0_22 = arith.constant 0 : index
    %c37 = arith.constant 37 : index
    %18 = vector.load %arg24[%c0_22, %c37] : memref<1x60xf32, #tpu.memory_space<vmem>>, vector<1x16xf32>
    tpu.vector_store %arg24[%c0_22, %c37], %17 {strides = array<i32>} : memref<1x60xf32, #tpu.memory_space<vmem>>, vector<1x16xf32>,
    %c0_23 = arith.constant 0 : index
    %c0_24 = arith.constant 0 : index
    %19 = vector.load %arg24[%c0_23, %c0_24] : memref<1x60xf32, #tpu.memory_space<vmem>>, vector<1x16xf32>
    %c0_25 = arith.constant 0 : index
    %c30 = arith.constant 30 : index
    %20 = vector.load %arg24[%c0_25, %c30] : memref<1x60xf32, #tpu.memory_space<vmem>>, vector<1x16xf32>
    %21 = tpu.concatenate %19, %20 in 1 : vector<1x16xf32>, vector<1x16xf32> -> vector<1x32xf32>
    %c0_26 = arith.constant 0 : index
    %c0_27 = arith.constant 0 : index
    %22 = vector.load %arg1[%c0_26, %c0_27] : memref<24x15xf32, #tpu.memory_space<vmem>>, vector<24x1xf32>
    %23 = vector.broadcast %22 : vector<24x1xf32> to vector<24x32xf32>
    %24 = vector.broadcast %21 : vector<1x32xf32> to vector<24x32xf32>
    %25 = arith.mulf %23, %24 : vector<24x32xf32>
    %c0_28 = arith.constant 0 : index
    %c1 = arith.constant 1 : index
    %26 = vector.load %arg24[%c0_28, %c1] : memref<1x60xf32, #tpu.memory_space<vmem>>, vector<1x16xf32>
    %c0_29 = arith.constant 0 : index
    %c31 = arith.constant 31 : index
    %27 = vector.load %arg24[%c0_29, %c31] : memref<1x60xf32, #tpu.memory_space<vmem>>, vector<1x16xf32>
    %28 = tpu.concatenate %26, %27 in 1 : vector<1x16xf32>, vector<1x16xf32> -> vector<1x32xf32>
    %c0_30 = arith.constant 0 : index
    %c1_31 = arith.constant 1 : index
    %29 = vector.load %arg1[%c0_30, %c1_31] : memref<24x15xf32, #tpu.memory_space<vmem>>, vector<24x1xf32>
    %30 = vector.broadcast %29 : vector<24x1xf32> to vector<24x32xf32>
    %31 = vector.broadcast %28 : vector<1x32xf32> to vector<24x32xf32>
    %32 = arith.mulf %30, %31 : vector<24x32xf32>
    %33 = arith.addf %25, %32 : vector<24x32xf32>
    %c0_32 = arith.constant 0 : index
    %c2 = arith.constant 2 : index
    %34 = vector.load %arg24[%c0_32, %c2] : memref<1x60xf32, #tpu.memory_space<vmem>>, vector<1x16xf32>
    %c0_33 = arith.constant 0 : index
    %c32 = arith.constant 32 : index
    %35 = vector.load %arg24[%c0_33, %c32] : memref<1x60xf32, #tpu.memory_space<vmem>>, vector<1x16xf32>
    %36 = tpu.concatenate %34, %35 in 1 : vector<1x16xf32>, vector<1x16xf32> -> vector<1x32xf32>
    %c0_34 = arith.constant 0 : index
    %c2_35 = arith.constant 2 : index
    %37 = vector.load %arg1[%c0_34, %c2_35] : memref<24x15xf32, #tpu.memory_space<vmem>>, vector<24x1xf32>
    %38 = vector.broadcast %37 : vector<24x1xf32> to vector<24x32xf32>
    %39 = vector.broadcast %36 : vector<1x32xf32> to vector<24x32xf32>
    %40 = arith.mulf %38, %39 : vector<24x32xf32>
    %41 = arith.addf %33, %40 : vector<24x32xf32>
    %c0_36 = arith.constant 0 : index
    %c3 = arith.constant 3 : index
    %42 = vector.load %arg24[%c0_36, %c3] : memref<1x60xf32, #tpu.memory_space<vmem>>, vector<1x16xf32>
    %c0_37 = arith.constant 0 : index
    %c33 = arith.constant 33 : index
    %43 = vector.load %arg24[%c0_37, %c33] : memref<1x60xf32, #tpu.memory_space<vmem>>, vector<1x16xf32>
    %44 = tpu.concatenate %42, %43 in 1 : vector<1x16xf32>, vector<1x16xf32> -> vector<1x32xf32>
    %c0_38 = arith.constant 0 : index
    %c3_39 = arith.constant 3 : index
    %45 = vector.load %arg1[%c0_38, %c3_39] : memref<24x15xf32, #tpu.memory_space<vmem>>, vector<24x1xf32>
    %46 = vector.broadcast %45 : vector<24x1xf32> to vector<24x32xf32>
    %47 = vector.broadcast %44 : vector<1x32xf32> to vector<24x32xf32>
    %48 = arith.mulf %46, %47 : vector<24x32xf32>
    %49 = arith.addf %41, %48 : vector<24x32xf32>
    %c0_40 = arith.constant 0 : index
    %c4 = arith.constant 4 : index
    %50 = vector.load %arg24[%c0_40, %c4] : memref<1x60xf32, #tpu.memory_space<vmem>>, vector<1x16xf32>
    %c0_41 = arith.constant 0 : index
    %c34 = arith.constant 34 : index
    %51 = vector.load %arg24[%c0_41, %c34] : memref<1x60xf32, #tpu.memory_space<vmem>>, vector<1x16xf32>
    %52 = tpu.concatenate %50, %51 in 1 : vector<1x16xf32>, vector<1x16xf32> -> vector<1x32xf32>
    %c0_42 = arith.constant 0 : index
    %c4_43 = arith.constant 4 : index
    %53 = vector.load %arg1[%c0_42, %c4_43] : memref<24x15xf32, #tpu.memory_space<vmem>>, vector<24x1xf32>
    %54 = vector.broadcast %53 : vector<24x1xf32> to vector<24x32xf32>
    %55 = vector.broadcast %52 : vector<1x32xf32> to vector<24x32xf32>
    %56 = arith.mulf %54, %55 : vector<24x32xf32>
    %57 = arith.addf %49, %56 : vector<24x32xf32>
    %c0_44 = arith.constant 0 : index
    %c5 = arith.constant 5 : index
    %58 = vector.load %arg24[%c0_44, %c5] : memref<1x60xf32, #tpu.memory_space<vmem>>, vector<1x16xf32>
    %c0_45 = arith.constant 0 : index
    %c35 = arith.constant 35 : index
    %59 = vector.load %arg24[%c0_45, %c35] : memref<1x60xf32, #tpu.memory_space<vmem>>, vector<1x16xf32>
    %60 = tpu.concatenate %58, %59 in 1 : vector<1x16xf32>, vector<1x16xf32> -> vector<1x32xf32>
    %c0_46 = arith.constant 0 : index
    %c5_47 = arith.constant 5 : index
    %61 = vector.load %arg1[%c0_46, %c5_47] : memref<24x15xf32, #tpu.memory_space<vmem>>, vector<24x1xf32>
    %62 = vector.broadcast %61 : vector<24x1xf32> to vector<24x32xf32>
    %63 = vector.broadcast %60 : vector<1x32xf32> to vector<24x32xf32>
    %64 = arith.mulf %62, %63 : vector<24x32xf32>
    %65 = arith.addf %57, %64 : vector<24x32xf32>
    %c0_48 = arith.constant 0 : index
    %c6 = arith.constant 6 : index
    %66 = vector.load %arg24[%c0_48, %c6] : memref<1x60xf32, #tpu.memory_space<vmem>>, vector<1x16xf32>
    %c0_49 = arith.constant 0 : index
    %c36 = arith.constant 36 : index
    %67 = vector.load %arg24[%c0_49, %c36] : memref<1x60xf32, #tpu.memory_space<vmem>>, vector<1x16xf32>
    %68 = tpu.concatenate %66, %67 in 1 : vector<1x16xf32>, vector<1x16xf32> -> vector<1x32xf32>
    %c0_50 = arith.constant 0 : index
    %c6_51 = arith.constant 6 : index
    %69 = vector.load %arg1[%c0_50, %c6_51] : memref<24x15xf32, #tpu.memory_space<vmem>>, vector<24x1xf32>
    %70 = vector.broadcast %69 : vector<24x1xf32> to vector<24x32xf32>
    %71 = vector.broadcast %68 : vector<1x32xf32> to vector<24x32xf32>
    %72 = arith.mulf %70, %71 : vector<24x32xf32>
    %73 = arith.addf %65, %72 : vector<24x32xf32>
    %c0_52 = arith.constant 0 : index
    %c7_53 = arith.constant 7 : index
    %74 = vector.load %arg24[%c0_52, %c7_53] : memref<1x60xf32, #tpu.memory_space<vmem>>, vector<1x16xf32>
    %c0_54 = arith.constant 0 : index
    %c37_55 = arith.constant 37 : index
    %75 = vector.load %arg24[%c0_54, %c37_55] : memref<1x60xf32, #tpu.memory_space<vmem>>, vector<1x16xf32>
    %76 = tpu.concatenate %74, %75 in 1 : vector<1x16xf32>, vector<1x16xf32> -> vector<1x32xf32>
    %c0_56 = arith.constant 0 : index
    %c7_57 = arith.constant 7 : index
    %77 = vector.load %arg1[%c0_56, %c7_57] : memref<24x15xf32, #tpu.memory_space<vmem>>, vector<24x1xf32>
    %78 = vector.broadcast %77 : vector<24x1xf32> to vector<24x32xf32>
    %79 = vector.broadcast %76 : vector<1x32xf32> to vector<24x32xf32>
    %80 = arith.mulf %78, %79 : vector<24x32xf32>
    %81 = arith.addf %73, %80 : vector<24x32xf32>
    %c0_58 = arith.constant 0 : index
    %c8 = arith.constant 8 : index
    %82 = vector.load %arg24[%c0_58, %c8] : memref<1x60xf32, #tpu.memory_space<vmem>>, vector<1x16xf32>
    %c0_59 = arith.constant 0 : index
    %c38 = arith.constant 38 : index
    %83 = vector.load %arg24[%c0_59, %c38] : memref<1x60xf32, #tpu.memory_space<vmem>>, vector<1x16xf32>
    %84 = tpu.concatenate %82, %83 in 1 : vector<1x16xf32>, vector<1x16xf32> -> vector<1x32xf32>
    %c0_60 = arith.constant 0 : index
    %c8_61 = arith.constant 8 : index
    %85 = vector.load %arg1[%c0_60, %c8_61] : memref<24x15xf32, #tpu.memory_space<vmem>>, vector<24x1xf32>
    %86 = vector.broadcast %85 : vector<24x1xf32> to vector<24x32xf32>
    %87 = vector.broadcast %84 : vector<1x32xf32> to vector<24x32xf32>
    %88 = arith.mulf %86, %87 : vector<24x32xf32>
    %89 = arith.addf %81, %88 : vector<24x32xf32>
    %c0_62 = arith.constant 0 : index
    %c9 = arith.constant 9 : index
    %90 = vector.load %arg24[%c0_62, %c9] : memref<1x60xf32, #tpu.memory_space<vmem>>, vector<1x16xf32>
    %c0_63 = arith.constant 0 : index
    %c39 = arith.constant 39 : index
    %91 = vector.load %arg24[%c0_63, %c39] : memref<1x60xf32, #tpu.memory_space<vmem>>, vector<1x16xf32>
    %92 = tpu.concatenate %90, %91 in 1 : vector<1x16xf32>, vector<1x16xf32> -> vector<1x32xf32>
    %c0_64 = arith.constant 0 : index
    %c9_65 = arith.constant 9 : index
    %93 = vector.load %arg1[%c0_64, %c9_65] : memref<24x15xf32, #tpu.memory_space<vmem>>, vector<24x1xf32>
    %94 = vector.broadcast %93 : vector<24x1xf32> to vector<24x32xf32>
    %95 = vector.broadcast %92 : vector<1x32xf32> to vector<24x32xf32>
    %96 = arith.mulf %94, %95 : vector<24x32xf32>
    %97 = arith.addf %89, %96 : vector<24x32xf32>
    %c0_66 = arith.constant 0 : index
    %c10 = arith.constant 10 : index
    %98 = vector.load %arg24[%c0_66, %c10] : memref<1x60xf32, #tpu.memory_space<vmem>>, vector<1x16xf32>
    %c0_67 = arith.constant 0 : index
    %c40 = arith.constant 40 : index
    %99 = vector.load %arg24[%c0_67, %c40] : memref<1x60xf32, #tpu.memory_space<vmem>>, vector<1x16xf32>
    %100 = tpu.concatenate %98, %99 in 1 : vector<1x16xf32>, vector<1x16xf32> -> vector<1x32xf32>
    %c0_68 = arith.constant 0 : index
    %c10_69 = arith.constant 10 : index
    %101 = vector.load %arg1[%c0_68, %c10_69] : memref<24x15xf32, #tpu.memory_space<vmem>>, vector<24x1xf32>
    %102 = vector.broadcast %101 : vector<24x1xf32> to vector<24x32xf32>
    %103 = vector.broadcast %100 : vector<1x32xf32> to vector<24x32xf32>
    %104 = arith.mulf %102, %103 : vector<24x32xf32>
    %105 = arith.addf %97, %104 : vector<24x32xf32>
    %c0_70 = arith.constant 0 : index
    %c11 = arith.constant 11 : index
    %106 = vector.load %arg24[%c0_70, %c11] : memref<1x60xf32, #tpu.memory_space<vmem>>, vector<1x16xf32>
    %c0_71 = arith.constant 0 : index
    %c41 = arith.constant 41 : index
    %107 = vector.load %arg24[%c0_71, %c41] : memref<1x60xf32, #tpu.memory_space<vmem>>, vector<1x16xf32>
    %108 = tpu.concatenate %106, %107 in 1 : vector<1x16xf32>, vector<1x16xf32> -> vector<1x32xf32>
    %c0_72 = arith.constant 0 : index
    %c11_73 = arith.constant 11 : index
    %109 = vector.load %arg1[%c0_72, %c11_73] : memref<24x15xf32, #tpu.memory_space<vmem>>, vector<24x1xf32>
    %110 = vector.broadcast %109 : vector<24x1xf32> to vector<24x32xf32>
    %111 = vector.broadcast %108 : vector<1x32xf32> to vector<24x32xf32>
    %112 = arith.mulf %110, %111 : vector<24x32xf32>
    %113 = arith.addf %105, %112 : vector<24x32xf32>
    %c0_74 = arith.constant 0 : index
    %c12 = arith.constant 12 : index
    %114 = vector.load %arg24[%c0_74, %c12] : memref<1x60xf32, #tpu.memory_space<vmem>>, vector<1x16xf32>
    %c0_75 = arith.constant 0 : index
    %c42 = arith.constant 42 : index
    %115 = vector.load %arg24[%c0_75, %c42] : memref<1x60xf32, #tpu.memory_space<vmem>>, vector<1x16xf32>
    %116 = tpu.concatenate %114, %115 in 1 : vector<1x16xf32>, vector<1x16xf32> -> vector<1x32xf32>
    %c0_76 = arith.constant 0 : index
    %c12_77 = arith.constant 12 : index
    %117 = vector.load %arg1[%c0_76, %c12_77] : memref<24x15xf32, #tpu.memory_space<vmem>>, vector<24x1xf32>
    %118 = vector.broadcast %117 : vector<24x1xf32> to vector<24x32xf32>
    %119 = vector.broadcast %116 : vector<1x32xf32> to vector<24x32xf32>
    %120 = arith.mulf %118, %119 : vector<24x32xf32>
    %121 = arith.addf %113, %120 : vector<24x32xf32>
    %c0_78 = arith.constant 0 : index
    %c13 = arith.constant 13 : index
    %122 = vector.load %arg24[%c0_78, %c13] : memref<1x60xf32, #tpu.memory_space<vmem>>, vector<1x16xf32>
    %c0_79 = arith.constant 0 : index
    %c43 = arith.constant 43 : index
    %123 = vector.load %arg24[%c0_79, %c43] : memref<1x60xf32, #tpu.memory_space<vmem>>, vector<1x16xf32>
    %124 = tpu.concatenate %122, %123 in 1 : vector<1x16xf32>, vector<1x16xf32> -> vector<1x32xf32>
    %c0_80 = arith.constant 0 : index
    %c13_81 = arith.constant 13 : index
    %125 = vector.load %arg1[%c0_80, %c13_81] : memref<24x15xf32, #tpu.memory_space<vmem>>, vector<24x1xf32>
    %126 = vector.broadcast %125 : vector<24x1xf32> to vector<24x32xf32>
    %127 = vector.broadcast %124 : vector<1x32xf32> to vector<24x32xf32>
    %128 = arith.mulf %126, %127 : vector<24x32xf32>
    %129 = arith.addf %121, %128 : vector<24x32xf32>
    %c0_82 = arith.constant 0 : index
    %c14 = arith.constant 14 : index
    %130 = vector.load %arg24[%c0_82, %c14] : memref<1x60xf32, #tpu.memory_space<vmem>>, vector<1x16xf32>
    %c0_83 = arith.constant 0 : index
    %c44 = arith.constant 44 : index
    %131 = vector.load %arg24[%c0_83, %c44] : memref<1x60xf32, #tpu.memory_space<vmem>>, vector<1x16xf32>
    %132 = tpu.concatenate %130, %131 in 1 : vector<1x16xf32>, vector<1x16xf32> -> vector<1x32xf32>
    %c0_84 = arith.constant 0 : index
    %c14_85 = arith.constant 14 : index
    %133 = vector.load %arg1[%c0_84, %c14_85] : memref<24x15xf32, #tpu.memory_space<vmem>>, vector<24x1xf32>
    %134 = vector.broadcast %133 : vector<24x1xf32> to vector<24x32xf32>
    %135 = vector.broadcast %132 : vector<1x32xf32> to vector<24x32xf32>
    %136 = arith.mulf %134, %135 : vector<24x32xf32>
    %137 = arith.addf %129, %136 : vector<24x32xf32>
    %c0_86 = arith.constant 0 : index
    %c0_87 = arith.constant 0 : index
    %138 = vector.load %arg2[%c0_86, %c0_87] : memref<24x3xf32, #tpu.memory_space<vmem>>, vector<24x1xf32>
    %c0_88 = arith.constant 0 : index
    %c1_89 = arith.constant 1 : index
    %139 = vector.load %arg2[%c0_88, %c1_89] : memref<24x3xf32, #tpu.memory_space<vmem>>, vector<24x1xf32>
    %c0_90 = arith.constant 0 : index
    %c2_91 = arith.constant 2 : index
    %140 = vector.load %arg2[%c0_90, %c2_91] : memref<24x3xf32, #tpu.memory_space<vmem>>, vector<24x1xf32>
    %141 = vector.broadcast %138 : vector<24x1xf32> to vector<24x32xf32>
    %142 = arith.addf %137, %141 : vector<24x32xf32>
    %cst_92 = arith.constant dense<0.000000e+00> : vector<24xf32>
    %143 = vector.multi_reduction <add>, %142, %cst_92 [1] : vector<24x32xf32> to vector<24xf32>
    %144 = vector.shape_cast %143 : vector<24xf32> to vector<24x1xf32>
    %145 = arith.mulf %142, %142 : vector<24x32xf32>
    %cst_93 = arith.constant dense<0.000000e+00> : vector<24xf32>
    %146 = vector.multi_reduction <add>, %145, %cst_93 [1] : vector<24x32xf32> to vector<24xf32>
    %147 = vector.shape_cast %146 : vector<24xf32> to vector<24x1xf32>
    %cst_94 = arith.constant 3.125000e-02 : f32
    %148 = vector.broadcast %cst_94 : f32 to vector<24x1xf32>
    %149 = arith.mulf %144, %148 : vector<24x1xf32>
    %cst_95 = arith.constant 3.125000e-02 : f32
    %150 = vector.broadcast %cst_95 : f32 to vector<24x1xf32>
    %151 = arith.mulf %147, %150 : vector<24x1xf32>
    %152 = arith.mulf %149, %149 : vector<24x1xf32>
    %153 = arith.subf %151, %152 : vector<24x1xf32>
    %cst_96 = arith.constant 0.000000e+00 : f32
    %154 = vector.broadcast %cst_96 : f32 to vector<24x1xf32>
    %155 = arith.maximumf %153, %154 : vector<24x1xf32>
    %cst_97 = arith.constant 9.99999974E-6 : f32
    %156 = vector.broadcast %cst_97 : f32 to vector<24x1xf32>
    %157 = arith.addf %155, %156 : vector<24x1xf32>
    %158 = math.rsqrt %157 : vector<24x1xf32>
    %159 = arith.mulf %158, %139 : vector<24x1xf32>
    %160 = arith.mulf %149, %159 : vector<24x1xf32>
    %161 = arith.subf %140, %160 : vector<24x1xf32>
    %162 = vector.broadcast %159 : vector<24x1xf32> to vector<24x32xf32>
    %163 = arith.mulf %142, %162 : vector<24x32xf32>
    %164 = vector.broadcast %161 : vector<24x1xf32> to vector<24x32xf32>
    %165 = arith.addf %163, %164 : vector<24x32xf32>
    %cst_98 = arith.constant 0.000000e+00 : f32
    %166 = vector.broadcast %cst_98 : f32 to vector<24x32xf32>
    %167 = arith.cmpf ogt, %165, %166 : vector<24x32xf32>
    %cst_99 = arith.constant 0.00999999977 : f32
    %168 = vector.broadcast %cst_99 : f32 to vector<24x32xf32>
    %169 = arith.mulf %168, %165 : vector<24x32xf32>
    %170 = arith.select %167, %165, %169 : vector<24x32xi1>, vector<24x32xf32>
    %171 = vector.extract_strided_slice %170 {offsets = [0, 0], sizes = [24, 16], strides = [1, 1]} : vector<24x32xf32> to vector<24x16xf32>
    %c48 = arith.constant 48 : index
    %c2_100 = arith.constant 2 : index
    %172 = vector.load %arg30[%c48, %c2_100] : memref<72x40xf32, #tpu.memory_space<vmem>>, vector<24x16xf32>
    tpu.vector_store %arg30[%c48, %c2_100], %171 {strides = array<i32>} : memref<72x40xf32, #tpu.memory_space<vmem>>, vector<24x16xf32>,
    %173 = vector.extract_strided_slice %170 {offsets = [0, 16], sizes = [24, 16], strides = [1, 1]} : vector<24x32xf32> to vector<24x16xf32>
    %c48_101 = arith.constant 48 : index
    %c22 = arith.constant 22 : index
    %174 = vector.load %arg30[%c48_101, %c22] : memref<72x40xf32, #tpu.memory_space<vmem>>, vector<24x16xf32>
    tpu.vector_store %arg30[%c48_101, %c22], %173 {strides = array<i32>} : memref<72x40xf32, #tpu.memory_space<vmem>>, vector<24x16xf32>,
    %c0_102 = arith.constant 0 : index
    %c0_103 = arith.constant 0 : index
    %175 = vector.load %arg17[%c0_102, %c0_103] : memref<16x8xbf16, #tpu.memory_space<vmem>>, vector<16x8xbf16>
    %176 = vector.extract_strided_slice %170 {offsets = [0, 0], sizes = [24, 16], strides = [1, 1]} : vector<24x32xf32> to vector<24x16xf32>
    %177 = arith.truncf %176 : vector<24x16xf32> to vector<24x16xbf16>
    %cst_104 = arith.constant dense<0.000000e+00> : vector<24x8xf32>
    %178 = tpu.matmul %177, %175, %cst_104 {dimension_numbers = #tpu.dot_dimension_numbers<[1], [0], [0], [1], [0, 0, 1, 1], [], []>} : vector<24x16xbf16>, vector<16x8xbf16>, vector<24x8xf32> -> vector<24x8xf32>
    %c0_105 = arith.constant 0 : index
    %c7_106 = arith.constant 7 : index
    %179 = vector.load %arg25[%c0_105, %c7_106] : memref<24x44xf32, #tpu.memory_space<vmem>>, vector<24x8xf32>
    tpu.vector_store %arg25[%c0_105, %c7_106], %178 {strides = array<i32>} : memref<24x44xf32, #tpu.memory_space<vmem>>, vector<24x8xf32>,
    %180 = vector.extract_strided_slice %170 {offsets = [0, 16], sizes = [24, 16], strides = [1, 1]} : vector<24x32xf32> to vector<24x16xf32>
    %181 = arith.truncf %180 : vector<24x16xf32> to vector<24x16xbf16>
    %cst_107 = arith.constant dense<0.000000e+00> : vector<24x8xf32>
    %182 = tpu.matmul %181, %175, %cst_107 {dimension_numbers = #tpu.dot_dimension_numbers<[1], [0], [0], [1], [0, 0, 1, 1], [], []>} : vector<24x16xbf16>, vector<16x8xbf16>, vector<24x8xf32> -> vector<24x8xf32>
    %c0_108 = arith.constant 0 : index
    %c29 = arith.constant 29 : index
    %183 = vector.load %arg25[%c0_108, %c29] : memref<24x44xf32, #tpu.memory_space<vmem>>, vector<24x8xf32>
    tpu.vector_store %arg25[%c0_108, %c29], %182 {strides = array<i32>} : memref<24x44xf32, #tpu.memory_space<vmem>>, vector<24x8xf32>,
    %c0_109 = arith.constant 0 : index
    %c0_110 = arith.constant 0 : index
    %184 = vector.load %arg25[%c0_109, %c0_110] : memref<24x44xf32, #tpu.memory_space<vmem>>, vector<24x8xf32>
    %c0_111 = arith.constant 0 : index
    %c22_112 = arith.constant 22 : index
    %185 = vector.load %arg25[%c0_111, %c22_112] : memref<24x44xf32, #tpu.memory_space<vmem>>, vector<24x8xf32>
    %186 = tpu.concatenate %184, %185 in 1 : vector<24x8xf32>, vector<24x8xf32> -> vector<24x16xf32>
    %c0_113 = arith.constant 0 : index
    %c1_114 = arith.constant 1 : index
    %187 = vector.load %arg25[%c0_113, %c1_114] : memref<24x44xf32, #tpu.memory_space<vmem>>, vector<24x8xf32>
    %c0_115 = arith.constant 0 : index
    %c23 = arith.constant 23 : index
    %188 = vector.load %arg25[%c0_115, %c23] : memref<24x44xf32, #tpu.memory_space<vmem>>, vector<24x8xf32>
    %189 = tpu.concatenate %187, %188 in 1 : vector<24x8xf32>, vector<24x8xf32> -> vector<24x16xf32>
    %c0_116 = arith.constant 0 : index
    %c2_117 = arith.constant 2 : index
    %190 = vector.load %arg25[%c0_116, %c2_117] : memref<24x44xf32, #tpu.memory_space<vmem>>, vector<24x8xf32>
    %c0_118 = arith.constant 0 : index
    %c24 = arith.constant 24 : index
    %191 = vector.load %arg25[%c0_118, %c24] : memref<24x44xf32, #tpu.memory_space<vmem>>, vector<24x8xf32>
    %192 = tpu.concatenate %190, %191 in 1 : vector<24x8xf32>, vector<24x8xf32> -> vector<24x16xf32>
    %c0_119 = arith.constant 0 : index
    %c3_120 = arith.constant 3 : index
    %193 = vector.load %arg25[%c0_119, %c3_120] : memref<24x44xf32, #tpu.memory_space<vmem>>, vector<24x8xf32>
    %c0_121 = arith.constant 0 : index
    %c25 = arith.constant 25 : index
    %194 = vector.load %arg25[%c0_121, %c25] : memref<24x44xf32, #tpu.memory_space<vmem>>, vector<24x8xf32>
    %195 = tpu.concatenate %193, %194 in 1 : vector<24x8xf32>, vector<24x8xf32> -> vector<24x16xf32>
    %c0_122 = arith.constant 0 : index
    %c4_123 = arith.constant 4 : index
    %196 = vector.load %arg25[%c0_122, %c4_123] : memref<24x44xf32, #tpu.memory_space<vmem>>, vector<24x8xf32>
    %c0_124 = arith.constant 0 : index
    %c26 = arith.constant 26 : index
    %197 = vector.load %arg25[%c0_124, %c26] : memref<24x44xf32, #tpu.memory_space<vmem>>, vector<24x8xf32>
    %198 = tpu.concatenate %196, %197 in 1 : vector<24x8xf32>, vector<24x8xf32> -> vector<24x16xf32>
    %c0_125 = arith.constant 0 : index
    %c5_126 = arith.constant 5 : index
    %199 = vector.load %arg25[%c0_125, %c5_126] : memref<24x44xf32, #tpu.memory_space<vmem>>, vector<24x8xf32>
    %c0_127 = arith.constant 0 : index
    %c27 = arith.constant 27 : index
    %200 = vector.load %arg25[%c0_127, %c27] : memref<24x44xf32, #tpu.memory_space<vmem>>, vector<24x8xf32>
    %201 = tpu.concatenate %199, %200 in 1 : vector<24x8xf32>, vector<24x8xf32> -> vector<24x16xf32>
    %c0_128 = arith.constant 0 : index
    %c6_129 = arith.constant 6 : index
    %202 = vector.load %arg25[%c0_128, %c6_129] : memref<24x44xf32, #tpu.memory_space<vmem>>, vector<24x8xf32>
    %c0_130 = arith.constant 0 : index
    %c28 = arith.constant 28 : index
    %203 = vector.load %arg25[%c0_130, %c28] : memref<24x44xf32, #tpu.memory_space<vmem>>, vector<24x8xf32>
    %204 = tpu.concatenate %202, %203 in 1 : vector<24x8xf32>, vector<24x8xf32> -> vector<24x16xf32>
    %c0_131 = arith.constant 0 : index
    %c7_132 = arith.constant 7 : index
    %205 = vector.load %arg25[%c0_131, %c7_132] : memref<24x44xf32, #tpu.memory_space<vmem>>, vector<24x8xf32>
    %c0_133 = arith.constant 0 : index
    %c29_134 = arith.constant 29 : index
    %206 = vector.load %arg25[%c0_133, %c29_134] : memref<24x44xf32, #tpu.memory_space<vmem>>, vector<24x8xf32>
    %207 = tpu.concatenate %205, %206 in 1 : vector<24x8xf32>, vector<24x8xf32> -> vector<24x16xf32>
    %c0_135 = arith.constant 0 : index
    %c8_136 = arith.constant 8 : index
    %208 = vector.load %arg25[%c0_135, %c8_136] : memref<24x44xf32, #tpu.memory_space<vmem>>, vector<24x8xf32>
    %c0_137 = arith.constant 0 : index
    %c30_138 = arith.constant 30 : index
    %209 = vector.load %arg25[%c0_137, %c30_138] : memref<24x44xf32, #tpu.memory_space<vmem>>, vector<24x8xf32>
    %210 = tpu.concatenate %208, %209 in 1 : vector<24x8xf32>, vector<24x8xf32> -> vector<24x16xf32>
    %c0_139 = arith.constant 0 : index
    %c9_140 = arith.constant 9 : index
    %211 = vector.load %arg25[%c0_139, %c9_140] : memref<24x44xf32, #tpu.memory_space<vmem>>, vector<24x8xf32>
    %c0_141 = arith.constant 0 : index
    %c31_142 = arith.constant 31 : index
    %212 = vector.load %arg25[%c0_141, %c31_142] : memref<24x44xf32, #tpu.memory_space<vmem>>, vector<24x8xf32>
    %213 = tpu.concatenate %211, %212 in 1 : vector<24x8xf32>, vector<24x8xf32> -> vector<24x16xf32>
    %c0_143 = arith.constant 0 : index
    %c10_144 = arith.constant 10 : index
    %214 = vector.load %arg25[%c0_143, %c10_144] : memref<24x44xf32, #tpu.memory_space<vmem>>, vector<24x8xf32>
    %c0_145 = arith.constant 0 : index
    %c32_146 = arith.constant 32 : index
    %215 = vector.load %arg25[%c0_145, %c32_146] : memref<24x44xf32, #tpu.memory_space<vmem>>, vector<24x8xf32>
    %216 = tpu.concatenate %214, %215 in 1 : vector<24x8xf32>, vector<24x8xf32> -> vector<24x16xf32>
    %c0_147 = arith.constant 0 : index
    %c11_148 = arith.constant 11 : index
    %217 = vector.load %arg25[%c0_147, %c11_148] : memref<24x44xf32, #tpu.memory_space<vmem>>, vector<24x8xf32>
    %c0_149 = arith.constant 0 : index
    %c33_150 = arith.constant 33 : index
    %218 = vector.load %arg25[%c0_149, %c33_150] : memref<24x44xf32, #tpu.memory_space<vmem>>, vector<24x8xf32>
    %219 = tpu.concatenate %217, %218 in 1 : vector<24x8xf32>, vector<24x8xf32> -> vector<24x16xf32>
    %c0_151 = arith.constant 0 : index
    %c12_152 = arith.constant 12 : index
    %220 = vector.load %arg25[%c0_151, %c12_152] : memref<24x44xf32, #tpu.memory_space<vmem>>, vector<24x8xf32>
    %c0_153 = arith.constant 0 : index
    %c34_154 = arith.constant 34 : index
    %221 = vector.load %arg25[%c0_153, %c34_154] : memref<24x44xf32, #tpu.memory_space<vmem>>, vector<24x8xf32>
    %222 = tpu.concatenate %220, %221 in 1 : vector<24x8xf32>, vector<24x8xf32> -> vector<24x16xf32>
    %c0_155 = arith.constant 0 : index
    %c13_156 = arith.constant 13 : index
    %223 = vector.load %arg25[%c0_155, %c13_156] : memref<24x44xf32, #tpu.memory_space<vmem>>, vector<24x8xf32>
    %c0_157 = arith.constant 0 : index
    %c35_158 = arith.constant 35 : index
    %224 = vector.load %arg25[%c0_157, %c35_158] : memref<24x44xf32, #tpu.memory_space<vmem>>, vector<24x8xf32>
    %225 = tpu.concatenate %223, %224 in 1 : vector<24x8xf32>, vector<24x8xf32> -> vector<24x16xf32>
    %c0_159 = arith.constant 0 : index
    %c14_160 = arith.constant 14 : index
    %226 = vector.load %arg25[%c0_159, %c14_160] : memref<24x44xf32, #tpu.memory_space<vmem>>, vector<24x8xf32>
    %c0_161 = arith.constant 0 : index
    %c36_162 = arith.constant 36 : index
    %227 = vector.load %arg25[%c0_161, %c36_162] : memref<24x44xf32, #tpu.memory_space<vmem>>, vector<24x8xf32>
    %228 = tpu.concatenate %226, %227 in 1 : vector<24x8xf32>, vector<24x8xf32> -> vector<24x16xf32>
    %229 = tpu.concatenate %186, %189, %192, %195, %198, %201, %204, %207, %210, %213, %216, %219, %222, %225, %228 in 0 : vector<24x16xf32>, vector<24x16xf32>, vector<24x16xf32>, vector<24x16xf32>, vector<24x16xf32>, vector<24x16xf32>, vector<24x16xf32>, vector<24x16xf32>, vector<24x16xf32>, vector<24x16xf32>, vector<24x16xf32>, vector<24x16xf32>, vector<24x16xf32>, vector<24x16xf32>, vector<24x16xf32> -> vector<360x16xf32>
    %c0_163 = arith.constant 0 : index
    %c0_164 = arith.constant 0 : index
    %230 = vector.load %arg3[%c0_163, %c0_164] : memref<48x360xbf16, #tpu.memory_space<vmem>>, vector<48x360xbf16>
    %231 = arith.truncf %229 : vector<360x16xf32> to vector<360x16xbf16>
    %cst_165 = arith.constant dense<0.000000e+00> : vector<48x16xf32>
    %232 = tpu.matmul %230, %231, %cst_165 {dimension_numbers = #tpu.dot_dimension_numbers<[1], [0], [0], [1], [0, 0, 1, 1], [], []>} : vector<48x360xbf16>, vector<360x16xbf16>, vector<48x16xf32> -> vector<48x16xf32>
    %c0_166 = arith.constant 0 : index
    %c0_167 = arith.constant 0 : index
    %233 = vector.load %arg4[%c0_166, %c0_167] : memref<48x3xf32, #tpu.memory_space<vmem>>, vector<48x1xf32>
    %c0_168 = arith.constant 0 : index
    %c1_169 = arith.constant 1 : index
    %234 = vector.load %arg4[%c0_168, %c1_169] : memref<48x3xf32, #tpu.memory_space<vmem>>, vector<48x1xf32>
    %c0_170 = arith.constant 0 : index
    %c2_171 = arith.constant 2 : index
    %235 = vector.load %arg4[%c0_170, %c2_171] : memref<48x3xf32, #tpu.memory_space<vmem>>, vector<48x1xf32>
    %236 = vector.broadcast %233 : vector<48x1xf32> to vector<48x16xf32>
    %237 = arith.addf %232, %236 : vector<48x16xf32>
    %cst_172 = arith.constant dense<0.000000e+00> : vector<48xf32>
    %238 = vector.multi_reduction <add>, %237, %cst_172 [1] : vector<48x16xf32> to vector<48xf32>
    %239 = vector.shape_cast %238 : vector<48xf32> to vector<48x1xf32>
    %240 = arith.mulf %237, %237 : vector<48x16xf32>
    %cst_173 = arith.constant dense<0.000000e+00> : vector<48xf32>
    %241 = vector.multi_reduction <add>, %240, %cst_173 [1] : vector<48x16xf32> to vector<48xf32>
    %242 = vector.shape_cast %241 : vector<48xf32> to vector<48x1xf32>
    %cst_174 = arith.constant 6.250000e-02 : f32
    %243 = vector.broadcast %cst_174 : f32 to vector<48x1xf32>
    %244 = arith.mulf %239, %243 : vector<48x1xf32>
    %cst_175 = arith.constant 6.250000e-02 : f32
    %245 = vector.broadcast %cst_175 : f32 to vector<48x1xf32>
    %246 = arith.mulf %242, %245 : vector<48x1xf32>
    %247 = arith.mulf %244, %244 : vector<48x1xf32>
    %248 = arith.subf %246, %247 : vector<48x1xf32>
    %cst_176 = arith.constant 0.000000e+00 : f32
    %249 = vector.broadcast %cst_176 : f32 to vector<48x1xf32>
    %250 = arith.maximumf %248, %249 : vector<48x1xf32>
    %cst_177 = arith.constant 9.99999974E-6 : f32
    %251 = vector.broadcast %cst_177 : f32 to vector<48x1xf32>
    %252 = arith.addf %250, %251 : vector<48x1xf32>
    %253 = math.rsqrt %252 : vector<48x1xf32>
    %254 = arith.mulf %253, %234 : vector<48x1xf32>
    %255 = arith.mulf %244, %254 : vector<48x1xf32>
    %256 = arith.subf %235, %255 : vector<48x1xf32>
    %257 = vector.broadcast %254 : vector<48x1xf32> to vector<48x16xf32>
    %258 = arith.mulf %237, %257 : vector<48x16xf32>
    %259 = vector.broadcast %256 : vector<48x1xf32> to vector<48x16xf32>
    %260 = arith.addf %258, %259 : vector<48x16xf32>
    %cst_178 = arith.constant 0.000000e+00 : f32
    %261 = vector.broadcast %cst_178 : f32 to vector<48x16xf32>
    %262 = arith.cmpf ogt, %260, %261 : vector<48x16xf32>
    %cst_179 = arith.constant 0.00999999977 : f32
    %263 = vector.broadcast %cst_179 : f32 to vector<48x16xf32>
    %264 = arith.mulf %263, %260 : vector<48x16xf32>
    %265 = arith.select %262, %260, %264 : vector<48x16xi1>, vector<48x16xf32>
    %266 = vector.extract_strided_slice %265 {offsets = [0, 0], sizes = [48, 8], strides = [1, 1]} : vector<48x16xf32> to vector<48x8xf32>
    %c64 = arith.constant 64 : index
    %c2_180 = arith.constant 2 : index
    %267 = vector.load %arg29[%c64, %c2_180] : memref<112x24xf32, #tpu.memory_space<vmem>>, vector<48x8xf32>
    tpu.vector_store %arg29[%c64, %c2_180], %266 {strides = array<i32>} : memref<112x24xf32, #tpu.memory_space<vmem>>, vector<48x8xf32>,
    %268 = vector.extract_strided_slice %265 {offsets = [0, 8], sizes = [48, 8], strides = [1, 1]} : vector<48x16xf32> to vector<48x8xf32>
    %c64_181 = arith.constant 64 : index
    %c14_182 = arith.constant 14 : index
    %269 = vector.load %arg29[%c64_181, %c14_182] : memref<112x24xf32, #tpu.memory_space<vmem>>, vector<48x8xf32>
    tpu.vector_store %arg29[%c64_181, %c14_182], %268 {strides = array<i32>} : memref<112x24xf32, #tpu.memory_space<vmem>>, vector<48x8xf32>,
    %c0_183 = arith.constant 0 : index
    %c0_184 = arith.constant 0 : index
    %270 = vector.load %arg18[%c0_183, %c0_184] : memref<8x4xbf16, #tpu.memory_space<vmem>>, vector<8x4xbf16>
    %271 = vector.extract_strided_slice %265 {offsets = [0, 0], sizes = [48, 8], strides = [1, 1]} : vector<48x16xf32> to vector<48x8xf32>
    %272 = arith.truncf %271 : vector<48x8xf32> to vector<48x8xbf16>
    %cst_185 = arith.constant dense<0.000000e+00> : vector<48x4xf32>
    %273 = tpu.matmul %272, %270, %cst_185 {dimension_numbers = #tpu.dot_dimension_numbers<[1], [0], [0], [1], [0, 0, 1, 1], [], []>} : vector<48x8xbf16>, vector<8x4xbf16>, vector<48x4xf32> -> vector<48x4xf32>
    %c0_186 = arith.constant 0 : index
    %c7_187 = arith.constant 7 : index
    %274 = vector.load %arg26[%c0_186, %c7_187] : memref<48x36xf32, #tpu.memory_space<vmem>>, vector<48x4xf32>
    tpu.vector_store %arg26[%c0_186, %c7_187], %273 {strides = array<i32>} : memref<48x36xf32, #tpu.memory_space<vmem>>, vector<48x4xf32>,
    %275 = vector.extract_strided_slice %265 {offsets = [0, 8], sizes = [48, 8], strides = [1, 1]} : vector<48x16xf32> to vector<48x8xf32>
    %276 = arith.truncf %275 : vector<48x8xf32> to vector<48x8xbf16>
    %cst_188 = arith.constant dense<0.000000e+00> : vector<48x4xf32>
    %277 = tpu.matmul %276, %270, %cst_188 {dimension_numbers = #tpu.dot_dimension_numbers<[1], [0], [0], [1], [0, 0, 1, 1], [], []>} : vector<48x8xbf16>, vector<8x4xbf16>, vector<48x4xf32> -> vector<48x4xf32>
    %c0_189 = arith.constant 0 : index
    %c25_190 = arith.constant 25 : index
    %278 = vector.load %arg26[%c0_189, %c25_190] : memref<48x36xf32, #tpu.memory_space<vmem>>, vector<48x4xf32>
    tpu.vector_store %arg26[%c0_189, %c25_190], %277 {strides = array<i32>} : memref<48x36xf32, #tpu.memory_space<vmem>>, vector<48x4xf32>,
    %c0_191 = arith.constant 0 : index
    %c0_192 = arith.constant 0 : index
    %279 = vector.load %arg26[%c0_191, %c0_192] : memref<48x36xf32, #tpu.memory_space<vmem>>, vector<48x4xf32>
    %c0_193 = arith.constant 0 : index
    %c18 = arith.constant 18 : index
    %280 = vector.load %arg26[%c0_193, %c18] : memref<48x36xf32, #tpu.memory_space<vmem>>, vector<48x4xf32>
    %281 = tpu.concatenate %279, %280 in 1 : vector<48x4xf32>, vector<48x4xf32> -> vector<48x8xf32>
    %c0_194 = arith.constant 0 : index
    %c1_195 = arith.constant 1 : index
    %282 = vector.load %arg26[%c0_194, %c1_195] : memref<48x36xf32, #tpu.memory_space<vmem>>, vector<48x4xf32>
    %c0_196 = arith.constant 0 : index
    %c19 = arith.constant 19 : index
    %283 = vector.load %arg26[%c0_196, %c19] : memref<48x36xf32, #tpu.memory_space<vmem>>, vector<48x4xf32>
    %284 = tpu.concatenate %282, %283 in 1 : vector<48x4xf32>, vector<48x4xf32> -> vector<48x8xf32>
    %c0_197 = arith.constant 0 : index
    %c2_198 = arith.constant 2 : index
    %285 = vector.load %arg26[%c0_197, %c2_198] : memref<48x36xf32, #tpu.memory_space<vmem>>, vector<48x4xf32>
    %c0_199 = arith.constant 0 : index
    %c20 = arith.constant 20 : index
    %286 = vector.load %arg26[%c0_199, %c20] : memref<48x36xf32, #tpu.memory_space<vmem>>, vector<48x4xf32>
    %287 = tpu.concatenate %285, %286 in 1 : vector<48x4xf32>, vector<48x4xf32> -> vector<48x8xf32>
    %c0_200 = arith.constant 0 : index
    %c3_201 = arith.constant 3 : index
    %288 = vector.load %arg26[%c0_200, %c3_201] : memref<48x36xf32, #tpu.memory_space<vmem>>, vector<48x4xf32>
    %c0_202 = arith.constant 0 : index
    %c21 = arith.constant 21 : index
    %289 = vector.load %arg26[%c0_202, %c21] : memref<48x36xf32, #tpu.memory_space<vmem>>, vector<48x4xf32>
    %290 = tpu.concatenate %288, %289 in 1 : vector<48x4xf32>, vector<48x4xf32> -> vector<48x8xf32>
    %c0_203 = arith.constant 0 : index
    %c4_204 = arith.constant 4 : index
    %291 = vector.load %arg26[%c0_203, %c4_204] : memref<48x36xf32, #tpu.memory_space<vmem>>, vector<48x4xf32>
    %c0_205 = arith.constant 0 : index
    %c22_206 = arith.constant 22 : index
    %292 = vector.load %arg26[%c0_205, %c22_206] : memref<48x36xf32, #tpu.memory_space<vmem>>, vector<48x4xf32>
    %293 = tpu.concatenate %291, %292 in 1 : vector<48x4xf32>, vector<48x4xf32> -> vector<48x8xf32>
    %c0_207 = arith.constant 0 : index
    %c5_208 = arith.constant 5 : index
    %294 = vector.load %arg26[%c0_207, %c5_208] : memref<48x36xf32, #tpu.memory_space<vmem>>, vector<48x4xf32>
    %c0_209 = arith.constant 0 : index
    %c23_210 = arith.constant 23 : index
    %295 = vector.load %arg26[%c0_209, %c23_210] : memref<48x36xf32, #tpu.memory_space<vmem>>, vector<48x4xf32>
    %296 = tpu.concatenate %294, %295 in 1 : vector<48x4xf32>, vector<48x4xf32> -> vector<48x8xf32>
    %c0_211 = arith.constant 0 : index
    %c6_212 = arith.constant 6 : index
    %297 = vector.load %arg26[%c0_211, %c6_212] : memref<48x36xf32, #tpu.memory_space<vmem>>, vector<48x4xf32>
    %c0_213 = arith.constant 0 : index
    %c24_214 = arith.constant 24 : index
    %298 = vector.load %arg26[%c0_213, %c24_214] : memref<48x36xf32, #tpu.memory_space<vmem>>, vector<48x4xf32>
    %299 = tpu.concatenate %297, %298 in 1 : vector<48x4xf32>, vector<48x4xf32> -> vector<48x8xf32>
    %c0_215 = arith.constant 0 : index
    %c7_216 = arith.constant 7 : index
    %300 = vector.load %arg26[%c0_215, %c7_216] : memref<48x36xf32, #tpu.memory_space<vmem>>, vector<48x4xf32>
    %c0_217 = arith.constant 0 : index
    %c25_218 = arith.constant 25 : index
    %301 = vector.load %arg26[%c0_217, %c25_218] : memref<48x36xf32, #tpu.memory_space<vmem>>, vector<48x4xf32>
    %302 = tpu.concatenate %300, %301 in 1 : vector<48x4xf32>, vector<48x4xf32> -> vector<48x8xf32>
    %c0_219 = arith.constant 0 : index
    %c8_220 = arith.constant 8 : index
    %303 = vector.load %arg26[%c0_219, %c8_220] : memref<48x36xf32, #tpu.memory_space<vmem>>, vector<48x4xf32>
    %c0_221 = arith.constant 0 : index
    %c26_222 = arith.constant 26 : index
    %304 = vector.load %arg26[%c0_221, %c26_222] : memref<48x36xf32, #tpu.memory_space<vmem>>, vector<48x4xf32>
    %305 = tpu.concatenate %303, %304 in 1 : vector<48x4xf32>, vector<48x4xf32> -> vector<48x8xf32>
    %c0_223 = arith.constant 0 : index
    %c9_224 = arith.constant 9 : index
    %306 = vector.load %arg26[%c0_223, %c9_224] : memref<48x36xf32, #tpu.memory_space<vmem>>, vector<48x4xf32>
    %c0_225 = arith.constant 0 : index
    %c27_226 = arith.constant 27 : index
    %307 = vector.load %arg26[%c0_225, %c27_226] : memref<48x36xf32, #tpu.memory_space<vmem>>, vector<48x4xf32>
    %308 = tpu.concatenate %306, %307 in 1 : vector<48x4xf32>, vector<48x4xf32> -> vector<48x8xf32>
    %c0_227 = arith.constant 0 : index
    %c10_228 = arith.constant 10 : index
    %309 = vector.load %arg26[%c0_227, %c10_228] : memref<48x36xf32, #tpu.memory_space<vmem>>, vector<48x4xf32>
    %c0_229 = arith.constant 0 : index
    %c28_230 = arith.constant 28 : index
    %310 = vector.load %arg26[%c0_229, %c28_230] : memref<48x36xf32, #tpu.memory_space<vmem>>, vector<48x4xf32>
    %311 = tpu.concatenate %309, %310 in 1 : vector<48x4xf32>, vector<48x4xf32> -> vector<48x8xf32>
    %c0_231 = arith.constant 0 : index
    %c11_232 = arith.constant 11 : index
    %312 = vector.load %arg26[%c0_231, %c11_232] : memref<48x36xf32, #tpu.memory_space<vmem>>, vector<48x4xf32>
    %c0_233 = arith.constant 0 : index
    %c29_234 = arith.constant 29 : index
    %313 = vector.load %arg26[%c0_233, %c29_234] : memref<48x36xf32, #tpu.memory_space<vmem>>, vector<48x4xf32>
    %314 = tpu.concatenate %312, %313 in 1 : vector<48x4xf32>, vector<48x4xf32> -> vector<48x8xf32>
    %c0_235 = arith.constant 0 : index
    %c12_236 = arith.constant 12 : index
    %315 = vector.load %arg26[%c0_235, %c12_236] : memref<48x36xf32, #tpu.memory_space<vmem>>, vector<48x4xf32>
    %c0_237 = arith.constant 0 : index
    %c30_238 = arith.constant 30 : index
    %316 = vector.load %arg26[%c0_237, %c30_238] : memref<48x36xf32, #tpu.memory_space<vmem>>, vector<48x4xf32>
    %317 = tpu.concatenate %315, %316 in 1 : vector<48x4xf32>, vector<48x4xf32> -> vector<48x8xf32>
    %c0_239 = arith.constant 0 : index
    %c13_240 = arith.constant 13 : index
    %318 = vector.load %arg26[%c0_239, %c13_240] : memref<48x36xf32, #tpu.memory_space<vmem>>, vector<48x4xf32>
    %c0_241 = arith.constant 0 : index
    %c31_242 = arith.constant 31 : index
    %319 = vector.load %arg26[%c0_241, %c31_242] : memref<48x36xf32, #tpu.memory_space<vmem>>, vector<48x4xf32>
    %320 = tpu.concatenate %318, %319 in 1 : vector<48x4xf32>, vector<48x4xf32> -> vector<48x8xf32>
    %c0_243 = arith.constant 0 : index
    %c14_244 = arith.constant 14 : index
    %321 = vector.load %arg26[%c0_243, %c14_244] : memref<48x36xf32, #tpu.memory_space<vmem>>, vector<48x4xf32>
    %c0_245 = arith.constant 0 : index
    %c32_246 = arith.constant 32 : index
    %322 = vector.load %arg26[%c0_245, %c32_246] : memref<48x36xf32, #tpu.memory_space<vmem>>, vector<48x4xf32>
    %323 = tpu.concatenate %321, %322 in 1 : vector<48x4xf32>, vector<48x4xf32> -> vector<48x8xf32>
    %324 = tpu.concatenate %281, %284, %287, %290, %293, %296, %299, %302, %305, %308, %311, %314, %317, %320, %323 in 0 : vector<48x8xf32>, vector<48x8xf32>, vector<48x8xf32>, vector<48x8xf32>, vector<48x8xf32>, vector<48x8xf32>, vector<48x8xf32>, vector<48x8xf32>, vector<48x8xf32>, vector<48x8xf32>, vector<48x8xf32>, vector<48x8xf32>, vector<48x8xf32>, vector<48x8xf32>, vector<48x8xf32> -> vector<720x8xf32>
    %c0_247 = arith.constant 0 : index
    %c0_248 = arith.constant 0 : index
    %325 = vector.load %arg5[%c0_247, %c0_248] : memref<64x720xbf16, #tpu.memory_space<vmem>>, vector<64x720xbf16>
    %326 = arith.truncf %324 : vector<720x8xf32> to vector<720x8xbf16>
    %cst_249 = arith.constant dense<0.000000e+00> : vector<64x8xf32>
    %327 = tpu.matmul %325, %326, %cst_249 {dimension_numbers = #tpu.dot_dimension_numbers<[1], [0], [0], [1], [0, 0, 1, 1], [], []>} : vector<64x720xbf16>, vector<720x8xbf16>, vector<64x8xf32> -> vector<64x8xf32>
    %c0_250 = arith.constant 0 : index
    %c0_251 = arith.constant 0 : index
    %328 = vector.load %arg6[%c0_250, %c0_251] : memref<64x3xf32, #tpu.memory_space<vmem>>, vector<64x1xf32>
    %c0_252 = arith.constant 0 : index
    %c1_253 = arith.constant 1 : index
    %329 = vector.load %arg6[%c0_252, %c1_253] : memref<64x3xf32, #tpu.memory_space<vmem>>, vector<64x1xf32>
    %c0_254 = arith.constant 0 : index
    %c2_255 = arith.constant 2 : index
    %330 = vector.load %arg6[%c0_254, %c2_255] : memref<64x3xf32, #tpu.memory_space<vmem>>, vector<64x1xf32>
    %331 = vector.broadcast %328 : vector<64x1xf32> to vector<64x8xf32>
    %332 = arith.addf %327, %331 : vector<64x8xf32>
    %cst_256 = arith.constant dense<0.000000e+00> : vector<64xf32>
    %333 = vector.multi_reduction <add>, %332, %cst_256 [1] : vector<64x8xf32> to vector<64xf32>
    %334 = vector.shape_cast %333 : vector<64xf32> to vector<64x1xf32>
    %335 = arith.mulf %332, %332 : vector<64x8xf32>
    %cst_257 = arith.constant dense<0.000000e+00> : vector<64xf32>
    %336 = vector.multi_reduction <add>, %335, %cst_257 [1] : vector<64x8xf32> to vector<64xf32>
    %337 = vector.shape_cast %336 : vector<64xf32> to vector<64x1xf32>
    %cst_258 = arith.constant 1.250000e-01 : f32
    %338 = vector.broadcast %cst_258 : f32 to vector<64x1xf32>
    %339 = arith.mulf %334, %338 : vector<64x1xf32>
    %cst_259 = arith.constant 1.250000e-01 : f32
    %340 = vector.broadcast %cst_259 : f32 to vector<64x1xf32>
    %341 = arith.mulf %337, %340 : vector<64x1xf32>
    %342 = arith.mulf %339, %339 : vector<64x1xf32>
    %343 = arith.subf %341, %342 : vector<64x1xf32>
    %cst_260 = arith.constant 0.000000e+00 : f32
    %344 = vector.broadcast %cst_260 : f32 to vector<64x1xf32>
    %345 = arith.maximumf %343, %344 : vector<64x1xf32>
    %cst_261 = arith.constant 9.99999974E-6 : f32
    %346 = vector.broadcast %cst_261 : f32 to vector<64x1xf32>
    %347 = arith.addf %345, %346 : vector<64x1xf32>
    %348 = math.rsqrt %347 : vector<64x1xf32>
    %349 = arith.mulf %348, %329 : vector<64x1xf32>
    %350 = arith.mulf %339, %349 : vector<64x1xf32>
    %351 = arith.subf %330, %350 : vector<64x1xf32>
    %352 = vector.broadcast %349 : vector<64x1xf32> to vector<64x8xf32>
    %353 = arith.mulf %332, %352 : vector<64x8xf32>
    %354 = vector.broadcast %351 : vector<64x1xf32> to vector<64x8xf32>
    %355 = arith.addf %353, %354 : vector<64x8xf32>
    %cst_262 = arith.constant 0.000000e+00 : f32
    %356 = vector.broadcast %cst_262 : f32 to vector<64x8xf32>
    %357 = arith.cmpf ogt, %355, %356 : vector<64x8xf32>
    %cst_263 = arith.constant 0.00999999977 : f32
    %358 = vector.broadcast %cst_263 : f32 to vector<64x8xf32>
    %359 = arith.mulf %358, %355 : vector<64x8xf32>
    %360 = arith.select %357, %355, %359 : vector<64x8xi1>, vector<64x8xf32>
    %361 = vector.extract_strided_slice %360 {offsets = [0, 0], sizes = [64, 4], strides = [1, 1]} : vector<64x8xf32> to vector<64x4xf32>
    %c64_264 = arith.constant 64 : index
    %c2_265 = arith.constant 2 : index
    %362 = vector.load %arg28[%c64_264, %c2_265] : memref<128x16xf32, #tpu.memory_space<vmem>>, vector<64x4xf32>
    tpu.vector_store %arg28[%c64_264, %c2_265], %361 {strides = array<i32>} : memref<128x16xf32, #tpu.memory_space<vmem>>, vector<64x4xf32>,
    %363 = vector.extract_strided_slice %360 {offsets = [0, 4], sizes = [64, 4], strides = [1, 1]} : vector<64x8xf32> to vector<64x4xf32>
    %c64_266 = arith.constant 64 : index
    %c10_267 = arith.constant 10 : index
    %364 = vector.load %arg28[%c64_266, %c10_267] : memref<128x16xf32, #tpu.memory_space<vmem>>, vector<64x4xf32>
    tpu.vector_store %arg28[%c64_266, %c10_267], %363 {strides = array<i32>} : memref<128x16xf32, #tpu.memory_space<vmem>>, vector<64x4xf32>,
    %c0_268 = arith.constant 0 : index
    %c0_269 = arith.constant 0 : index
    %365 = vector.load %arg19[%c0_268, %c0_269] : memref<4x2xbf16, #tpu.memory_space<vmem>>, vector<4x2xbf16>
    %366 = vector.extract_strided_slice %360 {offsets = [0, 0], sizes = [64, 4], strides = [1, 1]} : vector<64x8xf32> to vector<64x4xf32>
    %367 = arith.truncf %366 : vector<64x4xf32> to vector<64x4xbf16>
    %cst_270 = arith.constant dense<0.000000e+00> : vector<64x2xf32>
    %368 = tpu.matmul %367, %365, %cst_270 {dimension_numbers = #tpu.dot_dimension_numbers<[1], [0], [0], [1], [0, 0, 1, 1], [], []>} : vector<64x4xbf16>, vector<4x2xbf16>, vector<64x2xf32> -> vector<64x2xf32>
    %c0_271 = arith.constant 0 : index
    %c7_272 = arith.constant 7 : index
    %369 = vector.load %arg27[%c0_271, %c7_272] : memref<64x32xf32, #tpu.memory_space<vmem>>, vector<64x2xf32>
    tpu.vector_store %arg27[%c0_271, %c7_272], %368 {strides = array<i32>} : memref<64x32xf32, #tpu.memory_space<vmem>>, vector<64x2xf32>,
    %370 = vector.extract_strided_slice %360 {offsets = [0, 4], sizes = [64, 4], strides = [1, 1]} : vector<64x8xf32> to vector<64x4xf32>
    %371 = arith.truncf %370 : vector<64x4xf32> to vector<64x4xbf16>
    %cst_273 = arith.constant dense<0.000000e+00> : vector<64x2xf32>
    %372 = tpu.matmul %371, %365, %cst_273 {dimension_numbers = #tpu.dot_dimension_numbers<[1], [0], [0], [1], [0, 0, 1, 1], [], []>} : vector<64x4xbf16>, vector<4x2xbf16>, vector<64x2xf32> -> vector<64x2xf32>
    %c0_274 = arith.constant 0 : index
    %c23_275 = arith.constant 23 : index
    %373 = vector.load %arg27[%c0_274, %c23_275] : memref<64x32xf32, #tpu.memory_space<vmem>>, vector<64x2xf32>
    tpu.vector_store %arg27[%c0_274, %c23_275], %372 {strides = array<i32>} : memref<64x32xf32, #tpu.memory_space<vmem>>, vector<64x2xf32>,
    %c0_276 = arith.constant 0 : index
    %c0_277 = arith.constant 0 : index
    %374 = vector.load %arg27[%c0_276, %c0_277] : memref<64x32xf32, #tpu.memory_space<vmem>>, vector<64x2xf32>
    %c0_278 = arith.constant 0 : index
    %c16 = arith.constant 16 : index
    %375 = vector.load %arg27[%c0_278, %c16] : memref<64x32xf32, #tpu.memory_space<vmem>>, vector<64x2xf32>
    %376 = tpu.concatenate %374, %375 in 1 : vector<64x2xf32>, vector<64x2xf32> -> vector<64x4xf32>
    %c0_279 = arith.constant 0 : index
    %c1_280 = arith.constant 1 : index
    %377 = vector.load %arg27[%c0_279, %c1_280] : memref<64x32xf32, #tpu.memory_space<vmem>>, vector<64x2xf32>
    %c0_281 = arith.constant 0 : index
    %c17 = arith.constant 17 : index
    %378 = vector.load %arg27[%c0_281, %c17] : memref<64x32xf32, #tpu.memory_space<vmem>>, vector<64x2xf32>
    %379 = tpu.concatenate %377, %378 in 1 : vector<64x2xf32>, vector<64x2xf32> -> vector<64x4xf32>
    %c0_282 = arith.constant 0 : index
    %c2_283 = arith.constant 2 : index
    %380 = vector.load %arg27[%c0_282, %c2_283] : memref<64x32xf32, #tpu.memory_space<vmem>>, vector<64x2xf32>
    %c0_284 = arith.constant 0 : index
    %c18_285 = arith.constant 18 : index
    %381 = vector.load %arg27[%c0_284, %c18_285] : memref<64x32xf32, #tpu.memory_space<vmem>>, vector<64x2xf32>
    %382 = tpu.concatenate %380, %381 in 1 : vector<64x2xf32>, vector<64x2xf32> -> vector<64x4xf32>
    %c0_286 = arith.constant 0 : index
    %c3_287 = arith.constant 3 : index
    %383 = vector.load %arg27[%c0_286, %c3_287] : memref<64x32xf32, #tpu.memory_space<vmem>>, vector<64x2xf32>
    %c0_288 = arith.constant 0 : index
    %c19_289 = arith.constant 19 : index
    %384 = vector.load %arg27[%c0_288, %c19_289] : memref<64x32xf32, #tpu.memory_space<vmem>>, vector<64x2xf32>
    %385 = tpu.concatenate %383, %384 in 1 : vector<64x2xf32>, vector<64x2xf32> -> vector<64x4xf32>
    %c0_290 = arith.constant 0 : index
    %c4_291 = arith.constant 4 : index
    %386 = vector.load %arg27[%c0_290, %c4_291] : memref<64x32xf32, #tpu.memory_space<vmem>>, vector<64x2xf32>
    %c0_292 = arith.constant 0 : index
    %c20_293 = arith.constant 20 : index
    %387 = vector.load %arg27[%c0_292, %c20_293] : memref<64x32xf32, #tpu.memory_space<vmem>>, vector<64x2xf32>
    %388 = tpu.concatenate %386, %387 in 1 : vector<64x2xf32>, vector<64x2xf32> -> vector<64x4xf32>
    %c0_294 = arith.constant 0 : index
    %c5_295 = arith.constant 5 : index
    %389 = vector.load %arg27[%c0_294, %c5_295] : memref<64x32xf32, #tpu.memory_space<vmem>>, vector<64x2xf32>
    %c0_296 = arith.constant 0 : index
    %c21_297 = arith.constant 21 : index
    %390 = vector.load %arg27[%c0_296, %c21_297] : memref<64x32xf32, #tpu.memory_space<vmem>>, vector<64x2xf32>
    %391 = tpu.concatenate %389, %390 in 1 : vector<64x2xf32>, vector<64x2xf32> -> vector<64x4xf32>
    %c0_298 = arith.constant 0 : index
    %c6_299 = arith.constant 6 : index
    %392 = vector.load %arg27[%c0_298, %c6_299] : memref<64x32xf32, #tpu.memory_space<vmem>>, vector<64x2xf32>
    %c0_300 = arith.constant 0 : index
    %c22_301 = arith.constant 22 : index
    %393 = vector.load %arg27[%c0_300, %c22_301] : memref<64x32xf32, #tpu.memory_space<vmem>>, vector<64x2xf32>
    %394 = tpu.concatenate %392, %393 in 1 : vector<64x2xf32>, vector<64x2xf32> -> vector<64x4xf32>
    %c0_302 = arith.constant 0 : index
    %c7_303 = arith.constant 7 : index
    %395 = vector.load %arg27[%c0_302, %c7_303] : memref<64x32xf32, #tpu.memory_space<vmem>>, vector<64x2xf32>
    %c0_304 = arith.constant 0 : index
    %c23_305 = arith.constant 23 : index
    %396 = vector.load %arg27[%c0_304, %c23_305] : memref<64x32xf32, #tpu.memory_space<vmem>>, vector<64x2xf32>
    %397 = tpu.concatenate %395, %396 in 1 : vector<64x2xf32>, vector<64x2xf32> -> vector<64x4xf32>
    %c0_306 = arith.constant 0 : index
    %c8_307 = arith.constant 8 : index
    %398 = vector.load %arg27[%c0_306, %c8_307] : memref<64x32xf32, #tpu.memory_space<vmem>>, vector<64x2xf32>
    %c0_308 = arith.constant 0 : index
    %c24_309 = arith.constant 24 : index
    %399 = vector.load %arg27[%c0_308, %c24_309] : memref<64x32xf32, #tpu.memory_space<vmem>>, vector<64x2xf32>
    %400 = tpu.concatenate %398, %399 in 1 : vector<64x2xf32>, vector<64x2xf32> -> vector<64x4xf32>
    %c0_310 = arith.constant 0 : index
    %c9_311 = arith.constant 9 : index
    %401 = vector.load %arg27[%c0_310, %c9_311] : memref<64x32xf32, #tpu.memory_space<vmem>>, vector<64x2xf32>
    %c0_312 = arith.constant 0 : index
    %c25_313 = arith.constant 25 : index
    %402 = vector.load %arg27[%c0_312, %c25_313] : memref<64x32xf32, #tpu.memory_space<vmem>>, vector<64x2xf32>
    %403 = tpu.concatenate %401, %402 in 1 : vector<64x2xf32>, vector<64x2xf32> -> vector<64x4xf32>
    %c0_314 = arith.constant 0 : index
    %c10_315 = arith.constant 10 : index
    %404 = vector.load %arg27[%c0_314, %c10_315] : memref<64x32xf32, #tpu.memory_space<vmem>>, vector<64x2xf32>
    %c0_316 = arith.constant 0 : index
    %c26_317 = arith.constant 26 : index
    %405 = vector.load %arg27[%c0_316, %c26_317] : memref<64x32xf32, #tpu.memory_space<vmem>>, vector<64x2xf32>
    %406 = tpu.concatenate %404, %405 in 1 : vector<64x2xf32>, vector<64x2xf32> -> vector<64x4xf32>
    %c0_318 = arith.constant 0 : index
    %c11_319 = arith.constant 11 : index
    %407 = vector.load %arg27[%c0_318, %c11_319] : memref<64x32xf32, #tpu.memory_space<vmem>>, vector<64x2xf32>
    %c0_320 = arith.constant 0 : index
    %c27_321 = arith.constant 27 : index
    %408 = vector.load %arg27[%c0_320, %c27_321] : memref<64x32xf32, #tpu.memory_space<vmem>>, vector<64x2xf32>
    %409 = tpu.concatenate %407, %408 in 1 : vector<64x2xf32>, vector<64x2xf32> -> vector<64x4xf32>
    %c0_322 = arith.constant 0 : index
    %c12_323 = arith.constant 12 : index
    %410 = vector.load %arg27[%c0_322, %c12_323] : memref<64x32xf32, #tpu.memory_space<vmem>>, vector<64x2xf32>
    %c0_324 = arith.constant 0 : index
    %c28_325 = arith.constant 28 : index
    %411 = vector.load %arg27[%c0_324, %c28_325] : memref<64x32xf32, #tpu.memory_space<vmem>>, vector<64x2xf32>
    %412 = tpu.concatenate %410, %411 in 1 : vector<64x2xf32>, vector<64x2xf32> -> vector<64x4xf32>
    %c0_326 = arith.constant 0 : index
    %c13_327 = arith.constant 13 : index
    %413 = vector.load %arg27[%c0_326, %c13_327] : memref<64x32xf32, #tpu.memory_space<vmem>>, vector<64x2xf32>
    %c0_328 = arith.constant 0 : index
    %c29_329 = arith.constant 29 : index
    %414 = vector.load %arg27[%c0_328, %c29_329] : memref<64x32xf32, #tpu.memory_space<vmem>>, vector<64x2xf32>
    %415 = tpu.concatenate %413, %414 in 1 : vector<64x2xf32>, vector<64x2xf32> -> vector<64x4xf32>
    %c0_330 = arith.constant 0 : index
    %c14_331 = arith.constant 14 : index
    %416 = vector.load %arg27[%c0_330, %c14_331] : memref<64x32xf32, #tpu.memory_space<vmem>>, vector<64x2xf32>
    %c0_332 = arith.constant 0 : index
    %c30_333 = arith.constant 30 : index
    %417 = vector.load %arg27[%c0_332, %c30_333] : memref<64x32xf32, #tpu.memory_space<vmem>>, vector<64x2xf32>
    %418 = tpu.concatenate %416, %417 in 1 : vector<64x2xf32>, vector<64x2xf32> -> vector<64x4xf32>
    %419 = tpu.concatenate %376, %379, %382, %385, %388, %391, %394, %397, %400, %403, %406, %409, %412, %415, %418 in 0 : vector<64x4xf32>, vector<64x4xf32>, vector<64x4xf32>, vector<64x4xf32>, vector<64x4xf32>, vector<64x4xf32>, vector<64x4xf32>, vector<64x4xf32>, vector<64x4xf32>, vector<64x4xf32>, vector<64x4xf32>, vector<64x4xf32>, vector<64x4xf32>, vector<64x4xf32>, vector<64x4xf32> -> vector<960x4xf32>
    %c0_334 = arith.constant 0 : index
    %c0_335 = arith.constant 0 : index
    %420 = vector.load %arg7[%c0_334, %c0_335] : memref<64x960xbf16, #tpu.memory_space<vmem>>, vector<64x960xbf16>
    %421 = arith.truncf %419 : vector<960x4xf32> to vector<960x4xbf16>
    %cst_336 = arith.constant dense<0.000000e+00> : vector<64x4xf32>
    %422 = tpu.matmul %420, %421, %cst_336 {dimension_numbers = #tpu.dot_dimension_numbers<[1], [0], [0], [1], [0, 0, 1, 1], [], []>} : vector<64x960xbf16>, vector<960x4xbf16>, vector<64x4xf32> -> vector<64x4xf32>
    %c0_337 = arith.constant 0 : index
    %c0_338 = arith.constant 0 : index
    %423 = vector.load %arg8[%c0_337, %c0_338] : memref<64x3xf32, #tpu.memory_space<vmem>>, vector<64x1xf32>
    %c0_339 = arith.constant 0 : index
    %c1_340 = arith.constant 1 : index
    %424 = vector.load %arg8[%c0_339, %c1_340] : memref<64x3xf32, #tpu.memory_space<vmem>>, vector<64x1xf32>
    %c0_341 = arith.constant 0 : index
    %c2_342 = arith.constant 2 : index
    %425 = vector.load %arg8[%c0_341, %c2_342] : memref<64x3xf32, #tpu.memory_space<vmem>>, vector<64x1xf32>
    %426 = vector.broadcast %423 : vector<64x1xf32> to vector<64x4xf32>
    %427 = arith.addf %422, %426 : vector<64x4xf32>
    %cst_343 = arith.constant dense<0.000000e+00> : vector<64xf32>
    %428 = vector.multi_reduction <add>, %427, %cst_343 [1] : vector<64x4xf32> to vector<64xf32>
    %429 = vector.shape_cast %428 : vector<64xf32> to vector<64x1xf32>
    %430 = arith.mulf %427, %427 : vector<64x4xf32>
    %cst_344 = arith.constant dense<0.000000e+00> : vector<64xf32>
    %431 = vector.multi_reduction <add>, %430, %cst_344 [1] : vector<64x4xf32> to vector<64xf32>
    %432 = vector.shape_cast %431 : vector<64xf32> to vector<64x1xf32>
    %cst_345 = arith.constant 2.500000e-01 : f32
    %433 = vector.broadcast %cst_345 : f32 to vector<64x1xf32>
    %434 = arith.mulf %429, %433 : vector<64x1xf32>
    %cst_346 = arith.constant 2.500000e-01 : f32
    %435 = vector.broadcast %cst_346 : f32 to vector<64x1xf32>
    %436 = arith.mulf %432, %435 : vector<64x1xf32>
    %437 = arith.mulf %434, %434 : vector<64x1xf32>
    %438 = arith.subf %436, %437 : vector<64x1xf32>
    %cst_347 = arith.constant 0.000000e+00 : f32
    %439 = vector.broadcast %cst_347 : f32 to vector<64x1xf32>
    %440 = arith.maximumf %438, %439 : vector<64x1xf32>
    %cst_348 = arith.constant 9.99999974E-6 : f32
    %441 = vector.broadcast %cst_348 : f32 to vector<64x1xf32>
    %442 = arith.addf %440, %441 : vector<64x1xf32>
    %443 = math.rsqrt %442 : vector<64x1xf32>
    %444 = arith.mulf %443, %424 : vector<64x1xf32>
    %445 = arith.mulf %434, %444 : vector<64x1xf32>
    %446 = arith.subf %425, %445 : vector<64x1xf32>
    %447 = vector.broadcast %444 : vector<64x1xf32> to vector<64x4xf32>
    %448 = arith.mulf %427, %447 : vector<64x4xf32>
    %449 = vector.broadcast %446 : vector<64x1xf32> to vector<64x4xf32>
    %450 = arith.addf %448, %449 : vector<64x4xf32>
    %cst_349 = arith.constant 0.000000e+00 : f32
    %451 = vector.broadcast %cst_349 : f32 to vector<64x4xf32>
    %452 = arith.cmpf ogt, %450, %451 : vector<64x4xf32>
    %cst_350 = arith.constant 2.000000e-01 : f32
    %453 = vector.broadcast %cst_350 : f32 to vector<64x4xf32>
    %454 = arith.mulf %453, %450 : vector<64x4xf32>
    %455 = arith.select %452, %450, %454 : vector<64x4xi1>, vector<64x4xf32>
    %c0_351 = arith.constant 0 : index
    %c0_352 = arith.constant 0 : index
    %456 = vector.load %arg20[%c0_351, %c0_352] : memref<2x4xf32, #tpu.memory_space<vmem>>, vector<2x4xf32>
    %457 = vector.extract_strided_slice %455 {offsets = [0, 0], sizes = [64, 2], strides = [1, 1]} : vector<64x4xf32> to vector<64x2xf32>
    %cst_353 = arith.constant dense<0.000000e+00> : vector<64x4xf32>
    %458 = tpu.matmul %457, %456, %cst_353 {dimension_numbers = #tpu.dot_dimension_numbers<[1], [0], [0], [1], [0, 0, 1, 1], [], []>} : vector<64x2xf32>, vector<2x4xf32>, vector<64x4xf32> -> vector<64x4xf32>
    %c0_354 = arith.constant 0 : index
    %c2_355 = arith.constant 2 : index
    %459 = vector.load %arg28[%c0_354, %c2_355] : memref<128x16xf32, #tpu.memory_space<vmem>>, vector<64x4xf32>
    tpu.vector_store %arg28[%c0_354, %c2_355], %458 {strides = array<i32>} : memref<128x16xf32, #tpu.memory_space<vmem>>, vector<64x4xf32>,
    %460 = vector.extract_strided_slice %455 {offsets = [0, 2], sizes = [64, 2], strides = [1, 1]} : vector<64x4xf32> to vector<64x2xf32>
    %cst_356 = arith.constant dense<0.000000e+00> : vector<64x4xf32>
    %461 = tpu.matmul %460, %456, %cst_356 {dimension_numbers = #tpu.dot_dimension_numbers<[1], [0], [0], [1], [0, 0, 1, 1], [], []>} : vector<64x2xf32>, vector<2x4xf32>, vector<64x4xf32> -> vector<64x4xf32>
    %c0_357 = arith.constant 0 : index
    %c10_358 = arith.constant 10 : index
    %462 = vector.load %arg28[%c0_357, %c10_358] : memref<128x16xf32, #tpu.memory_space<vmem>>, vector<64x4xf32>
    tpu.vector_store %arg28[%c0_357, %c10_358], %461 {strides = array<i32>} : memref<128x16xf32, #tpu.memory_space<vmem>>, vector<64x4xf32>,
    %c0_359 = arith.constant 0 : index
    %c0_360 = arith.constant 0 : index
    %463 = vector.load %arg28[%c0_359, %c0_360] : memref<128x16xf32, #tpu.memory_space<vmem>>, vector<128x4xf32>
    %c0_361 = arith.constant 0 : index
    %c8_362 = arith.constant 8 : index
    %464 = vector.load %arg28[%c0_361, %c8_362] : memref<128x16xf32, #tpu.memory_space<vmem>>, vector<128x4xf32>
    %465 = tpu.concatenate %463, %464 in 1 : vector<128x4xf32>, vector<128x4xf32> -> vector<128x8xf32>
    %c0_363 = arith.constant 0 : index
    %c1_364 = arith.constant 1 : index
    %466 = vector.load %arg28[%c0_363, %c1_364] : memref<128x16xf32, #tpu.memory_space<vmem>>, vector<128x4xf32>
    %c0_365 = arith.constant 0 : index
    %c9_366 = arith.constant 9 : index
    %467 = vector.load %arg28[%c0_365, %c9_366] : memref<128x16xf32, #tpu.memory_space<vmem>>, vector<128x4xf32>
    %468 = tpu.concatenate %466, %467 in 1 : vector<128x4xf32>, vector<128x4xf32> -> vector<128x8xf32>
    %c0_367 = arith.constant 0 : index
    %c2_368 = arith.constant 2 : index
    %469 = vector.load %arg28[%c0_367, %c2_368] : memref<128x16xf32, #tpu.memory_space<vmem>>, vector<128x4xf32>
    %c0_369 = arith.constant 0 : index
    %c10_370 = arith.constant 10 : index
    %470 = vector.load %arg28[%c0_369, %c10_370] : memref<128x16xf32, #tpu.memory_space<vmem>>, vector<128x4xf32>
    %471 = tpu.concatenate %469, %470 in 1 : vector<128x4xf32>, vector<128x4xf32> -> vector<128x8xf32>
    %c0_371 = arith.constant 0 : index
    %c3_372 = arith.constant 3 : index
    %472 = vector.load %arg28[%c0_371, %c3_372] : memref<128x16xf32, #tpu.memory_space<vmem>>, vector<128x4xf32>
    %c0_373 = arith.constant 0 : index
    %c11_374 = arith.constant 11 : index
    %473 = vector.load %arg28[%c0_373, %c11_374] : memref<128x16xf32, #tpu.memory_space<vmem>>, vector<128x4xf32>
    %474 = tpu.concatenate %472, %473 in 1 : vector<128x4xf32>, vector<128x4xf32> -> vector<128x8xf32>
    %c0_375 = arith.constant 0 : index
    %c4_376 = arith.constant 4 : index
    %475 = vector.load %arg28[%c0_375, %c4_376] : memref<128x16xf32, #tpu.memory_space<vmem>>, vector<128x4xf32>
    %c0_377 = arith.constant 0 : index
    %c12_378 = arith.constant 12 : index
    %476 = vector.load %arg28[%c0_377, %c12_378] : memref<128x16xf32, #tpu.memory_space<vmem>>, vector<128x4xf32>
    %477 = tpu.concatenate %475, %476 in 1 : vector<128x4xf32>, vector<128x4xf32> -> vector<128x8xf32>
    %478 = tpu.concatenate %465, %468, %471, %474, %477 in 0 : vector<128x8xf32>, vector<128x8xf32>, vector<128x8xf32>, vector<128x8xf32>, vector<128x8xf32> -> vector<640x8xf32>
    %c0_379 = arith.constant 0 : index
    %c0_380 = arith.constant 0 : index
    %479 = vector.load %arg9[%c0_379, %c0_380] : memref<64x640xbf16, #tpu.memory_space<vmem>>, vector<64x640xbf16>
    %480 = arith.truncf %478 : vector<640x8xf32> to vector<640x8xbf16>
    %cst_381 = arith.constant dense<0.000000e+00> : vector<64x8xf32>
    %481 = tpu.matmul %479, %480, %cst_381 {dimension_numbers = #tpu.dot_dimension_numbers<[1], [0], [0], [1], [0, 0, 1, 1], [], []>} : vector<64x640xbf16>, vector<640x8xbf16>, vector<64x8xf32> -> vector<64x8xf32>
    %c0_382 = arith.constant 0 : index
    %c0_383 = arith.constant 0 : index
    %482 = vector.load %arg10[%c0_382, %c0_383] : memref<64x3xf32, #tpu.memory_space<vmem>>, vector<64x1xf32>
    %c0_384 = arith.constant 0 : index
    %c1_385 = arith.constant 1 : index
    %483 = vector.load %arg10[%c0_384, %c1_385] : memref<64x3xf32, #tpu.memory_space<vmem>>, vector<64x1xf32>
    %c0_386 = arith.constant 0 : index
    %c2_387 = arith.constant 2 : index
    %484 = vector.load %arg10[%c0_386, %c2_387] : memref<64x3xf32, #tpu.memory_space<vmem>>, vector<64x1xf32>
    %485 = vector.broadcast %482 : vector<64x1xf32> to vector<64x8xf32>
    %486 = arith.addf %481, %485 : vector<64x8xf32>
    %cst_388 = arith.constant dense<0.000000e+00> : vector<64xf32>
    %487 = vector.multi_reduction <add>, %486, %cst_388 [1] : vector<64x8xf32> to vector<64xf32>
    %488 = vector.shape_cast %487 : vector<64xf32> to vector<64x1xf32>
    %489 = arith.mulf %486, %486 : vector<64x8xf32>
    %cst_389 = arith.constant dense<0.000000e+00> : vector<64xf32>
    %490 = vector.multi_reduction <add>, %489, %cst_389 [1] : vector<64x8xf32> to vector<64xf32>
    %491 = vector.shape_cast %490 : vector<64xf32> to vector<64x1xf32>
    %cst_390 = arith.constant 1.250000e-01 : f32
    %492 = vector.broadcast %cst_390 : f32 to vector<64x1xf32>
    %493 = arith.mulf %488, %492 : vector<64x1xf32>
    %cst_391 = arith.constant 1.250000e-01 : f32
    %494 = vector.broadcast %cst_391 : f32 to vector<64x1xf32>
    %495 = arith.mulf %491, %494 : vector<64x1xf32>
    %496 = arith.mulf %493, %493 : vector<64x1xf32>
    %497 = arith.subf %495, %496 : vector<64x1xf32>
    %cst_392 = arith.constant 0.000000e+00 : f32
    %498 = vector.broadcast %cst_392 : f32 to vector<64x1xf32>
    %499 = arith.maximumf %497, %498 : vector<64x1xf32>
    %cst_393 = arith.constant 9.99999974E-6 : f32
    %500 = vector.broadcast %cst_393 : f32 to vector<64x1xf32>
    %501 = arith.addf %499, %500 : vector<64x1xf32>
    %502 = math.rsqrt %501 : vector<64x1xf32>
    %503 = arith.mulf %502, %483 : vector<64x1xf32>
    %504 = arith.mulf %493, %503 : vector<64x1xf32>
    %505 = arith.subf %484, %504 : vector<64x1xf32>
    %506 = vector.broadcast %503 : vector<64x1xf32> to vector<64x8xf32>
    %507 = arith.mulf %486, %506 : vector<64x8xf32>
    %508 = vector.broadcast %505 : vector<64x1xf32> to vector<64x8xf32>
    %509 = arith.addf %507, %508 : vector<64x8xf32>
    %cst_394 = arith.constant 0.000000e+00 : f32
    %510 = vector.broadcast %cst_394 : f32 to vector<64x8xf32>
    %511 = arith.cmpf ogt, %509, %510 : vector<64x8xf32>
    %cst_395 = arith.constant 0.00999999977 : f32
    %512 = vector.broadcast %cst_395 : f32 to vector<64x8xf32>
    %513 = arith.mulf %512, %509 : vector<64x8xf32>
    %514 = arith.select %511, %509, %513 : vector<64x8xi1>, vector<64x8xf32>
    %c0_396 = arith.constant 0 : index
    %c0_397 = arith.constant 0 : index
    %515 = vector.load %arg21[%c0_396, %c0_397] : memref<4x8xf32, #tpu.memory_space<vmem>>, vector<4x8xf32>
    %516 = vector.extract_strided_slice %514 {offsets = [0, 0], sizes = [64, 4], strides = [1, 1]} : vector<64x8xf32> to vector<64x4xf32>
    %cst_398 = arith.constant dense<0.000000e+00> : vector<64x8xf32>
    %517 = tpu.matmul %516, %515, %cst_398 {dimension_numbers = #tpu.dot_dimension_numbers<[1], [0], [0], [1], [0, 0, 1, 1], [], []>} : vector<64x4xf32>, vector<4x8xf32>, vector<64x8xf32> -> vector<64x8xf32>
    %c0_399 = arith.constant 0 : index
    %c2_400 = arith.constant 2 : index
    %518 = vector.load %arg29[%c0_399, %c2_400] : memref<112x24xf32, #tpu.memory_space<vmem>>, vector<64x8xf32>
    tpu.vector_store %arg29[%c0_399, %c2_400], %517 {strides = array<i32>} : memref<112x24xf32, #tpu.memory_space<vmem>>, vector<64x8xf32>,
    %519 = vector.extract_strided_slice %514 {offsets = [0, 4], sizes = [64, 4], strides = [1, 1]} : vector<64x8xf32> to vector<64x4xf32>
    %cst_401 = arith.constant dense<0.000000e+00> : vector<64x8xf32>
    %520 = tpu.matmul %519, %515, %cst_401 {dimension_numbers = #tpu.dot_dimension_numbers<[1], [0], [0], [1], [0, 0, 1, 1], [], []>} : vector<64x4xf32>, vector<4x8xf32>, vector<64x8xf32> -> vector<64x8xf32>
    %c0_402 = arith.constant 0 : index
    %c14_403 = arith.constant 14 : index
    %521 = vector.load %arg29[%c0_402, %c14_403] : memref<112x24xf32, #tpu.memory_space<vmem>>, vector<64x8xf32>
    tpu.vector_store %arg29[%c0_402, %c14_403], %520 {strides = array<i32>} : memref<112x24xf32, #tpu.memory_space<vmem>>, vector<64x8xf32>,
    %c0_404 = arith.constant 0 : index
    %c0_405 = arith.constant 0 : index
    %522 = vector.load %arg29[%c0_404, %c0_405] : memref<112x24xf32, #tpu.memory_space<vmem>>, vector<112x8xf32>
    %c0_406 = arith.constant 0 : index
    %c12_407 = arith.constant 12 : index
    %523 = vector.load %arg29[%c0_406, %c12_407] : memref<112x24xf32, #tpu.memory_space<vmem>>, vector<112x8xf32>
    %524 = tpu.concatenate %522, %523 in 1 : vector<112x8xf32>, vector<112x8xf32> -> vector<112x16xf32>
    %c0_408 = arith.constant 0 : index
    %c1_409 = arith.constant 1 : index
    %525 = vector.load %arg29[%c0_408, %c1_409] : memref<112x24xf32, #tpu.memory_space<vmem>>, vector<112x8xf32>
    %c0_410 = arith.constant 0 : index
    %c13_411 = arith.constant 13 : index
    %526 = vector.load %arg29[%c0_410, %c13_411] : memref<112x24xf32, #tpu.memory_space<vmem>>, vector<112x8xf32>
    %527 = tpu.concatenate %525, %526 in 1 : vector<112x8xf32>, vector<112x8xf32> -> vector<112x16xf32>
    %c0_412 = arith.constant 0 : index
    %c2_413 = arith.constant 2 : index
    %528 = vector.load %arg29[%c0_412, %c2_413] : memref<112x24xf32, #tpu.memory_space<vmem>>, vector<112x8xf32>
    %c0_414 = arith.constant 0 : index
    %c14_415 = arith.constant 14 : index
    %529 = vector.load %arg29[%c0_414, %c14_415] : memref<112x24xf32, #tpu.memory_space<vmem>>, vector<112x8xf32>
    %530 = tpu.concatenate %528, %529 in 1 : vector<112x8xf32>, vector<112x8xf32> -> vector<112x16xf32>
    %c0_416 = arith.constant 0 : index
    %c3_417 = arith.constant 3 : index
    %531 = vector.load %arg29[%c0_416, %c3_417] : memref<112x24xf32, #tpu.memory_space<vmem>>, vector<112x8xf32>
    %c0_418 = arith.constant 0 : index
    %c15 = arith.constant 15 : index
    %532 = vector.load %arg29[%c0_418, %c15] : memref<112x24xf32, #tpu.memory_space<vmem>>, vector<112x8xf32>
    %533 = tpu.concatenate %531, %532 in 1 : vector<112x8xf32>, vector<112x8xf32> -> vector<112x16xf32>
    %c0_419 = arith.constant 0 : index
    %c4_420 = arith.constant 4 : index
    %534 = vector.load %arg29[%c0_419, %c4_420] : memref<112x24xf32, #tpu.memory_space<vmem>>, vector<112x8xf32>
    %c0_421 = arith.constant 0 : index
    %c16_422 = arith.constant 16 : index
    %535 = vector.load %arg29[%c0_421, %c16_422] : memref<112x24xf32, #tpu.memory_space<vmem>>, vector<112x8xf32>
    %536 = tpu.concatenate %534, %535 in 1 : vector<112x8xf32>, vector<112x8xf32> -> vector<112x16xf32>
    %537 = tpu.concatenate %524, %527, %530, %533, %536 in 0 : vector<112x16xf32>, vector<112x16xf32>, vector<112x16xf32>, vector<112x16xf32>, vector<112x16xf32> -> vector<560x16xf32>
    %c0_423 = arith.constant 0 : index
    %c0_424 = arith.constant 0 : index
    %538 = vector.load %arg11[%c0_423, %c0_424] : memref<48x560xbf16, #tpu.memory_space<vmem>>, vector<48x560xbf16>
    %539 = arith.truncf %537 : vector<560x16xf32> to vector<560x16xbf16>
    %cst_425 = arith.constant dense<0.000000e+00> : vector<48x16xf32>
    %540 = tpu.matmul %538, %539, %cst_425 {dimension_numbers = #tpu.dot_dimension_numbers<[1], [0], [0], [1], [0, 0, 1, 1], [], []>} : vector<48x560xbf16>, vector<560x16xbf16>, vector<48x16xf32> -> vector<48x16xf32>
    %c0_426 = arith.constant 0 : index
    %c0_427 = arith.constant 0 : index
    %541 = vector.load %arg12[%c0_426, %c0_427] : memref<48x3xf32, #tpu.memory_space<vmem>>, vector<48x1xf32>
    %c0_428 = arith.constant 0 : index
    %c1_429 = arith.constant 1 : index
    %542 = vector.load %arg12[%c0_428, %c1_429] : memref<48x3xf32, #tpu.memory_space<vmem>>, vector<48x1xf32>
    %c0_430 = arith.constant 0 : index
    %c2_431 = arith.constant 2 : index
    %543 = vector.load %arg12[%c0_430, %c2_431] : memref<48x3xf32, #tpu.memory_space<vmem>>, vector<48x1xf32>
    %544 = vector.broadcast %541 : vector<48x1xf32> to vector<48x16xf32>
    %545 = arith.addf %540, %544 : vector<48x16xf32>
    %cst_432 = arith.constant dense<0.000000e+00> : vector<48xf32>
    %546 = vector.multi_reduction <add>, %545, %cst_432 [1] : vector<48x16xf32> to vector<48xf32>
    %547 = vector.shape_cast %546 : vector<48xf32> to vector<48x1xf32>
    %548 = arith.mulf %545, %545 : vector<48x16xf32>
    %cst_433 = arith.constant dense<0.000000e+00> : vector<48xf32>
    %549 = vector.multi_reduction <add>, %548, %cst_433 [1] : vector<48x16xf32> to vector<48xf32>
    %550 = vector.shape_cast %549 : vector<48xf32> to vector<48x1xf32>
    %cst_434 = arith.constant 6.250000e-02 : f32
    %551 = vector.broadcast %cst_434 : f32 to vector<48x1xf32>
    %552 = arith.mulf %547, %551 : vector<48x1xf32>
    %cst_435 = arith.constant 6.250000e-02 : f32
    %553 = vector.broadcast %cst_435 : f32 to vector<48x1xf32>
    %554 = arith.mulf %550, %553 : vector<48x1xf32>
    %555 = arith.mulf %552, %552 : vector<48x1xf32>
    %556 = arith.subf %554, %555 : vector<48x1xf32>
    %cst_436 = arith.constant 0.000000e+00 : f32
    %557 = vector.broadcast %cst_436 : f32 to vector<48x1xf32>
    %558 = arith.maximumf %556, %557 : vector<48x1xf32>
    %cst_437 = arith.constant 9.99999974E-6 : f32
    %559 = vector.broadcast %cst_437 : f32 to vector<48x1xf32>
    %560 = arith.addf %558, %559 : vector<48x1xf32>
    %561 = math.rsqrt %560 : vector<48x1xf32>
    %562 = arith.mulf %561, %542 : vector<48x1xf32>
    %563 = arith.mulf %552, %562 : vector<48x1xf32>
    %564 = arith.subf %543, %563 : vector<48x1xf32>
    %565 = vector.broadcast %562 : vector<48x1xf32> to vector<48x16xf32>
    %566 = arith.mulf %545, %565 : vector<48x16xf32>
    %567 = vector.broadcast %564 : vector<48x1xf32> to vector<48x16xf32>
    %568 = arith.addf %566, %567 : vector<48x16xf32>
    %cst_438 = arith.constant 0.000000e+00 : f32
    %569 = vector.broadcast %cst_438 : f32 to vector<48x16xf32>
    %570 = arith.cmpf ogt, %568, %569 : vector<48x16xf32>
    %cst_439 = arith.constant 0.00999999977 : f32
    %571 = vector.broadcast %cst_439 : f32 to vector<48x16xf32>
    %572 = arith.mulf %571, %568 : vector<48x16xf32>
    %573 = arith.select %570, %568, %572 : vector<48x16xi1>, vector<48x16xf32>
    %c0_440 = arith.constant 0 : index
    %c0_441 = arith.constant 0 : index
    %574 = vector.load %arg22[%c0_440, %c0_441] : memref<8x16xf32, #tpu.memory_space<vmem>>, vector<8x16xf32>
    %575 = vector.extract_strided_slice %573 {offsets = [0, 0], sizes = [48, 8], strides = [1, 1]} : vector<48x16xf32> to vector<48x8xf32>
    %cst_442 = arith.constant dense<0.000000e+00> : vector<48x16xf32>
    %576 = tpu.matmul %575, %574, %cst_442 {dimension_numbers = #tpu.dot_dimension_numbers<[1], [0], [0], [1], [0, 0, 1, 1], [], []>} : vector<48x8xf32>, vector<8x16xf32>, vector<48x16xf32> -> vector<48x16xf32>
    %c0_443 = arith.constant 0 : index
    %c2_444 = arith.constant 2 : index
    %577 = vector.load %arg30[%c0_443, %c2_444] : memref<72x40xf32, #tpu.memory_space<vmem>>, vector<48x16xf32>
    tpu.vector_store %arg30[%c0_443, %c2_444], %576 {strides = array<i32>} : memref<72x40xf32, #tpu.memory_space<vmem>>, vector<48x16xf32>,
    %578 = vector.extract_strided_slice %573 {offsets = [0, 8], sizes = [48, 8], strides = [1, 1]} : vector<48x16xf32> to vector<48x8xf32>
    %cst_445 = arith.constant dense<0.000000e+00> : vector<48x16xf32>
    %579 = tpu.matmul %578, %574, %cst_445 {dimension_numbers = #tpu.dot_dimension_numbers<[1], [0], [0], [1], [0, 0, 1, 1], [], []>} : vector<48x8xf32>, vector<8x16xf32>, vector<48x16xf32> -> vector<48x16xf32>
    %c0_446 = arith.constant 0 : index
    %c22_447 = arith.constant 22 : index
    %580 = vector.load %arg30[%c0_446, %c22_447] : memref<72x40xf32, #tpu.memory_space<vmem>>, vector<48x16xf32>
    tpu.vector_store %arg30[%c0_446, %c22_447], %579 {strides = array<i32>} : memref<72x40xf32, #tpu.memory_space<vmem>>, vector<48x16xf32>,
    %c0_448 = arith.constant 0 : index
    %c0_449 = arith.constant 0 : index
    %581 = vector.load %arg30[%c0_448, %c0_449] : memref<72x40xf32, #tpu.memory_space<vmem>>, vector<72x16xf32>
    %c0_450 = arith.constant 0 : index
    %c20_451 = arith.constant 20 : index
    %582 = vector.load %arg30[%c0_450, %c20_451] : memref<72x40xf32, #tpu.memory_space<vmem>>, vector<72x16xf32>
    %583 = tpu.concatenate %581, %582 in 1 : vector<72x16xf32>, vector<72x16xf32> -> vector<72x32xf32>
    %c0_452 = arith.constant 0 : index
    %c1_453 = arith.constant 1 : index
    %584 = vector.load %arg30[%c0_452, %c1_453] : memref<72x40xf32, #tpu.memory_space<vmem>>, vector<72x16xf32>
    %c0_454 = arith.constant 0 : index
    %c21_455 = arith.constant 21 : index
    %585 = vector.load %arg30[%c0_454, %c21_455] : memref<72x40xf32, #tpu.memory_space<vmem>>, vector<72x16xf32>
    %586 = tpu.concatenate %584, %585 in 1 : vector<72x16xf32>, vector<72x16xf32> -> vector<72x32xf32>
    %c0_456 = arith.constant 0 : index
    %c2_457 = arith.constant 2 : index
    %587 = vector.load %arg30[%c0_456, %c2_457] : memref<72x40xf32, #tpu.memory_space<vmem>>, vector<72x16xf32>
    %c0_458 = arith.constant 0 : index
    %c22_459 = arith.constant 22 : index
    %588 = vector.load %arg30[%c0_458, %c22_459] : memref<72x40xf32, #tpu.memory_space<vmem>>, vector<72x16xf32>
    %589 = tpu.concatenate %587, %588 in 1 : vector<72x16xf32>, vector<72x16xf32> -> vector<72x32xf32>
    %c0_460 = arith.constant 0 : index
    %c3_461 = arith.constant 3 : index
    %590 = vector.load %arg30[%c0_460, %c3_461] : memref<72x40xf32, #tpu.memory_space<vmem>>, vector<72x16xf32>
    %c0_462 = arith.constant 0 : index
    %c23_463 = arith.constant 23 : index
    %591 = vector.load %arg30[%c0_462, %c23_463] : memref<72x40xf32, #tpu.memory_space<vmem>>, vector<72x16xf32>
    %592 = tpu.concatenate %590, %591 in 1 : vector<72x16xf32>, vector<72x16xf32> -> vector<72x32xf32>
    %c0_464 = arith.constant 0 : index
    %c4_465 = arith.constant 4 : index
    %593 = vector.load %arg30[%c0_464, %c4_465] : memref<72x40xf32, #tpu.memory_space<vmem>>, vector<72x16xf32>
    %c0_466 = arith.constant 0 : index
    %c24_467 = arith.constant 24 : index
    %594 = vector.load %arg30[%c0_466, %c24_467] : memref<72x40xf32, #tpu.memory_space<vmem>>, vector<72x16xf32>
    %595 = tpu.concatenate %593, %594 in 1 : vector<72x16xf32>, vector<72x16xf32> -> vector<72x32xf32>
    %596 = tpu.concatenate %583, %586, %589, %592, %595 in 0 : vector<72x32xf32>, vector<72x32xf32>, vector<72x32xf32>, vector<72x32xf32>, vector<72x32xf32> -> vector<360x32xf32>
    %c0_468 = arith.constant 0 : index
    %c0_469 = arith.constant 0 : index
    %597 = vector.load %arg13[%c0_468, %c0_469] : memref<24x360xbf16, #tpu.memory_space<vmem>>, vector<24x360xbf16>
    %598 = arith.truncf %596 : vector<360x32xf32> to vector<360x32xbf16>
    %cst_470 = arith.constant dense<0.000000e+00> : vector<24x32xf32>
    %599 = tpu.matmul %597, %598, %cst_470 {dimension_numbers = #tpu.dot_dimension_numbers<[1], [0], [0], [1], [0, 0, 1, 1], [], []>} : vector<24x360xbf16>, vector<360x32xbf16>, vector<24x32xf32> -> vector<24x32xf32>
    %c0_471 = arith.constant 0 : index
    %c0_472 = arith.constant 0 : index
    %600 = vector.load %arg14[%c0_471, %c0_472] : memref<24x3xf32, #tpu.memory_space<vmem>>, vector<24x1xf32>
    %c0_473 = arith.constant 0 : index
    %c1_474 = arith.constant 1 : index
    %601 = vector.load %arg14[%c0_473, %c1_474] : memref<24x3xf32, #tpu.memory_space<vmem>>, vector<24x1xf32>
    %c0_475 = arith.constant 0 : index
    %c2_476 = arith.constant 2 : index
    %602 = vector.load %arg14[%c0_475, %c2_476] : memref<24x3xf32, #tpu.memory_space<vmem>>, vector<24x1xf32>
    %603 = vector.broadcast %600 : vector<24x1xf32> to vector<24x32xf32>
    %604 = arith.addf %599, %603 : vector<24x32xf32>
    %cst_477 = arith.constant dense<0.000000e+00> : vector<24xf32>
    %605 = vector.multi_reduction <add>, %604, %cst_477 [1] : vector<24x32xf32> to vector<24xf32>
    %606 = vector.shape_cast %605 : vector<24xf32> to vector<24x1xf32>
    %607 = arith.mulf %604, %604 : vector<24x32xf32>
    %cst_478 = arith.constant dense<0.000000e+00> : vector<24xf32>
    %608 = vector.multi_reduction <add>, %607, %cst_478 [1] : vector<24x32xf32> to vector<24xf32>
    %609 = vector.shape_cast %608 : vector<24xf32> to vector<24x1xf32>
    %cst_479 = arith.constant 3.125000e-02 : f32
    %610 = vector.broadcast %cst_479 : f32 to vector<24x1xf32>
    %611 = arith.mulf %606, %610 : vector<24x1xf32>
    %cst_480 = arith.constant 3.125000e-02 : f32
    %612 = vector.broadcast %cst_480 : f32 to vector<24x1xf32>
    %613 = arith.mulf %609, %612 : vector<24x1xf32>
    %614 = arith.mulf %611, %611 : vector<24x1xf32>
    %615 = arith.subf %613, %614 : vector<24x1xf32>
    %cst_481 = arith.constant 0.000000e+00 : f32
    %616 = vector.broadcast %cst_481 : f32 to vector<24x1xf32>
    %617 = arith.maximumf %615, %616 : vector<24x1xf32>
    %cst_482 = arith.constant 9.99999974E-6 : f32
    %618 = vector.broadcast %cst_482 : f32 to vector<24x1xf32>
    %619 = arith.addf %617, %618 : vector<24x1xf32>
    %620 = math.rsqrt %619 : vector<24x1xf32>
    %621 = arith.mulf %620, %601 : vector<24x1xf32>
    %622 = arith.mulf %611, %621 : vector<24x1xf32>
    %623 = arith.subf %602, %622 : vector<24x1xf32>
    %624 = vector.broadcast %621 : vector<24x1xf32> to vector<24x32xf32>
    %625 = arith.mulf %604, %624 : vector<24x32xf32>
    %626 = vector.broadcast %623 : vector<24x1xf32> to vector<24x32xf32>
    %627 = arith.addf %625, %626 : vector<24x32xf32>
    %cst_483 = arith.constant 0.000000e+00 : f32
    %628 = vector.broadcast %cst_483 : f32 to vector<24x32xf32>
    %629 = arith.cmpf ogt, %627, %628 : vector<24x32xf32>
    %cst_484 = arith.constant 0.00999999977 : f32
    %630 = vector.broadcast %cst_484 : f32 to vector<24x32xf32>
    %631 = arith.mulf %630, %627 : vector<24x32xf32>
    %632 = arith.select %629, %627, %631 : vector<24x32xi1>, vector<24x32xf32>
    %c0_485 = arith.constant 0 : index
    %c0_486 = arith.constant 0 : index
    %633 = vector.load %arg15[%c0_485, %c0_486] : memref<1x25xf32, #tpu.memory_space<vmem>>, vector<1x24xf32>
    %cst_487 = arith.constant dense<0.000000e+00> : vector<1x32xf32>
    %634 = tpu.matmul %633, %632, %cst_487 {dimension_numbers = #tpu.dot_dimension_numbers<[1], [0], [0], [1], [0, 0, 1, 1], [], []>} : vector<1x24xf32>, vector<24x32xf32>, vector<1x32xf32> -> vector<1x32xf32>
    %c0_488 = arith.constant 0 : index
    %c24_489 = arith.constant 24 : index
    %635 = vector.load %arg15[%c0_488, %c24_489] : memref<1x25xf32, #tpu.memory_space<vmem>>, vector<1x1xf32>
    %636 = vector.broadcast %635 : vector<1x1xf32> to vector<1x32xf32>
    %637 = arith.mulf %636, %14 : vector<1x32xf32>
    %638 = arith.addf %634, %637 : vector<1x32xf32>
    %c0_490 = arith.constant 0 : index
    %c0_491 = arith.constant 0 : index
    %639 = vector.load %arg16[%c0_490, %c0_491] : memref<1x1xf32, #tpu.memory_space<vmem>>, vector<1x1xf32>
    %640 = vector.broadcast %639 : vector<1x1xf32> to vector<1x32xf32>
    %641 = arith.addf %638, %640 : vector<1x32xf32>
    %642 = math.tanh %641 : vector<1x32xf32>
    %c0_492 = arith.constant 0 : index
    %c0_493 = arith.constant 0 : index
    %643 = vector.load %arg23[%c0_492, %c0_493] : memref<1x32xf32, #tpu.memory_space<vmem>>, vector<1x32xf32>
    tpu.vector_store %arg23[%c0_492, %c0_493], %642 {strides = array<i32>} : memref<1x32xf32, #tpu.memory_space<vmem>>, vector<1x32xf32>,
    return
  }
}

</mosaic_0001>

<llo_original>
// kernel: tpu_custom_call.1
$region0: #{tpu_custom_call.1}
  #allocation0 [shape = 'u32[]', space=smem, size = 0x4, offset = 0x4, fixed_abs, tag = 'smem constant byte address 0x4 - core index']
  #allocation1 [shape = 'u32[144,128]{1,0:T(1,128)}', space=vmem, size = 0x12000, scoped, tag = 'internal scratch']
  #allocation2 [shape = 'f32[1,60]{1,0:T(1,128)}', space=vmem, size = 0x200, scoped, tag = 'scratch operand']
  #allocation3 [shape = 'f32[24,44]{1,0:T(8,128)}', space=vmem, size = 0x3000, scoped, tag = 'scratch operand']
  #allocation4 [shape = 'f32[48,36]{1,0:T(8,128)}', space=vmem, size = 0x6000, scoped, tag = 'scratch operand']
  #allocation5 [shape = 'f32[64,32]{1,0:T(8,128)}', space=vmem, size = 0x8000, scoped, tag = 'scratch operand']
  #allocation6 [shape = 'f32[128,16]{1,0:T(8,128)}', space=vmem, size = 0x10000, scoped, tag = 'scratch operand']
  #allocation7 [shape = 'f32[112,24]{1,0:T(8,128)}', space=vmem, size = 0xe000, scoped, tag = 'scratch operand']
  #allocation8 [shape = 'f32[72,40]{1,0:T(8,128)}', space=vmem, size = 0x9000, scoped, tag = 'scratch operand']
  #allocation9 [shape = 'f32[1,1]{1,0:T(1,128)S(1)}', space=vmem, size = 0x200, scoped, tag = 'scoped memory for tpu_custom_call.1']
  %s0 = inlined_call_operand.hbm [shape: f32[1,32], index: 0, kind: input, shape index: {}]
  %s1 = inlined_call_operand.vmem [shape: f32[24,15], index: 1, kind: input, shape index: {}]
  %s2 = inlined_call_operand.vmem [shape: f32[24,3], index: 2, kind: input, shape index: {}]
  %s3 = inlined_call_operand.hbm [shape: bf16[48,360], index: 3, kind: input, shape index: {}]
  %s4 = inlined_call_operand.vmem [shape: f32[48,3], index: 4, kind: input, shape index: {}]
  %s5 = inlined_call_operand.vmem [shape: bf16[64,720], index: 5, kind: input, shape index: {}]
  %s6 = inlined_call_operand.vmem [shape: f32[64,3], index: 6, kind: input, shape index: {}]
  %s7 = inlined_call_operand.vmem [shape: bf16[64,960], index: 7, kind: input, shape index: {}]
  %s8 = inlined_call_operand.vmem [shape: f32[64,3], index: 8, kind: input, shape index: {}]
  %s9 = inlined_call_operand.hbm [shape: bf16[64,640], index: 9, kind: input, shape index: {}]
  %s10 = inlined_call_operand.vmem [shape: f32[64,3], index: 10, kind: input, shape index: {}]
  %s11 = inlined_call_operand.hbm [shape: bf16[48,560], index: 11, kind: input, shape index: {}]
  %s12 = inlined_call_operand.vmem [shape: f32[48,3], index: 12, kind: input, shape index: {}]
  %s13 = inlined_call_operand.hbm [shape: bf16[24,360], index: 13, kind: input, shape index: {}]
  %s14 = inlined_call_operand.vmem [shape: f32[24,3], index: 14, kind: input, shape index: {}]
  %s15 = inlined_call_operand.vmem [shape: f32[1,25], index: 15, kind: input, shape index: {}]
  %s16 = inlined_call_operand.<no memory space> [shape: f32[1,1], index: 16, kind: input, shape index: {}]
  %s17 = inlined_call_operand.vmem [shape: bf16[16,8], index: 17, kind: input, shape index: {}]
  %s18 = inlined_call_operand.vmem [shape: bf16[8,4], index: 18, kind: input, shape index: {}]
  %s19 = inlined_call_operand.vmem [shape: bf16[4,2], index: 19, kind: input, shape index: {}]
  %s20 = inlined_call_operand.vmem [shape: f32[2,4], index: 20, kind: input, shape index: {}]
  %s21 = inlined_call_operand.vmem [shape: f32[4,8], index: 21, kind: input, shape index: {}]
  %s22 = inlined_call_operand.vmem [shape: f32[8,16], index: 22, kind: input, shape index: {}]
  %s23 = inlined_call_operand.hbm [shape: f32[1,32], index: 23, kind: output, shape index: {}]
  %s24 = sld [smem:[#allocation0]]
  $region122: #{tpu_custom_call.1} parent=0
    _
  %s26 = ssub.s32 1, %s24
  %s27 = scalar_select 0, %s26, %s24
  %v28 = vstv %s16
  %29 = vst [vmem:[#allocation9] sm:$0x1] %v28
  $region1: #{tpu_custom_call.1} parent=0
    #allocation10 [shape = 'u8[512]{0}', space=vmem, size = 0x400, scoped, tag = 'input window, operand 0, single buffered']
    #allocation11 [shape = 's32[1]{0}', space=sflag, size = 0x4, scoped, tag = 'scoped memory for tpu_custom_call.1']
    #allocation12 [shape = 's32[1]{0}', space=sflag, size = 0x4, scoped, tag = 'scoped memory for tpu_custom_call.1']
    #allocation13 [shape = 'u8[36864]{0}', space=vmem, size = 0x9000, scoped, tag = 'input window, operand 3, single buffered']
    #allocation14 [shape = 's32[1]{0}', space=sflag, size = 0x4, scoped, tag = 'scoped memory for tpu_custom_call.1']
    #allocation15 [shape = 'u8[81920]{0}', space=vmem, size = 0x14000, scoped, tag = 'input window, operand 9, single buffered']
    #allocation16 [shape = 'u8[61440]{0}', space=vmem, size = 0xf000, scoped, tag = 'input window, operand 11, single buffered']
    #allocation17 [shape = 's32[1]{0}', space=sflag, size = 0x4, scoped, tag = 'scoped memory for tpu_custom_call.1']
    #allocation18 [shape = 'u8[18432]{0}', space=vmem, size = 0x4800, scoped, tag = 'input window, operand 13, single buffered']
    #allocation19 [shape = 'u8[512]{0}', space=vmem, size = 0x400, scoped, tag = 'output window, operand 0, single buffered']
    %30 = vsyncpa [#allocation11], 0
    %31 = vsyncpa [#allocation14], 0
    %32 = vsyncpa [#allocation17], 0
    %33 = vsyncpa [#allocation12], 0
    // Predicated region
    $region2: #{tpu_custom_call.1} parent=1 // pred_check
      _
    $region3: #{tpu_custom_call.1} parent=1 // pred_check_branch
      %35 = sbr.rel (0) target = $region5
    $region4: #{tpu_custom_call.1} parent=1 // pred_region
      %s37 = ssub.s32 16, 16
      %38 = vsyncadd [#allocation11], %s37
      %s40 = sshll.u32 [#allocation10], 4
      %s41 = int_to_ptr.vmem [resolvable:$true] %s40
      %43 = dma.hbm_to_vmem [thread:$0]  %s0, 16, %s41, [#allocation11]
    $region5: #{tpu_custom_call.1} parent=1 // pred_fallthru
      _
    // Predicated region
    $region6: #{tpu_custom_call.1} parent=1 // pred_check
      _
    $region7: #{tpu_custom_call.1} parent=1 // pred_check_branch
      %45 = sbr.rel (0) target = $region9
    $region8: #{tpu_custom_call.1} parent=1 // pred_region
      _
    $region9: #{tpu_custom_call.1} parent=1 // pred_fallthru
      _
    // Predicated region
    $region10: #{tpu_custom_call.1} parent=1 // pred_check
      _
    $region11: #{tpu_custom_call.1} parent=1 // pred_check_branch
      %47 = sbr.rel (0) target = $region13
    $region12: #{tpu_custom_call.1} parent=1 // pred_region
      _
    $region13: #{tpu_custom_call.1} parent=1 // pred_fallthru
      _
    // Predicated region
    $region14: #{tpu_custom_call.1} parent=1 // pred_check
      _
    $region15: #{tpu_custom_call.1} parent=1 // pred_check_branch
      %49 = sbr.rel (0) target = $region17
    $region16: #{tpu_custom_call.1} parent=1 // pred_region
      %s51 = ssub.s32 1152, 1152
      %52 = vsyncadd [#allocation14], %s51
      %s53 = sshll.u32 [#allocation13], 4
      %s54 = int_to_ptr.vmem [resolvable:$true] %s53
      %59 = dma.hbm_to_vmem [thread:$0]  %s3, 1152, %s54, [#allocation14], 192, 192, 12
    $region17: #{tpu_custom_call.1} parent=1 // pred_fallthru
      _
    // Predicated region
    $region18: #{tpu_custom_call.1} parent=1 // pred_check
      _
    $region19: #{tpu_custom_call.1} parent=1 // pred_check_branch
      %61 = sbr.rel (0) target = $region21
    $region20: #{tpu_custom_call.1} parent=1 // pred_region
      _
    $region21: #{tpu_custom_call.1} parent=1 // pred_fallthru
      _
    // Predicated region
    $region22: #{tpu_custom_call.1} parent=1 // pred_check
      _
    $region23: #{tpu_custom_call.1} parent=1 // pred_check_branch
      %63 = sbr.rel (0) target = $region25
    $region24: #{tpu_custom_call.1} parent=1 // pred_region
      _
    $region25: #{tpu_custom_call.1} parent=1 // pred_fallthru
      _
    // Predicated region
    $region26: #{tpu_custom_call.1} parent=1 // pred_check
      _
    $region27: #{tpu_custom_call.1} parent=1 // pred_check_branch
      %65 = sbr.rel (0) target = $region29
    $region28: #{tpu_custom_call.1} parent=1 // pred_region
      _
    $region29: #{tpu_custom_call.1} parent=1 // pred_fallthru
      _
    // Predicated region
    $region30: #{tpu_custom_call.1} parent=1 // pred_check
      _
    $region31: #{tpu_custom_call.1} parent=1 // pred_check_branch
      %67 = sbr.rel (0) target = $region33
    $region32: #{tpu_custom_call.1} parent=1 // pred_region
      _
    $region33: #{tpu_custom_call.1} parent=1 // pred_fallthru
      _
    // Predicated region
    $region34: #{tpu_custom_call.1} parent=1 // pred_check
      _
    $region35: #{tpu_custom_call.1} parent=1 // pred_check_branch
      %69 = sbr.rel (0) target = $region37
    $region36: #{tpu_custom_call.1} parent=1 // pred_region
      _
    $region37: #{tpu_custom_call.1} parent=1 // pred_fallthru
      _
    // Predicated region
    $region38: #{tpu_custom_call.1} parent=1 // pred_check
      _
    $region39: #{tpu_custom_call.1} parent=1 // pred_check_branch
      %71 = sbr.rel (0) target = $region41
    $region40: #{tpu_custom_call.1} parent=1 // pred_region
      %s73 = ssub.s32 2560, 2560
      %74 = vsyncadd [#allocation14], %s73
      %s75 = sshll.u32 [#allocation15], 4
      %s76 = int_to_ptr.vmem [resolvable:$true] %s75
      %81 = dma.hbm_to_vmem [thread:$0]  %s9, 2560, %s76, [#allocation14], 320, 320, 20
    $region41: #{tpu_custom_call.1} parent=1 // pred_fallthru
      _
    // Predicated region
    $region42: #{tpu_custom_call.1} parent=1 // pred_check
      _
    $region43: #{tpu_custom_call.1} parent=1 // pred_check_branch
      %83 = sbr.rel (0) target = $region45
    $region44: #{tpu_custom_call.1} parent=1 // pred_region
      _
    $region45: #{tpu_custom_call.1} parent=1 // pred_fallthru
      _
    // Predicated region
    $region46: #{tpu_custom_call.1} parent=1 // pred_check
      _
    $region47: #{tpu_custom_call.1} parent=1 // pred_check_branch
      %85 = sbr.rel (0) target = $region49
    $region48: #{tpu_custom_call.1} parent=1 // pred_region
      %s87 = ssub.s32 1920, 1920
      %88 = vsyncadd [#allocation17], %s87
      %s89 = sshll.u32 [#allocation16], 4
      %s90 = int_to_ptr.vmem [resolvable:$true] %s89
      %95 = dma.hbm_to_vmem [thread:$0]  %s11, 1920, %s90, [#allocation17], 320, 320, 20
    $region49: #{tpu_custom_call.1} parent=1 // pred_fallthru
      _
    // Predicated region
    $region50: #{tpu_custom_call.1} parent=1 // pred_check
      _
    $region51: #{tpu_custom_call.1} parent=1 // pred_check_branch
      %97 = sbr.rel (0) target = $region53
    $region52: #{tpu_custom_call.1} parent=1 // pred_region
      _
    $region53: #{tpu_custom_call.1} parent=1 // pred_fallthru
      _
    // Predicated region
    $region54: #{tpu_custom_call.1} parent=1 // pred_check
      _
    $region55: #{tpu_custom_call.1} parent=1 // pred_check_branch
      %99 = sbr.rel (0) target = $region57
    $region56: #{tpu_custom_call.1} parent=1 // pred_region
      %s101 = ssub.s32 576, 576
      %102 = vsyncadd [#allocation17], %s101
      %s103 = sshll.u32 [#allocation18], 4
      %s104 = int_to_ptr.vmem [resolvable:$true] %s103
      %109 = dma.hbm_to_vmem [thread:$0]  %s13, 576, %s104, [#allocation17], 192, 192, 12
    $region57: #{tpu_custom_call.1} parent=1 // pred_fallthru
      _
    // Predicated region
    $region58: #{tpu_custom_call.1} parent=1 // pred_check
      _
    $region59: #{tpu_custom_call.1} parent=1 // pred_check_branch
      %111 = sbr.rel (0) target = $region61
    $region60: #{tpu_custom_call.1} parent=1 // pred_region
      _
    $region61: #{tpu_custom_call.1} parent=1 // pred_fallthru
      _
    // Predicated region
    $region62: #{tpu_custom_call.1} parent=1 // pred_check
      _
    $region63: #{tpu_custom_call.1} parent=1 // pred_check_branch
      %113 = sbr.rel (0) target = $region65
    $region64: #{tpu_custom_call.1} parent=1 // pred_region
      _
    $region65: #{tpu_custom_call.1} parent=1 // pred_fallthru
      _
    // Predicated region
    $region66: #{tpu_custom_call.1} parent=1 // pred_check
      _
    $region67: #{tpu_custom_call.1} parent=1 // pred_check_branch
      %115 = sbr.rel (0) target = $region69
    $region68: #{tpu_custom_call.1} parent=1 // pred_region
      _
    $region69: #{tpu_custom_call.1} parent=1 // pred_fallthru
      _
    // Predicated region
    $region70: #{tpu_custom_call.1} parent=1 // pred_check
      _
    $region71: #{tpu_custom_call.1} parent=1 // pred_check_branch
      %117 = sbr.rel (0) target = $region73
    $region72: #{tpu_custom_call.1} parent=1 // pred_region
      _
    $region73: #{tpu_custom_call.1} parent=1 // pred_fallthru
      _
    // Predicated region
    $region74: #{tpu_custom_call.1} parent=1 // pred_check
      _
    $region75: #{tpu_custom_call.1} parent=1 // pred_check_branch
      %119 = sbr.rel (0) target = $region77
    $region76: #{tpu_custom_call.1} parent=1 // pred_region
      _
    $region77: #{tpu_custom_call.1} parent=1 // pred_fallthru
      _
    // Predicated region
    $region78: #{tpu_custom_call.1} parent=1 // pred_check
      _
    $region79: #{tpu_custom_call.1} parent=1 // pred_check_branch
      %121 = sbr.rel (0) target = $region81
    $region80: #{tpu_custom_call.1} parent=1 // pred_region
      _
    $region81: #{tpu_custom_call.1} parent=1 // pred_fallthru
      _
    // Predicated region
    $region82: #{tpu_custom_call.1} parent=1 // pred_check
      _
    $region83: #{tpu_custom_call.1} parent=1 // pred_check_branch
      %123 = sbr.rel (0) target = $region85
    $region84: #{tpu_custom_call.1} parent=1 // pred_region
      _
    $region85: #{tpu_custom_call.1} parent=1 // pred_fallthru
      _
    // Predicated region
    $region86: #{tpu_custom_call.1} parent=1 // pred_check
      _
    $region87: #{tpu_custom_call.1} parent=1 // pred_check_branch
      %125 = sbr.rel (0) target = $region89
    $region88: #{tpu_custom_call.1} parent=1 // pred_region
      _
    $region89: #{tpu_custom_call.1} parent=1 // pred_fallthru
      _
    // Predicated region
    $region90: #{tpu_custom_call.1} parent=1 // pred_check
      _
    $region91: #{tpu_custom_call.1} parent=1 // pred_check_branch
      %127 = sbr.rel (0) target = $region93
    $region92: #{tpu_custom_call.1} parent=1 // pred_region
      _
    $region93: #{tpu_custom_call.1} parent=1 // pred_fallthru
      _
    // Predicated region
    $region94: #{tpu_custom_call.1} parent=1 // pred_check
      _
    $region95: #{tpu_custom_call.1} parent=1 // pred_check_branch
      %129 = sbr.rel (0) target = $region97
    $region96: #{tpu_custom_call.1} parent=1 // pred_region
      %130 = dma.done [#allocation11], 16
    $region97: #{tpu_custom_call.1} parent=1 // pred_fallthru
      _
    // Predicated region
    $region98: #{tpu_custom_call.1} parent=1 // pred_check
      _
    $region99: #{tpu_custom_call.1} parent=1 // pred_check_branch
      %132 = sbr.rel (0) target = $region101
    $region100: #{tpu_custom_call.1} parent=1 // pred_region
      %133 = dma.done [#allocation14], 1152
    $region101: #{tpu_custom_call.1} parent=1 // pred_fallthru
      _
    // Predicated region
    $region102: #{tpu_custom_call.1} parent=1 // pred_check
      _
    $region103: #{tpu_custom_call.1} parent=1 // pred_check_branch
      %135 = sbr.rel (0) target = $region105
    $region104: #{tpu_custom_call.1} parent=1 // pred_region
      %136 = dma.done [#allocation14], 2560
    $region105: #{tpu_custom_call.1} parent=1 // pred_fallthru
      _
    // Predicated region
    $region106: #{tpu_custom_call.1} parent=1 // pred_check
      _
    $region107: #{tpu_custom_call.1} parent=1 // pred_check_branch
      %138 = sbr.rel (0) target = $region109
    $region108: #{tpu_custom_call.1} parent=1 // pred_region
      %139 = dma.done [#allocation17], 1920
    $region109: #{tpu_custom_call.1} parent=1 // pred_fallthru
      _
    // Predicated region
    $region110: #{tpu_custom_call.1} parent=1 // pred_check
      _
    $region111: #{tpu_custom_call.1} parent=1 // pred_check_branch
      %141 = sbr.rel (0) target = $region113
    $region112: #{tpu_custom_call.1} parent=1 // pred_region
      %142 = dma.done [#allocation17], 576
    $region113: #{tpu_custom_call.1} parent=1 // pred_fallthru
      _
    %vm144 = vcmask 483328
    %145 = vst.msk [vmem:[#allocation2] sm:$0x1] %vm144, 0.0
    %vm146 = vcmask 359424
    %147 = vst.msk [vmem:[#allocation3] sm:$0xff] %vm146, 0.0
    %148 = vst.msk [vmem:[#allocation3 + $0x8] sm:$0xff] %vm146, 0.0
    %149 = vst.msk [vmem:[#allocation3 + $0x10] sm:$0xff] %vm146, 0.0
    %vm150 = vcmask 293888
    %151 = vst.msk [vmem:[#allocation4] sm:$0xff] %vm150, 0.0
    %152 = vst.msk [vmem:[#allocation4 + $0x8] sm:$0xff] %vm150, 0.0
    %153 = vst.msk [vmem:[#allocation4 + $0x10] sm:$0xff] %vm150, 0.0
    %154 = vst.msk [vmem:[#allocation4 + $0x18] sm:$0xff] %vm150, 0.0
    %155 = vst.msk [vmem:[#allocation4 + $0x20] sm:$0xff] %vm150, 0.0
    %156 = vst.msk [vmem:[#allocation4 + $0x28] sm:$0xff] %vm150, 0.0
    %vm157 = vcmask 261120
    %158 = vst.msk [vmem:[#allocation5] sm:$0xff] %vm157, 0.0
    %159 = vst.msk [vmem:[#allocation5 + $0x8] sm:$0xff] %vm157, 0.0
    %160 = vst.msk [vmem:[#allocation5 + $0x10] sm:$0xff] %vm157, 0.0
    %161 = vst.msk [vmem:[#allocation5 + $0x18] sm:$0xff] %vm157, 0.0
    %162 = vst.msk [vmem:[#allocation5 + $0x20] sm:$0xff] %vm157, 0.0
    %163 = vst.msk [vmem:[#allocation5 + $0x28] sm:$0xff] %vm157, 0.0
    %164 = vst.msk [vmem:[#allocation5 + $0x30] sm:$0xff] %vm157, 0.0
    %165 = vst.msk [vmem:[#allocation5 + $0x38] sm:$0xff] %vm157, 0.0
    %vm166 = vcmask 130048
    %167 = vst.msk [vmem:[#allocation6] sm:$0xff] %vm166, 0.0
    %168 = vst.msk [vmem:[#allocation6 + $0x8] sm:$0xff] %vm166, 0.0
    %169 = vst.msk [vmem:[#allocation6 + $0x10] sm:$0xff] %vm166, 0.0
    %170 = vst.msk [vmem:[#allocation6 + $0x18] sm:$0xff] %vm166, 0.0
    %171 = vst.msk [vmem:[#allocation6 + $0x20] sm:$0xff] %vm166, 0.0
    %172 = vst.msk [vmem:[#allocation6 + $0x28] sm:$0xff] %vm166, 0.0
    %173 = vst.msk [vmem:[#allocation6 + $0x30] sm:$0xff] %vm166, 0.0
    %174 = vst.msk [vmem:[#allocation6 + $0x38] sm:$0xff] %vm166, 0.0
    %175 = vst.msk [vmem:[#allocation6 + $0x40] sm:$0xff] %vm166, 0.0
    %176 = vst.msk [vmem:[#allocation6 + $0x48] sm:$0xff] %vm166, 0.0
    %177 = vst.msk [vmem:[#allocation6 + $0x50] sm:$0xff] %vm166, 0.0
    %178 = vst.msk [vmem:[#allocation6 + $0x58] sm:$0xff] %vm166, 0.0
    %179 = vst.msk [vmem:[#allocation6 + $0x60] sm:$0xff] %vm166, 0.0
    %180 = vst.msk [vmem:[#allocation6 + $0x68] sm:$0xff] %vm166, 0.0
    %181 = vst.msk [vmem:[#allocation6 + $0x70] sm:$0xff] %vm166, 0.0
    %182 = vst.msk [vmem:[#allocation6 + $0x78] sm:$0xff] %vm166, 0.0
    %vm183 = vcmask 195584
    %184 = vst.msk [vmem:[#allocation7] sm:$0xff] %vm183, 0.0
    %185 = vst.msk [vmem:[#allocation7 + $0x8] sm:$0xff] %vm183, 0.0
    %186 = vst.msk [vmem:[#allocation7 + $0x10] sm:$0xff] %vm183, 0.0
    %187 = vst.msk [vmem:[#allocation7 + $0x18] sm:$0xff] %vm183, 0.0
    %188 = vst.msk [vmem:[#allocation7 + $0x20] sm:$0xff] %vm183, 0.0
    %189 = vst.msk [vmem:[#allocation7 + $0x28] sm:$0xff] %vm183, 0.0
    %190 = vst.msk [vmem:[#allocation7 + $0x30] sm:$0xff] %vm183, 0.0
    %191 = vst.msk [vmem:[#allocation7 + $0x38] sm:$0xff] %vm183, 0.0
    %192 = vst.msk [vmem:[#allocation7 + $0x40] sm:$0xff] %vm183, 0.0
    %193 = vst.msk [vmem:[#allocation7 + $0x48] sm:$0xff] %vm183, 0.0
    %194 = vst.msk [vmem:[#allocation7 + $0x50] sm:$0xff] %vm183, 0.0
    %195 = vst.msk [vmem:[#allocation7 + $0x58] sm:$0xff] %vm183, 0.0
    %196 = vst.msk [vmem:[#allocation7 + $0x60] sm:$0xff] %vm183, 0.0
    %197 = vst.msk [vmem:[#allocation7 + $0x68] sm:$0xff] %vm183, 0.0
    %vm198 = vcmask 326656
    %199 = vst.msk [vmem:[#allocation8] sm:$0xff] %vm198, 0.0
    %200 = vst.msk [vmem:[#allocation8 + $0x8] sm:$0xff] %vm198, 0.0
    %201 = vst.msk [vmem:[#allocation8 + $0x10] sm:$0xff] %vm198, 0.0
    %202 = vst.msk [vmem:[#allocation8 + $0x18] sm:$0xff] %vm198, 0.0
    %203 = vst.msk [vmem:[#allocation8 + $0x20] sm:$0xff] %vm198, 0.0
    %204 = vst.msk [vmem:[#allocation8 + $0x28] sm:$0xff] %vm198, 0.0
    %205 = vst.msk [vmem:[#allocation8 + $0x30] sm:$0xff] %vm198, 0.0
    %206 = vst.msk [vmem:[#allocation8 + $0x38] sm:$0xff] %vm198, 0.0
    %207 = vst.msk [vmem:[#allocation8 + $0x40] sm:$0xff] %vm198, 0.0
    %v208 = vld [vmem:[#allocation10] sm:$0x1]
    %v210 = vlaneseq
    %v211 = vshrl.u32 %v210, 7
    %v212 = vsub.s32 0, %v211
    %v213 = vrot.slane %v208, %v212
    %214 = vrot.lane.b32.xlu0 %v213, 7
    %v215 = vpop.permute.xlu0 %214
    %vm217 = vcmask 180280
    %218 = vst.msk [vmem:[#allocation2] sm:$0x1] %vm217, %v215
    %219 = vrot.lane.b32.xlu0 %v213, 21
    %v220 = vpop.permute.xlu0 %219
    %vm222 = vcmask 426280
    %223 = vst.msk [vmem:[#allocation2] sm:$0x1] %vm222, %v220
    %v224 = vld [vmem:[#allocation2] sm:$0x1]
    %v226 = vlaneseq
    %v227 = vshrl.u32 %v226, 7
    %v228 = vsub.s32 0, %v227
    %v229 = vrot.slane %v224, %v228
    %230 = vrot.lane.b32.xlu0 %v229, 114
    %v231 = vpop.permute.xlu0 %230
    %v233 = vsel %vm166, %v224, %v231
    %v234 = vld [vmem:[%s1] sm:$0xff]
    %v235 = vld [vmem:[%s1 + $0x8] sm:$0xff]
    %v236 = vld [vmem:[%s1 + $0x10] sm:$0xff]
    %238 = vset.pattern.permute.xlu0 0
    %239 = vperm.xlu0 %238, %v234
    %v240 = vpop.permute.xlu0 %239
    %243 = vset.pattern.permute.xlu0 0
    %244 = vperm.xlu0 %243, %v235
    %v245 = vpop.permute.xlu0 %244
    %248 = vset.pattern.permute.xlu0 0
    %249 = vperm.xlu0 %248, %v236
    %v250 = vpop.permute.xlu0 %249
    %v252 = vlaneseq
    %v253 = vshrl.u32 %v252, 7
    %v254 = vsub.s32 0, %v253
    %v255 = vrot.slane %v233, %v254
    %v256 = vmul.f32 %v240, %v255
    %v257 = vmul.f32 %v245, %v255
    %v258 = vmul.f32 %v250, %v255
    %259 = vrot.lane.b32.xlu0 %v229, 127
    %v260 = vpop.permute.xlu0 %259
    %262 = vrot.lane.b32.xlu0 %v229, 113
    %v263 = vpop.permute.xlu0 %262
    %v265 = vsel %vm166, %v260, %v263
    %266 = vset.pattern.permute.xlu0 1
    %267 = vperm.xlu0 %266, %v234
    %v268 = vpop.permute.xlu0 %267
    %270 = vset.pattern.permute.xlu0 1
    %271 = vperm.xlu0 %270, %v235
    %v272 = vpop.permute.xlu0 %271
    %274 = vset.pattern.permute.xlu0 1
    %275 = vperm.xlu0 %274, %v236
    %v276 = vpop.permute.xlu0 %275
    %v278 = vlaneseq
    %v279 = vshrl.u32 %v278, 7
    %v280 = vsub.s32 0, %v279
    %v281 = vrot.slane %v265, %v280
    %v282 = vmul.f32 %v268, %v281
    %v283 = vmul.f32 %v272, %v281
    %v284 = vmul.f32 %v276, %v281
    %v285 = vadd.f32 %v256, %v282
    %v286 = vadd.f32 %v257, %v283
    %v287 = vadd.f32 %v258, %v284
    %288 = vrot.lane.b32.xlu0 %v229, 126
    %v289 = vpop.permute.xlu0 %288
    %291 = vrot.lane.b32.xlu0 %v229, 112
    %v292 = vpop.permute.xlu0 %291
    %v294 = vsel %vm166, %v289, %v292
    %295 = vset.pattern.permute.xlu0 2
    %296 = vperm.xlu0 %295, %v234
    %v297 = vpop.permute.xlu0 %296
    %299 = vset.pattern.permute.xlu0 2
    %300 = vperm.xlu0 %299, %v235
    %v301 = vpop.permute.xlu0 %300
    %303 = vset.pattern.permute.xlu0 2
    %304 = vperm.xlu0 %303, %v236
    %v305 = vpop.permute.xlu0 %304
    %v307 = vlaneseq
    %v308 = vshrl.u32 %v307, 7
    %v309 = vsub.s32 0, %v308
    %v310 = vrot.slane %v294, %v309
    %v311 = vmul.f32 %v297, %v310
    %v312 = vmul.f32 %v301, %v310
    %v313 = vmul.f32 %v305, %v310
    %v314 = vadd.f32 %v285, %v311
    %v315 = vadd.f32 %v286, %v312
    %v316 = vadd.f32 %v287, %v313
    %317 = vrot.lane.b32.xlu0 %v229, 125
    %v318 = vpop.permute.xlu0 %317
    %320 = vrot.lane.b32.xlu0 %v229, 111
    %v321 = vpop.permute.xlu0 %320
    %v323 = vsel %vm166, %v318, %v321
    %324 = vset.pattern.permute.xlu0 3
    %325 = vperm.xlu0 %324, %v234
    %v326 = vpop.permute.xlu0 %325
    %328 = vset.pattern.permute.xlu0 3
    %329 = vperm.xlu0 %328, %v235
    %v330 = vpop.permute.xlu0 %329
    %332 = vset.pattern.permute.xlu0 3
    %333 = vperm.xlu0 %332, %v236
    %v334 = vpop.permute.xlu0 %333
    %v336 = vlaneseq
    %v337 = vshrl.u32 %v336, 7
    %v338 = vsub.s32 0, %v337
    %v339 = vrot.slane %v323, %v338
    %v340 = vmul.f32 %v326, %v339
    %v341 = vmul.f32 %v330, %v339
    %v342 = vmul.f32 %v334, %v339
    %v343 = vadd.f32 %v314, %v340
    %v344 = vadd.f32 %v315, %v341
    %v345 = vadd.f32 %v316, %v342
    %346 = vrot.lane.b32.xlu0 %v229, 124
    %v347 = vpop.permute.xlu0 %346
    %349 = vrot.lane.b32.xlu0 %v229, 110
    %v350 = vpop.permute.xlu0 %349
    %v352 = vsel %vm166, %v347, %v350
    %353 = vset.pattern.permute.xlu0 4
    %354 = vperm.xlu0 %353, %v234
    %v355 = vpop.permute.xlu0 %354
    %357 = vset.pattern.permute.xlu0 4
    %358 = vperm.xlu0 %357, %v235
    %v359 = vpop.permute.xlu0 %358
    %361 = vset.pattern.permute.xlu0 4
    %362 = vperm.xlu0 %361, %v236
    %v363 = vpop.permute.xlu0 %362
    %v365 = vlaneseq
    %v366 = vshrl.u32 %v365, 7
    %v367 = vsub.s32 0, %v366
    %v368 = vrot.slane %v352, %v367
    %v369 = vmul.f32 %v355, %v368
    %v370 = vmul.f32 %v359, %v368
    %v371 = vmul.f32 %v363, %v368
    %v372 = vadd.f32 %v343, %v369
    %v373 = vadd.f32 %v344, %v370
    %v374 = vadd.f32 %v345, %v371
    %375 = vrot.lane.b32.xlu0 %v229, 123
    %v376 = vpop.permute.xlu0 %375
    %378 = vrot.lane.b32.xlu0 %v229, 109
    %v379 = vpop.permute.xlu0 %378
    %v381 = vsel %vm166, %v376, %v379
    %382 = vset.pattern.permute.xlu0 5
    %383 = vperm.xlu0 %382, %v234
    %v384 = vpop.permute.xlu0 %383
    %386 = vset.pattern.permute.xlu0 5
    %387 = vperm.xlu0 %386, %v235
    %v388 = vpop.permute.xlu0 %387
    %390 = vset.pattern.permute.xlu0 5
    %391 = vperm.xlu0 %390, %v236
    %v392 = vpop.permute.xlu0 %391
    %v394 = vlaneseq
    %v395 = vshrl.u32 %v394, 7
    %v396 = vsub.s32 0, %v395
    %v397 = vrot.slane %v381, %v396
    %v398 = vmul.f32 %v384, %v397
    %v399 = vmul.f32 %v388, %v397
    %v400 = vmul.f32 %v392, %v397
    %v401 = vadd.f32 %v372, %v398
    %v402 = vadd.f32 %v373, %v399
    %v403 = vadd.f32 %v374, %v400
    %404 = vrot.lane.b32.xlu0 %v229, 122
    %v405 = vpop.permute.xlu0 %404
    %407 = vrot.lane.b32.xlu0 %v229, 108
    %v408 = vpop.permute.xlu0 %407
    %v410 = vsel %vm166, %v405, %v408
    %411 = vset.pattern.permute.xlu0 6
    %412 = vperm.xlu0 %411, %v234
    %v413 = vpop.permute.xlu0 %412
    %415 = vset.pattern.permute.xlu0 6
    %416 = vperm.xlu0 %415, %v235
    %v417 = vpop.permute.xlu0 %416
    %419 = vset.pattern.permute.xlu0 6
    %420 = vperm.xlu0 %419, %v236
    %v421 = vpop.permute.xlu0 %420
    %v423 = vlaneseq
    %v424 = vshrl.u32 %v423, 7
    %v425 = vsub.s32 0, %v424
    %v426 = vrot.slane %v410, %v425
    %v427 = vmul.f32 %v413, %v426
    %v428 = vmul.f32 %v417, %v426
    %v429 = vmul.f32 %v421, %v426
    %v430 = vadd.f32 %v401, %v427
    %v431 = vadd.f32 %v402, %v428
    %v432 = vadd.f32 %v403, %v429
    %433 = vrot.lane.b32.xlu0 %v229, 121
    %v434 = vpop.permute.xlu0 %433
    %436 = vrot.lane.b32.xlu0 %v229, 107
    %v437 = vpop.permute.xlu0 %436
    %v439 = vsel %vm166, %v434, %v437
    %440 = vset.pattern.permute.xlu0 7
    %441 = vperm.xlu0 %440, %v234
    %v442 = vpop.permute.xlu0 %441
    %444 = vset.pattern.permute.xlu0 7
    %445 = vperm.xlu0 %444, %v235
    %v446 = vpop.permute.xlu0 %445
    %448 = vset.pattern.permute.xlu0 7
    %449 = vperm.xlu0 %448, %v236
    %v450 = vpop.permute.xlu0 %449
    %v452 = vlaneseq
    %v453 = vshrl.u32 %v452, 7
    %v454 = vsub.s32 0, %v453
    %v455 = vrot.slane %v439, %v454
    %v456 = vmul.f32 %v442, %v455
    %v457 = vmul.f32 %v446, %v455
    %v458 = vmul.f32 %v450, %v455
    %v459 = vadd.f32 %v430, %v456
    %v460 = vadd.f32 %v431, %v457
    %v461 = vadd.f32 %v432, %v458
    %462 = vrot.lane.b32.xlu0 %v229, 120
    %v463 = vpop.permute.xlu0 %462
    %465 = vrot.lane.b32.xlu0 %v229, 106
    %v466 = vpop.permute.xlu0 %465
    %v468 = vsel %vm166, %v463, %v466
    %469 = vset.pattern.permute.xlu0 8
    %470 = vperm.xlu0 %469, %v234
    %v471 = vpop.permute.xlu0 %470
    %473 = vset.pattern.permute.xlu0 8
    %474 = vperm.xlu0 %473, %v235
    %v475 = vpop.permute.xlu0 %474
    %477 = vset.pattern.permute.xlu0 8
    %478 = vperm.xlu0 %477, %v236
    %v479 = vpop.permute.xlu0 %478
    %v481 = vlaneseq
    %v482 = vshrl.u32 %v481, 7
    %v483 = vsub.s32 0, %v482
    %v484 = vrot.slane %v468, %v483
    %v485 = vmul.f32 %v471, %v484
    %v486 = vmul.f32 %v475, %v484
    %v487 = vmul.f32 %v479, %v484
    %v488 = vadd.f32 %v459, %v485
    %v489 = vadd.f32 %v460, %v486
    %v490 = vadd.f32 %v461, %v487
    %491 = vrot.lane.b32.xlu0 %v229, 119
    %v492 = vpop.permute.xlu0 %491
    %494 = vrot.lane.b32.xlu0 %v229, 105
    %v495 = vpop.permute.xlu0 %494
    %v497 = vsel %vm166, %v492, %v495
    %498 = vset.pattern.permute.xlu0 9
    %499 = vperm.xlu0 %498, %v234
    %v500 = vpop.permute.xlu0 %499
    %502 = vset.pattern.permute.xlu0 9
    %503 = vperm.xlu0 %502, %v235
    %v504 = vpop.permute.xlu0 %503
    %506 = vset.pattern.permute.xlu0 9
    %507 = vperm.xlu0 %506, %v236
    %v508 = vpop.permute.xlu0 %507
    %v510 = vlaneseq
    %v511 = vshrl.u32 %v510, 7
    %v512 = vsub.s32 0, %v511
    %v513 = vrot.slane %v497, %v512
    %v514 = vmul.f32 %v500, %v513
    %v515 = vmul.f32 %v504, %v513
    %v516 = vmul.f32 %v508, %v513
    %v517 = vadd.f32 %v488, %v514
    %v518 = vadd.f32 %v489, %v515
    %v519 = vadd.f32 %v490, %v516
    %520 = vrot.lane.b32.xlu0 %v229, 118
    %v521 = vpop.permute.xlu0 %520
    %523 = vrot.lane.b32.xlu0 %v229, 104
    %v524 = vpop.permute.xlu0 %523
    %v526 = vsel %vm166, %v521, %v524
    %527 = vset.pattern.permute.xlu0 10
    %528 = vperm.xlu0 %527, %v234
    %v529 = vpop.permute.xlu0 %528
    %531 = vset.pattern.permute.xlu0 10
    %532 = vperm.xlu0 %531, %v235
    %v533 = vpop.permute.xlu0 %532
    %535 = vset.pattern.permute.xlu0 10
    %536 = vperm.xlu0 %535, %v236
    %v537 = vpop.permute.xlu0 %536
    %v539 = vlaneseq
    %v540 = vshrl.u32 %v539, 7
    %v541 = vsub.s32 0, %v540
    %v542 = vrot.slane %v526, %v541
    %v543 = vmul.f32 %v529, %v542
    %v544 = vmul.f32 %v533, %v542
    %v545 = vmul.f32 %v537, %v542
    %v546 = vadd.f32 %v517, %v543
    %v547 = vadd.f32 %v518, %v544
    %v548 = vadd.f32 %v519, %v545
    %549 = vrot.lane.b32.xlu0 %v229, 117
    %v550 = vpop.permute.xlu0 %549
    %552 = vrot.lane.b32.xlu0 %v229, 103
    %v553 = vpop.permute.xlu0 %552
    %v555 = vsel %vm166, %v550, %v553
    %556 = vset.pattern.permute.xlu0 11
    %557 = vperm.xlu0 %556, %v234
    %v558 = vpop.permute.xlu0 %557
    %560 = vset.pattern.permute.xlu0 11
    %561 = vperm.xlu0 %560, %v235
    %v562 = vpop.permute.xlu0 %561
    %564 = vset.pattern.permute.xlu0 11
    %565 = vperm.xlu0 %564, %v236
    %v566 = vpop.permute.xlu0 %565
    %v568 = vlaneseq
    %v569 = vshrl.u32 %v568, 7
    %v570 = vsub.s32 0, %v569
    %v571 = vrot.slane %v555, %v570
    %v572 = vmul.f32 %v558, %v571
    %v573 = vmul.f32 %v562, %v571
    %v574 = vmul.f32 %v566, %v571
    %v575 = vadd.f32 %v546, %v572
    %v576 = vadd.f32 %v547, %v573
    %v577 = vadd.f32 %v548, %v574
    %578 = vrot.lane.b32.xlu0 %v229, 116
    %v579 = vpop.permute.xlu0 %578
    %581 = vrot.lane.b32.xlu0 %v229, 102
    %v582 = vpop.permute.xlu0 %581
    %v584 = vsel %vm166, %v579, %v582
    %585 = vset.pattern.permute.xlu0 12
    %586 = vperm.xlu0 %585, %v234
    %v587 = vpop.permute.xlu0 %586
    %589 = vset.pattern.permute.xlu0 12
    %590 = vperm.xlu0 %589, %v235
    %v591 = vpop.permute.xlu0 %590
    %593 = vset.pattern.permute.xlu0 12
    %594 = vperm.xlu0 %593, %v236
    %v595 = vpop.permute.xlu0 %594
    %v597 = vlaneseq
    %v598 = vshrl.u32 %v597, 7
    %v599 = vsub.s32 0, %v598
    %v600 = vrot.slane %v584, %v599
    %v601 = vmul.f32 %v587, %v600
    %v602 = vmul.f32 %v591, %v600
    %v603 = vmul.f32 %v595, %v600
    %v604 = vadd.f32 %v575, %v601
    %v605 = vadd.f32 %v576, %v602
    %v606 = vadd.f32 %v577, %v603
    %607 = vrot.lane.b32.xlu0 %v229, 115
    %v608 = vpop.permute.xlu0 %607
    %610 = vrot.lane.b32.xlu0 %v229, 101
    %v611 = vpop.permute.xlu0 %610
    %v613 = vsel %vm166, %v608, %v611
    %614 = vset.pattern.permute.xlu0 13
    %615 = vperm.xlu0 %614, %v234
    %v616 = vpop.permute.xlu0 %615
    %618 = vset.pattern.permute.xlu0 13
    %619 = vperm.xlu0 %618, %v235
    %v620 = vpop.permute.xlu0 %619
    %622 = vset.pattern.permute.xlu0 13
    %623 = vperm.xlu0 %622, %v236
    %v624 = vpop.permute.xlu0 %623
    %v626 = vlaneseq
    %v627 = vshrl.u32 %v626, 7
    %v628 = vsub.s32 0, %v627
    %v629 = vrot.slane %v613, %v628
    %v630 = vmul.f32 %v616, %v629
    %v631 = vmul.f32 %v620, %v629
    %v632 = vmul.f32 %v624, %v629
    %v633 = vadd.f32 %v604, %v630
    %v634 = vadd.f32 %v605, %v631
    %v635 = vadd.f32 %v606, %v632
    %636 = vrot.lane.b32.xlu0 %v229, 100
    %v637 = vpop.permute.xlu0 %636
    %v639 = vsel %vm166, %v231, %v637
    %640 = vset.pattern.permute.xlu0 14
    %641 = vperm.xlu0 %640, %v234
    %v642 = vpop.permute.xlu0 %641
    %644 = vset.pattern.permute.xlu0 14
    %645 = vperm.xlu0 %644, %v235
    %v646 = vpop.permute.xlu0 %645
    %648 = vset.pattern.permute.xlu0 14
    %649 = vperm.xlu0 %648, %v236
    %v650 = vpop.permute.xlu0 %649
    %v652 = vlaneseq
    %v653 = vshrl.u32 %v652, 7
    %v654 = vsub.s32 0, %v653
    %v655 = vrot.slane %v639, %v654
    %v656 = vmul.f32 %v642, %v655
    %v657 = vmul.f32 %v646, %v655
    %v658 = vmul.f32 %v650, %v655
    %v659 = vadd.f32 %v633, %v656
    %v660 = vadd.f32 %v634, %v657
    %v661 = vadd.f32 %v635, %v658
    %v662 = vld [vmem:[%s2] sm:$0xff]
    %v663 = vld [vmem:[%s2 + $0x8] sm:$0xff]
    %v664 = vld [vmem:[%s2 + $0x10] sm:$0xff]
    %666 = vset.pattern.permute.xlu0 0
    %667 = vperm.xlu0 %666, %v662
    %v668 = vpop.permute.xlu0 %667
    %671 = vset.pattern.permute.xlu0 0
    %672 = vperm.xlu0 %671, %v663
    %v673 = vpop.permute.xlu0 %672
    %676 = vset.pattern.permute.xlu0 0
    %677 = vperm.xlu0 %676, %v664
    %v678 = vpop.permute.xlu0 %677
    %v680 = vadd.f32 %v659, %v668
    %v681 = vadd.f32 %v660, %v673
    %v682 = vadd.f32 %v661, %v678
    %v683 = vsel %vm157, %v680, 0.0
    %684 = vadd.xlane.f32.xlu0 %v683
    %v685 = vpop.xlane.xlu0 %684
    %v686 = vsel %vm157, %v681, 0.0
    %687 = vadd.xlane.f32.xlu0 %v686
    %v688 = vpop.xlane.xlu0 %687
    %v689 = vsel %vm157, %v682, 0.0
    %690 = vadd.xlane.f32.xlu0 %v689
    %v691 = vpop.xlane.xlu0 %690
    %v692 = vmul.f32 %v680, %v680
    %v693 = vmul.f32 %v681, %v681
    %v694 = vmul.f32 %v682, %v682
    %v695 = vsel %vm157, %v692, 0.0
    %696 = vadd.xlane.f32.xlu0 %v695
    %v697 = vpop.xlane.xlu0 %696
    %v698 = vsel %vm157, %v693, 0.0
    %699 = vadd.xlane.f32.xlu0 %v698
    %v700 = vpop.xlane.xlu0 %699
    %v701 = vsel %vm157, %v694, 0.0
    %702 = vadd.xlane.f32.xlu0 %v701
    %v703 = vpop.xlane.xlu0 %702
    %v704 = vmul.f32 %v685, 0.03125
    %v705 = vmul.f32 %v688, 0.03125
    %v706 = vmul.f32 %v691, 0.03125
    %v707 = vmul.f32 %v697, 0.03125
    %v708 = vmul.f32 %v700, 0.03125
    %v709 = vmul.f32 %v703, 0.03125
    %v710 = vmul.f32 %v704, %v704
    %v711 = vmul.f32 %v705, %v705
    %v712 = vmul.f32 %v706, %v706
    %v713 = vsub.f32 %v707, %v710
    %v714 = vsub.f32 %v708, %v711
    %v715 = vsub.f32 %v709, %v712
    %v716 = vmax.f32 %v713, 0.0
    %v717 = vmax.f32 %v714, 0.0
    %v718 = vmax.f32 %v715, 0.0
    %v719 = vadd.f32 %v716, 1e-05
    %v720 = vadd.f32 %v717, 1e-05
    %v721 = vadd.f32 %v718, 1e-05
    %v722 = vrsqrt.pop %v719
    %v723 = vrsqrt.pop %v720
    %v724 = vrsqrt.pop %v721
    %v725 = vmul.f32 %v722, %v662
    %v726 = vmul.f32 %v723, %v663
    %v727 = vmul.f32 %v724, %v664
    %v728 = vmul.f32 %v704, %v725
    %v729 = vmul.f32 %v705, %v726
    %v730 = vmul.f32 %v706, %v727
    %734 = vrot.lane.b32.xlu0 %v728, 1
    %v735 = vpop.permute.xlu0 %734
    %736 = vrot.lane.b32.xlu0 %v729, 1
    %v737 = vpop.permute.xlu0 %736
    %738 = vrot.lane.b32.xlu0 %v730, 1
    %v739 = vpop.permute.xlu0 %738
    %v743 = vsub.f32 %v662, %v735
    %v744 = vsub.f32 %v663, %v737
    %v745 = vsub.f32 %v664, %v739
    %747 = vset.pattern.permute.xlu0 1
    %748 = vperm.xlu0 %747, %v725
    %v749 = vpop.permute.xlu0 %748
    %752 = vset.pattern.permute.xlu0 1
    %753 = vperm.xlu0 %752, %v726
    %v754 = vpop.permute.xlu0 %753
    %757 = vset.pattern.permute.xlu0 1
    %758 = vperm.xlu0 %757, %v727
    %v759 = vpop.permute.xlu0 %758
    %v761 = vmul.f32 %v680, %v749
    %v762 = vmul.f32 %v681, %v754
    %v763 = vmul.f32 %v682, %v759
    %765 = vset.pattern.permute.xlu0 2
    %766 = vperm.xlu0 %765, %v743
    %v767 = vpop.permute.xlu0 %766
    %770 = vset.pattern.permute.xlu0 2
    %771 = vperm.xlu0 %770, %v744
    %v772 = vpop.permute.xlu0 %771
    %775 = vset.pattern.permute.xlu0 2
    %776 = vperm.xlu0 %775, %v745
    %v777 = vpop.permute.xlu0 %776
    %v779 = vadd.f32 %v761, %v767
    %v780 = vadd.f32 %v762, %v772
    %v781 = vadd.f32 %v763, %v777
    %vm782 = vcmp.gt.f32.partialorder %v779, 0.0
    %vm783 = vcmp.gt.f32.partialorder %v780, 0.0
    %vm784 = vcmp.gt.f32.partialorder %v781, 0.0
    %v785 = vmul.f32 %v779, 0.01
    %v786 = vmul.f32 %v780, 0.01
    %v787 = vmul.f32 %v781, 0.01
    %v788 = vsel %vm782, %v779, %v785
    %v789 = vsel %vm783, %v780, %v786
    %v790 = vsel %vm784, %v781, %v787
    %794 = vrot.lane.b32.xlu0 %v788, 2
    %v795 = vpop.permute.xlu0 %794
    %796 = vrot.lane.b32.xlu0 %v789, 2
    %v797 = vpop.permute.xlu0 %796
    %798 = vrot.lane.b32.xlu0 %v790, 2
    %v799 = vpop.permute.xlu0 %798
    %vm803 = vcmask 146448
    %804 = vst.msk [vmem:[#allocation8 + $0x30] sm:$0xff] %vm803, %v795
    %805 = vst.msk [vmem:[#allocation8 + $0x38] sm:$0xff] %vm803, %v797
    %806 = vst.msk [vmem:[#allocation8 + $0x40] sm:$0xff] %vm803, %v799
    %807 = vrot.lane.b32.xlu0 %v788, 6
    %v808 = vpop.permute.xlu0 %807
    %809 = vrot.lane.b32.xlu0 %v789, 6
    %v810 = vpop.permute.xlu0 %809
    %811 = vrot.lane.b32.xlu0 %v790, 6
    %v812 = vpop.permute.xlu0 %811
    %vm816 = vcmask 310448
    %817 = vst.msk [vmem:[#allocation8 + $0x30] sm:$0xff] %vm816, %v808
    %818 = vst.msk [vmem:[#allocation8 + $0x38] sm:$0xff] %vm816, %v810
    %819 = vst.msk [vmem:[#allocation8 + $0x40] sm:$0xff] %vm816, %v812
    %v820 = vld [vmem:[%s17] sm:$0xf]
    %v821 = vld [vmem:[%s17 + $0x4] sm:$0xf]
    %v822 = vpack.c.bf16 %v789, %v788
    %v823 = vpack.c.bf16 %v790, %v790
    %v826 = vunpack.c.l.b16 %v820
    %v827 = vunpack.c.l.b16 %v821
    %v828 = vpack.c.b16 %v827, %v826
    %v831 = vsel %vm166, %v822, 0
    %v834 = vsel %vm166, %v823, 0
    %836 = vmatprep.subr.bf16.mxu0 0
    %837 = vmatpush1.bf16.msra.mxu0 %v828
    %838 = vmatprep.subr.bf16.mxu0 0
    %839 = vmatpush1.bf16.msra.mxu0 0
    %840 = vmatprep.subr.bf16.mxu0 0
    %841 = vmatpush1.bf16.msra.mxu0 0
    %842 = vmatprep.subr.bf16.mxu0 0
    %843 = vmatpush1.bf16.msra.mxu0 0
    %844 = vmatprep.subr.bf16.mxu0 0
    %845 = vmatpush1.bf16.msra.mxu0 0
    %846 = vmatprep.subr.bf16.mxu0 0
    %847 = vmatpush1.bf16.msra.mxu0 0
    %848 = vmatprep.subr.bf16.mxu0 0
    %849 = vmatpush1.bf16.msra.mxu0 0
    %850 = vmatprep.subr.bf16.mxu0 0
    %851 = vmatpush1.bf16.msra.mxu0 0
    %852 = vmatprep.subr.bf16.mxu0 0
    %853 = vmatpush1.bf16.msra.mxu0 0
    %854 = vmatprep.subr.bf16.mxu0 0
    %855 = vmatpush1.bf16.msra.mxu0 0
    %856 = vmatprep.subr.bf16.mxu0 0
    %857 = vmatpush1.bf16.msra.mxu0 0
    %858 = vmatprep.subr.bf16.mxu0 0
    %859 = vmatpush1.bf16.msra.mxu0 0
    %860 = vmatprep.subr.bf16.mxu0 0
    %861 = vmatpush1.bf16.msra.mxu0 0
    %862 = vmatprep.subr.bf16.mxu0 0
    %863 = vmatpush1.bf16.msra.mxu0 0
    %864 = vmatprep.subr.bf16.mxu0 0
    %865 = vmatpush1.bf16.msra.mxu0 0
    %866 = vmatprep.subr.bf16.mxu0 0
    %867 = vmatpush1.bf16.msra.mxu0 0
    %868 = vmatprep.mubr.bf16.mxu0 0
    %869 = vmatmul.mubr.bf16.gmra.mrb[0].mxu0 %v831
    %v870 = vpop.f32.mrb[0].mxu0
    %v871 = vadd.f32 0.0, %v870
    %v872 = vpop.f32.mrb[0].mxu0
    %v873 = vpop.f32.mrb[0].mxu0
    %v874 = vadd.f32 0.0, %v873
    %v875 = vpop.f32.mrb[0].mxu0
    %876 = vmatprep.mubr.bf16.mxu0 0
    %877 = vmatmul.mubr.bf16.gmra.mrb[0].mxu0 %v834
    %v878 = vpop.f32.mrb[0].mxu0
    %v879 = vadd.f32 0.0, %v878
    %v880 = vpop.f32.mrb[0].mxu0
    %v881 = vpop.f32.mrb[0].mxu0
    %v882 = vpop.f32.mrb[0].mxu0
    %883 = vdwg.mxu0
    %887 = vrot.lane.b32.xlu0 %v871, 7
    %v888 = vpop.permute.xlu0 %887
    %889 = vrot.lane.b32.xlu0 %v874, 7
    %v890 = vpop.permute.xlu0 %889
    %891 = vrot.lane.b32.xlu0 %v879, 7
    %v892 = vpop.permute.xlu0 %891
    %vm896 = vcmask 121912
    %897 = vst.msk [vmem:[#allocation3] sm:$0xff] %vm896, %v888
    %898 = vst.msk [vmem:[#allocation3 + $0x8] sm:$0xff] %vm896, %v890
    %899 = vst.msk [vmem:[#allocation3 + $0x10] sm:$0xff] %vm896, %v892
    %902 = vrot.lane.b32.xlu0 %v822, 112
    %v903 = vpop.permute.xlu0 %902
    %904 = vrot.lane.b32.xlu0 %v823, 112
    %v905 = vpop.permute.xlu0 %904
    %v907 = vsel %vm166, %v903, 0
    %v910 = vsel %vm166, %v905, 0
    %912 = vmatprep.subr.bf16.mxu0 0
    %913 = vmatpush1.bf16.msra.mxu0 %v828
    %914 = vmatprep.subr.bf16.mxu0 0
    %915 = vmatpush1.bf16.msra.mxu0 0
    %916 = vmatprep.subr.bf16.mxu0 0
    %917 = vmatpush1.bf16.msra.mxu0 0
    %918 = vmatprep.subr.bf16.mxu0 0
    %919 = vmatpush1.bf16.msra.mxu0 0
    %920 = vmatprep.subr.bf16.mxu0 0
    %921 = vmatpush1.bf16.msra.mxu0 0
    %922 = vmatprep.subr.bf16.mxu0 0
    %923 = vmatpush1.bf16.msra.mxu0 0
    %924 = vmatprep.subr.bf16.mxu0 0
    %925 = vmatpush1.bf16.msra.mxu0 0
    %926 = vmatprep.subr.bf16.mxu0 0
    %927 = vmatpush1.bf16.msra.mxu0 0
    %928 = vmatprep.subr.bf16.mxu0 0
    %929 = vmatpush1.bf16.msra.mxu0 0
    %930 = vmatprep.subr.bf16.mxu0 0
    %931 = vmatpush1.bf16.msra.mxu0 0
    %932 = vmatprep.subr.bf16.mxu0 0
    %933 = vmatpush1.bf16.msra.mxu0 0
    %934 = vmatprep.subr.bf16.mxu0 0
    %935 = vmatpush1.bf16.msra.mxu0 0
    %936 = vmatprep.subr.bf16.mxu0 0
    %937 = vmatpush1.bf16.msra.mxu0 0
    %938 = vmatprep.subr.bf16.mxu0 0
    %939 = vmatpush1.bf16.msra.mxu0 0
    %940 = vmatprep.subr.bf16.mxu0 0
    %941 = vmatpush1.bf16.msra.mxu0 0
    %942 = vmatprep.subr.bf16.mxu0 0
    %943 = vmatpush1.bf16.msra.mxu0 0
    %944 = vmatprep.mubr.bf16.mxu0 0
    %945 = vmatmul.mubr.bf16.gmra.mrb[0].mxu0 %v907
    %v946 = vpop.f32.mrb[0].mxu0
    %v947 = vadd.f32 0.0, %v946
    %v948 = vpop.f32.mrb[0].mxu0
    %v949 = vpop.f32.mrb[0].mxu0
    %v950 = vadd.f32 0.0, %v949
    %v951 = vpop.f32.mrb[0].mxu0
    %952 = vmatprep.mubr.bf16.mxu0 0
    %953 = vmatmul.mubr.bf16.gmra.mrb[0].mxu0 %v910
    %v954 = vpop.f32.mrb[0].mxu0
    %v955 = vadd.f32 0.0, %v954
    %v956 = vpop.f32.mrb[0].mxu0
    %v957 = vpop.f32.mrb[0].mxu0
    %v958 = vpop.f32.mrb[0].mxu0
    %959 = vdwg.mxu0
    %963 = vrot.lane.b32.xlu0 %v947, 29
    %v964 = vpop.permute.xlu0 %963
    %965 = vrot.lane.b32.xlu0 %v950, 29
    %v966 = vpop.permute.xlu0 %965
    %967 = vrot.lane.b32.xlu0 %v955, 29
    %v968 = vpop.permute.xlu0 %967
    %vm972 = vcmask 302312
    %973 = vst.msk [vmem:[#allocation3] sm:$0xff] %vm972, %v964
    %974 = vst.msk [vmem:[#allocation3 + $0x8] sm:$0xff] %vm972, %v966
    %975 = vst.msk [vmem:[#allocation3 + $0x10] sm:$0xff] %vm972, %v968
    %v976 = vld [vmem:[#allocation3] sm:$0xff]
    %v977 = vld [vmem:[#allocation3 + $0x8] sm:$0xff]
    %v978 = vld [vmem:[#allocation3 + $0x10] sm:$0xff]
    %982 = vrot.lane.b32.xlu0 %v976, 114
    %v983 = vpop.permute.xlu0 %982
    %984 = vrot.lane.b32.xlu0 %v977, 114
    %v985 = vpop.permute.xlu0 %984
    %986 = vrot.lane.b32.xlu0 %v978, 114
    %v987 = vpop.permute.xlu0 %986
    %vm991 = vcmask 64512
    %v992 = vsel %vm991, %v976, %v983
    %v993 = vsel %vm991, %v977, %v985
    %v994 = vsel %vm991, %v978, %v987
    %995 = vrot.lane.b32.xlu0 %v976, 127
    %v996 = vpop.permute.xlu0 %995
    %997 = vrot.lane.b32.xlu0 %v977, 127
    %v998 = vpop.permute.xlu0 %997
    %999 = vrot.lane.b32.xlu0 %v978, 127
    %v1000 = vpop.permute.xlu0 %999
    %1004 = vrot.lane.b32.xlu0 %v976, 113
    %v1005 = vpop.permute.xlu0 %1004
    %1006 = vrot.lane.b32.xlu0 %v977, 113
    %v1007 = vpop.permute.xlu0 %1006
    %1008 = vrot.lane.b32.xlu0 %v978, 113
    %v1009 = vpop.permute.xlu0 %1008
    %v1013 = vsel %vm991, %v996, %v1005
    %v1014 = vsel %vm991, %v998, %v1007
    %v1015 = vsel %vm991, %v1000, %v1009
    %1016 = vrot.lane.b32.xlu0 %v976, 126
    %v1017 = vpop.permute.xlu0 %1016
    %1018 = vrot.lane.b32.xlu0 %v977, 126
    %v1019 = vpop.permute.xlu0 %1018
    %1020 = vrot.lane.b32.xlu0 %v978, 126
    %v1021 = vpop.permute.xlu0 %1020
    %1025 = vrot.lane.b32.xlu0 %v976, 112
    %v1026 = vpop.permute.xlu0 %1025
    %1027 = vrot.lane.b32.xlu0 %v977, 112
    %v1028 = vpop.permute.xlu0 %1027
    %1029 = vrot.lane.b32.xlu0 %v978, 112
    %v1030 = vpop.permute.xlu0 %1029
    %v1034 = vsel %vm991, %v1017, %v1026
    %v1035 = vsel %vm991, %v1019, %v1028
    %v1036 = vsel %vm991, %v1021, %v1030
    %1037 = vrot.lane.b32.xlu0 %v976, 125
    %v1038 = vpop.permute.xlu0 %1037
    %1039 = vrot.lane.b32.xlu0 %v977, 125
    %v1040 = vpop.permute.xlu0 %1039
    %1041 = vrot.lane.b32.xlu0 %v978, 125
    %v1042 = vpop.permute.xlu0 %1041
    %1046 = vrot.lane.b32.xlu0 %v976, 111
    %v1047 = vpop.permute.xlu0 %1046
    %1048 = vrot.lane.b32.xlu0 %v977, 111
    %v1049 = vpop.permute.xlu0 %1048
    %1050 = vrot.lane.b32.xlu0 %v978, 111
    %v1051 = vpop.permute.xlu0 %1050
    %v1055 = vsel %vm991, %v1038, %v1047
    %v1056 = vsel %vm991, %v1040, %v1049
    %v1057 = vsel %vm991, %v1042, %v1051
    %1058 = vrot.lane.b32.xlu0 %v976, 124
    %v1059 = vpop.permute.xlu0 %1058
    %1060 = vrot.lane.b32.xlu0 %v977, 124
    %v1061 = vpop.permute.xlu0 %1060
    %1062 = vrot.lane.b32.xlu0 %v978, 124
    %v1063 = vpop.permute.xlu0 %1062
    %1067 = vrot.lane.b32.xlu0 %v976, 110
    %v1068 = vpop.permute.xlu0 %1067
    %1069 = vrot.lane.b32.xlu0 %v977, 110
    %v1070 = vpop.permute.xlu0 %1069
    %1071 = vrot.lane.b32.xlu0 %v978, 110
    %v1072 = vpop.permute.xlu0 %1071
    %v1076 = vsel %vm991, %v1059, %v1068
    %v1077 = vsel %vm991, %v1061, %v1070
    %v1078 = vsel %vm991, %v1063, %v1072
    %1079 = vrot.lane.b32.xlu0 %v976, 123
    %v1080 = vpop.permute.xlu0 %1079
    %1081 = vrot.lane.b32.xlu0 %v977, 123
    %v1082 = vpop.permute.xlu0 %1081
    %1083 = vrot.lane.b32.xlu0 %v978, 123
    %v1084 = vpop.permute.xlu0 %1083
    %1088 = vrot.lane.b32.xlu0 %v976, 109
    %v1089 = vpop.permute.xlu0 %1088
    %1090 = vrot.lane.b32.xlu0 %v977, 109
    %v1091 = vpop.permute.xlu0 %1090
    %1092 = vrot.lane.b32.xlu0 %v978, 109
    %v1093 = vpop.permute.xlu0 %1092
    %v1097 = vsel %vm991, %v1080, %v1089
    %v1098 = vsel %vm991, %v1082, %v1091
    %v1099 = vsel %vm991, %v1084, %v1093
    %1100 = vrot.lane.b32.xlu0 %v976, 122
    %v1101 = vpop.permute.xlu0 %1100
    %1102 = vrot.lane.b32.xlu0 %v977, 122
    %v1103 = vpop.permute.xlu0 %1102
    %1104 = vrot.lane.b32.xlu0 %v978, 122
    %v1105 = vpop.permute.xlu0 %1104
    %1109 = vrot.lane.b32.xlu0 %v976, 108
    %v1110 = vpop.permute.xlu0 %1109
    %1111 = vrot.lane.b32.xlu0 %v977, 108
    %v1112 = vpop.permute.xlu0 %1111
    %1113 = vrot.lane.b32.xlu0 %v978, 108
    %v1114 = vpop.permute.xlu0 %1113
    %v1118 = vsel %vm991, %v1101, %v1110
    %v1119 = vsel %vm991, %v1103, %v1112
    %v1120 = vsel %vm991, %v1105, %v1114
    %1121 = vrot.lane.b32.xlu0 %v976, 121
    %v1122 = vpop.permute.xlu0 %1121
    %1123 = vrot.lane.b32.xlu0 %v977, 121
    %v1124 = vpop.permute.xlu0 %1123
    %1125 = vrot.lane.b32.xlu0 %v978, 121
    %v1126 = vpop.permute.xlu0 %1125
    %1130 = vrot.lane.b32.xlu0 %v976, 107
    %v1131 = vpop.permute.xlu0 %1130
    %1132 = vrot.lane.b32.xlu0 %v977, 107
    %v1133 = vpop.permute.xlu0 %1132
    %1134 = vrot.lane.b32.xlu0 %v978, 107
    %v1135 = vpop.permute.xlu0 %1134
    %v1139 = vsel %vm991, %v1122, %v1131
    %v1140 = vsel %vm991, %v1124, %v1133
    %v1141 = vsel %vm991, %v1126, %v1135
    %1142 = vrot.lane.b32.xlu0 %v976, 120
    %v1143 = vpop.permute.xlu0 %1142
    %1144 = vrot.lane.b32.xlu0 %v977, 120
    %v1145 = vpop.permute.xlu0 %1144
    %1146 = vrot.lane.b32.xlu0 %v978, 120
    %v1147 = vpop.permute.xlu0 %1146
    %1151 = vrot.lane.b32.xlu0 %v976, 106
    %v1152 = vpop.permute.xlu0 %1151
    %1153 = vrot.lane.b32.xlu0 %v977, 106
    %v1154 = vpop.permute.xlu0 %1153
    %1155 = vrot.lane.b32.xlu0 %v978, 106
    %v1156 = vpop.permute.xlu0 %1155
    %v1160 = vsel %vm991, %v1143, %v1152
    %v1161 = vsel %vm991, %v1145, %v1154
    %v1162 = vsel %vm991, %v1147, %v1156
    %1163 = vrot.lane.b32.xlu0 %v976, 119
    %v1164 = vpop.permute.xlu0 %1163
    %1165 = vrot.lane.b32.xlu0 %v977, 119
    %v1166 = vpop.permute.xlu0 %1165
    %1167 = vrot.lane.b32.xlu0 %v978, 119
    %v1168 = vpop.permute.xlu0 %1167
    %1172 = vrot.lane.b32.xlu0 %v976, 105
    %v1173 = vpop.permute.xlu0 %1172
    %1174 = vrot.lane.b32.xlu0 %v977, 105
    %v1175 = vpop.permute.xlu0 %1174
    %1176 = vrot.lane.b32.xlu0 %v978, 105
    %v1177 = vpop.permute.xlu0 %1176
    %v1181 = vsel %vm991, %v1164, %v1173
    %v1182 = vsel %vm991, %v1166, %v1175
    %v1183 = vsel %vm991, %v1168, %v1177
    %1184 = vrot.lane.b32.xlu0 %v976, 118
    %v1185 = vpop.permute.xlu0 %1184
    %1186 = vrot.lane.b32.xlu0 %v977, 118
    %v1187 = vpop.permute.xlu0 %1186
    %1188 = vrot.lane.b32.xlu0 %v978, 118
    %v1189 = vpop.permute.xlu0 %1188
    %1193 = vrot.lane.b32.xlu0 %v976, 104
    %v1194 = vpop.permute.xlu0 %1193
    %1195 = vrot.lane.b32.xlu0 %v977, 104
    %v1196 = vpop.permute.xlu0 %1195
    %1197 = vrot.lane.b32.xlu0 %v978, 104
    %v1198 = vpop.permute.xlu0 %1197
    %v1202 = vsel %vm991, %v1185, %v1194
    %v1203 = vsel %vm991, %v1187, %v1196
    %v1204 = vsel %vm991, %v1189, %v1198
    %1205 = vrot.lane.b32.xlu0 %v976, 117
    %v1206 = vpop.permute.xlu0 %1205
    %1207 = vrot.lane.b32.xlu0 %v977, 117
    %v1208 = vpop.permute.xlu0 %1207
    %1209 = vrot.lane.b32.xlu0 %v978, 117
    %v1210 = vpop.permute.xlu0 %1209
    %1214 = vrot.lane.b32.xlu0 %v976, 103
    %v1215 = vpop.permute.xlu0 %1214
    %1216 = vrot.lane.b32.xlu0 %v977, 103
    %v1217 = vpop.permute.xlu0 %1216
    %1218 = vrot.lane.b32.xlu0 %v978, 103
    %v1219 = vpop.permute.xlu0 %1218
    %v1223 = vsel %vm991, %v1206, %v1215
    %v1224 = vsel %vm991, %v1208, %v1217
    %v1225 = vsel %vm991, %v1210, %v1219
    %1226 = vrot.lane.b32.xlu0 %v976, 116
    %v1227 = vpop.permute.xlu0 %1226
    %1228 = vrot.lane.b32.xlu0 %v977, 116
    %v1229 = vpop.permute.xlu0 %1228
    %1230 = vrot.lane.b32.xlu0 %v978, 116
    %v1231 = vpop.permute.xlu0 %1230
    %1235 = vrot.lane.b32.xlu0 %v976, 102
    %v1236 = vpop.permute.xlu0 %1235
    %1237 = vrot.lane.b32.xlu0 %v977, 102
    %v1238 = vpop.permute.xlu0 %1237
    %1239 = vrot.lane.b32.xlu0 %v978, 102
    %v1240 = vpop.permute.xlu0 %1239
    %v1244 = vsel %vm991, %v1227, %v1236
    %v1245 = vsel %vm991, %v1229, %v1238
    %v1246 = vsel %vm991, %v1231, %v1240
    %1247 = vrot.lane.b32.xlu0 %v976, 115
    %v1248 = vpop.permute.xlu0 %1247
    %1249 = vrot.lane.b32.xlu0 %v977, 115
    %v1250 = vpop.permute.xlu0 %1249
    %1251 = vrot.lane.b32.xlu0 %v978, 115
    %v1252 = vpop.permute.xlu0 %1251
    %1256 = vrot.lane.b32.xlu0 %v976, 101
    %v1257 = vpop.permute.xlu0 %1256
    %1258 = vrot.lane.b32.xlu0 %v977, 101
    %v1259 = vpop.permute.xlu0 %1258
    %1260 = vrot.lane.b32.xlu0 %v978, 101
    %v1261 = vpop.permute.xlu0 %1260
    %v1265 = vsel %vm991, %v1248, %v1257
    %v1266 = vsel %vm991, %v1250, %v1259
    %v1267 = vsel %vm991, %v1252, %v1261
    %1268 = vrot.lane.b32.xlu0 %v976, 100
    %v1269 = vpop.permute.xlu0 %1268
    %1270 = vrot.lane.b32.xlu0 %v977, 100
    %v1271 = vpop.permute.xlu0 %1270
    %1272 = vrot.lane.b32.xlu0 %v978, 100
    %v1273 = vpop.permute.xlu0 %1272
    %v1277 = vsel %vm991, %v983, %v1269
    %v1278 = vsel %vm991, %v985, %v1271
    %v1279 = vsel %vm991, %v987, %v1273
    %v1280 = vld [vmem:[#allocation13] sm:$0xff]
    %v1281 = vld [vmem:[#allocation13 + $0x8] sm:$0xf]
    %v1282 = vld [vmem:[#allocation13 + $0xc] sm:$0xff]
    %v1283 = vld [vmem:[#allocation13 + $0x14] sm:$0xf]
    %v1284 = vld [vmem:[#allocation13 + $0x18] sm:$0xff]
    %v1285 = vld [vmem:[#allocation13 + $0x20] sm:$0xf]
    %v1286 = vld [vmem:[#allocation13 + $0x24] sm:$0xff]
    %v1287 = vld [vmem:[#allocation13 + $0x2c] sm:$0xf]
    %v1288 = vld [vmem:[#allocation13 + $0x30] sm:$0xff]
    %v1289 = vld [vmem:[#allocation13 + $0x38] sm:$0xf]
    %v1290 = vld [vmem:[#allocation13 + $0x3c] sm:$0xff]
    %v1291 = vld [vmem:[#allocation13 + $0x44] sm:$0xf]
    %v1292 = vpack.c.bf16 %v993, %v992
    %v1293 = vpack.c.bf16 %v1013, %v994
    %v1294 = vpack.c.bf16 %v1015, %v1014
    %v1295 = vpack.c.bf16 %v1035, %v1034
    %v1296 = vpack.c.bf16 %v1055, %v1036
    %v1297 = vpack.c.bf16 %v1057, %v1056
    %v1298 = vpack.c.bf16 %v1077, %v1076
    %v1299 = vpack.c.bf16 %v1097, %v1078
    %v1300 = vpack.c.bf16 %v1099, %v1098
    %v1301 = vpack.c.bf16 %v1119, %v1118
    %v1302 = vpack.c.bf16 %v1139, %v1120
    %v1303 = vpack.c.bf16 %v1141, %v1140
    %v1304 = vpack.c.bf16 %v1161, %v1160
    %v1305 = vpack.c.bf16 %v1181, %v1162
    %v1306 = vpack.c.bf16 %v1183, %v1182
    %v1307 = vpack.c.bf16 %v1203, %v1202
    %v1308 = vpack.c.bf16 %v1223, %v1204
    %v1309 = vpack.c.bf16 %v1225, %v1224
    %v1310 = vpack.c.bf16 %v1245, %v1244
    %v1311 = vpack.c.bf16 %v1265, %v1246
    %v1312 = vpack.c.bf16 %v1267, %v1266
    %v1313 = vpack.c.bf16 %v1278, %v1277
    %v1314 = vpack.c.bf16 %v1279, %v1279
    %v1315 = vld [vmem:[%s4] sm:$0xff]
    %v1316 = vld [vmem:[%s4 + $0x8] sm:$0xff]
    %v1317 = vld [vmem:[%s4 + $0x10] sm:$0xff]
    %v1318 = vld [vmem:[%s4 + $0x18] sm:$0xff]
    %v1319 = vld [vmem:[%s4 + $0x20] sm:$0xff]
    %v1320 = vld [vmem:[%s4 + $0x28] sm:$0xff]
    %1322 = vset.pattern.permute.xlu0 0
    %1323 = vperm.xlu0 %1322, %v1315
    %v1324 = vpop.permute.xlu0 %1323
    %1327 = vset.pattern.permute.xlu0 0
    %1328 = vperm.xlu0 %1327, %v1316
    %v1329 = vpop.permute.xlu0 %1328
    %1332 = vset.pattern.permute.xlu0 0
    %1333 = vperm.xlu0 %1332, %v1317
    %v1334 = vpop.permute.xlu0 %1333
    %1337 = vset.pattern.permute.xlu0 0
    %1338 = vperm.xlu0 %1337, %v1318
    %v1339 = vpop.permute.xlu0 %1338
    %1342 = vset.pattern.permute.xlu0 0
    %1343 = vperm.xlu0 %1342, %v1319
    %v1344 = vpop.permute.xlu0 %1343
    %1347 = vset.pattern.permute.xlu0 0
    %1348 = vperm.xlu0 %1347, %v1320
    %v1349 = vpop.permute.xlu0 %1348
    %v1363 = vunpack.c.l.b16 %v1280
    %v1364 = vunpack.c.h.b16 %v1280
    %v1365 = vunpack.c.l.b16 %v1281
    %v1366 = vunpack.c.l.b16 %v1282
    %v1367 = vunpack.c.h.b16 %v1282
    %v1368 = vunpack.c.l.b16 %v1283
    %v1369 = vunpack.c.l.b16 %v1284
    %v1370 = vunpack.c.h.b16 %v1284
    %v1371 = vunpack.c.l.b16 %v1285
    %v1372 = vunpack.c.l.b16 %v1286
    %v1373 = vunpack.c.h.b16 %v1286
    %v1374 = vunpack.c.l.b16 %v1287
    %v1375 = vunpack.c.l.b16 %v1288
    %v1376 = vunpack.c.h.b16 %v1288
    %v1377 = vunpack.c.l.b16 %v1289
    %v1378 = vunpack.c.l.b16 %v1290
    %v1379 = vunpack.c.h.b16 %v1290
    %v1380 = vunpack.c.l.b16 %v1291
    %v1381 = vpack.c.b16 %v1366, %v1363
    %v1382 = vpack.c.b16 %v1367, %v1364
    %v1383 = vpack.c.b16 %v1368, %v1365
    %v1384 = vpack.c.b16 %v1372, %v1369
    %v1385 = vpack.c.b16 %v1373, %v1370
    %v1386 = vpack.c.b16 %v1374, %v1371
    %v1387 = vpack.c.b16 %v1378, %v1375
    %v1388 = vpack.c.b16 %v1379, %v1376
    %v1389 = vpack.c.b16 %v1380, %v1377
    %vm1396 = vcmask 850944
    %v1398 = vsel %vm1396, %v1383, 0
    %v1401 = vsel %vm1396, %v1386, 0
    %v1404 = vsel %vm1396, %v1389, 0
    %vm1406 = vcmask 1043456
    %v1408 = vsel %vm1406, %v1314, 0
    %1410 = vmatprep.subr.bf16.mxu0 0
    %1411 = vmatpush1.bf16.msra.mxu0 %v1292
    %1412 = vmatprep.subr.bf16.mxu0 0
    %1413 = vmatpush1.bf16.msra.mxu0 %v1293
    %1414 = vmatprep.subr.bf16.mxu0 0
    %1415 = vmatpush1.bf16.msra.mxu0 %v1294
    %1416 = vmatprep.subr.bf16.mxu0 0
    %1417 = vmatpush1.bf16.msra.mxu0 %v1295
    %1418 = vmatprep.subr.bf16.mxu0 0
    %1419 = vmatpush1.bf16.msra.mxu0 %v1296
    %1420 = vmatprep.subr.bf16.mxu0 0
    %1421 = vmatpush1.bf16.msra.mxu0 %v1297
    %1422 = vmatprep.subr.bf16.mxu0 0
    %1423 = vmatpush1.bf16.msra.mxu0 %v1298
    %1424 = vmatprep.subr.bf16.mxu0 0
    %1425 = vmatpush1.bf16.msra.mxu0 %v1299
    %1426 = vmatprep.subr.bf16.mxu0 0
    %1427 = vmatpush1.bf16.msra.mxu0 %v1300
    %1428 = vmatprep.subr.bf16.mxu0 0
    %1429 = vmatpush1.bf16.msra.mxu0 %v1301
    %1430 = vmatprep.subr.bf16.mxu0 0
    %1431 = vmatpush1.bf16.msra.mxu0 %v1302
    %1432 = vmatprep.subr.bf16.mxu0 0
    %1433 = vmatpush1.bf16.msra.mxu0 %v1303
    %1434 = vmatprep.subr.bf16.mxu0 0
    %1435 = vmatpush1.bf16.msra.mxu0 %v1304
    %1436 = vmatprep.subr.bf16.mxu0 0
    %1437 = vmatpush1.bf16.msra.mxu0 %v1305
    %1438 = vmatprep.subr.bf16.mxu0 0
    %1439 = vmatpush1.bf16.msra.mxu0 %v1306
    %1440 = vmatprep.subr.bf16.mxu0 0
    %1441 = vmatpush1.bf16.msra.mxu0 %v1307
    %1442 = vmatprep.mubr.bf16.mxu0 %v1382
    %1443 = vmatmul.mubr.bf16.gmra.mrb[0].mxu0 %v1381
    %v1444 = vpop.f32.mrb[0].mxu0
    %v1445 = vadd.f32 %v1324, %v1444
    %v1446 = vpop.f32.mrb[0].mxu0
    %v1447 = vpop.f32.mrb[0].mxu0
    %v1448 = vadd.f32 %v1329, %v1447
    %v1449 = vpop.f32.mrb[0].mxu0
    %1450 = vmatprep.mubr.bf16.mxu0 %v1385
    %1451 = vmatmul.mubr.bf16.gmra.mrb[0].mxu0 %v1384
    %v1452 = vpop.f32.mrb[0].mxu0
    %v1453 = vadd.f32 %v1334, %v1452
    %v1454 = vpop.f32.mrb[0].mxu0
    %v1455 = vpop.f32.mrb[0].mxu0
    %v1456 = vadd.f32 %v1339, %v1455
    %v1457 = vpop.f32.mrb[0].mxu0
    %1458 = vmatprep.mubr.bf16.mxu0 %v1388
    %1459 = vmatmul.mubr.bf16.gmra.mrb[0].mxu0 %v1387
    %v1460 = vpop.f32.mrb[0].mxu0
    %v1461 = vadd.f32 %v1344, %v1460
    %v1462 = vpop.f32.mrb[0].mxu0
    %v1463 = vpop.f32.mrb[0].mxu0
    %v1464 = vadd.f32 %v1349, %v1463
    %v1465 = vpop.f32.mrb[0].mxu0
    %1466 = vdwg.mxu0
    %1467 = vmatprep.subr.bf16.mxu0 0
    %1468 = vmatpush1.bf16.msra.mxu0 %v1308
    %1469 = vmatprep.subr.bf16.mxu0 0
    %1470 = vmatpush1.bf16.msra.mxu0 %v1309
    %1471 = vmatprep.subr.bf16.mxu0 0
    %1472 = vmatpush1.bf16.msra.mxu0 %v1310
    %1473 = vmatprep.subr.bf16.mxu0 0
    %1474 = vmatpush1.bf16.msra.mxu0 %v1311
    %1475 = vmatprep.subr.bf16.mxu0 0
    %1476 = vmatpush1.bf16.msra.mxu0 %v1312
    %1477 = vmatprep.subr.bf16.mxu0 0
    %1478 = vmatpush1.bf16.msra.mxu0 %v1313
    %1479 = vmatprep.subr.bf16.mxu0 0
    %1480 = vmatpush1.bf16.msra.mxu0 %v1408
    %1481 = vmatprep.subr.bf16.mxu0 0
    %1482 = vmatpush1.bf16.msra.mxu0 0
    %1483 = vmatprep.subr.bf16.mxu0 0
    %1484 = vmatpush1.bf16.msra.mxu0 0
    %1485 = vmatprep.subr.bf16.mxu0 0
    %1486 = vmatpush1.bf16.msra.mxu0 0
    %1487 = vmatprep.subr.bf16.mxu0 0
    %1488 = vmatpush1.bf16.msra.mxu0 0
    %1489 = vmatprep.subr.bf16.mxu0 0
    %1490 = vmatpush1.bf16.msra.mxu0 0
    %1491 = vmatprep.subr.bf16.mxu0 0
    %1492 = vmatpush1.bf16.msra.mxu0 0
    %1493 = vmatprep.subr.bf16.mxu0 0
    %1494 = vmatpush1.bf16.msra.mxu0 0
    %1495 = vmatprep.subr.bf16.mxu0 0
    %1496 = vmatpush1.bf16.msra.mxu0 0
    %1497 = vmatprep.subr.bf16.mxu0 0
    %1498 = vmatpush1.bf16.msra.mxu0 0
    %1499 = vmatprep.mubr.bf16.mxu0 0
    %1500 = vmatmul.mubr.bf16.gmra.mrb[0].mxu0 %v1398
    %v1501 = vpop.f32.mrb[0].mxu0
    %v1502 = vadd.f32 %v1445, %v1501
    %v1503 = vpop.f32.mrb[0].mxu0
    %v1504 = vpop.f32.mrb[0].mxu0
    %v1505 = vadd.f32 %v1448, %v1504
    %v1506 = vpop.f32.mrb[0].mxu0
    %1507 = vmatprep.mubr.bf16.mxu0 0
    %1508 = vmatmul.mubr.bf16.gmra.mrb[0].mxu0 %v1401
    %v1509 = vpop.f32.mrb[0].mxu0
    %v1510 = vadd.f32 %v1453, %v1509
    %v1511 = vpop.f32.mrb[0].mxu0
    %v1512 = vpop.f32.mrb[0].mxu0
    %v1513 = vadd.f32 %v1456, %v1512
    %v1514 = vpop.f32.mrb[0].mxu0
    %1515 = vmatprep.mubr.bf16.mxu0 0
    %1516 = vmatmul.mubr.bf16.gmra.mrb[0].mxu0 %v1404
    %v1517 = vpop.f32.mrb[0].mxu0
    %v1518 = vadd.f32 %v1461, %v1517
    %v1519 = vpop.f32.mrb[0].mxu0
    %v1520 = vpop.f32.mrb[0].mxu0
    %v1521 = vadd.f32 %v1464, %v1520
    %v1522 = vpop.f32.mrb[0].mxu0
    %1523 = vdwg.mxu0
    %v1524 = vsel %vm166, %v1502, 0.0
    %1525 = vadd.xlane.f32.xlu0 %v1524
    %v1526 = vpop.xlane.xlu0 %1525
    %v1527 = vsel %vm166, %v1505, 0.0
    %1528 = vadd.xlane.f32.xlu0 %v1527
    %v1529 = vpop.xlane.xlu0 %1528
    %v1530 = vsel %vm166, %v1510, 0.0
    %1531 = vadd.xlane.f32.xlu0 %v1530
    %v1532 = vpop.xlane.xlu0 %1531
    %v1533 = vsel %vm166, %v1513, 0.0
    %1534 = vadd.xlane.f32.xlu0 %v1533
    %v1535 = vpop.xlane.xlu0 %1534
    %v1536 = vsel %vm166, %v1518, 0.0
    %1537 = vadd.xlane.f32.xlu0 %v1536
    %v1538 = vpop.xlane.xlu0 %1537
    %v1539 = vsel %vm166, %v1521, 0.0
    %1540 = vadd.xlane.f32.xlu0 %v1539
    %v1541 = vpop.xlane.xlu0 %1540
    %v1542 = vmul.f32 %v1502, %v1502
    %v1543 = vmul.f32 %v1505, %v1505
    %v1544 = vmul.f32 %v1510, %v1510
    %v1545 = vmul.f32 %v1513, %v1513
    %v1546 = vmul.f32 %v1518, %v1518
    %v1547 = vmul.f32 %v1521, %v1521
    %v1548 = vsel %vm166, %v1542, 0.0
    %1549 = vadd.xlane.f32.xlu0 %v1548
    %v1550 = vpop.xlane.xlu0 %1549
    %v1551 = vsel %vm166, %v1543, 0.0
    %1552 = vadd.xlane.f32.xlu0 %v1551
    %v1553 = vpop.xlane.xlu0 %1552
    %v1554 = vsel %vm166, %v1544, 0.0
    %1555 = vadd.xlane.f32.xlu0 %v1554
    %v1556 = vpop.xlane.xlu0 %1555
    %v1557 = vsel %vm166, %v1545, 0.0
    %1558 = vadd.xlane.f32.xlu0 %v1557
    %v1559 = vpop.xlane.xlu0 %1558
    %v1560 = vsel %vm166, %v1546, 0.0
    %1561 = vadd.xlane.f32.xlu0 %v1560
    %v1562 = vpop.xlane.xlu0 %1561
    %v1563 = vsel %vm166, %v1547, 0.0
    %1564 = vadd.xlane.f32.xlu0 %v1563
    %v1565 = vpop.xlane.xlu0 %1564
    %v1566 = vmul.f32 %v1526, 0.0625
    %v1567 = vmul.f32 %v1529, 0.0625
    %v1568 = vmul.f32 %v1532, 0.0625
    %v1569 = vmul.f32 %v1535, 0.0625
    %v1570 = vmul.f32 %v1538, 0.0625
    %v1571 = vmul.f32 %v1541, 0.0625
    %v1572 = vmul.f32 %v1550, 0.0625
    %v1573 = vmul.f32 %v1553, 0.0625
    %v1574 = vmul.f32 %v1556, 0.0625
    %v1575 = vmul.f32 %v1559, 0.0625
    %v1576 = vmul.f32 %v1562, 0.0625
    %v1577 = vmul.f32 %v1565, 0.0625
    %v1578 = vmul.f32 %v1566, %v1566
    %v1579 = vmul.f32 %v1567, %v1567
    %v1580 = vmul.f32 %v1568, %v1568
    %v1581 = vmul.f32 %v1569, %v1569
    %v1582 = vmul.f32 %v1570, %v1570
    %v1583 = vmul.f32 %v1571, %v1571
    %v1584 = vsub.f32 %v1572, %v1578
    %v1585 = vsub.f32 %v1573, %v1579
    %v1586 = vsub.f32 %v1574, %v1580
    %v1587 = vsub.f32 %v1575, %v1581
    %v1588 = vsub.f32 %v1576, %v1582
    %v1589 = vsub.f32 %v1577, %v1583
    %v1590 = vmax.f32 %v1584, 0.0
    %v1591 = vmax.f32 %v1585, 0.0
    %v1592 = vmax.f32 %v1586, 0.0
    %v1593 = vmax.f32 %v1587, 0.0
    %v1594 = vmax.f32 %v1588, 0.0
    %v1595 = vmax.f32 %v1589, 0.0
    %v1596 = vadd.f32 %v1590, 1e-05
    %v1597 = vadd.f32 %v1591, 1e-05
    %v1598 = vadd.f32 %v1592, 1e-05
    %v1599 = vadd.f32 %v1593, 1e-05
    %v1600 = vadd.f32 %v1594, 1e-05
    %v1601 = vadd.f32 %v1595, 1e-05
    %v1602 = vrsqrt.pop %v1596
    %v1603 = vrsqrt.pop %v1597
    %v1604 = vrsqrt.pop %v1598
    %v1605 = vrsqrt.pop %v1599
    %v1606 = vrsqrt.pop %v1600
    %v1607 = vrsqrt.pop %v1601
    %v1608 = vmul.f32 %v1602, %v1315
    %v1609 = vmul.f32 %v1603, %v1316
    %v1610 = vmul.f32 %v1604, %v1317
    %v1611 = vmul.f32 %v1605, %v1318
    %v1612 = vmul.f32 %v1606, %v1319
    %v1613 = vmul.f32 %v1607, %v1320
    %v1614 = vmul.f32 %v1566, %v1608
    %v1615 = vmul.f32 %v1567, %v1609
    %v1616 = vmul.f32 %v1568, %v1610
    %v1617 = vmul.f32 %v1569, %v1611
    %v1618 = vmul.f32 %v1570, %v1612
    %v1619 = vmul.f32 %v1571, %v1613
    %1626 = vrot.lane.b32.xlu0 %v1614, 1
    %v1627 = vpop.permute.xlu0 %1626
    %1628 = vrot.lane.b32.xlu0 %v1615, 1
    %v1629 = vpop.permute.xlu0 %1628
    %1630 = vrot.lane.b32.xlu0 %v1616, 1
    %v1631 = vpop.permute.xlu0 %1630
    %1632 = vrot.lane.b32.xlu0 %v1617, 1
    %v1633 = vpop.permute.xlu0 %1632
    %1634 = vrot.lane.b32.xlu0 %v1618, 1
    %v1635 = vpop.permute.xlu0 %1634
    %1636 = vrot.lane.b32.xlu0 %v1619, 1
    %v1637 = vpop.permute.xlu0 %1636
    %v1644 = vsub.f32 %v1315, %v1627
    %v1645 = vsub.f32 %v1316, %v1629
    %v1646 = vsub.f32 %v1317, %v1631
    %v1647 = vsub.f32 %v1318, %v1633
    %v1648 = vsub.f32 %v1319, %v1635
    %v1649 = vsub.f32 %v1320, %v1637
    %1651 = vset.pattern.permute.xlu0 1
    %1652 = vperm.xlu0 %1651, %v1608
    %v1653 = vpop.permute.xlu0 %1652
    %1656 = vset.pattern.permute.xlu0 1
    %1657 = vperm.xlu0 %1656, %v1609
    %v1658 = vpop.permute.xlu0 %1657
    %1661 = vset.pattern.permute.xlu0 1
    %1662 = vperm.xlu0 %1661, %v1610
    %v1663 = vpop.permute.xlu0 %1662
    %1666 = vset.pattern.permute.xlu0 1
    %1667 = vperm.xlu0 %1666, %v1611
    %v1668 = vpop.permute.xlu0 %1667
    %1671 = vset.pattern.permute.xlu0 1
    %1672 = vperm.xlu0 %1671, %v1612
    %v1673 = vpop.permute.xlu0 %1672
    %1676 = vset.pattern.permute.xlu0 1
    %1677 = vperm.xlu0 %1676, %v1613
    %v1678 = vpop.permute.xlu0 %1677
    %v1680 = vmul.f32 %v1502, %v1653
    %v1681 = vmul.f32 %v1505, %v1658
    %v1682 = vmul.f32 %v1510, %v1663
    %v1683 = vmul.f32 %v1513, %v1668
    %v1684 = vmul.f32 %v1518, %v1673
    %v1685 = vmul.f32 %v1521, %v1678
    %1687 = vset.pattern.permute.xlu0 2
    %1688 = vperm.xlu0 %1687, %v1644
    %v1689 = vpop.permute.xlu0 %1688
    %1692 = vset.pattern.permute.xlu0 2
    %1693 = vperm.xlu0 %1692, %v1645
    %v1694 = vpop.permute.xlu0 %1693
    %1697 = vset.pattern.permute.xlu0 2
    %1698 = vperm.xlu0 %1697, %v1646
    %v1699 = vpop.permute.xlu0 %1698
    %1702 = vset.pattern.permute.xlu0 2
    %1703 = vperm.xlu0 %1702, %v1647
    %v1704 = vpop.permute.xlu0 %1703
    %1707 = vset.pattern.permute.xlu0 2
    %1708 = vperm.xlu0 %1707, %v1648
    %v1709 = vpop.permute.xlu0 %1708
    %1712 = vset.pattern.permute.xlu0 2
    %1713 = vperm.xlu0 %1712, %v1649
    %v1714 = vpop.permute.xlu0 %1713
    %v1716 = vadd.f32 %v1680, %v1689
    %v1717 = vadd.f32 %v1681, %v1694
    %v1718 = vadd.f32 %v1682, %v1699
    %v1719 = vadd.f32 %v1683, %v1704
    %v1720 = vadd.f32 %v1684, %v1709
    %v1721 = vadd.f32 %v1685, %v1714
    %vm1722 = vcmp.gt.f32.partialorder %v1716, 0.0
    %vm1723 = vcmp.gt.f32.partialorder %v1717, 0.0
    %vm1724 = vcmp.gt.f32.partialorder %v1718, 0.0
    %vm1725 = vcmp.gt.f32.partialorder %v1719, 0.0
    %vm1726 = vcmp.gt.f32.partialorder %v1720, 0.0
    %vm1727 = vcmp.gt.f32.partialorder %v1721, 0.0
    %v1728 = vmul.f32 %v1716, 0.01
    %v1729 = vmul.f32 %v1717, 0.01
    %v1730 = vmul.f32 %v1718, 0.01
    %v1731 = vmul.f32 %v1719, 0.01
    %v1732 = vmul.f32 %v1720, 0.01
    %v1733 = vmul.f32 %v1721, 0.01
    %v1734 = vsel %vm1722, %v1716, %v1728
    %v1735 = vsel %vm1723, %v1717, %v1729
    %v1736 = vsel %vm1724, %v1718, %v1730
    %v1737 = vsel %vm1725, %v1719, %v1731
    %v1738 = vsel %vm1726, %v1720, %v1732
    %v1739 = vsel %vm1727, %v1721, %v1733
    %1746 = vrot.lane.b32.xlu0 %v1734, 2
    %v1747 = vpop.permute.xlu0 %1746
    %1748 = vrot.lane.b32.xlu0 %v1735, 2
    %v1749 = vpop.permute.xlu0 %1748
    %1750 = vrot.lane.b32.xlu0 %v1736, 2
    %v1751 = vpop.permute.xlu0 %1750
    %1752 = vrot.lane.b32.xlu0 %v1737, 2
    %v1753 = vpop.permute.xlu0 %1752
    %1754 = vrot.lane.b32.xlu0 %v1738, 2
    %v1755 = vpop.permute.xlu0 %1754
    %1756 = vrot.lane.b32.xlu0 %v1739, 2
    %v1757 = vpop.permute.xlu0 %1756
    %vm1764 = vcmask 80912
    %1765 = vst.msk [vmem:[#allocation7 + $0x40] sm:$0xff] %vm1764, %v1747
    %1766 = vst.msk [vmem:[#allocation7 + $0x48] sm:$0xff] %vm1764, %v1749
    %1767 = vst.msk [vmem:[#allocation7 + $0x50] sm:$0xff] %vm1764, %v1751
    %1768 = vst.msk [vmem:[#allocation7 + $0x58] sm:$0xff] %vm1764, %v1753
    %1769 = vst.msk [vmem:[#allocation7 + $0x60] sm:$0xff] %vm1764, %v1755
    %1770 = vst.msk [vmem:[#allocation7 + $0x68] sm:$0xff] %vm1764, %v1757
    %1771 = vrot.lane.b32.xlu0 %v1734, 6
    %v1772 = vpop.permute.xlu0 %1771
    %1773 = vrot.lane.b32.xlu0 %v1735, 6
    %v1774 = vpop.permute.xlu0 %1773
    %1775 = vrot.lane.b32.xlu0 %v1736, 6
    %v1776 = vpop.permute.xlu0 %1775
    %1777 = vrot.lane.b32.xlu0 %v1737, 6
    %v1778 = vpop.permute.xlu0 %1777
    %1779 = vrot.lane.b32.xlu0 %v1738, 6
    %v1780 = vpop.permute.xlu0 %1779
    %1781 = vrot.lane.b32.xlu0 %v1739, 6
    %v1782 = vpop.permute.xlu0 %1781
    %vm1789 = vcmask 179312
    %1790 = vst.msk [vmem:[#allocation7 + $0x40] sm:$0xff] %vm1789, %v1772
    %1791 = vst.msk [vmem:[#allocation7 + $0x48] sm:$0xff] %vm1789, %v1774
    %1792 = vst.msk [vmem:[#allocation7 + $0x50] sm:$0xff] %vm1789, %v1776
    %1793 = vst.msk [vmem:[#allocation7 + $0x58] sm:$0xff] %vm1789, %v1778
    %1794 = vst.msk [vmem:[#allocation7 + $0x60] sm:$0xff] %vm1789, %v1780
    %1795 = vst.msk [vmem:[#allocation7 + $0x68] sm:$0xff] %vm1789, %v1782
    %v1796 = vld [vmem:[%s18] sm:$0xf]
    %v1797 = vpack.c.bf16 %v1735, %v1734
    %v1798 = vpack.c.bf16 %v1737, %v1736
    %v1799 = vpack.c.bf16 %v1739, %v1738
    %v1801 = vsel %vm991, %v1797, 0
    %v1804 = vsel %vm991, %v1798, 0
    %v1807 = vsel %vm991, %v1799, 0
    %v1810 = vsel %vm1406, %v1796, 0
    %1812 = vmatprep.subr.bf16.mxu0 0
    %1813 = vmatpush1.bf16.msra.mxu0 %v1810
    %1814 = vmatprep.subr.bf16.mxu0 0
    %1815 = vmatpush1.bf16.msra.mxu0 0
    %1816 = vmatprep.subr.bf16.mxu0 0
    %1817 = vmatpush1.bf16.msra.mxu0 0
    %1818 = vmatprep.subr.bf16.mxu0 0
    %1819 = vmatpush1.bf16.msra.mxu0 0
    %1820 = vmatprep.subr.bf16.mxu0 0
    %1821 = vmatpush1.bf16.msra.mxu0 0
    %1822 = vmatprep.subr.bf16.mxu0 0
    %1823 = vmatpush1.bf16.msra.mxu0 0
    %1824 = vmatprep.subr.bf16.mxu0 0
    %1825 = vmatpush1.bf16.msra.mxu0 0
    %1826 = vmatprep.subr.bf16.mxu0 0
    %1827 = vmatpush1.bf16.msra.mxu0 0
    %1828 = vmatprep.subr.bf16.mxu0 0
    %1829 = vmatpush1.bf16.msra.mxu0 0
    %1830 = vmatprep.subr.bf16.mxu0 0
    %1831 = vmatpush1.bf16.msra.mxu0 0
    %1832 = vmatprep.subr.bf16.mxu0 0
    %1833 = vmatpush1.bf16.msra.mxu0 0
    %1834 = vmatprep.subr.bf16.mxu0 0
    %1835 = vmatpush1.bf16.msra.mxu0 0
    %1836 = vmatprep.subr.bf16.mxu0 0
    %1837 = vmatpush1.bf16.msra.mxu0 0
    %1838 = vmatprep.subr.bf16.mxu0 0
    %1839 = vmatpush1.bf16.msra.mxu0 0
    %1840 = vmatprep.subr.bf16.mxu0 0
    %1841 = vmatpush1.bf16.msra.mxu0 0
    %1842 = vmatprep.subr.bf16.mxu0 0
    %1843 = vmatpush1.bf16.msra.mxu0 0
    %1844 = vmatprep.mubr.bf16.mxu0 0
    %1845 = vmatmul.mubr.bf16.gmra.mrb[0].mxu0 %v1801
    %v1846 = vpop.f32.mrb[0].mxu0
    %v1847 = vadd.f32 0.0, %v1846
    %v1848 = vpop.f32.mrb[0].mxu0
    %v1849 = vpop.f32.mrb[0].mxu0
    %v1850 = vadd.f32 0.0, %v1849
    %v1851 = vpop.f32.mrb[0].mxu0
    %1852 = vmatprep.mubr.bf16.mxu0 0
    %1853 = vmatmul.mubr.bf16.gmra.mrb[0].mxu0 %v1804
    %v1854 = vpop.f32.mrb[0].mxu0
    %v1855 = vadd.f32 0.0, %v1854
    %v1856 = vpop.f32.mrb[0].mxu0
    %v1857 = vpop.f32.mrb[0].mxu0
    %v1858 = vadd.f32 0.0, %v1857
    %v1859 = vpop.f32.mrb[0].mxu0
    %1860 = vmatprep.mubr.bf16.mxu0 0
    %1861 = vmatmul.mubr.bf16.gmra.mrb[0].mxu0 %v1807
    %v1862 = vpop.f32.mrb[0].mxu0
    %v1863 = vadd.f32 0.0, %v1862
    %v1864 = vpop.f32.mrb[0].mxu0
    %v1865 = vpop.f32.mrb[0].mxu0
    %v1866 = vadd.f32 0.0, %v1865
    %v1867 = vpop.f32.mrb[0].mxu0
    %1868 = vdwg.mxu0
    %1875 = vrot.lane.b32.xlu0 %v1847, 7
    %v1876 = vpop.permute.xlu0 %1875
    %1877 = vrot.lane.b32.xlu0 %v1850, 7
    %v1878 = vpop.permute.xlu0 %1877
    %1879 = vrot.lane.b32.xlu0 %v1855, 7
    %v1880 = vpop.permute.xlu0 %1879
    %1881 = vrot.lane.b32.xlu0 %v1858, 7
    %v1882 = vpop.permute.xlu0 %1881
    %1883 = vrot.lane.b32.xlu0 %v1863, 7
    %v1884 = vpop.permute.xlu0 %1883
    %1885 = vrot.lane.b32.xlu0 %v1866, 7
    %v1886 = vpop.permute.xlu0 %1885
    %vm1893 = vcmask 89144
    %1894 = vst.msk [vmem:[#allocation4] sm:$0xff] %vm1893, %v1876
    %1895 = vst.msk [vmem:[#allocation4 + $0x8] sm:$0xff] %vm1893, %v1878
    %1896 = vst.msk [vmem:[#allocation4 + $0x10] sm:$0xff] %vm1893, %v1880
    %1897 = vst.msk [vmem:[#allocation4 + $0x18] sm:$0xff] %vm1893, %v1882
    %1898 = vst.msk [vmem:[#allocation4 + $0x20] sm:$0xff] %vm1893, %v1884
    %1899 = vst.msk [vmem:[#allocation4 + $0x28] sm:$0xff] %vm1893, %v1886
    %1903 = vrot.lane.b32.xlu0 %v1797, 120
    %v1904 = vpop.permute.xlu0 %1903
    %1905 = vrot.lane.b32.xlu0 %v1798, 120
    %v1906 = vpop.permute.xlu0 %1905
    %1907 = vrot.lane.b32.xlu0 %v1799, 120
    %v1908 = vpop.permute.xlu0 %1907
    %v1910 = vsel %vm991, %v1904, 0
    %v1913 = vsel %vm991, %v1906, 0
    %v1916 = vsel %vm991, %v1908, 0
    %1918 = vmatprep.subr.bf16.mxu0 0
    %1919 = vmatpush1.bf16.msra.mxu0 %v1810
    %1920 = vmatprep.subr.bf16.mxu0 0
    %1921 = vmatpush1.bf16.msra.mxu0 0
    %1922 = vmatprep.subr.bf16.mxu0 0
    %1923 = vmatpush1.bf16.msra.mxu0 0
    %1924 = vmatprep.subr.bf16.mxu0 0
    %1925 = vmatpush1.bf16.msra.mxu0 0
    %1926 = vmatprep.subr.bf16.mxu0 0
    %1927 = vmatpush1.bf16.msra.mxu0 0
    %1928 = vmatprep.subr.bf16.mxu0 0
    %1929 = vmatpush1.bf16.msra.mxu0 0
    %1930 = vmatprep.subr.bf16.mxu0 0
    %1931 = vmatpush1.bf16.msra.mxu0 0
    %1932 = vmatprep.subr.bf16.mxu0 0
    %1933 = vmatpush1.bf16.msra.mxu0 0
    %1934 = vmatprep.subr.bf16.mxu0 0
    %1935 = vmatpush1.bf16.msra.mxu0 0
    %1936 = vmatprep.subr.bf16.mxu0 0
    %1937 = vmatpush1.bf16.msra.mxu0 0
    %1938 = vmatprep.subr.bf16.mxu0 0
    %1939 = vmatpush1.bf16.msra.mxu0 0
    %1940 = vmatprep.subr.bf16.mxu0 0
    %1941 = vmatpush1.bf16.msra.mxu0 0
    %1942 = vmatprep.subr.bf16.mxu0 0
    %1943 = vmatpush1.bf16.msra.mxu0 0
    %1944 = vmatprep.subr.bf16.mxu0 0
    %1945 = vmatpush1.bf16.msra.mxu0 0
    %1946 = vmatprep.subr.bf16.mxu0 0
    %1947 = vmatpush1.bf16.msra.mxu0 0
    %1948 = vmatprep.subr.bf16.mxu0 0
    %1949 = vmatpush1.bf16.msra.mxu0 0
    %1950 = vmatprep.mubr.bf16.mxu0 0
    %1951 = vmatmul.mubr.bf16.gmra.mrb[0].mxu0 %v1910
    %v1952 = vpop.f32.mrb[0].mxu0
    %v1953 = vadd.f32 0.0, %v1952
    %v1954 = vpop.f32.mrb[0].mxu0
    %v1955 = vpop.f32.mrb[0].mxu0
    %v1956 = vadd.f32 0.0, %v1955
    %v1957 = vpop.f32.mrb[0].mxu0
    %1958 = vmatprep.mubr.bf16.mxu0 0
    %1959 = vmatmul.mubr.bf16.gmra.mrb[0].mxu0 %v1913
    %v1960 = vpop.f32.mrb[0].mxu0
    %v1961 = vadd.f32 0.0, %v1960
    %v1962 = vpop.f32.mrb[0].mxu0
    %v1963 = vpop.f32.mrb[0].mxu0
    %v1964 = vadd.f32 0.0, %v1963
    %v1965 = vpop.f32.mrb[0].mxu0
    %1966 = vmatprep.mubr.bf16.mxu0 0
    %1967 = vmatmul.mubr.bf16.gmra.mrb[0].mxu0 %v1916
    %v1968 = vpop.f32.mrb[0].mxu0
    %v1969 = vadd.f32 0.0, %v1968
    %v1970 = vpop.f32.mrb[0].mxu0
    %v1971 = vpop.f32.mrb[0].mxu0
    %v1972 = vadd.f32 0.0, %v1971
    %v1973 = vpop.f32.mrb[0].mxu0
    %1974 = vdwg.mxu0
    %1981 = vrot.lane.b32.xlu0 %v1953, 25
    %v1982 = vpop.permute.xlu0 %1981
    %1983 = vrot.lane.b32.xlu0 %v1956, 25
    %v1984 = vpop.permute.xlu0 %1983
    %1985 = vrot.lane.b32.xlu0 %v1961, 25
    %v1986 = vpop.permute.xlu0 %1985
    %1987 = vrot.lane.b32.xlu0 %v1964, 25
    %v1988 = vpop.permute.xlu0 %1987
    %1989 = vrot.lane.b32.xlu0 %v1969, 25
    %v1990 = vpop.permute.xlu0 %1989
    %1991 = vrot.lane.b32.xlu0 %v1972, 25
    %v1992 = vpop.permute.xlu0 %1991
    %vm1999 = vcmask 236744
    %2000 = vst.msk [vmem:[#allocation4] sm:$0xff] %vm1999, %v1982
    %2001 = vst.msk [vmem:[#allocation4 + $0x8] sm:$0xff] %vm1999, %v1984
    %2002 = vst.msk [vmem:[#allocation4 + $0x10] sm:$0xff] %vm1999, %v1986
    %2003 = vst.msk [vmem:[#allocation4 + $0x18] sm:$0xff] %vm1999, %v1988
    %2004 = vst.msk [vmem:[#allocation4 + $0x20] sm:$0xff] %vm1999, %v1990
    %2005 = vst.msk [vmem:[#allocation4 + $0x28] sm:$0xff] %vm1999, %v1992
    %v2006 = vld [vmem:[#allocation4] sm:$0xff]
    %v2007 = vld [vmem:[#allocation4 + $0x8] sm:$0xff]
    %v2008 = vld [vmem:[#allocation4 + $0x10] sm:$0xff]
    %v2009 = vld [vmem:[#allocation4 + $0x18] sm:$0xff]
    %v2010 = vld [vmem:[#allocation4 + $0x20] sm:$0xff]
    %v2011 = vld [vmem:[#allocation4 + $0x28] sm:$0xff]
    %2018 = vrot.lane.b32.xlu0 %v2006, 114
    %v2019 = vpop.permute.xlu0 %2018
    %2020 = vrot.lane.b32.xlu0 %v2007, 114
    %v2021 = vpop.permute.xlu0 %2020
    %2022 = vrot.lane.b32.xlu0 %v2008, 114
    %v2023 = vpop.permute.xlu0 %2022
    %2024 = vrot.lane.b32.xlu0 %v2009, 114
    %v2025 = vpop.permute.xlu0 %2024
    %2026 = vrot.lane.b32.xlu0 %v2010, 114
    %v2027 = vpop.permute.xlu0 %2026
    %2028 = vrot.lane.b32.xlu0 %v2011, 114
    %v2029 = vpop.permute.xlu0 %2028
    %vm2036 = vcmask 31744
    %v2037 = vsel %vm2036, %v2006, %v2019
    %v2038 = vsel %vm2036, %v2007, %v2021
    %v2039 = vsel %vm2036, %v2008, %v2023
    %v2040 = vsel %vm2036, %v2009, %v2025
    %v2041 = vsel %vm2036, %v2010, %v2027
    %v2042 = vsel %vm2036, %v2011, %v2029
    %2043 = vrot.lane.b32.xlu0 %v2006, 127
    %v2044 = vpop.permute.xlu0 %2043
    %2045 = vrot.lane.b32.xlu0 %v2007, 127
    %v2046 = vpop.permute.xlu0 %2045
    %2047 = vrot.lane.b32.xlu0 %v2008, 127
    %v2048 = vpop.permute.xlu0 %2047
    %2049 = vrot.lane.b32.xlu0 %v2009, 127
    %v2050 = vpop.permute.xlu0 %2049
    %2051 = vrot.lane.b32.xlu0 %v2010, 127
    %v2052 = vpop.permute.xlu0 %2051
    %2053 = vrot.lane.b32.xlu0 %v2011, 127
    %v2054 = vpop.permute.xlu0 %2053
    %2061 = vrot.lane.b32.xlu0 %v2006, 113
    %v2062 = vpop.permute.xlu0 %2061
    %2063 = vrot.lane.b32.xlu0 %v2007, 113
    %v2064 = vpop.permute.xlu0 %2063
    %2065 = vrot.lane.b32.xlu0 %v2008, 113
    %v2066 = vpop.permute.xlu0 %2065
    %2067 = vrot.lane.b32.xlu0 %v2009, 113
    %v2068 = vpop.permute.xlu0 %2067
    %2069 = vrot.lane.b32.xlu0 %v2010, 113
    %v2070 = vpop.permute.xlu0 %2069
    %2071 = vrot.lane.b32.xlu0 %v2011, 113
    %v2072 = vpop.permute.xlu0 %2071
    %v2079 = vsel %vm2036, %v2044, %v2062
    %v2080 = vsel %vm2036, %v2046, %v2064
    %v2081 = vsel %vm2036, %v2048, %v2066
    %v2082 = vsel %vm2036, %v2050, %v2068
    %v2083 = vsel %vm2036, %v2052, %v2070
    %v2084 = vsel %vm2036, %v2054, %v2072
    %2085 = vrot.lane.b32.xlu0 %v2006, 126
    %v2086 = vpop.permute.xlu0 %2085
    %2087 = vrot.lane.b32.xlu0 %v2007, 126
    %v2088 = vpop.permute.xlu0 %2087
    %2089 = vrot.lane.b32.xlu0 %v2008, 126
    %v2090 = vpop.permute.xlu0 %2089
    %2091 = vrot.lane.b32.xlu0 %v2009, 126
    %v2092 = vpop.permute.xlu0 %2091
    %2093 = vrot.lane.b32.xlu0 %v2010, 126
    %v2094 = vpop.permute.xlu0 %2093
    %2095 = vrot.lane.b32.xlu0 %v2011, 126
    %v2096 = vpop.permute.xlu0 %2095
    %2103 = vrot.lane.b32.xlu0 %v2006, 112
    %v2104 = vpop.permute.xlu0 %2103
    %2105 = vrot.lane.b32.xlu0 %v2007, 112
    %v2106 = vpop.permute.xlu0 %2105
    %2107 = vrot.lane.b32.xlu0 %v2008, 112
    %v2108 = vpop.permute.xlu0 %2107
    %2109 = vrot.lane.b32.xlu0 %v2009, 112
    %v2110 = vpop.permute.xlu0 %2109
    %2111 = vrot.lane.b32.xlu0 %v2010, 112
    %v2112 = vpop.permute.xlu0 %2111
    %2113 = vrot.lane.b32.xlu0 %v2011, 112
    %v2114 = vpop.permute.xlu0 %2113
    %v2121 = vsel %vm2036, %v2086, %v2104
    %v2122 = vsel %vm2036, %v2088, %v2106
    %v2123 = vsel %vm2036, %v2090, %v2108
    %v2124 = vsel %vm2036, %v2092, %v2110
    %v2125 = vsel %vm2036, %v2094, %v2112
    %v2126 = vsel %vm2036, %v2096, %v2114
    %2127 = vrot.lane.b32.xlu0 %v2006, 125
    %v2128 = vpop.permute.xlu0 %2127
    %2129 = vrot.lane.b32.xlu0 %v2007, 125
    %v2130 = vpop.permute.xlu0 %2129
    %2131 = vrot.lane.b32.xlu0 %v2008, 125
    %v2132 = vpop.permute.xlu0 %2131
    %2133 = vrot.lane.b32.xlu0 %v2009, 125
    %v2134 = vpop.permute.xlu0 %2133
    %2135 = vrot.lane.b32.xlu0 %v2010, 125
    %v2136 = vpop.permute.xlu0 %2135
    %2137 = vrot.lane.b32.xlu0 %v2011, 125
    %v2138 = vpop.permute.xlu0 %2137
    %2145 = vrot.lane.b32.xlu0 %v2006, 111
    %v2146 = vpop.permute.xlu0 %2145
    %2147 = vrot.lane.b32.xlu0 %v2007, 111
    %v2148 = vpop.permute.xlu0 %2147
    %2149 = vrot.lane.b32.xlu0 %v2008, 111
    %v2150 = vpop.permute.xlu0 %2149
    %2151 = vrot.lane.b32.xlu0 %v2009, 111
    %v2152 = vpop.permute.xlu0 %2151
    %2153 = vrot.lane.b32.xlu0 %v2010, 111
    %v2154 = vpop.permute.xlu0 %2153
    %2155 = vrot.lane.b32.xlu0 %v2011, 111
    %v2156 = vpop.permute.xlu0 %2155
    %v2163 = vsel %vm2036, %v2128, %v2146
    %v2164 = vsel %vm2036, %v2130, %v2148
    %v2165 = vsel %vm2036, %v2132, %v2150
    %v2166 = vsel %vm2036, %v2134, %v2152
    %v2167 = vsel %vm2036, %v2136, %v2154
    %v2168 = vsel %vm2036, %v2138, %v2156
    %2169 = vrot.lane.b32.xlu0 %v2006, 124
    %v2170 = vpop.permute.xlu0 %2169
    %2171 = vrot.lane.b32.xlu0 %v2007, 124
    %v2172 = vpop.permute.xlu0 %2171
    %2173 = vrot.lane.b32.xlu0 %v2008, 124
    %v2174 = vpop.permute.xlu0 %2173
    %2175 = vrot.lane.b32.xlu0 %v2009, 124
    %v2176 = vpop.permute.xlu0 %2175
    %2177 = vrot.lane.b32.xlu0 %v2010, 124
    %v2178 = vpop.permute.xlu0 %2177
    %2179 = vrot.lane.b32.xlu0 %v2011, 124
    %v2180 = vpop.permute.xlu0 %2179
    %2187 = vrot.lane.b32.xlu0 %v2006, 110
    %v2188 = vpop.permute.xlu0 %2187
    %2189 = vrot.lane.b32.xlu0 %v2007, 110
    %v2190 = vpop.permute.xlu0 %2189
    %2191 = vrot.lane.b32.xlu0 %v2008, 110
    %v2192 = vpop.permute.xlu0 %2191
    %2193 = vrot.lane.b32.xlu0 %v2009, 110
    %v2194 = vpop.permute.xlu0 %2193
    %2195 = vrot.lane.b32.xlu0 %v2010, 110
    %v2196 = vpop.permute.xlu0 %2195
    %2197 = vrot.lane.b32.xlu0 %v2011, 110
    %v2198 = vpop.permute.xlu0 %2197
    %v2205 = vsel %vm2036, %v2170, %v2188
    %v2206 = vsel %vm2036, %v2172, %v2190
    %v2207 = vsel %vm2036, %v2174, %v2192
    %v2208 = vsel %vm2036, %v2176, %v2194
    %v2209 = vsel %vm2036, %v2178, %v2196
    %v2210 = vsel %vm2036, %v2180, %v2198
    %2211 = vrot.lane.b32.xlu0 %v2006, 123
    %v2212 = vpop.permute.xlu0 %2211
    %2213 = vrot.lane.b32.xlu0 %v2007, 123
    %v2214 = vpop.permute.xlu0 %2213
    %2215 = vrot.lane.b32.xlu0 %v2008, 123
    %v2216 = vpop.permute.xlu0 %2215
    %2217 = vrot.lane.b32.xlu0 %v2009, 123
    %v2218 = vpop.permute.xlu0 %2217
    %2219 = vrot.lane.b32.xlu0 %v2010, 123
    %v2220 = vpop.permute.xlu0 %2219
    %2221 = vrot.lane.b32.xlu0 %v2011, 123
    %v2222 = vpop.permute.xlu0 %2221
    %2229 = vrot.lane.b32.xlu0 %v2006, 109
    %v2230 = vpop.permute.xlu0 %2229
    %2231 = vrot.lane.b32.xlu0 %v2007, 109
    %v2232 = vpop.permute.xlu0 %2231
    %2233 = vrot.lane.b32.xlu0 %v2008, 109
    %v2234 = vpop.permute.xlu0 %2233
    %2235 = vrot.lane.b32.xlu0 %v2009, 109
    %v2236 = vpop.permute.xlu0 %2235
    %2237 = vrot.lane.b32.xlu0 %v2010, 109
    %v2238 = vpop.permute.xlu0 %2237
    %2239 = vrot.lane.b32.xlu0 %v2011, 109
    %v2240 = vpop.permute.xlu0 %2239
    %v2247 = vsel %vm2036, %v2212, %v2230
    %v2248 = vsel %vm2036, %v2214, %v2232
    %v2249 = vsel %vm2036, %v2216, %v2234
    %v2250 = vsel %vm2036, %v2218, %v2236
    %v2251 = vsel %vm2036, %v2220, %v2238
    %v2252 = vsel %vm2036, %v2222, %v2240
    %2253 = vrot.lane.b32.xlu0 %v2006, 122
    %v2254 = vpop.permute.xlu0 %2253
    %2255 = vrot.lane.b32.xlu0 %v2007, 122
    %v2256 = vpop.permute.xlu0 %2255
    %2257 = vrot.lane.b32.xlu0 %v2008, 122
    %v2258 = vpop.permute.xlu0 %2257
    %2259 = vrot.lane.b32.xlu0 %v2009, 122
    %v2260 = vpop.permute.xlu0 %2259
    %2261 = vrot.lane.b32.xlu0 %v2010, 122
    %v2262 = vpop.permute.xlu0 %2261
    %2263 = vrot.lane.b32.xlu0 %v2011, 122
    %v2264 = vpop.permute.xlu0 %2263
    %2271 = vrot.lane.b32.xlu0 %v2006, 108
    %v2272 = vpop.permute.xlu0 %2271
    %2273 = vrot.lane.b32.xlu0 %v2007, 108
    %v2274 = vpop.permute.xlu0 %2273
    %2275 = vrot.lane.b32.xlu0 %v2008, 108
    %v2276 = vpop.permute.xlu0 %2275
    %2277 = vrot.lane.b32.xlu0 %v2009, 108
    %v2278 = vpop.permute.xlu0 %2277
    %2279 = vrot.lane.b32.xlu0 %v2010, 108
    %v2280 = vpop.permute.xlu0 %2279
    %2281 = vrot.lane.b32.xlu0 %v2011, 108
    %v2282 = vpop.permute.xlu0 %2281
    %v2289 = vsel %vm2036, %v2254, %v2272
    %v2290 = vsel %vm2036, %v2256, %v2274
    %v2291 = vsel %vm2036, %v2258, %v2276
    %v2292 = vsel %vm2036, %v2260, %v2278
    %v2293 = vsel %vm2036, %v2262, %v2280
    %v2294 = vsel %vm2036, %v2264, %v2282
    %2295 = vrot.lane.b32.xlu0 %v2006, 121
    %v2296 = vpop.permute.xlu0 %2295
    %2297 = vrot.lane.b32.xlu0 %v2007, 121
    %v2298 = vpop.permute.xlu0 %2297
    %2299 = vrot.lane.b32.xlu0 %v2008, 121
    %v2300 = vpop.permute.xlu0 %2299
    %2301 = vrot.lane.b32.xlu0 %v2009, 121
    %v2302 = vpop.permute.xlu0 %2301
    %2303 = vrot.lane.b32.xlu0 %v2010, 121
    %v2304 = vpop.permute.xlu0 %2303
    %2305 = vrot.lane.b32.xlu0 %v2011, 121
    %v2306 = vpop.permute.xlu0 %2305
    %2313 = vrot.lane.b32.xlu0 %v2006, 107
    %v2314 = vpop.permute.xlu0 %2313
    %2315 = vrot.lane.b32.xlu0 %v2007, 107
    %v2316 = vpop.permute.xlu0 %2315
    %2317 = vrot.lane.b32.xlu0 %v2008, 107
    %v2318 = vpop.permute.xlu0 %2317
    %2319 = vrot.lane.b32.xlu0 %v2009, 107
    %v2320 = vpop.permute.xlu0 %2319
    %2321 = vrot.lane.b32.xlu0 %v2010, 107
    %v2322 = vpop.permute.xlu0 %2321
    %2323 = vrot.lane.b32.xlu0 %v2011, 107
    %v2324 = vpop.permute.xlu0 %2323
    %v2331 = vsel %vm2036, %v2296, %v2314
    %v2332 = vsel %vm2036, %v2298, %v2316
    %v2333 = vsel %vm2036, %v2300, %v2318
    %v2334 = vsel %vm2036, %v2302, %v2320
    %v2335 = vsel %vm2036, %v2304, %v2322
    %v2336 = vsel %vm2036, %v2306, %v2324
    %2337 = vrot.lane.b32.xlu0 %v2006, 120
    %v2338 = vpop.permute.xlu0 %2337
    %2339 = vrot.lane.b32.xlu0 %v2007, 120
    %v2340 = vpop.permute.xlu0 %2339
    %2341 = vrot.lane.b32.xlu0 %v2008, 120
    %v2342 = vpop.permute.xlu0 %2341
    %2343 = vrot.lane.b32.xlu0 %v2009, 120
    %v2344 = vpop.permute.xlu0 %2343
    %2345 = vrot.lane.b32.xlu0 %v2010, 120
    %v2346 = vpop.permute.xlu0 %2345
    %2347 = vrot.lane.b32.xlu0 %v2011, 120
    %v2348 = vpop.permute.xlu0 %2347
    %2355 = vrot.lane.b32.xlu0 %v2006, 106
    %v2356 = vpop.permute.xlu0 %2355
    %2357 = vrot.lane.b32.xlu0 %v2007, 106
    %v2358 = vpop.permute.xlu0 %2357
    %2359 = vrot.lane.b32.xlu0 %v2008, 106
    %v2360 = vpop.permute.xlu0 %2359
    %2361 = vrot.lane.b32.xlu0 %v2009, 106
    %v2362 = vpop.permute.xlu0 %2361
    %2363 = vrot.lane.b32.xlu0 %v2010, 106
    %v2364 = vpop.permute.xlu0 %2363
    %2365 = vrot.lane.b32.xlu0 %v2011, 106
    %v2366 = vpop.permute.xlu0 %2365
    %v2373 = vsel %vm2036, %v2338, %v2356
    %v2374 = vsel %vm2036, %v2340, %v2358
    %v2375 = vsel %vm2036, %v2342, %v2360
    %v2376 = vsel %vm2036, %v2344, %v2362
    %v2377 = vsel %vm2036, %v2346, %v2364
    %v2378 = vsel %vm2036, %v2348, %v2366
    %2379 = vrot.lane.b32.xlu0 %v2006, 119
    %v2380 = vpop.permute.xlu0 %2379
    %2381 = vrot.lane.b32.xlu0 %v2007, 119
    %v2382 = vpop.permute.xlu0 %2381
    %2383 = vrot.lane.b32.xlu0 %v2008, 119
    %v2384 = vpop.permute.xlu0 %2383
    %2385 = vrot.lane.b32.xlu0 %v2009, 119
    %v2386 = vpop.permute.xlu0 %2385
    %2387 = vrot.lane.b32.xlu0 %v2010, 119
    %v2388 = vpop.permute.xlu0 %2387
    %2389 = vrot.lane.b32.xlu0 %v2011, 119
    %v2390 = vpop.permute.xlu0 %2389
    %2397 = vrot.lane.b32.xlu0 %v2006, 105
    %v2398 = vpop.permute.xlu0 %2397
    %2399 = vrot.lane.b32.xlu0 %v2007, 105
    %v2400 = vpop.permute.xlu0 %2399
    %2401 = vrot.lane.b32.xlu0 %v2008, 105
    %v2402 = vpop.permute.xlu0 %2401
    %2403 = vrot.lane.b32.xlu0 %v2009, 105
    %v2404 = vpop.permute.xlu0 %2403
    %2405 = vrot.lane.b32.xlu0 %v2010, 105
    %v2406 = vpop.permute.xlu0 %2405
    %2407 = vrot.lane.b32.xlu0 %v2011, 105
    %v2408 = vpop.permute.xlu0 %2407
    %v2415 = vsel %vm2036, %v2380, %v2398
    %v2416 = vsel %vm2036, %v2382, %v2400
    %v2417 = vsel %vm2036, %v2384, %v2402
    %v2418 = vsel %vm2036, %v2386, %v2404
    %v2419 = vsel %vm2036, %v2388, %v2406
    %v2420 = vsel %vm2036, %v2390, %v2408
    %2421 = vrot.lane.b32.xlu0 %v2006, 118
    %v2422 = vpop.permute.xlu0 %2421
    %2423 = vrot.lane.b32.xlu0 %v2007, 118
    %v2424 = vpop.permute.xlu0 %2423
    %2425 = vrot.lane.b32.xlu0 %v2008, 118
    %v2426 = vpop.permute.xlu0 %2425
    %2427 = vrot.lane.b32.xlu0 %v2009, 118
    %v2428 = vpop.permute.xlu0 %2427
    %2429 = vrot.lane.b32.xlu0 %v2010, 118
    %v2430 = vpop.permute.xlu0 %2429
    %2431 = vrot.lane.b32.xlu0 %v2011, 118
    %v2432 = vpop.permute.xlu0 %2431
    %2439 = vrot.lane.b32.xlu0 %v2006, 104
    %v2440 = vpop.permute.xlu0 %2439
    %2441 = vrot.lane.b32.xlu0 %v2007, 104
    %v2442 = vpop.permute.xlu0 %2441
    %2443 = vrot.lane.b32.xlu0 %v2008, 104
    %v2444 = vpop.permute.xlu0 %2443
    %2445 = vrot.lane.b32.xlu0 %v2009, 104
    %v2446 = vpop.permute.xlu0 %2445
    %2447 = vrot.lane.b32.xlu0 %v2010, 104
    %v2448 = vpop.permute.xlu0 %2447
    %2449 = vrot.lane.b32.xlu0 %v2011, 104
    %v2450 = vpop.permute.xlu0 %2449
    %v2457 = vsel %vm2036, %v2422, %v2440
    %v2458 = vsel %vm2036, %v2424, %v2442
    %v2459 = vsel %vm2036, %v2426, %v2444
    %v2460 = vsel %vm2036, %v2428, %v2446
    %v2461 = vsel %vm2036, %v2430, %v2448
    %v2462 = vsel %vm2036, %v2432, %v2450
    %2463 = vrot.lane.b32.xlu0 %v2006, 117
    %v2464 = vpop.permute.xlu0 %2463
    %2465 = vrot.lane.b32.xlu0 %v2007, 117
    %v2466 = vpop.permute.xlu0 %2465
    %2467 = vrot.lane.b32.xlu0 %v2008, 117
    %v2468 = vpop.permute.xlu0 %2467
    %2469 = vrot.lane.b32.xlu0 %v2009, 117
    %v2470 = vpop.permute.xlu0 %2469
    %2471 = vrot.lane.b32.xlu0 %v2010, 117
    %v2472 = vpop.permute.xlu0 %2471
    %2473 = vrot.lane.b32.xlu0 %v2011, 117
    %v2474 = vpop.permute.xlu0 %2473
    %2481 = vrot.lane.b32.xlu0 %v2006, 103
    %v2482 = vpop.permute.xlu0 %2481
    %2483 = vrot.lane.b32.xlu0 %v2007, 103
    %v2484 = vpop.permute.xlu0 %2483
    %2485 = vrot.lane.b32.xlu0 %v2008, 103
    %v2486 = vpop.permute.xlu0 %2485
    %2487 = vrot.lane.b32.xlu0 %v2009, 103
    %v2488 = vpop.permute.xlu0 %2487
    %2489 = vrot.lane.b32.xlu0 %v2010, 103
    %v2490 = vpop.permute.xlu0 %2489
    %2491 = vrot.lane.b32.xlu0 %v2011, 103
    %v2492 = vpop.permute.xlu0 %2491
    %v2499 = vsel %vm2036, %v2464, %v2482
    %v2500 = vsel %vm2036, %v2466, %v2484
    %v2501 = vsel %vm2036, %v2468, %v2486
    %v2502 = vsel %vm2036, %v2470, %v2488
    %v2503 = vsel %vm2036, %v2472, %v2490
    %v2504 = vsel %vm2036, %v2474, %v2492
    %2505 = vrot.lane.b32.xlu0 %v2006, 116
    %v2506 = vpop.permute.xlu0 %2505
    %2507 = vrot.lane.b32.xlu0 %v2007, 116
    %v2508 = vpop.permute.xlu0 %2507
    %2509 = vrot.lane.b32.xlu0 %v2008, 116
    %v2510 = vpop.permute.xlu0 %2509
    %2511 = vrot.lane.b32.xlu0 %v2009, 116
    %v2512 = vpop.permute.xlu0 %2511
    %2513 = vrot.lane.b32.xlu0 %v2010, 116
    %v2514 = vpop.permute.xlu0 %2513
    %2515 = vrot.lane.b32.xlu0 %v2011, 116
    %v2516 = vpop.permute.xlu0 %2515
    %2523 = vrot.lane.b32.xlu0 %v2006, 102
    %v2524 = vpop.permute.xlu0 %2523
    %2525 = vrot.lane.b32.xlu0 %v2007, 102
    %v2526 = vpop.permute.xlu0 %2525
    %2527 = vrot.lane.b32.xlu0 %v2008, 102
    %v2528 = vpop.permute.xlu0 %2527
    %2529 = vrot.lane.b32.xlu0 %v2009, 102
    %v2530 = vpop.permute.xlu0 %2529
    %2531 = vrot.lane.b32.xlu0 %v2010, 102
    %v2532 = vpop.permute.xlu0 %2531
    %2533 = vrot.lane.b32.xlu0 %v2011, 102
    %v2534 = vpop.permute.xlu0 %2533
    %v2541 = vsel %vm2036, %v2506, %v2524
    %v2542 = vsel %vm2036, %v2508, %v2526
    %v2543 = vsel %vm2036, %v2510, %v2528
    %v2544 = vsel %vm2036, %v2512, %v2530
    %v2545 = vsel %vm2036, %v2514, %v2532
    %v2546 = vsel %vm2036, %v2516, %v2534
    %2547 = vrot.lane.b32.xlu0 %v2006, 115
    %v2548 = vpop.permute.xlu0 %2547
    %2549 = vrot.lane.b32.xlu0 %v2007, 115
    %v2550 = vpop.permute.xlu0 %2549
    %2551 = vrot.lane.b32.xlu0 %v2008, 115
    %v2552 = vpop.permute.xlu0 %2551
    %2553 = vrot.lane.b32.xlu0 %v2009, 115
    %v2554 = vpop.permute.xlu0 %2553
    %2555 = vrot.lane.b32.xlu0 %v2010, 115
    %v2556 = vpop.permute.xlu0 %2555
    %2557 = vrot.lane.b32.xlu0 %v2011, 115
    %v2558 = vpop.permute.xlu0 %2557
    %2565 = vrot.lane.b32.xlu0 %v2006, 101
    %v2566 = vpop.permute.xlu0 %2565
    %2567 = vrot.lane.b32.xlu0 %v2007, 101
    %v2568 = vpop.permute.xlu0 %2567
    %2569 = vrot.lane.b32.xlu0 %v2008, 101
    %v2570 = vpop.permute.xlu0 %2569
    %2571 = vrot.lane.b32.xlu0 %v2009, 101
    %v2572 = vpop.permute.xlu0 %2571
    %2573 = vrot.lane.b32.xlu0 %v2010, 101
    %v2574 = vpop.permute.xlu0 %2573
    %2575 = vrot.lane.b32.xlu0 %v2011, 101
    %v2576 = vpop.permute.xlu0 %2575
    %v2583 = vsel %vm2036, %v2548, %v2566
    %v2584 = vsel %vm2036, %v2550, %v2568
    %v2585 = vsel %vm2036, %v2552, %v2570
    %v2586 = vsel %vm2036, %v2554, %v2572
    %v2587 = vsel %vm2036, %v2556, %v2574
    %v2588 = vsel %vm2036, %v2558, %v2576
    %2589 = vrot.lane.b32.xlu0 %v2006, 100
    %v2590 = vpop.permute.xlu0 %2589
    %2591 = vrot.lane.b32.xlu0 %v2007, 100
    %v2592 = vpop.permute.xlu0 %2591
    %2593 = vrot.lane.b32.xlu0 %v2008, 100
    %v2594 = vpop.permute.xlu0 %2593
    %2595 = vrot.lane.b32.xlu0 %v2009, 100
    %v2596 = vpop.permute.xlu0 %2595
    %2597 = vrot.lane.b32.xlu0 %v2010, 100
    %v2598 = vpop.permute.xlu0 %2597
    %2599 = vrot.lane.b32.xlu0 %v2011, 100
    %v2600 = vpop.permute.xlu0 %2599
    %v2607 = vsel %vm2036, %v2019, %v2590
    %v2608 = vsel %vm2036, %v2021, %v2592
    %v2609 = vsel %vm2036, %v2023, %v2594
    %v2610 = vsel %vm2036, %v2025, %v2596
    %v2611 = vsel %vm2036, %v2027, %v2598
    %v2612 = vsel %vm2036, %v2029, %v2600
    %v2613 = vld [vmem:[%s5] sm:$0xff]
    %v2614 = vld [vmem:[%s5 + $0x8] sm:$0xff]
    %v2615 = vld [vmem:[%s5 + $0x10] sm:$0xff]
    %v2616 = vld [vmem:[%s5 + $0x18] sm:$0xff]
    %v2617 = vld [vmem:[%s5 + $0x20] sm:$0xff]
    %v2618 = vld [vmem:[%s5 + $0x28] sm:$0xff]
    %v2619 = vld [vmem:[%s5 + $0x30] sm:$0xff]
    %v2620 = vld [vmem:[%s5 + $0x38] sm:$0xff]
    %v2621 = vld [vmem:[%s5 + $0x40] sm:$0xff]
    %v2622 = vld [vmem:[%s5 + $0x48] sm:$0xff]
    %v2623 = vld [vmem:[%s5 + $0x50] sm:$0xff]
    %v2624 = vld [vmem:[%s5 + $0x58] sm:$0xff]
    %v2625 = vld [vmem:[%s5 + $0x60] sm:$0xff]
    %v2626 = vld [vmem:[%s5 + $0x68] sm:$0xff]
    %v2627 = vld [vmem:[%s5 + $0x70] sm:$0xff]
    %v2628 = vld [vmem:[%s5 + $0x78] sm:$0xff]
    %v2629 = vld [vmem:[%s5 + $0x80] sm:$0xff]
    %v2630 = vld [vmem:[%s5 + $0x88] sm:$0xff]
    %v2631 = vld [vmem:[%s5 + $0x90] sm:$0xff]
    %v2632 = vld [vmem:[%s5 + $0x98] sm:$0xff]
    %v2633 = vld [vmem:[%s5 + $0xa0] sm:$0xff]
    %v2634 = vld [vmem:[%s5 + $0xa8] sm:$0xff]
    %v2635 = vld [vmem:[%s5 + $0xb0] sm:$0xff]
    %v2636 = vld [vmem:[%s5 + $0xb8] sm:$0xff]
    %v2637 = vpack.c.bf16 %v2038, %v2037
    %v2638 = vpack.c.bf16 %v2040, %v2039
    %v2639 = vpack.c.bf16 %v2042, %v2041
    %v2640 = vpack.c.bf16 %v2080, %v2079
    %v2641 = vpack.c.bf16 %v2082, %v2081
    %v2642 = vpack.c.bf16 %v2084, %v2083
    %v2643 = vpack.c.bf16 %v2122, %v2121
    %v2644 = vpack.c.bf16 %v2124, %v2123
    %v2645 = vpack.c.bf16 %v2126, %v2125
    %v2646 = vpack.c.bf16 %v2164, %v2163
    %v2647 = vpack.c.bf16 %v2166, %v2165
    %v2648 = vpack.c.bf16 %v2168, %v2167
    %v2649 = vpack.c.bf16 %v2206, %v2205
    %v2650 = vpack.c.bf16 %v2208, %v2207
    %v2651 = vpack.c.bf16 %v2210, %v2209
    %v2652 = vpack.c.bf16 %v2248, %v2247
    %v2653 = vpack.c.bf16 %v2250, %v2249
    %v2654 = vpack.c.bf16 %v2252, %v2251
    %v2655 = vpack.c.bf16 %v2290, %v2289
    %v2656 = vpack.c.bf16 %v2292, %v2291
    %v2657 = vpack.c.bf16 %v2294, %v2293
    %v2658 = vpack.c.bf16 %v2332, %v2331
    %v2659 = vpack.c.bf16 %v2334, %v2333
    %v2660 = vpack.c.bf16 %v2336, %v2335
    %v2661 = vpack.c.bf16 %v2374, %v2373
    %v2662 = vpack.c.bf16 %v2376, %v2375
    %v2663 = vpack.c.bf16 %v2378, %v2377
    %v2664 = vpack.c.bf16 %v2416, %v2415
    %v2665 = vpack.c.bf16 %v2418, %v2417
    %v2666 = vpack.c.bf16 %v2420, %v2419
    %v2667 = vpack.c.bf16 %v2458, %v2457
    %v2668 = vpack.c.bf16 %v2460, %v2459
    %v2669 = vpack.c.bf16 %v2462, %v2461
    %v2670 = vpack.c.bf16 %v2500, %v2499
    %v2671 = vpack.c.bf16 %v2502, %v2501
    %v2672 = vpack.c.bf16 %v2504, %v2503
    %v2673 = vpack.c.bf16 %v2542, %v2541
    %v2674 = vpack.c.bf16 %v2544, %v2543
    %v2675 = vpack.c.bf16 %v2546, %v2545
    %v2676 = vpack.c.bf16 %v2584, %v2583
    %v2677 = vpack.c.bf16 %v2586, %v2585
    %v2678 = vpack.c.bf16 %v2588, %v2587
    %v2679 = vpack.c.bf16 %v2608, %v2607
    %v2680 = vpack.c.bf16 %v2610, %v2609
    %v2681 = vpack.c.bf16 %v2612, %v2611
    %v2682 = vld [vmem:[%s6] sm:$0xff]
    %v2683 = vld [vmem:[%s6 + $0x8] sm:$0xff]
    %v2684 = vld [vmem:[%s6 + $0x10] sm:$0xff]
    %v2685 = vld [vmem:[%s6 + $0x18] sm:$0xff]
    %v2686 = vld [vmem:[%s6 + $0x20] sm:$0xff]
    %v2687 = vld [vmem:[%s6 + $0x28] sm:$0xff]
    %v2688 = vld [vmem:[%s6 + $0x30] sm:$0xff]
    %v2689 = vld [vmem:[%s6 + $0x38] sm:$0xff]
    %2691 = vset.pattern.permute.xlu0 0
    %2692 = vperm.xlu0 %2691, %v2682
    %v2693 = vpop.permute.xlu0 %2692
    %2696 = vset.pattern.permute.xlu0 0
    %2697 = vperm.xlu0 %2696, %v2683
    %v2698 = vpop.permute.xlu0 %2697
    %2701 = vset.pattern.permute.xlu0 0
    %2702 = vperm.xlu0 %2701, %v2684
    %v2703 = vpop.permute.xlu0 %2702
    %2706 = vset.pattern.permute.xlu0 0
    %2707 = vperm.xlu0 %2706, %v2685
    %v2708 = vpop.permute.xlu0 %2707
    %2711 = vset.pattern.permute.xlu0 0
    %2712 = vperm.xlu0 %2711, %v2686
    %v2713 = vpop.permute.xlu0 %2712
    %2716 = vset.pattern.permute.xlu0 0
    %2717 = vperm.xlu0 %2716, %v2687
    %v2718 = vpop.permute.xlu0 %2717
    %2721 = vset.pattern.permute.xlu0 0
    %2722 = vperm.xlu0 %2721, %v2688
    %v2723 = vpop.permute.xlu0 %2722
    %2726 = vset.pattern.permute.xlu0 0
    %2727 = vperm.xlu0 %2726, %v2689
    %v2728 = vpop.permute.xlu0 %2727
    %v2754 = vunpack.c.l.b16 %v2613
    %v2755 = vunpack.c.h.b16 %v2613
    %v2756 = vunpack.c.l.b16 %v2614
    %v2757 = vunpack.c.h.b16 %v2614
    %v2758 = vunpack.c.l.b16 %v2615
    %v2759 = vunpack.c.h.b16 %v2615
    %v2760 = vunpack.c.l.b16 %v2616
    %v2761 = vunpack.c.h.b16 %v2616
    %v2762 = vunpack.c.l.b16 %v2617
    %v2763 = vunpack.c.h.b16 %v2617
    %v2764 = vunpack.c.l.b16 %v2618
    %v2765 = vunpack.c.h.b16 %v2618
    %v2766 = vunpack.c.l.b16 %v2619
    %v2767 = vunpack.c.h.b16 %v2619
    %v2768 = vunpack.c.l.b16 %v2620
    %v2769 = vunpack.c.h.b16 %v2620
    %v2770 = vunpack.c.l.b16 %v2621
    %v2771 = vunpack.c.h.b16 %v2621
    %v2772 = vunpack.c.l.b16 %v2622
    %v2773 = vunpack.c.h.b16 %v2622
    %v2774 = vunpack.c.l.b16 %v2623
    %v2775 = vunpack.c.h.b16 %v2623
    %v2776 = vunpack.c.l.b16 %v2624
    %v2777 = vunpack.c.h.b16 %v2624
    %v2778 = vunpack.c.l.b16 %v2625
    %v2779 = vunpack.c.h.b16 %v2625
    %v2780 = vunpack.c.l.b16 %v2626
    %v2781 = vunpack.c.h.b16 %v2626
    %v2782 = vunpack.c.l.b16 %v2627
    %v2783 = vunpack.c.h.b16 %v2627
    %v2784 = vunpack.c.l.b16 %v2628
    %v2785 = vunpack.c.h.b16 %v2628
    %v2786 = vunpack.c.l.b16 %v2629
    %v2787 = vunpack.c.h.b16 %v2629
    %v2788 = vunpack.c.l.b16 %v2630
    %v2789 = vunpack.c.h.b16 %v2630
    %v2790 = vunpack.c.l.b16 %v2631
    %v2791 = vunpack.c.h.b16 %v2631
    %v2792 = vunpack.c.l.b16 %v2632
    %v2793 = vunpack.c.h.b16 %v2632
    %v2794 = vunpack.c.l.b16 %v2633
    %v2795 = vunpack.c.h.b16 %v2633
    %v2796 = vunpack.c.l.b16 %v2634
    %v2797 = vunpack.c.h.b16 %v2634
    %v2798 = vunpack.c.l.b16 %v2635
    %v2799 = vunpack.c.h.b16 %v2635
    %v2800 = vunpack.c.l.b16 %v2636
    %v2801 = vunpack.c.h.b16 %v2636
    %v2802 = vpack.c.b16 %v2760, %v2754
    %v2803 = vpack.c.b16 %v2761, %v2755
    %v2804 = vpack.c.b16 %v2762, %v2756
    %v2805 = vpack.c.b16 %v2763, %v2757
    %v2806 = vpack.c.b16 %v2764, %v2758
    %v2807 = vpack.c.b16 %v2765, %v2759
    %v2808 = vpack.c.b16 %v2772, %v2766
    %v2809 = vpack.c.b16 %v2773, %v2767
    %v2810 = vpack.c.b16 %v2774, %v2768
    %v2811 = vpack.c.b16 %v2775, %v2769
    %v2812 = vpack.c.b16 %v2776, %v2770
    %v2813 = vpack.c.b16 %v2777, %v2771
    %v2814 = vpack.c.b16 %v2784, %v2778
    %v2815 = vpack.c.b16 %v2785, %v2779
    %v2816 = vpack.c.b16 %v2786, %v2780
    %v2817 = vpack.c.b16 %v2787, %v2781
    %v2818 = vpack.c.b16 %v2788, %v2782
    %v2819 = vpack.c.b16 %v2789, %v2783
    %v2820 = vpack.c.b16 %v2796, %v2790
    %v2821 = vpack.c.b16 %v2797, %v2791
    %v2822 = vpack.c.b16 %v2798, %v2792
    %v2823 = vpack.c.b16 %v2799, %v2793
    %v2824 = vpack.c.b16 %v2800, %v2794
    %v2825 = vpack.c.b16 %v2801, %v2795
    %vm2846 = vcmask 654336
    %v2848 = vsel %vm2846, %v2807, 0
    %v2851 = vsel %vm2846, %v2813, 0
    %v2854 = vsel %vm2846, %v2819, 0
    %v2857 = vsel %vm2846, %v2825, 0
    %2859 = vmatprep.subr.bf16.mxu0 0
    %2860 = vmatpush1.bf16.msra.mxu0 %v2637
    %2861 = vmatprep.subr.bf16.mxu0 0
    %2862 = vmatpush1.bf16.msra.mxu0 %v2638
    %2863 = vmatprep.subr.bf16.mxu0 0
    %2864 = vmatpush1.bf16.msra.mxu0 %v2639
    %2865 = vmatprep.subr.bf16.mxu0 0
    %2866 = vmatpush1.bf16.msra.mxu0 %v2640
    %2867 = vmatprep.subr.bf16.mxu0 0
    %2868 = vmatpush1.bf16.msra.mxu0 %v2641
    %2869 = vmatprep.subr.bf16.mxu0 0
    %2870 = vmatpush1.bf16.msra.mxu0 %v2642
    %2871 = vmatprep.subr.bf16.mxu0 0
    %2872 = vmatpush1.bf16.msra.mxu0 %v2643
    %2873 = vmatprep.subr.bf16.mxu0 0
    %2874 = vmatpush1.bf16.msra.mxu0 %v2644
    %2875 = vmatprep.subr.bf16.mxu0 0
    %2876 = vmatpush1.bf16.msra.mxu0 %v2645
    %2877 = vmatprep.subr.bf16.mxu0 0
    %2878 = vmatpush1.bf16.msra.mxu0 %v2646
    %2879 = vmatprep.subr.bf16.mxu0 0
    %2880 = vmatpush1.bf16.msra.mxu0 %v2647
    %2881 = vmatprep.subr.bf16.mxu0 0
    %2882 = vmatpush1.bf16.msra.mxu0 %v2648
    %2883 = vmatprep.subr.bf16.mxu0 0
    %2884 = vmatpush1.bf16.msra.mxu0 %v2649
    %2885 = vmatprep.subr.bf16.mxu0 0
    %2886 = vmatpush1.bf16.msra.mxu0 %v2650
    %2887 = vmatprep.subr.bf16.mxu0 0
    %2888 = vmatpush1.bf16.msra.mxu0 %v2651
    %2889 = vmatprep.subr.bf16.mxu0 0
    %2890 = vmatpush1.bf16.msra.mxu0 %v2652
    %2891 = vmatprep.mubr.bf16.mxu0 %v2803
    %2892 = vmatmul.mubr.bf16.gmra.mrb[0].mxu0 %v2802
    %v2893 = vpop.f32.mrb[0].mxu0
    %v2894 = vadd.f32 %v2693, %v2893
    %v2895 = vpop.f32.mrb[0].mxu0
    %v2896 = vpop.f32.mrb[0].mxu0
    %v2897 = vadd.f32 %v2698, %v2896
    %v2898 = vpop.f32.mrb[0].mxu0
    %2899 = vmatprep.mubr.bf16.mxu0 %v2809
    %2900 = vmatmul.mubr.bf16.gmra.mrb[0].mxu0 %v2808
    %v2901 = vpop.f32.mrb[0].mxu0
    %v2902 = vadd.f32 %v2703, %v2901
    %v2903 = vpop.f32.mrb[0].mxu0
    %v2904 = vpop.f32.mrb[0].mxu0
    %v2905 = vadd.f32 %v2708, %v2904
    %v2906 = vpop.f32.mrb[0].mxu0
    %2907 = vmatprep.mubr.bf16.mxu0 %v2815
    %2908 = vmatmul.mubr.bf16.gmra.mrb[0].mxu0 %v2814
    %v2909 = vpop.f32.mrb[0].mxu0
    %v2910 = vadd.f32 %v2713, %v2909
    %v2911 = vpop.f32.mrb[0].mxu0
    %v2912 = vpop.f32.mrb[0].mxu0
    %v2913 = vadd.f32 %v2718, %v2912
    %v2914 = vpop.f32.mrb[0].mxu0
    %2915 = vmatprep.mubr.bf16.mxu0 %v2821
    %2916 = vmatmul.mubr.bf16.gmra.mrb[0].mxu0 %v2820
    %v2917 = vpop.f32.mrb[0].mxu0
    %v2918 = vadd.f32 %v2723, %v2917
    %v2919 = vpop.f32.mrb[0].mxu0
    %v2920 = vpop.f32.mrb[0].mxu0
    %v2921 = vadd.f32 %v2728, %v2920
    %v2922 = vpop.f32.mrb[0].mxu0
    %2923 = vdwg.mxu0
    %2924 = vmatprep.subr.bf16.mxu0 0
    %2925 = vmatpush1.bf16.msra.mxu0 %v2653
    %2926 = vmatprep.subr.bf16.mxu0 0
    %2927 = vmatpush1.bf16.msra.mxu0 %v2654
    %2928 = vmatprep.subr.bf16.mxu0 0
    %2929 = vmatpush1.bf16.msra.mxu0 %v2655
    %2930 = vmatprep.subr.bf16.mxu0 0
    %2931 = vmatpush1.bf16.msra.mxu0 %v2656
    %2932 = vmatprep.subr.bf16.mxu0 0
    %2933 = vmatpush1.bf16.msra.mxu0 %v2657
    %2934 = vmatprep.subr.bf16.mxu0 0
    %2935 = vmatpush1.bf16.msra.mxu0 %v2658
    %2936 = vmatprep.subr.bf16.mxu0 0
    %2937 = vmatpush1.bf16.msra.mxu0 %v2659
    %2938 = vmatprep.subr.bf16.mxu0 0
    %2939 = vmatpush1.bf16.msra.mxu0 %v2660
    %2940 = vmatprep.subr.bf16.mxu0 0
    %2941 = vmatpush1.bf16.msra.mxu0 %v2661
    %2942 = vmatprep.subr.bf16.mxu0 0
    %2943 = vmatpush1.bf16.msra.mxu0 %v2662
    %2944 = vmatprep.subr.bf16.mxu0 0
    %2945 = vmatpush1.bf16.msra.mxu0 %v2663
    %2946 = vmatprep.subr.bf16.mxu0 0
    %2947 = vmatpush1.bf16.msra.mxu0 %v2664
    %2948 = vmatprep.subr.bf16.mxu0 0
    %2949 = vmatpush1.bf16.msra.mxu0 %v2665
    %2950 = vmatprep.subr.bf16.mxu0 0
    %2951 = vmatpush1.bf16.msra.mxu0 %v2666
    %2952 = vmatprep.subr.bf16.mxu0 0
    %2953 = vmatpush1.bf16.msra.mxu0 %v2667
    %2954 = vmatprep.subr.bf16.mxu0 0
    %2955 = vmatpush1.bf16.msra.mxu0 %v2668
    %2956 = vmatprep.mubr.bf16.mxu0 %v2805
    %2957 = vmatmul.mubr.bf16.gmra.mrb[0].mxu0 %v2804
    %v2958 = vpop.f32.mrb[0].mxu0
    %v2959 = vadd.f32 %v2894, %v2958
    %v2960 = vpop.f32.mrb[0].mxu0
    %v2961 = vpop.f32.mrb[0].mxu0
    %v2962 = vadd.f32 %v2897, %v2961
    %v2963 = vpop.f32.mrb[0].mxu0
    %2964 = vmatprep.mubr.bf16.mxu0 %v2811
    %2965 = vmatmul.mubr.bf16.gmra.mrb[0].mxu0 %v2810
    %v2966 = vpop.f32.mrb[0].mxu0
    %v2967 = vadd.f32 %v2902, %v2966
    %v2968 = vpop.f32.mrb[0].mxu0
    %v2969 = vpop.f32.mrb[0].mxu0
    %v2970 = vadd.f32 %v2905, %v2969
    %v2971 = vpop.f32.mrb[0].mxu0
    %2972 = vmatprep.mubr.bf16.mxu0 %v2817
    %2973 = vmatmul.mubr.bf16.gmra.mrb[0].mxu0 %v2816
    %v2974 = vpop.f32.mrb[0].mxu0
    %v2975 = vadd.f32 %v2910, %v2974
    %v2976 = vpop.f32.mrb[0].mxu0
    %v2977 = vpop.f32.mrb[0].mxu0
    %v2978 = vadd.f32 %v2913, %v2977
    %v2979 = vpop.f32.mrb[0].mxu0
    %2980 = vmatprep.mubr.bf16.mxu0 %v2823
    %2981 = vmatmul.mubr.bf16.gmra.mrb[0].mxu0 %v2822
    %v2982 = vpop.f32.mrb[0].mxu0
    %v2983 = vadd.f32 %v2918, %v2982
    %v2984 = vpop.f32.mrb[0].mxu0
    %v2985 = vpop.f32.mrb[0].mxu0
    %v2986 = vadd.f32 %v2921, %v2985
    %v2987 = vpop.f32.mrb[0].mxu0
    %2988 = vdwg.mxu0
    %2989 = vmatprep.subr.bf16.mxu0 0
    %2990 = vmatpush1.bf16.msra.mxu0 %v2669
    %2991 = vmatprep.subr.bf16.mxu0 0
    %2992 = vmatpush1.bf16.msra.mxu0 %v2670
    %2993 = vmatprep.subr.bf16.mxu0 0
    %2994 = vmatpush1.bf16.msra.mxu0 %v2671
    %2995 = vmatprep.subr.bf16.mxu0 0
    %2996 = vmatpush1.bf16.msra.mxu0 %v2672
    %2997 = vmatprep.subr.bf16.mxu0 0
    %2998 = vmatpush1.bf16.msra.mxu0 %v2673
    %2999 = vmatprep.subr.bf16.mxu0 0
    %3000 = vmatpush1.bf16.msra.mxu0 %v2674
    %3001 = vmatprep.subr.bf16.mxu0 0
    %3002 = vmatpush1.bf16.msra.mxu0 %v2675
    %3003 = vmatprep.subr.bf16.mxu0 0
    %3004 = vmatpush1.bf16.msra.mxu0 %v2676
    %3005 = vmatprep.subr.bf16.mxu0 0
    %3006 = vmatpush1.bf16.msra.mxu0 %v2677
    %3007 = vmatprep.subr.bf16.mxu0 0
    %3008 = vmatpush1.bf16.msra.mxu0 %v2678
    %3009 = vmatprep.subr.bf16.mxu0 0
    %3010 = vmatpush1.bf16.msra.mxu0 %v2679
    %3011 = vmatprep.subr.bf16.mxu0 0
    %3012 = vmatpush1.bf16.msra.mxu0 %v2680
    %3013 = vmatprep.subr.bf16.mxu0 0
    %3014 = vmatpush1.bf16.msra.mxu0 %v2681
    %3015 = vmatprep.subr.bf16.mxu0 0
    %3016 = vmatpush1.bf16.msra.mxu0 0
    %3017 = vmatprep.subr.bf16.mxu0 0
    %3018 = vmatpush1.bf16.msra.mxu0 0
    %3019 = vmatprep.subr.bf16.mxu0 0
    %3020 = vmatpush1.bf16.msra.mxu0 0
    %3021 = vmatprep.mubr.bf16.mxu0 %v2848
    %3022 = vmatmul.mubr.bf16.gmra.mrb[0].mxu0 %v2806
    %v3023 = vpop.f32.mrb[0].mxu0
    %v3024 = vadd.f32 %v2959, %v3023
    %v3025 = vpop.f32.mrb[0].mxu0
    %v3026 = vpop.f32.mrb[0].mxu0
    %v3027 = vadd.f32 %v2962, %v3026
    %v3028 = vpop.f32.mrb[0].mxu0
    %3029 = vmatprep.mubr.bf16.mxu0 %v2851
    %3030 = vmatmul.mubr.bf16.gmra.mrb[0].mxu0 %v2812
    %v3031 = vpop.f32.mrb[0].mxu0
    %v3032 = vadd.f32 %v2967, %v3031
    %v3033 = vpop.f32.mrb[0].mxu0
    %v3034 = vpop.f32.mrb[0].mxu0
    %v3035 = vadd.f32 %v2970, %v3034
    %v3036 = vpop.f32.mrb[0].mxu0
    %3037 = vmatprep.mubr.bf16.mxu0 %v2854
    %3038 = vmatmul.mubr.bf16.gmra.mrb[0].mxu0 %v2818
    %v3039 = vpop.f32.mrb[0].mxu0
    %v3040 = vadd.f32 %v2975, %v3039
    %v3041 = vpop.f32.mrb[0].mxu0
    %v3042 = vpop.f32.mrb[0].mxu0
    %v3043 = vadd.f32 %v2978, %v3042
    %v3044 = vpop.f32.mrb[0].mxu0
    %3045 = vmatprep.mubr.bf16.mxu0 %v2857
    %3046 = vmatmul.mubr.bf16.gmra.mrb[0].mxu0 %v2824
    %v3047 = vpop.f32.mrb[0].mxu0
    %v3048 = vadd.f32 %v2983, %v3047
    %v3049 = vpop.f32.mrb[0].mxu0
    %v3050 = vpop.f32.mrb[0].mxu0
    %v3051 = vadd.f32 %v2986, %v3050
    %v3052 = vpop.f32.mrb[0].mxu0
    %3053 = vdwg.mxu0
    %v3054 = vsel %vm991, %v3024, 0.0
    %3055 = vadd.xlane.f32.xlu0 %v3054
    %v3056 = vpop.xlane.xlu0 %3055
    %v3057 = vsel %vm991, %v3027, 0.0
    %3058 = vadd.xlane.f32.xlu0 %v3057
    %v3059 = vpop.xlane.xlu0 %3058
    %v3060 = vsel %vm991, %v3032, 0.0
    %3061 = vadd.xlane.f32.xlu0 %v3060
    %v3062 = vpop.xlane.xlu0 %3061
    %v3063 = vsel %vm991, %v3035, 0.0
    %3064 = vadd.xlane.f32.xlu0 %v3063
    %v3065 = vpop.xlane.xlu0 %3064
    %v3066 = vsel %vm991, %v3040, 0.0
    %3067 = vadd.xlane.f32.xlu0 %v3066
    %v3068 = vpop.xlane.xlu0 %3067
    %v3069 = vsel %vm991, %v3043, 0.0
    %3070 = vadd.xlane.f32.xlu0 %v3069
    %v3071 = vpop.xlane.xlu0 %3070
    %v3072 = vsel %vm991, %v3048, 0.0
    %3073 = vadd.xlane.f32.xlu0 %v3072
    %v3074 = vpop.xlane.xlu0 %3073
    %v3075 = vsel %vm991, %v3051, 0.0
    %3076 = vadd.xlane.f32.xlu0 %v3075
    %v3077 = vpop.xlane.xlu0 %3076
    %v3078 = vmul.f32 %v3024, %v3024
    %v3079 = vmul.f32 %v3027, %v3027
    %v3080 = vmul.f32 %v3032, %v3032
    %v3081 = vmul.f32 %v3035, %v3035
    %v3082 = vmul.f32 %v3040, %v3040
    %v3083 = vmul.f32 %v3043, %v3043
    %v3084 = vmul.f32 %v3048, %v3048
    %v3085 = vmul.f32 %v3051, %v3051
    %v3086 = vsel %vm991, %v3078, 0.0
    %3087 = vadd.xlane.f32.xlu0 %v3086
    %v3088 = vpop.xlane.xlu0 %3087
    %v3089 = vsel %vm991, %v3079, 0.0
    %3090 = vadd.xlane.f32.xlu0 %v3089
    %v3091 = vpop.xlane.xlu0 %3090
    %v3092 = vsel %vm991, %v3080, 0.0
    %3093 = vadd.xlane.f32.xlu0 %v3092
    %v3094 = vpop.xlane.xlu0 %3093
    %v3095 = vsel %vm991, %v3081, 0.0
    %3096 = vadd.xlane.f32.xlu0 %v3095
    %v3097 = vpop.xlane.xlu0 %3096
    %v3098 = vsel %vm991, %v3082, 0.0
    %3099 = vadd.xlane.f32.xlu0 %v3098
    %v3100 = vpop.xlane.xlu0 %3099
    %v3101 = vsel %vm991, %v3083, 0.0
    %3102 = vadd.xlane.f32.xlu0 %v3101
    %v3103 = vpop.xlane.xlu0 %3102
    %v3104 = vsel %vm991, %v3084, 0.0
    %3105 = vadd.xlane.f32.xlu0 %v3104
    %v3106 = vpop.xlane.xlu0 %3105
    %v3107 = vsel %vm991, %v3085, 0.0
    %3108 = vadd.xlane.f32.xlu0 %v3107
    %v3109 = vpop.xlane.xlu0 %3108
    %v3110 = vmul.f32 %v3056, 0.125
    %v3111 = vmul.f32 %v3059, 0.125
    %v3112 = vmul.f32 %v3062, 0.125
    %v3113 = vmul.f32 %v3065, 0.125
    %v3114 = vmul.f32 %v3068, 0.125
    %v3115 = vmul.f32 %v3071, 0.125
    %v3116 = vmul.f32 %v3074, 0.125
    %v3117 = vmul.f32 %v3077, 0.125
    %v3118 = vmul.f32 %v3088, 0.125
    %v3119 = vmul.f32 %v3091, 0.125
    %v3120 = vmul.f32 %v3094, 0.125
    %v3121 = vmul.f32 %v3097, 0.125
    %v3122 = vmul.f32 %v3100, 0.125
    %v3123 = vmul.f32 %v3103, 0.125
    %v3124 = vmul.f32 %v3106, 0.125
    %v3125 = vmul.f32 %v3109, 0.125
    %v3126 = vmul.f32 %v3110, %v3110
    %v3127 = vmul.f32 %v3111, %v3111
    %v3128 = vmul.f32 %v3112, %v3112
    %v3129 = vmul.f32 %v3113, %v3113
    %v3130 = vmul.f32 %v3114, %v3114
    %v3131 = vmul.f32 %v3115, %v3115
    %v3132 = vmul.f32 %v3116, %v3116
    %v3133 = vmul.f32 %v3117, %v3117
    %v3134 = vsub.f32 %v3118, %v3126
    %v3135 = vsub.f32 %v3119, %v3127
    %v3136 = vsub.f32 %v3120, %v3128
    %v3137 = vsub.f32 %v3121, %v3129
    %v3138 = vsub.f32 %v3122, %v3130
    %v3139 = vsub.f32 %v3123, %v3131
    %v3140 = vsub.f32 %v3124, %v3132
    %v3141 = vsub.f32 %v3125, %v3133
    %v3142 = vmax.f32 %v3134, 0.0
    %v3143 = vmax.f32 %v3135, 0.0
    %v3144 = vmax.f32 %v3136, 0.0
    %v3145 = vmax.f32 %v3137, 0.0
    %v3146 = vmax.f32 %v3138, 0.0
    %v3147 = vmax.f32 %v3139, 0.0
    %v3148 = vmax.f32 %v3140, 0.0
    %v3149 = vmax.f32 %v3141, 0.0
    %v3150 = vadd.f32 %v3142, 1e-05
    %v3151 = vadd.f32 %v3143, 1e-05
    %v3152 = vadd.f32 %v3144, 1e-05
    %v3153 = vadd.f32 %v3145, 1e-05
    %v3154 = vadd.f32 %v3146, 1e-05
    %v3155 = vadd.f32 %v3147, 1e-05
    %v3156 = vadd.f32 %v3148, 1e-05
    %v3157 = vadd.f32 %v3149, 1e-05
    %v3158 = vrsqrt.pop %v3150
    %v3159 = vrsqrt.pop %v3151
    %v3160 = vrsqrt.pop %v3152
    %v3161 = vrsqrt.pop %v3153
    %v3162 = vrsqrt.pop %v3154
    %v3163 = vrsqrt.pop %v3155
    %v3164 = vrsqrt.pop %v3156
    %v3165 = vrsqrt.pop %v3157
    %v3166 = vmul.f32 %v3158, %v2682
    %v3167 = vmul.f32 %v3159, %v2683
    %v3168 = vmul.f32 %v3160, %v2684
    %v3169 = vmul.f32 %v3161, %v2685
    %v3170 = vmul.f32 %v3162, %v2686
    %v3171 = vmul.f32 %v3163, %v2687
    %v3172 = vmul.f32 %v3164, %v2688
    %v3173 = vmul.f32 %v3165, %v2689
    %v3174 = vmul.f32 %v3110, %v3166
    %v3175 = vmul.f32 %v3111, %v3167
    %v3176 = vmul.f32 %v3112, %v3168
    %v3177 = vmul.f32 %v3113, %v3169
    %v3178 = vmul.f32 %v3114, %v3170
    %v3179 = vmul.f32 %v3115, %v3171
    %v3180 = vmul.f32 %v3116, %v3172
    %v3181 = vmul.f32 %v3117, %v3173
    %3190 = vrot.lane.b32.xlu0 %v3174, 1
    %v3191 = vpop.permute.xlu0 %3190
    %3192 = vrot.lane.b32.xlu0 %v3175, 1
    %v3193 = vpop.permute.xlu0 %3192
    %3194 = vrot.lane.b32.xlu0 %v3176, 1
    %v3195 = vpop.permute.xlu0 %3194
    %3196 = vrot.lane.b32.xlu0 %v3177, 1
    %v3197 = vpop.permute.xlu0 %3196
    %3198 = vrot.lane.b32.xlu0 %v3178, 1
    %v3199 = vpop.permute.xlu0 %3198
    %3200 = vrot.lane.b32.xlu0 %v3179, 1
    %v3201 = vpop.permute.xlu0 %3200
    %3202 = vrot.lane.b32.xlu0 %v3180, 1
    %v3203 = vpop.permute.xlu0 %3202
    %3204 = vrot.lane.b32.xlu0 %v3181, 1
    %v3205 = vpop.permute.xlu0 %3204
    %v3214 = vsub.f32 %v2682, %v3191
    %v3215 = vsub.f32 %v2683, %v3193
    %v3216 = vsub.f32 %v2684, %v3195
    %v3217 = vsub.f32 %v2685, %v3197
    %v3218 = vsub.f32 %v2686, %v3199
    %v3219 = vsub.f32 %v2687, %v3201
    %v3220 = vsub.f32 %v2688, %v3203
    %v3221 = vsub.f32 %v2689, %v3205
    %3223 = vset.pattern.permute.xlu0 1
    %3224 = vperm.xlu0 %3223, %v3166
    %v3225 = vpop.permute.xlu0 %3224
    %3228 = vset.pattern.permute.xlu0 1
    %3229 = vperm.xlu0 %3228, %v3167
    %v3230 = vpop.permute.xlu0 %3229
    %3233 = vset.pattern.permute.xlu0 1
    %3234 = vperm.xlu0 %3233, %v3168
    %v3235 = vpop.permute.xlu0 %3234
    %3238 = vset.pattern.permute.xlu0 1
    %3239 = vperm.xlu0 %3238, %v3169
    %v3240 = vpop.permute.xlu0 %3239
    %3243 = vset.pattern.permute.xlu0 1
    %3244 = vperm.xlu0 %3243, %v3170
    %v3245 = vpop.permute.xlu0 %3244
    %3248 = vset.pattern.permute.xlu0 1
    %3249 = vperm.xlu0 %3248, %v3171
    %v3250 = vpop.permute.xlu0 %3249
    %3253 = vset.pattern.permute.xlu0 1
    %3254 = vperm.xlu0 %3253, %v3172
    %v3255 = vpop.permute.xlu0 %3254
    %3258 = vset.pattern.permute.xlu0 1
    %3259 = vperm.xlu0 %3258, %v3173
    %v3260 = vpop.permute.xlu0 %3259
    %v3262 = vmul.f32 %v3024, %v3225
    %v3263 = vmul.f32 %v3027, %v3230
    %v3264 = vmul.f32 %v3032, %v3235
    %v3265 = vmul.f32 %v3035, %v3240
    %v3266 = vmul.f32 %v3040, %v3245
    %v3267 = vmul.f32 %v3043, %v3250
    %v3268 = vmul.f32 %v3048, %v3255
    %v3269 = vmul.f32 %v3051, %v3260
    %3271 = vset.pattern.permute.xlu0 2
    %3272 = vperm.xlu0 %3271, %v3214
    %v3273 = vpop.permute.xlu0 %3272
    %3276 = vset.pattern.permute.xlu0 2
    %3277 = vperm.xlu0 %3276, %v3215
    %v3278 = vpop.permute.xlu0 %3277
    %3281 = vset.pattern.permute.xlu0 2
    %3282 = vperm.xlu0 %3281, %v3216
    %v3283 = vpop.permute.xlu0 %3282
    %3286 = vset.pattern.permute.xlu0 2
    %3287 = vperm.xlu0 %3286, %v3217
    %v3288 = vpop.permute.xlu0 %3287
    %3291 = vset.pattern.permute.xlu0 2
    %3292 = vperm.xlu0 %3291, %v3218
    %v3293 = vpop.permute.xlu0 %3292
    %3296 = vset.pattern.permute.xlu0 2
    %3297 = vperm.xlu0 %3296, %v3219
    %v3298 = vpop.permute.xlu0 %3297
    %3301 = vset.pattern.permute.xlu0 2
    %3302 = vperm.xlu0 %3301, %v3220
    %v3303 = vpop.permute.xlu0 %3302
    %3306 = vset.pattern.permute.xlu0 2
    %3307 = vperm.xlu0 %3306, %v3221
    %v3308 = vpop.permute.xlu0 %3307
    %v3310 = vadd.f32 %v3262, %v3273
    %v3311 = vadd.f32 %v3263, %v3278
    %v3312 = vadd.f32 %v3264, %v3283
    %v3313 = vadd.f32 %v3265, %v3288
    %v3314 = vadd.f32 %v3266, %v3293
    %v3315 = vadd.f32 %v3267, %v3298
    %v3316 = vadd.f32 %v3268, %v3303
    %v3317 = vadd.f32 %v3269, %v3308
    %vm3318 = vcmp.gt.f32.partialorder %v3310, 0.0
    %vm3319 = vcmp.gt.f32.partialorder %v3311, 0.0
    %vm3320 = vcmp.gt.f32.partialorder %v3312, 0.0
    %vm3321 = vcmp.gt.f32.partialorder %v3313, 0.0
    %vm3322 = vcmp.gt.f32.partialorder %v3314, 0.0
    %vm3323 = vcmp.gt.f32.partialorder %v3315, 0.0
    %vm3324 = vcmp.gt.f32.partialorder %v3316, 0.0
    %vm3325 = vcmp.gt.f32.partialorder %v3317, 0.0
    %v3326 = vmul.f32 %v3310, 0.01
    %v3327 = vmul.f32 %v3311, 0.01
    %v3328 = vmul.f32 %v3312, 0.01
    %v3329 = vmul.f32 %v3313, 0.01
    %v3330 = vmul.f32 %v3314, 0.01
    %v3331 = vmul.f32 %v3315, 0.01
    %v3332 = vmul.f32 %v3316, 0.01
    %v3333 = vmul.f32 %v3317, 0.01
    %v3334 = vsel %vm3318, %v3310, %v3326
    %v3335 = vsel %vm3319, %v3311, %v3327
    %v3336 = vsel %vm3320, %v3312, %v3328
    %v3337 = vsel %vm3321, %v3313, %v3329
    %v3338 = vsel %vm3322, %v3314, %v3330
    %v3339 = vsel %vm3323, %v3315, %v3331
    %v3340 = vsel %vm3324, %v3316, %v3332
    %v3341 = vsel %vm3325, %v3317, %v3333
    %3350 = vrot.lane.b32.xlu0 %v3334, 2
    %v3351 = vpop.permute.xlu0 %3350
    %3352 = vrot.lane.b32.xlu0 %v3335, 2
    %v3353 = vpop.permute.xlu0 %3352
    %3354 = vrot.lane.b32.xlu0 %v3336, 2
    %v3355 = vpop.permute.xlu0 %3354
    %3356 = vrot.lane.b32.xlu0 %v3337, 2
    %v3357 = vpop.permute.xlu0 %3356
    %3358 = vrot.lane.b32.xlu0 %v3338, 2
    %v3359 = vpop.permute.xlu0 %3358
    %3360 = vrot.lane.b32.xlu0 %v3339, 2
    %v3361 = vpop.permute.xlu0 %3360
    %3362 = vrot.lane.b32.xlu0 %v3340, 2
    %v3363 = vpop.permute.xlu0 %3362
    %3364 = vrot.lane.b32.xlu0 %v3341, 2
    %v3365 = vpop.permute.xlu0 %3364
    %vm3374 = vcmask 48144
    %3375 = vst.msk [vmem:[#allocation6 + $0x40] sm:$0xff] %vm3374, %v3351
    %3376 = vst.msk [vmem:[#allocation6 + $0x48] sm:$0xff] %vm3374, %v3353
    %3377 = vst.msk [vmem:[#allocation6 + $0x50] sm:$0xff] %vm3374, %v3355
    %3378 = vst.msk [vmem:[#allocation6 + $0x58] sm:$0xff] %vm3374, %v3357
    %3379 = vst.msk [vmem:[#allocation6 + $0x60] sm:$0xff] %vm3374, %v3359
    %3380 = vst.msk [vmem:[#allocation6 + $0x68] sm:$0xff] %vm3374, %v3361
    %3381 = vst.msk [vmem:[#allocation6 + $0x70] sm:$0xff] %vm3374, %v3363
    %3382 = vst.msk [vmem:[#allocation6 + $0x78] sm:$0xff] %vm3374, %v3365
    %3383 = vrot.lane.b32.xlu0 %v3334, 6
    %v3384 = vpop.permute.xlu0 %3383
    %3385 = vrot.lane.b32.xlu0 %v3335, 6
    %v3386 = vpop.permute.xlu0 %3385
    %3387 = vrot.lane.b32.xlu0 %v3336, 6
    %v3388 = vpop.permute.xlu0 %3387
    %3389 = vrot.lane.b32.xlu0 %v3337, 6
    %v3390 = vpop.permute.xlu0 %3389
    %3391 = vrot.lane.b32.xlu0 %v3338, 6
    %v3392 = vpop.permute.xlu0 %3391
    %3393 = vrot.lane.b32.xlu0 %v3339, 6
    %v3394 = vpop.permute.xlu0 %3393
    %3395 = vrot.lane.b32.xlu0 %v3340, 6
    %v3396 = vpop.permute.xlu0 %3395
    %3397 = vrot.lane.b32.xlu0 %v3341, 6
    %v3398 = vpop.permute.xlu0 %3397
    %vm3407 = vcmask 113744
    %3408 = vst.msk [vmem:[#allocation6 + $0x40] sm:$0xff] %vm3407, %v3384
    %3409 = vst.msk [vmem:[#allocation6 + $0x48] sm:$0xff] %vm3407, %v3386
    %3410 = vst.msk [vmem:[#allocation6 + $0x50] sm:$0xff] %vm3407, %v3388
    %3411 = vst.msk [vmem:[#allocation6 + $0x58] sm:$0xff] %vm3407, %v3390
    %3412 = vst.msk [vmem:[#allocation6 + $0x60] sm:$0xff] %vm3407, %v3392
    %3413 = vst.msk [vmem:[#allocation6 + $0x68] sm:$0xff] %vm3407, %v3394
    %3414 = vst.msk [vmem:[#allocation6 + $0x70] sm:$0xff] %vm3407, %v3396
    %3415 = vst.msk [vmem:[#allocation6 + $0x78] sm:$0xff] %vm3407, %v3398
    %v3416 = vld [vmem:[%s19] sm:$0x3]
    %v3417 = vpack.c.bf16 %v3335, %v3334
    %v3418 = vpack.c.bf16 %v3337, %v3336
    %v3419 = vpack.c.bf16 %v3339, %v3338
    %v3420 = vpack.c.bf16 %v3341, %v3340
    %v3422 = vsel %vm2036, %v3417, 0
    %v3425 = vsel %vm2036, %v3418, 0
    %v3428 = vsel %vm2036, %v3419, 0
    %v3431 = vsel %vm2036, %v3420, 0
    %vm3433 = vcmask 1041408
    %v3435 = vsel %vm3433, %v3416, 0
    %3437 = vmatprep.subr.bf16.mxu0 0
    %3438 = vmatpush1.bf16.msra.mxu0 %v3435
    %3439 = vmatprep.subr.bf16.mxu0 0
    %3440 = vmatpush1.bf16.msra.mxu0 0
    %3441 = vmatprep.subr.bf16.mxu0 0
    %3442 = vmatpush1.bf16.msra.mxu0 0
    %3443 = vmatprep.subr.bf16.mxu0 0
    %3444 = vmatpush1.bf16.msra.mxu0 0
    %3445 = vmatprep.subr.bf16.mxu0 0
    %3446 = vmatpush1.bf16.msra.mxu0 0
    %3447 = vmatprep.subr.bf16.mxu0 0
    %3448 = vmatpush1.bf16.msra.mxu0 0
    %3449 = vmatprep.subr.bf16.mxu0 0
    %3450 = vmatpush1.bf16.msra.mxu0 0
    %3451 = vmatprep.subr.bf16.mxu0 0
    %3452 = vmatpush1.bf16.msra.mxu0 0
    %3453 = vmatprep.subr.bf16.mxu0 0
    %3454 = vmatpush1.bf16.msra.mxu0 0
    %3455 = vmatprep.subr.bf16.mxu0 0
    %3456 = vmatpush1.bf16.msra.mxu0 0
    %3457 = vmatprep.subr.bf16.mxu0 0
    %3458 = vmatpush1.bf16.msra.mxu0 0
    %3459 = vmatprep.subr.bf16.mxu0 0
    %3460 = vmatpush1.bf16.msra.mxu0 0
    %3461 = vmatprep.subr.bf16.mxu0 0
    %3462 = vmatpush1.bf16.msra.mxu0 0
    %3463 = vmatprep.subr.bf16.mxu0 0
    %3464 = vmatpush1.bf16.msra.mxu0 0
    %3465 = vmatprep.subr.bf16.mxu0 0
    %3466 = vmatpush1.bf16.msra.mxu0 0
    %3467 = vmatprep.subr.bf16.mxu0 0
    %3468 = vmatpush1.bf16.msra.mxu0 0
    %3469 = vmatprep.mubr.bf16.mxu0 0
    %3470 = vmatmul.mubr.bf16.gmra.mrb[0].mxu0 %v3422
    %v3471 = vpop.f32.mrb[0].mxu0
    %v3472 = vadd.f32 0.0, %v3471
    %v3473 = vpop.f32.mrb[0].mxu0
    %v3474 = vpop.f32.mrb[0].mxu0
    %v3475 = vadd.f32 0.0, %v3474
    %v3476 = vpop.f32.mrb[0].mxu0
    %3477 = vmatprep.mubr.bf16.mxu0 0
    %3478 = vmatmul.mubr.bf16.gmra.mrb[0].mxu0 %v3425
    %v3479 = vpop.f32.mrb[0].mxu0
    %v3480 = vadd.f32 0.0, %v3479
    %v3481 = vpop.f32.mrb[0].mxu0
    %v3482 = vpop.f32.mrb[0].mxu0
    %v3483 = vadd.f32 0.0, %v3482
    %v3484 = vpop.f32.mrb[0].mxu0
    %3485 = vmatprep.mubr.bf16.mxu0 0
    %3486 = vmatmul.mubr.bf16.gmra.mrb[0].mxu0 %v3428
    %v3487 = vpop.f32.mrb[0].mxu0
    %v3488 = vadd.f32 0.0, %v3487
    %v3489 = vpop.f32.mrb[0].mxu0
    %v3490 = vpop.f32.mrb[0].mxu0
    %v3491 = vadd.f32 0.0, %v3490
    %v3492 = vpop.f32.mrb[0].mxu0
    %3493 = vmatprep.mubr.bf16.mxu0 0
    %3494 = vmatmul.mubr.bf16.gmra.mrb[0].mxu0 %v3431
    %v3495 = vpop.f32.mrb[0].mxu0
    %v3496 = vadd.f32 0.0, %v3495
    %v3497 = vpop.f32.mrb[0].mxu0
    %v3498 = vpop.f32.mrb[0].mxu0
    %v3499 = vadd.f32 0.0, %v3498
    %v3500 = vpop.f32.mrb[0].mxu0
    %3501 = vdwg.mxu0
    %3510 = vrot.lane.b32.xlu0 %v3472, 7
    %v3511 = vpop.permute.xlu0 %3510
    %3512 = vrot.lane.b32.xlu0 %v3475, 7
    %v3513 = vpop.permute.xlu0 %3512
    %3514 = vrot.lane.b32.xlu0 %v3480, 7
    %v3515 = vpop.permute.xlu0 %3514
    %3516 = vrot.lane.b32.xlu0 %v3483, 7
    %v3517 = vpop.permute.xlu0 %3516
    %3518 = vrot.lane.b32.xlu0 %v3488, 7
    %v3519 = vpop.permute.xlu0 %3518
    %3520 = vrot.lane.b32.xlu0 %v3491, 7
    %v3521 = vpop.permute.xlu0 %3520
    %3522 = vrot.lane.b32.xlu0 %v3496, 7
    %v3523 = vpop.permute.xlu0 %3522
    %3524 = vrot.lane.b32.xlu0 %v3499, 7
    %v3525 = vpop.permute.xlu0 %3524
    %vm3534 = vcmask 72760
    %3535 = vst.msk [vmem:[#allocation5] sm:$0xff] %vm3534, %v3511
    %3536 = vst.msk [vmem:[#allocation5 + $0x8] sm:$0xff] %vm3534, %v3513
    %3537 = vst.msk [vmem:[#allocation5 + $0x10] sm:$0xff] %vm3534, %v3515
    %3538 = vst.msk [vmem:[#allocation5 + $0x18] sm:$0xff] %vm3534, %v3517
    %3539 = vst.msk [vmem:[#allocation5 + $0x20] sm:$0xff] %vm3534, %v3519
    %3540 = vst.msk [vmem:[#allocation5 + $0x28] sm:$0xff] %vm3534, %v3521
    %3541 = vst.msk [vmem:[#allocation5 + $0x30] sm:$0xff] %vm3534, %v3523
    %3542 = vst.msk [vmem:[#allocation5 + $0x38] sm:$0xff] %vm3534, %v3525
    %3547 = vrot.lane.b32.xlu0 %v3417, 124
    %v3548 = vpop.permute.xlu0 %3547
    %3549 = vrot.lane.b32.xlu0 %v3418, 124
    %v3550 = vpop.permute.xlu0 %3549
    %3551 = vrot.lane.b32.xlu0 %v3419, 124
    %v3552 = vpop.permute.xlu0 %3551
    %3553 = vrot.lane.b32.xlu0 %v3420, 124
    %v3554 = vpop.permute.xlu0 %3553
    %v3556 = vsel %vm2036, %v3548, 0
    %v3559 = vsel %vm2036, %v3550, 0
    %v3562 = vsel %vm2036, %v3552, 0
    %v3565 = vsel %vm2036, %v3554, 0
    %3567 = vmatprep.subr.bf16.mxu0 0
    %3568 = vmatpush1.bf16.msra.mxu0 %v3435
    %3569 = vmatprep.subr.bf16.mxu0 0
    %3570 = vmatpush1.bf16.msra.mxu0 0
    %3571 = vmatprep.subr.bf16.mxu0 0
    %3572 = vmatpush1.bf16.msra.mxu0 0
    %3573 = vmatprep.subr.bf16.mxu0 0
    %3574 = vmatpush1.bf16.msra.mxu0 0
    %3575 = vmatprep.subr.bf16.mxu0 0
    %3576 = vmatpush1.bf16.msra.mxu0 0
    %3577 = vmatprep.subr.bf16.mxu0 0
    %3578 = vmatpush1.bf16.msra.mxu0 0
    %3579 = vmatprep.subr.bf16.mxu0 0
    %3580 = vmatpush1.bf16.msra.mxu0 0
    %3581 = vmatprep.subr.bf16.mxu0 0
    %3582 = vmatpush1.bf16.msra.mxu0 0
    %3583 = vmatprep.subr.bf16.mxu0 0
    %3584 = vmatpush1.bf16.msra.mxu0 0
    %3585 = vmatprep.subr.bf16.mxu0 0
    %3586 = vmatpush1.bf16.msra.mxu0 0
    %3587 = vmatprep.subr.bf16.mxu0 0
    %3588 = vmatpush1.bf16.msra.mxu0 0
    %3589 = vmatprep.subr.bf16.mxu0 0
    %3590 = vmatpush1.bf16.msra.mxu0 0
    %3591 = vmatprep.subr.bf16.mxu0 0
    %3592 = vmatpush1.bf16.msra.mxu0 0
    %3593 = vmatprep.subr.bf16.mxu0 0
    %3594 = vmatpush1.bf16.msra.mxu0 0
    %3595 = vmatprep.subr.bf16.mxu0 0
    %3596 = vmatpush1.bf16.msra.mxu0 0
    %3597 = vmatprep.subr.bf16.mxu0 0
    %3598 = vmatpush1.bf16.msra.mxu0 0
    %3599 = vmatprep.mubr.bf16.mxu0 0
    %3600 = vmatmul.mubr.bf16.gmra.mrb[0].mxu0 %v3556
    %v3601 = vpop.f32.mrb[0].mxu0
    %v3602 = vadd.f32 0.0, %v3601
    %v3603 = vpop.f32.mrb[0].mxu0
    %v3604 = vpop.f32.mrb[0].mxu0
    %v3605 = vadd.f32 0.0, %v3604
    %v3606 = vpop.f32.mrb[0].mxu0
    %3607 = vmatprep.mubr.bf16.mxu0 0
    %3608 = vmatmul.mubr.bf16.gmra.mrb[0].mxu0 %v3559
    %v3609 = vpop.f32.mrb[0].mxu0
    %v3610 = vadd.f32 0.0, %v3609
    %v3611 = vpop.f32.mrb[0].mxu0
    %v3612 = vpop.f32.mrb[0].mxu0
    %v3613 = vadd.f32 0.0, %v3612
    %v3614 = vpop.f32.mrb[0].mxu0
    %3615 = vmatprep.mubr.bf16.mxu0 0
    %3616 = vmatmul.mubr.bf16.gmra.mrb[0].mxu0 %v3562
    %v3617 = vpop.f32.mrb[0].mxu0
    %v3618 = vadd.f32 0.0, %v3617
    %v3619 = vpop.f32.mrb[0].mxu0
    %v3620 = vpop.f32.mrb[0].mxu0
    %v3621 = vadd.f32 0.0, %v3620
    %v3622 = vpop.f32.mrb[0].mxu0
    %3623 = vmatprep.mubr.bf16.mxu0 0
    %3624 = vmatmul.mubr.bf16.gmra.mrb[0].mxu0 %v3565
    %v3625 = vpop.f32.mrb[0].mxu0
    %v3626 = vadd.f32 0.0, %v3625
    %v3627 = vpop.f32.mrb[0].mxu0
    %v3628 = vpop.f32.mrb[0].mxu0
    %v3629 = vadd.f32 0.0, %v3628
    %v3630 = vpop.f32.mrb[0].mxu0
    %3631 = vdwg.mxu0
    %3640 = vrot.lane.b32.xlu0 %v3602, 23
    %v3641 = vpop.permute.xlu0 %3640
    %3642 = vrot.lane.b32.xlu0 %v3605, 23
    %v3643 = vpop.permute.xlu0 %3642
    %3644 = vrot.lane.b32.xlu0 %v3610, 23
    %v3645 = vpop.permute.xlu0 %3644
    %3646 = vrot.lane.b32.xlu0 %v3613, 23
    %v3647 = vpop.permute.xlu0 %3646
    %3648 = vrot.lane.b32.xlu0 %v3618, 23
    %v3649 = vpop.permute.xlu0 %3648
    %3650 = vrot.lane.b32.xlu0 %v3621, 23
    %v3651 = vpop.permute.xlu0 %3650
    %3652 = vrot.lane.b32.xlu0 %v3626, 23
    %v3653 = vpop.permute.xlu0 %3652
    %3654 = vrot.lane.b32.xlu0 %v3629, 23
    %v3655 = vpop.permute.xlu0 %3654
    %vm3664 = vcmask 203960
    %3665 = vst.msk [vmem:[#allocation5] sm:$0xff] %vm3664, %v3641
    %3666 = vst.msk [vmem:[#allocation5 + $0x8] sm:$0xff] %vm3664, %v3643
    %3667 = vst.msk [vmem:[#allocation5 + $0x10] sm:$0xff] %vm3664, %v3645
    %3668 = vst.msk [vmem:[#allocation5 + $0x18] sm:$0xff] %vm3664, %v3647
    %3669 = vst.msk [vmem:[#allocation5 + $0x20] sm:$0xff] %vm3664, %v3649
    %3670 = vst.msk [vmem:[#allocation5 + $0x28] sm:$0xff] %vm3664, %v3651
    %3671 = vst.msk [vmem:[#allocation5 + $0x30] sm:$0xff] %vm3664, %v3653
    %3672 = vst.msk [vmem:[#allocation5 + $0x38] sm:$0xff] %vm3664, %v3655
    %v3673 = vld [vmem:[#allocation5] sm:$0xff]
    %v3674 = vld [vmem:[#allocation5 + $0x8] sm:$0xff]
    %v3675 = vld [vmem:[#allocation5 + $0x10] sm:$0xff]
    %v3676 = vld [vmem:[#allocation5 + $0x18] sm:$0xff]
    %v3677 = vld [vmem:[#allocation5 + $0x20] sm:$0xff]
    %v3678 = vld [vmem:[#allocation5 + $0x28] sm:$0xff]
    %v3679 = vld [vmem:[#allocation5 + $0x30] sm:$0xff]
    %v3680 = vld [vmem:[#allocation5 + $0x38] sm:$0xff]
    %3689 = vrot.lane.b32.xlu0 %v3673, 114
    %v3690 = vpop.permute.xlu0 %3689
    %3691 = vrot.lane.b32.xlu0 %v3674, 114
    %v3692 = vpop.permute.xlu0 %3691
    %3693 = vrot.lane.b32.xlu0 %v3675, 114
    %v3694 = vpop.permute.xlu0 %3693
    %3695 = vrot.lane.b32.xlu0 %v3676, 114
    %v3696 = vpop.permute.xlu0 %3695
    %3697 = vrot.lane.b32.xlu0 %v3677, 114
    %v3698 = vpop.permute.xlu0 %3697
    %3699 = vrot.lane.b32.xlu0 %v3678, 114
    %v3700 = vpop.permute.xlu0 %3699
    %3701 = vrot.lane.b32.xlu0 %v3679, 114
    %v3702 = vpop.permute.xlu0 %3701
    %3703 = vrot.lane.b32.xlu0 %v3680, 114
    %v3704 = vpop.permute.xlu0 %3703
    %vm3713 = vcmask 15360
    %v3714 = vsel %vm3713, %v3673, %v3690
    %v3715 = vsel %vm3713, %v3674, %v3692
    %v3716 = vsel %vm3713, %v3675, %v3694
    %v3717 = vsel %vm3713, %v3676, %v3696
    %v3718 = vsel %vm3713, %v3677, %v3698
    %v3719 = vsel %vm3713, %v3678, %v3700
    %v3720 = vsel %vm3713, %v3679, %v3702
    %v3721 = vsel %vm3713, %v3680, %v3704
    %3722 = vrot.lane.b32.xlu0 %v3673, 127
    %v3723 = vpop.permute.xlu0 %3722
    %3724 = vrot.lane.b32.xlu0 %v3674, 127
    %v3725 = vpop.permute.xlu0 %3724
    %3726 = vrot.lane.b32.xlu0 %v3675, 127
    %v3727 = vpop.permute.xlu0 %3726
    %3728 = vrot.lane.b32.xlu0 %v3676, 127
    %v3729 = vpop.permute.xlu0 %3728
    %3730 = vrot.lane.b32.xlu0 %v3677, 127
    %v3731 = vpop.permute.xlu0 %3730
    %3732 = vrot.lane.b32.xlu0 %v3678, 127
    %v3733 = vpop.permute.xlu0 %3732
    %3734 = vrot.lane.b32.xlu0 %v3679, 127
    %v3735 = vpop.permute.xlu0 %3734
    %3736 = vrot.lane.b32.xlu0 %v3680, 127
    %v3737 = vpop.permute.xlu0 %3736
    %3746 = vrot.lane.b32.xlu0 %v3673, 113
    %v3747 = vpop.permute.xlu0 %3746
    %3748 = vrot.lane.b32.xlu0 %v3674, 113
    %v3749 = vpop.permute.xlu0 %3748
    %3750 = vrot.lane.b32.xlu0 %v3675, 113
    %v3751 = vpop.permute.xlu0 %3750
    %3752 = vrot.lane.b32.xlu0 %v3676, 113
    %v3753 = vpop.permute.xlu0 %3752
    %3754 = vrot.lane.b32.xlu0 %v3677, 113
    %v3755 = vpop.permute.xlu0 %3754
    %3756 = vrot.lane.b32.xlu0 %v3678, 113
    %v3757 = vpop.permute.xlu0 %3756
    %3758 = vrot.lane.b32.xlu0 %v3679, 113
    %v3759 = vpop.permute.xlu0 %3758
    %3760 = vrot.lane.b32.xlu0 %v3680, 113
    %v3761 = vpop.permute.xlu0 %3760
    %v3770 = vsel %vm3713, %v3723, %v3747
    %v3771 = vsel %vm3713, %v3725, %v3749
    %v3772 = vsel %vm3713, %v3727, %v3751
    %v3773 = vsel %vm3713, %v3729, %v3753
    %v3774 = vsel %vm3713, %v3731, %v3755
    %v3775 = vsel %vm3713, %v3733, %v3757
    %v3776 = vsel %vm3713, %v3735, %v3759
    %v3777 = vsel %vm3713, %v3737, %v3761
    %3778 = vrot.lane.b32.xlu0 %v3673, 126
    %v3779 = vpop.permute.xlu0 %3778
    %3780 = vrot.lane.b32.xlu0 %v3674, 126
    %v3781 = vpop.permute.xlu0 %3780
    %3782 = vrot.lane.b32.xlu0 %v3675, 126
    %v3783 = vpop.permute.xlu0 %3782
    %3784 = vrot.lane.b32.xlu0 %v3676, 126
    %v3785 = vpop.permute.xlu0 %3784
    %3786 = vrot.lane.b32.xlu0 %v3677, 126
    %v3787 = vpop.permute.xlu0 %3786
    %3788 = vrot.lane.b32.xlu0 %v3678, 126
    %v3789 = vpop.permute.xlu0 %3788
    %3790 = vrot.lane.b32.xlu0 %v3679, 126
    %v3791 = vpop.permute.xlu0 %3790
    %3792 = vrot.lane.b32.xlu0 %v3680, 126
    %v3793 = vpop.permute.xlu0 %3792
    %3802 = vrot.lane.b32.xlu0 %v3673, 112
    %v3803 = vpop.permute.xlu0 %3802
    %3804 = vrot.lane.b32.xlu0 %v3674, 112
    %v3805 = vpop.permute.xlu0 %3804
    %3806 = vrot.lane.b32.xlu0 %v3675, 112
    %v3807 = vpop.permute.xlu0 %3806
    %3808 = vrot.lane.b32.xlu0 %v3676, 112
    %v3809 = vpop.permute.xlu0 %3808
    %3810 = vrot.lane.b32.xlu0 %v3677, 112
    %v3811 = vpop.permute.xlu0 %3810
    %3812 = vrot.lane.b32.xlu0 %v3678, 112
    %v3813 = vpop.permute.xlu0 %3812
    %3814 = vrot.lane.b32.xlu0 %v3679, 112
    %v3815 = vpop.permute.xlu0 %3814
    %3816 = vrot.lane.b32.xlu0 %v3680, 112
    %v3817 = vpop.permute.xlu0 %3816
    %v3826 = vsel %vm3713, %v3779, %v3803
    %v3827 = vsel %vm3713, %v3781, %v3805
    %v3828 = vsel %vm3713, %v3783, %v3807
    %v3829 = vsel %vm3713, %v3785, %v3809
    %v3830 = vsel %vm3713, %v3787, %v3811
    %v3831 = vsel %vm3713, %v3789, %v3813
    %v3832 = vsel %vm3713, %v3791, %v3815
    %v3833 = vsel %vm3713, %v3793, %v3817
    %3834 = vrot.lane.b32.xlu0 %v3673, 125
    %v3835 = vpop.permute.xlu0 %3834
    %3836 = vrot.lane.b32.xlu0 %v3674, 125
    %v3837 = vpop.permute.xlu0 %3836
    %3838 = vrot.lane.b32.xlu0 %v3675, 125
    %v3839 = vpop.permute.xlu0 %3838
    %3840 = vrot.lane.b32.xlu0 %v3676, 125
    %v3841 = vpop.permute.xlu0 %3840
    %3842 = vrot.lane.b32.xlu0 %v3677, 125
    %v3843 = vpop.permute.xlu0 %3842
    %3844 = vrot.lane.b32.xlu0 %v3678, 125
    %v3845 = vpop.permute.xlu0 %3844
    %3846 = vrot.lane.b32.xlu0 %v3679, 125
    %v3847 = vpop.permute.xlu0 %3846
    %3848 = vrot.lane.b32.xlu0 %v3680, 125
    %v3849 = vpop.permute.xlu0 %3848
    %3858 = vrot.lane.b32.xlu0 %v3673, 111
    %v3859 = vpop.permute.xlu0 %3858
    %3860 = vrot.lane.b32.xlu0 %v3674, 111
    %v3861 = vpop.permute.xlu0 %3860
    %3862 = vrot.lane.b32.xlu0 %v3675, 111
    %v3863 = vpop.permute.xlu0 %3862
    %3864 = vrot.lane.b32.xlu0 %v3676, 111
    %v3865 = vpop.permute.xlu0 %3864
    %3866 = vrot.lane.b32.xlu0 %v3677, 111
    %v3867 = vpop.permute.xlu0 %3866
    %3868 = vrot.lane.b32.xlu0 %v3678, 111
    %v3869 = vpop.permute.xlu0 %3868
    %3870 = vrot.lane.b32.xlu0 %v3679, 111
    %v3871 = vpop.permute.xlu0 %3870
    %3872 = vrot.lane.b32.xlu0 %v3680, 111
    %v3873 = vpop.permute.xlu0 %3872
    %v3882 = vsel %vm3713, %v3835, %v3859
    %v3883 = vsel %vm3713, %v3837, %v3861
    %v3884 = vsel %vm3713, %v3839, %v3863
    %v3885 = vsel %vm3713, %v3841, %v3865
    %v3886 = vsel %vm3713, %v3843, %v3867
    %v3887 = vsel %vm3713, %v3845, %v3869
    %v3888 = vsel %vm3713, %v3847, %v3871
    %v3889 = vsel %vm3713, %v3849, %v3873
    %3890 = vrot.lane.b32.xlu0 %v3673, 124
    %v3891 = vpop.permute.xlu0 %3890
    %3892 = vrot.lane.b32.xlu0 %v3674, 124
    %v3893 = vpop.permute.xlu0 %3892
    %3894 = vrot.lane.b32.xlu0 %v3675, 124
    %v3895 = vpop.permute.xlu0 %3894
    %3896 = vrot.lane.b32.xlu0 %v3676, 124
    %v3897 = vpop.permute.xlu0 %3896
    %3898 = vrot.lane.b32.xlu0 %v3677, 124
    %v3899 = vpop.permute.xlu0 %3898
    %3900 = vrot.lane.b32.xlu0 %v3678, 124
    %v3901 = vpop.permute.xlu0 %3900
    %3902 = vrot.lane.b32.xlu0 %v3679, 124
    %v3903 = vpop.permute.xlu0 %3902
    %3904 = vrot.lane.b32.xlu0 %v3680, 124
    %v3905 = vpop.permute.xlu0 %3904
    %3914 = vrot.lane.b32.xlu0 %v3673, 110
    %v3915 = vpop.permute.xlu0 %3914
    %3916 = vrot.lane.b32.xlu0 %v3674, 110
    %v3917 = vpop.permute.xlu0 %3916
    %3918 = vrot.lane.b32.xlu0 %v3675, 110
    %v3919 = vpop.permute.xlu0 %3918
    %3920 = vrot.lane.b32.xlu0 %v3676, 110
    %v3921 = vpop.permute.xlu0 %3920
    %3922 = vrot.lane.b32.xlu0 %v3677, 110
    %v3923 = vpop.permute.xlu0 %3922
    %3924 = vrot.lane.b32.xlu0 %v3678, 110
    %v3925 = vpop.permute.xlu0 %3924
    %3926 = vrot.lane.b32.xlu0 %v3679, 110
    %v3927 = vpop.permute.xlu0 %3926
    %3928 = vrot.lane.b32.xlu0 %v3680, 110
    %v3929 = vpop.permute.xlu0 %3928
    %v3938 = vsel %vm3713, %v3891, %v3915
    %v3939 = vsel %vm3713, %v3893, %v3917
    %v3940 = vsel %vm3713, %v3895, %v3919
    %v3941 = vsel %vm3713, %v3897, %v3921
    %v3942 = vsel %vm3713, %v3899, %v3923
    %v3943 = vsel %vm3713, %v3901, %v3925
    %v3944 = vsel %vm3713, %v3903, %v3927
    %v3945 = vsel %vm3713, %v3905, %v3929
    %3946 = vrot.lane.b32.xlu0 %v3673, 123
    %v3947 = vpop.permute.xlu0 %3946
    %3948 = vrot.lane.b32.xlu0 %v3674, 123
    %v3949 = vpop.permute.xlu0 %3948
    %3950 = vrot.lane.b32.xlu0 %v3675, 123
    %v3951 = vpop.permute.xlu0 %3950
    %3952 = vrot.lane.b32.xlu0 %v3676, 123
    %v3953 = vpop.permute.xlu0 %3952
    %3954 = vrot.lane.b32.xlu0 %v3677, 123
    %v3955 = vpop.permute.xlu0 %3954
    %3956 = vrot.lane.b32.xlu0 %v3678, 123
    %v3957 = vpop.permute.xlu0 %3956
    %3958 = vrot.lane.b32.xlu0 %v3679, 123
    %v3959 = vpop.permute.xlu0 %3958
    %3960 = vrot.lane.b32.xlu0 %v3680, 123
    %v3961 = vpop.permute.xlu0 %3960
    %3970 = vrot.lane.b32.xlu0 %v3673, 109
    %v3971 = vpop.permute.xlu0 %3970
    %3972 = vrot.lane.b32.xlu0 %v3674, 109
    %v3973 = vpop.permute.xlu0 %3972
    %3974 = vrot.lane.b32.xlu0 %v3675, 109
    %v3975 = vpop.permute.xlu0 %3974
    %3976 = vrot.lane.b32.xlu0 %v3676, 109
    %v3977 = vpop.permute.xlu0 %3976
    %3978 = vrot.lane.b32.xlu0 %v3677, 109
    %v3979 = vpop.permute.xlu0 %3978
    %3980 = vrot.lane.b32.xlu0 %v3678, 109
    %v3981 = vpop.permute.xlu0 %3980
    %3982 = vrot.lane.b32.xlu0 %v3679, 109
    %v3983 = vpop.permute.xlu0 %3982
    %3984 = vrot.lane.b32.xlu0 %v3680, 109
    %v3985 = vpop.permute.xlu0 %3984
    %v3994 = vsel %vm3713, %v3947, %v3971
    %v3995 = vsel %vm3713, %v3949, %v3973
    %v3996 = vsel %vm3713, %v3951, %v3975
    %v3997 = vsel %vm3713, %v3953, %v3977
    %v3998 = vsel %vm3713, %v3955, %v3979
    %v3999 = vsel %vm3713, %v3957, %v3981
    %v4000 = vsel %vm3713, %v3959, %v3983
    %v4001 = vsel %vm3713, %v3961, %v3985
    %4002 = vrot.lane.b32.xlu0 %v3673, 122
    %v4003 = vpop.permute.xlu0 %4002
    %4004 = vrot.lane.b32.xlu0 %v3674, 122
    %v4005 = vpop.permute.xlu0 %4004
    %4006 = vrot.lane.b32.xlu0 %v3675, 122
    %v4007 = vpop.permute.xlu0 %4006
    %4008 = vrot.lane.b32.xlu0 %v3676, 122
    %v4009 = vpop.permute.xlu0 %4008
    %4010 = vrot.lane.b32.xlu0 %v3677, 122
    %v4011 = vpop.permute.xlu0 %4010
    %4012 = vrot.lane.b32.xlu0 %v3678, 122
    %v4013 = vpop.permute.xlu0 %4012
    %4014 = vrot.lane.b32.xlu0 %v3679, 122
    %v4015 = vpop.permute.xlu0 %4014
    %4016 = vrot.lane.b32.xlu0 %v3680, 122
    %v4017 = vpop.permute.xlu0 %4016
    %4026 = vrot.lane.b32.xlu0 %v3673, 108
    %v4027 = vpop.permute.xlu0 %4026
    %4028 = vrot.lane.b32.xlu0 %v3674, 108
    %v4029 = vpop.permute.xlu0 %4028
    %4030 = vrot.lane.b32.xlu0 %v3675, 108
    %v4031 = vpop.permute.xlu0 %4030
    %4032 = vrot.lane.b32.xlu0 %v3676, 108
    %v4033 = vpop.permute.xlu0 %4032
    %4034 = vrot.lane.b32.xlu0 %v3677, 108
    %v4035 = vpop.permute.xlu0 %4034
    %4036 = vrot.lane.b32.xlu0 %v3678, 108
    %v4037 = vpop.permute.xlu0 %4036
    %4038 = vrot.lane.b32.xlu0 %v3679, 108
    %v4039 = vpop.permute.xlu0 %4038
    %4040 = vrot.lane.b32.xlu0 %v3680, 108
    %v4041 = vpop.permute.xlu0 %4040
    %v4050 = vsel %vm3713, %v4003, %v4027
    %v4051 = vsel %vm3713, %v4005, %v4029
    %v4052 = vsel %vm3713, %v4007, %v4031
    %v4053 = vsel %vm3713, %v4009, %v4033
    %v4054 = vsel %vm3713, %v4011, %v4035
    %v4055 = vsel %vm3713, %v4013, %v4037
    %v4056 = vsel %vm3713, %v4015, %v4039
    %v4057 = vsel %vm3713, %v4017, %v4041
    %4058 = vrot.lane.b32.xlu0 %v3673, 121
    %v4059 = vpop.permute.xlu0 %4058
    %4060 = vrot.lane.b32.xlu0 %v3674, 121
    %v4061 = vpop.permute.xlu0 %4060
    %4062 = vrot.lane.b32.xlu0 %v3675, 121
    %v4063 = vpop.permute.xlu0 %4062
    %4064 = vrot.lane.b32.xlu0 %v3676, 121
    %v4065 = vpop.permute.xlu0 %4064
    %4066 = vrot.lane.b32.xlu0 %v3677, 121
    %v4067 = vpop.permute.xlu0 %4066
    %4068 = vrot.lane.b32.xlu0 %v3678, 121
    %v4069 = vpop.permute.xlu0 %4068
    %4070 = vrot.lane.b32.xlu0 %v3679, 121
    %v4071 = vpop.permute.xlu0 %4070
    %4072 = vrot.lane.b32.xlu0 %v3680, 121
    %v4073 = vpop.permute.xlu0 %4072
    %4082 = vrot.lane.b32.xlu0 %v3673, 107
    %v4083 = vpop.permute.xlu0 %4082
    %4084 = vrot.lane.b32.xlu0 %v3674, 107
    %v4085 = vpop.permute.xlu0 %4084
    %4086 = vrot.lane.b32.xlu0 %v3675, 107
    %v4087 = vpop.permute.xlu0 %4086
    %4088 = vrot.lane.b32.xlu0 %v3676, 107
    %v4089 = vpop.permute.xlu0 %4088
    %4090 = vrot.lane.b32.xlu0 %v3677, 107
    %v4091 = vpop.permute.xlu0 %4090
    %4092 = vrot.lane.b32.xlu0 %v3678, 107
    %v4093 = vpop.permute.xlu0 %4092
    %4094 = vrot.lane.b32.xlu0 %v3679, 107
    %v4095 = vpop.permute.xlu0 %4094
    %4096 = vrot.lane.b32.xlu0 %v3680, 107
    %v4097 = vpop.permute.xlu0 %4096
    %v4106 = vsel %vm3713, %v4059, %v4083
    %v4107 = vsel %vm3713, %v4061, %v4085
    %v4108 = vsel %vm3713, %v4063, %v4087
    %v4109 = vsel %vm3713, %v4065, %v4089
    %v4110 = vsel %vm3713, %v4067, %v4091
    %v4111 = vsel %vm3713, %v4069, %v4093
    %v4112 = vsel %vm3713, %v4071, %v4095
    %v4113 = vsel %vm3713, %v4073, %v4097
    %4114 = vrot.lane.b32.xlu0 %v3673, 120
    %v4115 = vpop.permute.xlu0 %4114
    %4116 = vrot.lane.b32.xlu0 %v3674, 120
    %v4117 = vpop.permute.xlu0 %4116
    %4118 = vrot.lane.b32.xlu0 %v3675, 120
    %v4119 = vpop.permute.xlu0 %4118
    %4120 = vrot.lane.b32.xlu0 %v3676, 120
    %v4121 = vpop.permute.xlu0 %4120
    %4122 = vrot.lane.b32.xlu0 %v3677, 120
    %v4123 = vpop.permute.xlu0 %4122
    %4124 = vrot.lane.b32.xlu0 %v3678, 120
    %v4125 = vpop.permute.xlu0 %4124
    %4126 = vrot.lane.b32.xlu0 %v3679, 120
    %v4127 = vpop.permute.xlu0 %4126
    %4128 = vrot.lane.b32.xlu0 %v3680, 120
    %v4129 = vpop.permute.xlu0 %4128
    %4138 = vrot.lane.b32.xlu0 %v3673, 106
    %v4139 = vpop.permute.xlu0 %4138
    %4140 = vrot.lane.b32.xlu0 %v3674, 106
    %v4141 = vpop.permute.xlu0 %4140
    %4142 = vrot.lane.b32.xlu0 %v3675, 106
    %v4143 = vpop.permute.xlu0 %4142
    %4144 = vrot.lane.b32.xlu0 %v3676, 106
    %v4145 = vpop.permute.xlu0 %4144
    %4146 = vrot.lane.b32.xlu0 %v3677, 106
    %v4147 = vpop.permute.xlu0 %4146
    %4148 = vrot.lane.b32.xlu0 %v3678, 106
    %v4149 = vpop.permute.xlu0 %4148
    %4150 = vrot.lane.b32.xlu0 %v3679, 106
    %v4151 = vpop.permute.xlu0 %4150
    %4152 = vrot.lane.b32.xlu0 %v3680, 106
    %v4153 = vpop.permute.xlu0 %4152
    %v4162 = vsel %vm3713, %v4115, %v4139
    %v4163 = vsel %vm3713, %v4117, %v4141
    %v4164 = vsel %vm3713, %v4119, %v4143
    %v4165 = vsel %vm3713, %v4121, %v4145
    %v4166 = vsel %vm3713, %v4123, %v4147
    %v4167 = vsel %vm3713, %v4125, %v4149
    %v4168 = vsel %vm3713, %v4127, %v4151
    %v4169 = vsel %vm3713, %v4129, %v4153
    %4170 = vrot.lane.b32.xlu0 %v3673, 119
    %v4171 = vpop.permute.xlu0 %4170
    %4172 = vrot.lane.b32.xlu0 %v3674, 119
    %v4173 = vpop.permute.xlu0 %4172
    %4174 = vrot.lane.b32.xlu0 %v3675, 119
    %v4175 = vpop.permute.xlu0 %4174
    %4176 = vrot.lane.b32.xlu0 %v3676, 119
    %v4177 = vpop.permute.xlu0 %4176
    %4178 = vrot.lane.b32.xlu0 %v3677, 119
    %v4179 = vpop.permute.xlu0 %4178
    %4180 = vrot.lane.b32.xlu0 %v3678, 119
    %v4181 = vpop.permute.xlu0 %4180
    %4182 = vrot.lane.b32.xlu0 %v3679, 119
    %v4183 = vpop.permute.xlu0 %4182
    %4184 = vrot.lane.b32.xlu0 %v3680, 119
    %v4185 = vpop.permute.xlu0 %4184
    %4194 = vrot.lane.b32.xlu0 %v3673, 105
    %v4195 = vpop.permute.xlu0 %4194
    %4196 = vrot.lane.b32.xlu0 %v3674, 105
    %v4197 = vpop.permute.xlu0 %4196
    %4198 = vrot.lane.b32.xlu0 %v3675, 105
    %v4199 = vpop.permute.xlu0 %4198
    %4200 = vrot.lane.b32.xlu0 %v3676, 105
    %v4201 = vpop.permute.xlu0 %4200
    %4202 = vrot.lane.b32.xlu0 %v3677, 105
    %v4203 = vpop.permute.xlu0 %4202
    %4204 = vrot.lane.b32.xlu0 %v3678, 105
    %v4205 = vpop.permute.xlu0 %4204
    %4206 = vrot.lane.b32.xlu0 %v3679, 105
    %v4207 = vpop.permute.xlu0 %4206
    %4208 = vrot.lane.b32.xlu0 %v3680, 105
    %v4209 = vpop.permute.xlu0 %4208
    %v4218 = vsel %vm3713, %v4171, %v4195
    %v4219 = vsel %vm3713, %v4173, %v4197
    %v4220 = vsel %vm3713, %v4175, %v4199
    %v4221 = vsel %vm3713, %v4177, %v4201
    %v4222 = vsel %vm3713, %v4179, %v4203
    %v4223 = vsel %vm3713, %v4181, %v4205
    %v4224 = vsel %vm3713, %v4183, %v4207
    %v4225 = vsel %vm3713, %v4185, %v4209
    %4226 = vrot.lane.b32.xlu0 %v3673, 118
    %v4227 = vpop.permute.xlu0 %4226
    %4228 = vrot.lane.b32.xlu0 %v3674, 118
    %v4229 = vpop.permute.xlu0 %4228
    %4230 = vrot.lane.b32.xlu0 %v3675, 118
    %v4231 = vpop.permute.xlu0 %4230
    %4232 = vrot.lane.b32.xlu0 %v3676, 118
    %v4233 = vpop.permute.xlu0 %4232
    %4234 = vrot.lane.b32.xlu0 %v3677, 118
    %v4235 = vpop.permute.xlu0 %4234
    %4236 = vrot.lane.b32.xlu0 %v3678, 118
    %v4237 = vpop.permute.xlu0 %4236
    %4238 = vrot.lane.b32.xlu0 %v3679, 118
    %v4239 = vpop.permute.xlu0 %4238
    %4240 = vrot.lane.b32.xlu0 %v3680, 118
    %v4241 = vpop.permute.xlu0 %4240
    %4250 = vrot.lane.b32.xlu0 %v3673, 104
    %v4251 = vpop.permute.xlu0 %4250
    %4252 = vrot.lane.b32.xlu0 %v3674, 104
    %v4253 = vpop.permute.xlu0 %4252
    %4254 = vrot.lane.b32.xlu0 %v3675, 104
    %v4255 = vpop.permute.xlu0 %4254
    %4256 = vrot.lane.b32.xlu0 %v3676, 104
    %v4257 = vpop.permute.xlu0 %4256
    %4258 = vrot.lane.b32.xlu0 %v3677, 104
    %v4259 = vpop.permute.xlu0 %4258
    %4260 = vrot.lane.b32.xlu0 %v3678, 104
    %v4261 = vpop.permute.xlu0 %4260
    %4262 = vrot.lane.b32.xlu0 %v3679, 104
    %v4263 = vpop.permute.xlu0 %4262
    %4264 = vrot.lane.b32.xlu0 %v3680, 104
    %v4265 = vpop.permute.xlu0 %4264
    %v4274 = vsel %vm3713, %v4227, %v4251
    %v4275 = vsel %vm3713, %v4229, %v4253
    %v4276 = vsel %vm3713, %v4231, %v4255
    %v4277 = vsel %vm3713, %v4233, %v4257
    %v4278 = vsel %vm3713, %v4235, %v4259
    %v4279 = vsel %vm3713, %v4237, %v4261
    %v4280 = vsel %vm3713, %v4239, %v4263
    %v4281 = vsel %vm3713, %v4241, %v4265
    %4282 = vrot.lane.b32.xlu0 %v3673, 117
    %v4283 = vpop.permute.xlu0 %4282
    %4284 = vrot.lane.b32.xlu0 %v3674, 117
    %v4285 = vpop.permute.xlu0 %4284
    %4286 = vrot.lane.b32.xlu0 %v3675, 117
    %v4287 = vpop.permute.xlu0 %4286
    %4288 = vrot.lane.b32.xlu0 %v3676, 117
    %v4289 = vpop.permute.xlu0 %4288
    %4290 = vrot.lane.b32.xlu0 %v3677, 117
    %v4291 = vpop.permute.xlu0 %4290
    %4292 = vrot.lane.b32.xlu0 %v3678, 117
    %v4293 = vpop.permute.xlu0 %4292
    %4294 = vrot.lane.b32.xlu0 %v3679, 117
    %v4295 = vpop.permute.xlu0 %4294
    %4296 = vrot.lane.b32.xlu0 %v3680, 117
    %v4297 = vpop.permute.xlu0 %4296
    %4306 = vrot.lane.b32.xlu0 %v3673, 103
    %v4307 = vpop.permute.xlu0 %4306
    %4308 = vrot.lane.b32.xlu0 %v3674, 103
    %v4309 = vpop.permute.xlu0 %4308
    %4310 = vrot.lane.b32.xlu0 %v3675, 103
    %v4311 = vpop.permute.xlu0 %4310
    %4312 = vrot.lane.b32.xlu0 %v3676, 103
    %v4313 = vpop.permute.xlu0 %4312
    %4314 = vrot.lane.b32.xlu0 %v3677, 103
    %v4315 = vpop.permute.xlu0 %4314
    %4316 = vrot.lane.b32.xlu0 %v3678, 103
    %v4317 = vpop.permute.xlu0 %4316
    %4318 = vrot.lane.b32.xlu0 %v3679, 103
    %v4319 = vpop.permute.xlu0 %4318
    %4320 = vrot.lane.b32.xlu0 %v3680, 103
    %v4321 = vpop.permute.xlu0 %4320
    %v4330 = vsel %vm3713, %v4283, %v4307
    %v4331 = vsel %vm3713, %v4285, %v4309
    %v4332 = vsel %vm3713, %v4287, %v4311
    %v4333 = vsel %vm3713, %v4289, %v4313
    %v4334 = vsel %vm3713, %v4291, %v4315
    %v4335 = vsel %vm3713, %v4293, %v4317
    %v4336 = vsel %vm3713, %v4295, %v4319
    %v4337 = vsel %vm3713, %v4297, %v4321
    %4338 = vrot.lane.b32.xlu0 %v3673, 116
    %v4339 = vpop.permute.xlu0 %4338
    %4340 = vrot.lane.b32.xlu0 %v3674, 116
    %v4341 = vpop.permute.xlu0 %4340
    %4342 = vrot.lane.b32.xlu0 %v3675, 116
    %v4343 = vpop.permute.xlu0 %4342
    %4344 = vrot.lane.b32.xlu0 %v3676, 116
    %v4345 = vpop.permute.xlu0 %4344
    %4346 = vrot.lane.b32.xlu0 %v3677, 116
    %v4347 = vpop.permute.xlu0 %4346
    %4348 = vrot.lane.b32.xlu0 %v3678, 116
    %v4349 = vpop.permute.xlu0 %4348
    %4350 = vrot.lane.b32.xlu0 %v3679, 116
    %v4351 = vpop.permute.xlu0 %4350
    %4352 = vrot.lane.b32.xlu0 %v3680, 116
    %v4353 = vpop.permute.xlu0 %4352
    %4362 = vrot.lane.b32.xlu0 %v3673, 102
    %v4363 = vpop.permute.xlu0 %4362
    %4364 = vrot.lane.b32.xlu0 %v3674, 102
    %v4365 = vpop.permute.xlu0 %4364
    %4366 = vrot.lane.b32.xlu0 %v3675, 102
    %v4367 = vpop.permute.xlu0 %4366
    %4368 = vrot.lane.b32.xlu0 %v3676, 102
    %v4369 = vpop.permute.xlu0 %4368
    %4370 = vrot.lane.b32.xlu0 %v3677, 102
    %v4371 = vpop.permute.xlu0 %4370
    %4372 = vrot.lane.b32.xlu0 %v3678, 102
    %v4373 = vpop.permute.xlu0 %4372
    %4374 = vrot.lane.b32.xlu0 %v3679, 102
    %v4375 = vpop.permute.xlu0 %4374
    %4376 = vrot.lane.b32.xlu0 %v3680, 102
    %v4377 = vpop.permute.xlu0 %4376
    %v4386 = vsel %vm3713, %v4339, %v4363
    %v4387 = vsel %vm3713, %v4341, %v4365
    %v4388 = vsel %vm3713, %v4343, %v4367
    %v4389 = vsel %vm3713, %v4345, %v4369
    %v4390 = vsel %vm3713, %v4347, %v4371
    %v4391 = vsel %vm3713, %v4349, %v4373
    %v4392 = vsel %vm3713, %v4351, %v4375
    %v4393 = vsel %vm3713, %v4353, %v4377
    %4394 = vrot.lane.b32.xlu0 %v3673, 115
    %v4395 = vpop.permute.xlu0 %4394
    %4396 = vrot.lane.b32.xlu0 %v3674, 115
    %v4397 = vpop.permute.xlu0 %4396
    %4398 = vrot.lane.b32.xlu0 %v3675, 115
    %v4399 = vpop.permute.xlu0 %4398
    %4400 = vrot.lane.b32.xlu0 %v3676, 115
    %v4401 = vpop.permute.xlu0 %4400
    %4402 = vrot.lane.b32.xlu0 %v3677, 115
    %v4403 = vpop.permute.xlu0 %4402
    %4404 = vrot.lane.b32.xlu0 %v3678, 115
    %v4405 = vpop.permute.xlu0 %4404
    %4406 = vrot.lane.b32.xlu0 %v3679, 115
    %v4407 = vpop.permute.xlu0 %4406
    %4408 = vrot.lane.b32.xlu0 %v3680, 115
    %v4409 = vpop.permute.xlu0 %4408
    %4418 = vrot.lane.b32.xlu0 %v3673, 101
    %v4419 = vpop.permute.xlu0 %4418
    %4420 = vrot.lane.b32.xlu0 %v3674, 101
    %v4421 = vpop.permute.xlu0 %4420
    %4422 = vrot.lane.b32.xlu0 %v3675, 101
    %v4423 = vpop.permute.xlu0 %4422
    %4424 = vrot.lane.b32.xlu0 %v3676, 101
    %v4425 = vpop.permute.xlu0 %4424
    %4426 = vrot.lane.b32.xlu0 %v3677, 101
    %v4427 = vpop.permute.xlu0 %4426
    %4428 = vrot.lane.b32.xlu0 %v3678, 101
    %v4429 = vpop.permute.xlu0 %4428
    %4430 = vrot.lane.b32.xlu0 %v3679, 101
    %v4431 = vpop.permute.xlu0 %4430
    %4432 = vrot.lane.b32.xlu0 %v3680, 101
    %v4433 = vpop.permute.xlu0 %4432
    %v4442 = vsel %vm3713, %v4395, %v4419
    %v4443 = vsel %vm3713, %v4397, %v4421
    %v4444 = vsel %vm3713, %v4399, %v4423
    %v4445 = vsel %vm3713, %v4401, %v4425
    %v4446 = vsel %vm3713, %v4403, %v4427
    %v4447 = vsel %vm3713, %v4405, %v4429
    %v4448 = vsel %vm3713, %v4407, %v4431
    %v4449 = vsel %vm3713, %v4409, %v4433
    %4450 = vrot.lane.b32.xlu0 %v3673, 100
    %v4451 = vpop.permute.xlu0 %4450
    %4452 = vrot.lane.b32.xlu0 %v3674, 100
    %v4453 = vpop.permute.xlu0 %4452
    %4454 = vrot.lane.b32.xlu0 %v3675, 100
    %v4455 = vpop.permute.xlu0 %4454
    %4456 = vrot.lane.b32.xlu0 %v3676, 100
    %v4457 = vpop.permute.xlu0 %4456
    %4458 = vrot.lane.b32.xlu0 %v3677, 100
    %v4459 = vpop.permute.xlu0 %4458
    %4460 = vrot.lane.b32.xlu0 %v3678, 100
    %v4461 = vpop.permute.xlu0 %4460
    %4462 = vrot.lane.b32.xlu0 %v3679, 100
    %v4463 = vpop.permute.xlu0 %4462
    %4464 = vrot.lane.b32.xlu0 %v3680, 100
    %v4465 = vpop.permute.xlu0 %4464
    %v4474 = vsel %vm3713, %v3690, %v4451
    %v4475 = vsel %vm3713, %v3692, %v4453
    %v4476 = vsel %vm3713, %v3694, %v4455
    %v4477 = vsel %vm3713, %v3696, %v4457
    %v4478 = vsel %vm3713, %v3698, %v4459
    %v4479 = vsel %vm3713, %v3700, %v4461
    %v4480 = vsel %vm3713, %v3702, %v4463
    %v4481 = vsel %vm3713, %v3704, %v4465
    %v4482 = vld [vmem:[%s7] sm:$0xff]
    %v4483 = vld [vmem:[%s7 + $0x8] sm:$0xff]
    %v4484 = vld [vmem:[%s7 + $0x10] sm:$0xff]
    %v4485 = vld [vmem:[%s7 + $0x18] sm:$0xff]
    %v4486 = vld [vmem:[%s7 + $0x20] sm:$0xff]
    %v4487 = vld [vmem:[%s7 + $0x28] sm:$0xff]
    %v4488 = vld [vmem:[%s7 + $0x30] sm:$0xff]
    %v4489 = vld [vmem:[%s7 + $0x38] sm:$0xff]
    %v4490 = vld [vmem:[%s7 + $0x40] sm:$0xff]
    %v4491 = vld [vmem:[%s7 + $0x48] sm:$0xff]
    %v4492 = vld [vmem:[%s7 + $0x50] sm:$0xff]
    %v4493 = vld [vmem:[%s7 + $0x58] sm:$0xff]
    %v4494 = vld [vmem:[%s7 + $0x60] sm:$0xff]
    %v4495 = vld [vmem:[%s7 + $0x68] sm:$0xff]
    %v4496 = vld [vmem:[%s7 + $0x70] sm:$0xff]
    %v4497 = vld [vmem:[%s7 + $0x78] sm:$0xff]
    %v4498 = vld [vmem:[%s7 + $0x80] sm:$0xff]
    %v4499 = vld [vmem:[%s7 + $0x88] sm:$0xff]
    %v4500 = vld [vmem:[%s7 + $0x90] sm:$0xff]
    %v4501 = vld [vmem:[%s7 + $0x98] sm:$0xff]
    %v4502 = vld [vmem:[%s7 + $0xa0] sm:$0xff]
    %v4503 = vld [vmem:[%s7 + $0xa8] sm:$0xff]
    %v4504 = vld [vmem:[%s7 + $0xb0] sm:$0xff]
    %v4505 = vld [vmem:[%s7 + $0xb8] sm:$0xff]
    %v4506 = vld [vmem:[%s7 + $0xc0] sm:$0xff]
    %v4507 = vld [vmem:[%s7 + $0xc8] sm:$0xff]
    %v4508 = vld [vmem:[%s7 + $0xd0] sm:$0xff]
    %v4509 = vld [vmem:[%s7 + $0xd8] sm:$0xff]
    %v4510 = vld [vmem:[%s7 + $0xe0] sm:$0xff]
    %v4511 = vld [vmem:[%s7 + $0xe8] sm:$0xff]
    %v4512 = vld [vmem:[%s7 + $0xf0] sm:$0xff]
    %v4513 = vld [vmem:[%s7 + $0xf8] sm:$0xff]
    %v4514 = vpack.c.bf16 %v3715, %v3714
    %v4515 = vpack.c.bf16 %v3717, %v3716
    %v4516 = vpack.c.bf16 %v3719, %v3718
    %v4517 = vpack.c.bf16 %v3721, %v3720
    %v4518 = vpack.c.bf16 %v3771, %v3770
    %v4519 = vpack.c.bf16 %v3773, %v3772
    %v4520 = vpack.c.bf16 %v3775, %v3774
    %v4521 = vpack.c.bf16 %v3777, %v3776
    %v4522 = vpack.c.bf16 %v3827, %v3826
    %v4523 = vpack.c.bf16 %v3829, %v3828
    %v4524 = vpack.c.bf16 %v3831, %v3830
    %v4525 = vpack.c.bf16 %v3833, %v3832
    %v4526 = vpack.c.bf16 %v3883, %v3882
    %v4527 = vpack.c.bf16 %v3885, %v3884
    %v4528 = vpack.c.bf16 %v3887, %v3886
    %v4529 = vpack.c.bf16 %v3889, %v3888
    %v4530 = vpack.c.bf16 %v3939, %v3938
    %v4531 = vpack.c.bf16 %v3941, %v3940
    %v4532 = vpack.c.bf16 %v3943, %v3942
    %v4533 = vpack.c.bf16 %v3945, %v3944
    %v4534 = vpack.c.bf16 %v3995, %v3994
    %v4535 = vpack.c.bf16 %v3997, %v3996
    %v4536 = vpack.c.bf16 %v3999, %v3998
    %v4537 = vpack.c.bf16 %v4001, %v4000
    %v4538 = vpack.c.bf16 %v4051, %v4050
    %v4539 = vpack.c.bf16 %v4053, %v4052
    %v4540 = vpack.c.bf16 %v4055, %v4054
    %v4541 = vpack.c.bf16 %v4057, %v4056
    %v4542 = vpack.c.bf16 %v4107, %v4106
    %v4543 = vpack.c.bf16 %v4109, %v4108
    %v4544 = vpack.c.bf16 %v4111, %v4110
    %v4545 = vpack.c.bf16 %v4113, %v4112
    %v4546 = vpack.c.bf16 %v4163, %v4162
    %v4547 = vpack.c.bf16 %v4165, %v4164
    %v4548 = vpack.c.bf16 %v4167, %v4166
    %v4549 = vpack.c.bf16 %v4169, %v4168
    %v4550 = vpack.c.bf16 %v4219, %v4218
    %v4551 = vpack.c.bf16 %v4221, %v4220
    %v4552 = vpack.c.bf16 %v4223, %v4222
    %v4553 = vpack.c.bf16 %v4225, %v4224
    %v4554 = vpack.c.bf16 %v4275, %v4274
    %v4555 = vpack.c.bf16 %v4277, %v4276
    %v4556 = vpack.c.bf16 %v4279, %v4278
    %v4557 = vpack.c.bf16 %v4281, %v4280
    %v4558 = vpack.c.bf16 %v4331, %v4330
    %v4559 = vpack.c.bf16 %v4333, %v4332
    %v4560 = vpack.c.bf16 %v4335, %v4334
    %v4561 = vpack.c.bf16 %v4337, %v4336
    %v4562 = vpack.c.bf16 %v4387, %v4386
    %v4563 = vpack.c.bf16 %v4389, %v4388
    %v4564 = vpack.c.bf16 %v4391, %v4390
    %v4565 = vpack.c.bf16 %v4393, %v4392
    %v4566 = vpack.c.bf16 %v4443, %v4442
    %v4567 = vpack.c.bf16 %v4445, %v4444
    %v4568 = vpack.c.bf16 %v4447, %v4446
    %v4569 = vpack.c.bf16 %v4449, %v4448
    %v4570 = vpack.c.bf16 %v4475, %v4474
    %v4571 = vpack.c.bf16 %v4477, %v4476
    %v4572 = vpack.c.bf16 %v4479, %v4478
    %v4573 = vpack.c.bf16 %v4481, %v4480
    %v4574 = vld [vmem:[%s8] sm:$0xff]
    %v4575 = vld [vmem:[%s8 + $0x8] sm:$0xff]
    %v4576 = vld [vmem:[%s8 + $0x10] sm:$0xff]
    %v4577 = vld [vmem:[%s8 + $0x18] sm:$0xff]
    %v4578 = vld [vmem:[%s8 + $0x20] sm:$0xff]
    %v4579 = vld [vmem:[%s8 + $0x28] sm:$0xff]
    %v4580 = vld [vmem:[%s8 + $0x30] sm:$0xff]
    %v4581 = vld [vmem:[%s8 + $0x38] sm:$0xff]
    %4583 = vset.pattern.permute.xlu0 0
    %4584 = vperm.xlu0 %4583, %v4574
    %v4585 = vpop.permute.xlu0 %4584
    %4588 = vset.pattern.permute.xlu0 0
    %4589 = vperm.xlu0 %4588, %v4575
    %v4590 = vpop.permute.xlu0 %4589
    %4593 = vset.pattern.permute.xlu0 0
    %4594 = vperm.xlu0 %4593, %v4576
    %v4595 = vpop.permute.xlu0 %4594
    %4598 = vset.pattern.permute.xlu0 0
    %4599 = vperm.xlu0 %4598, %v4577
    %v4600 = vpop.permute.xlu0 %4599
    %4603 = vset.pattern.permute.xlu0 0
    %4604 = vperm.xlu0 %4603, %v4578
    %v4605 = vpop.permute.xlu0 %4604
    %4608 = vset.pattern.permute.xlu0 0
    %4609 = vperm.xlu0 %4608, %v4579
    %v4610 = vpop.permute.xlu0 %4609
    %4613 = vset.pattern.permute.xlu0 0
    %4614 = vperm.xlu0 %4613, %v4580
    %v4615 = vpop.permute.xlu0 %4614
    %4618 = vset.pattern.permute.xlu0 0
    %4619 = vperm.xlu0 %4618, %v4581
    %v4620 = vpop.permute.xlu0 %4619
    %v4654 = vunpack.c.l.b16 %v4482
    %v4655 = vunpack.c.h.b16 %v4482
    %v4656 = vunpack.c.l.b16 %v4483
    %v4657 = vunpack.c.h.b16 %v4483
    %v4658 = vunpack.c.l.b16 %v4484
    %v4659 = vunpack.c.h.b16 %v4484
    %v4660 = vunpack.c.l.b16 %v4485
    %v4661 = vunpack.c.h.b16 %v4485
    %v4662 = vunpack.c.l.b16 %v4486
    %v4663 = vunpack.c.h.b16 %v4486
    %v4664 = vunpack.c.l.b16 %v4487
    %v4665 = vunpack.c.h.b16 %v4487
    %v4666 = vunpack.c.l.b16 %v4488
    %v4667 = vunpack.c.h.b16 %v4488
    %v4668 = vunpack.c.l.b16 %v4489
    %v4669 = vunpack.c.h.b16 %v4489
    %v4670 = vunpack.c.l.b16 %v4490
    %v4671 = vunpack.c.h.b16 %v4490
    %v4672 = vunpack.c.l.b16 %v4491
    %v4673 = vunpack.c.h.b16 %v4491
    %v4674 = vunpack.c.l.b16 %v4492
    %v4675 = vunpack.c.h.b16 %v4492
    %v4676 = vunpack.c.l.b16 %v4493
    %v4677 = vunpack.c.h.b16 %v4493
    %v4678 = vunpack.c.l.b16 %v4494
    %v4679 = vunpack.c.h.b16 %v4494
    %v4680 = vunpack.c.l.b16 %v4495
    %v4681 = vunpack.c.h.b16 %v4495
    %v4682 = vunpack.c.l.b16 %v4496
    %v4683 = vunpack.c.h.b16 %v4496
    %v4684 = vunpack.c.l.b16 %v4497
    %v4685 = vunpack.c.h.b16 %v4497
    %v4686 = vunpack.c.l.b16 %v4498
    %v4687 = vunpack.c.h.b16 %v4498
    %v4688 = vunpack.c.l.b16 %v4499
    %v4689 = vunpack.c.h.b16 %v4499
    %v4690 = vunpack.c.l.b16 %v4500
    %v4691 = vunpack.c.h.b16 %v4500
    %v4692 = vunpack.c.l.b16 %v4501
    %v4693 = vunpack.c.h.b16 %v4501
    %v4694 = vunpack.c.l.b16 %v4502
    %v4695 = vunpack.c.h.b16 %v4502
    %v4696 = vunpack.c.l.b16 %v4503
    %v4697 = vunpack.c.h.b16 %v4503
    %v4698 = vunpack.c.l.b16 %v4504
    %v4699 = vunpack.c.h.b16 %v4504
    %v4700 = vunpack.c.l.b16 %v4505
    %v4701 = vunpack.c.h.b16 %v4505
    %v4702 = vunpack.c.l.b16 %v4506
    %v4703 = vunpack.c.h.b16 %v4506
    %v4704 = vunpack.c.l.b16 %v4507
    %v4705 = vunpack.c.h.b16 %v4507
    %v4706 = vunpack.c.l.b16 %v4508
    %v4707 = vunpack.c.h.b16 %v4508
    %v4708 = vunpack.c.l.b16 %v4509
    %v4709 = vunpack.c.h.b16 %v4509
    %v4710 = vunpack.c.l.b16 %v4510
    %v4711 = vunpack.c.h.b16 %v4510
    %v4712 = vunpack.c.l.b16 %v4511
    %v4713 = vunpack.c.h.b16 %v4511
    %v4714 = vunpack.c.l.b16 %v4512
    %v4715 = vunpack.c.h.b16 %v4512
    %v4716 = vunpack.c.l.b16 %v4513
    %v4717 = vunpack.c.h.b16 %v4513
    %v4718 = vpack.c.b16 %v4662, %v4654
    %v4719 = vpack.c.b16 %v4663, %v4655
    %v4720 = vpack.c.b16 %v4664, %v4656
    %v4721 = vpack.c.b16 %v4665, %v4657
    %v4722 = vpack.c.b16 %v4666, %v4658
    %v4723 = vpack.c.b16 %v4667, %v4659
    %v4724 = vpack.c.b16 %v4668, %v4660
    %v4725 = vpack.c.b16 %v4669, %v4661
    %v4726 = vpack.c.b16 %v4678, %v4670
    %v4727 = vpack.c.b16 %v4679, %v4671
    %v4728 = vpack.c.b16 %v4680, %v4672
    %v4729 = vpack.c.b16 %v4681, %v4673
    %v4730 = vpack.c.b16 %v4682, %v4674
    %v4731 = vpack.c.b16 %v4683, %v4675
    %v4732 = vpack.c.b16 %v4684, %v4676
    %v4733 = vpack.c.b16 %v4685, %v4677
    %v4734 = vpack.c.b16 %v4694, %v4686
    %v4735 = vpack.c.b16 %v4695, %v4687
    %v4736 = vpack.c.b16 %v4696, %v4688
    %v4737 = vpack.c.b16 %v4697, %v4689
    %v4738 = vpack.c.b16 %v4698, %v4690
    %v4739 = vpack.c.b16 %v4699, %v4691
    %v4740 = vpack.c.b16 %v4700, %v4692
    %v4741 = vpack.c.b16 %v4701, %v4693
    %v4742 = vpack.c.b16 %v4710, %v4702
    %v4743 = vpack.c.b16 %v4711, %v4703
    %v4744 = vpack.c.b16 %v4712, %v4704
    %v4745 = vpack.c.b16 %v4713, %v4705
    %v4746 = vpack.c.b16 %v4714, %v4706
    %v4747 = vpack.c.b16 %v4715, %v4707
    %v4748 = vpack.c.b16 %v4716, %v4708
    %v4749 = vpack.c.b16 %v4717, %v4709
    %vm4778 = vcmask 523264
    %v4780 = vsel %vm4778, %v4725, 0
    %v4783 = vsel %vm4778, %v4733, 0
    %v4786 = vsel %vm4778, %v4741, 0
    %v4789 = vsel %vm4778, %v4749, 0
    %4791 = vmatprep.subr.bf16.mxu0 0
    %4792 = vmatpush1.bf16.msra.mxu0 %v4514
    %4793 = vmatprep.subr.bf16.mxu0 0
    %4794 = vmatpush1.bf16.msra.mxu0 %v4515
    %4795 = vmatprep.subr.bf16.mxu0 0
    %4796 = vmatpush1.bf16.msra.mxu0 %v4516
    %4797 = vmatprep.subr.bf16.mxu0 0
    %4798 = vmatpush1.bf16.msra.mxu0 %v4517
    %4799 = vmatprep.subr.bf16.mxu0 0
    %4800 = vmatpush1.bf16.msra.mxu0 %v4518
    %4801 = vmatprep.subr.bf16.mxu0 0
    %4802 = vmatpush1.bf16.msra.mxu0 %v4519
    %4803 = vmatprep.subr.bf16.mxu0 0
    %4804 = vmatpush1.bf16.msra.mxu0 %v4520
    %4805 = vmatprep.subr.bf16.mxu0 0
    %4806 = vmatpush1.bf16.msra.mxu0 %v4521
    %4807 = vmatprep.subr.bf16.mxu0 0
    %4808 = vmatpush1.bf16.msra.mxu0 %v4522
    %4809 = vmatprep.subr.bf16.mxu0 0
    %4810 = vmatpush1.bf16.msra.mxu0 %v4523
    %4811 = vmatprep.subr.bf16.mxu0 0
    %4812 = vmatpush1.bf16.msra.mxu0 %v4524
    %4813 = vmatprep.subr.bf16.mxu0 0
    %4814 = vmatpush1.bf16.msra.mxu0 %v4525
    %4815 = vmatprep.subr.bf16.mxu0 0
    %4816 = vmatpush1.bf16.msra.mxu0 %v4526
    %4817 = vmatprep.subr.bf16.mxu0 0
    %4818 = vmatpush1.bf16.msra.mxu0 %v4527
    %4819 = vmatprep.subr.bf16.mxu0 0
    %4820 = vmatpush1.bf16.msra.mxu0 %v4528
    %4821 = vmatprep.subr.bf16.mxu0 0
    %4822 = vmatpush1.bf16.msra.mxu0 %v4529
    %4823 = vmatprep.mubr.bf16.mxu0 %v4719
    %4824 = vmatmul.mubr.bf16.gmra.mrb[0].mxu0 %v4718
    %v4825 = vpop.f32.mrb[0].mxu0
    %v4826 = vadd.f32 %v4585, %v4825
    %v4827 = vpop.f32.mrb[0].mxu0
    %v4828 = vpop.f32.mrb[0].mxu0
    %v4829 = vadd.f32 %v4590, %v4828
    %v4830 = vpop.f32.mrb[0].mxu0
    %4831 = vmatprep.mubr.bf16.mxu0 %v4727
    %4832 = vmatmul.mubr.bf16.gmra.mrb[0].mxu0 %v4726
    %v4833 = vpop.f32.mrb[0].mxu0
    %v4834 = vadd.f32 %v4595, %v4833
    %v4835 = vpop.f32.mrb[0].mxu0
    %v4836 = vpop.f32.mrb[0].mxu0
    %v4837 = vadd.f32 %v4600, %v4836
    %v4838 = vpop.f32.mrb[0].mxu0
    %4839 = vmatprep.mubr.bf16.mxu0 %v4735
    %4840 = vmatmul.mubr.bf16.gmra.mrb[0].mxu0 %v4734
    %v4841 = vpop.f32.mrb[0].mxu0
    %v4842 = vadd.f32 %v4605, %v4841
    %v4843 = vpop.f32.mrb[0].mxu0
    %v4844 = vpop.f32.mrb[0].mxu0
    %v4845 = vadd.f32 %v4610, %v4844
    %v4846 = vpop.f32.mrb[0].mxu0
    %4847 = vmatprep.mubr.bf16.mxu0 %v4743
    %4848 = vmatmul.mubr.bf16.gmra.mrb[0].mxu0 %v4742
    %v4849 = vpop.f32.mrb[0].mxu0
    %v4850 = vadd.f32 %v4615, %v4849
    %v4851 = vpop.f32.mrb[0].mxu0
    %v4852 = vpop.f32.mrb[0].mxu0
    %v4853 = vadd.f32 %v4620, %v4852
    %v4854 = vpop.f32.mrb[0].mxu0
    %4855 = vdwg.mxu0
    %4856 = vmatprep.subr.bf16.mxu0 0
    %4857 = vmatpush1.bf16.msra.mxu0 %v4530
    %4858 = vmatprep.subr.bf16.mxu0 0
    %4859 = vmatpush1.bf16.msra.mxu0 %v4531
    %4860 = vmatprep.subr.bf16.mxu0 0
    %4861 = vmatpush1.bf16.msra.mxu0 %v4532
    %4862 = vmatprep.subr.bf16.mxu0 0
    %4863 = vmatpush1.bf16.msra.mxu0 %v4533
    %4864 = vmatprep.subr.bf16.mxu0 0
    %4865 = vmatpush1.bf16.msra.mxu0 %v4534
    %4866 = vmatprep.subr.bf16.mxu0 0
    %4867 = vmatpush1.bf16.msra.mxu0 %v4535
    %4868 = vmatprep.subr.bf16.mxu0 0
    %4869 = vmatpush1.bf16.msra.mxu0 %v4536
    %4870 = vmatprep.subr.bf16.mxu0 0
    %4871 = vmatpush1.bf16.msra.mxu0 %v4537
    %4872 = vmatprep.subr.bf16.mxu0 0
    %4873 = vmatpush1.bf16.msra.mxu0 %v4538
    %4874 = vmatprep.subr.bf16.mxu0 0
    %4875 = vmatpush1.bf16.msra.mxu0 %v4539
    %4876 = vmatprep.subr.bf16.mxu0 0
    %4877 = vmatpush1.bf16.msra.mxu0 %v4540
    %4878 = vmatprep.subr.bf16.mxu0 0
    %4879 = vmatpush1.bf16.msra.mxu0 %v4541
    %4880 = vmatprep.subr.bf16.mxu0 0
    %4881 = vmatpush1.bf16.msra.mxu0 %v4542
    %4882 = vmatprep.subr.bf16.mxu0 0
    %4883 = vmatpush1.bf16.msra.mxu0 %v4543
    %4884 = vmatprep.subr.bf16.mxu0 0
    %4885 = vmatpush1.bf16.msra.mxu0 %v4544
    %4886 = vmatprep.subr.bf16.mxu0 0
    %4887 = vmatpush1.bf16.msra.mxu0 %v4545
    %4888 = vmatprep.mubr.bf16.mxu0 %v4721
    %4889 = vmatmul.mubr.bf16.gmra.mrb[0].mxu0 %v4720
    %v4890 = vpop.f32.mrb[0].mxu0
    %v4891 = vadd.f32 %v4826, %v4890
    %v4892 = vpop.f32.mrb[0].mxu0
    %v4893 = vpop.f32.mrb[0].mxu0
    %v4894 = vadd.f32 %v4829, %v4893
    %v4895 = vpop.f32.mrb[0].mxu0
    %4896 = vmatprep.mubr.bf16.mxu0 %v4729
    %4897 = vmatmul.mubr.bf16.gmra.mrb[0].mxu0 %v4728
    %v4898 = vpop.f32.mrb[0].mxu0
    %v4899 = vadd.f32 %v4834, %v4898
    %v4900 = vpop.f32.mrb[0].mxu0
    %v4901 = vpop.f32.mrb[0].mxu0
    %v4902 = vadd.f32 %v4837, %v4901
    %v4903 = vpop.f32.mrb[0].mxu0
    %4904 = vmatprep.mubr.bf16.mxu0 %v4737
    %4905 = vmatmul.mubr.bf16.gmra.mrb[0].mxu0 %v4736
    %v4906 = vpop.f32.mrb[0].mxu0
    %v4907 = vadd.f32 %v4842, %v4906
    %v4908 = vpop.f32.mrb[0].mxu0
    %v4909 = vpop.f32.mrb[0].mxu0
    %v4910 = vadd.f32 %v4845, %v4909
    %v4911 = vpop.f32.mrb[0].mxu0
    %4912 = vmatprep.mubr.bf16.mxu0 %v4745
    %4913 = vmatmul.mubr.bf16.gmra.mrb[0].mxu0 %v4744
    %v4914 = vpop.f32.mrb[0].mxu0
    %v4915 = vadd.f32 %v4850, %v4914
    %v4916 = vpop.f32.mrb[0].mxu0
    %v4917 = vpop.f32.mrb[0].mxu0
    %v4918 = vadd.f32 %v4853, %v4917
    %v4919 = vpop.f32.mrb[0].mxu0
    %4920 = vdwg.mxu0
    %4921 = vmatprep.subr.bf16.mxu0 0
    %4922 = vmatpush1.bf16.msra.mxu0 %v4546
    %4923 = vmatprep.subr.bf16.mxu0 0
    %4924 = vmatpush1.bf16.msra.mxu0 %v4547
    %4925 = vmatprep.subr.bf16.mxu0 0
    %4926 = vmatpush1.bf16.msra.mxu0 %v4548
    %4927 = vmatprep.subr.bf16.mxu0 0
    %4928 = vmatpush1.bf16.msra.mxu0 %v4549
    %4929 = vmatprep.subr.bf16.mxu0 0
    %4930 = vmatpush1.bf16.msra.mxu0 %v4550
    %4931 = vmatprep.subr.bf16.mxu0 0
    %4932 = vmatpush1.bf16.msra.mxu0 %v4551
    %4933 = vmatprep.subr.bf16.mxu0 0
    %4934 = vmatpush1.bf16.msra.mxu0 %v4552
    %4935 = vmatprep.subr.bf16.mxu0 0
    %4936 = vmatpush1.bf16.msra.mxu0 %v4553
    %4937 = vmatprep.subr.bf16.mxu0 0
    %4938 = vmatpush1.bf16.msra.mxu0 %v4554
    %4939 = vmatprep.subr.bf16.mxu0 0
    %4940 = vmatpush1.bf16.msra.mxu0 %v4555
    %4941 = vmatprep.subr.bf16.mxu0 0
    %4942 = vmatpush1.bf16.msra.mxu0 %v4556
    %4943 = vmatprep.subr.bf16.mxu0 0
    %4944 = vmatpush1.bf16.msra.mxu0 %v4557
    %4945 = vmatprep.subr.bf16.mxu0 0
    %4946 = vmatpush1.bf16.msra.mxu0 %v4558
    %4947 = vmatprep.subr.bf16.mxu0 0
    %4948 = vmatpush1.bf16.msra.mxu0 %v4559
    %4949 = vmatprep.subr.bf16.mxu0 0
    %4950 = vmatpush1.bf16.msra.mxu0 %v4560
    %4951 = vmatprep.subr.bf16.mxu0 0
    %4952 = vmatpush1.bf16.msra.mxu0 %v4561
    %4953 = vmatprep.mubr.bf16.mxu0 %v4723
    %4954 = vmatmul.mubr.bf16.gmra.mrb[0].mxu0 %v4722
    %v4955 = vpop.f32.mrb[0].mxu0
    %v4956 = vadd.f32 %v4891, %v4955
    %v4957 = vpop.f32.mrb[0].mxu0
    %v4958 = vpop.f32.mrb[0].mxu0
    %v4959 = vadd.f32 %v4894, %v4958
    %v4960 = vpop.f32.mrb[0].mxu0
    %4961 = vmatprep.mubr.bf16.mxu0 %v4731
    %4962 = vmatmul.mubr.bf16.gmra.mrb[0].mxu0 %v4730
    %v4963 = vpop.f32.mrb[0].mxu0
    %v4964 = vadd.f32 %v4899, %v4963
    %v4965 = vpop.f32.mrb[0].mxu0
    %v4966 = vpop.f32.mrb[0].mxu0
    %v4967 = vadd.f32 %v4902, %v4966
    %v4968 = vpop.f32.mrb[0].mxu0
    %4969 = vmatprep.mubr.bf16.mxu0 %v4739
    %4970 = vmatmul.mubr.bf16.gmra.mrb[0].mxu0 %v4738
    %v4971 = vpop.f32.mrb[0].mxu0
    %v4972 = vadd.f32 %v4907, %v4971
    %v4973 = vpop.f32.mrb[0].mxu0
    %v4974 = vpop.f32.mrb[0].mxu0
    %v4975 = vadd.f32 %v4910, %v4974
    %v4976 = vpop.f32.mrb[0].mxu0
    %4977 = vmatprep.mubr.bf16.mxu0 %v4747
    %4978 = vmatmul.mubr.bf16.gmra.mrb[0].mxu0 %v4746
    %v4979 = vpop.f32.mrb[0].mxu0
    %v4980 = vadd.f32 %v4915, %v4979
    %v4981 = vpop.f32.mrb[0].mxu0
    %v4982 = vpop.f32.mrb[0].mxu0
    %v4983 = vadd.f32 %v4918, %v4982
    %v4984 = vpop.f32.mrb[0].mxu0
    %4985 = vdwg.mxu0
    %4986 = vmatprep.subr.bf16.mxu0 0
    %4987 = vmatpush1.bf16.msra.mxu0 %v4562
    %4988 = vmatprep.subr.bf16.mxu0 0
    %4989 = vmatpush1.bf16.msra.mxu0 %v4563
    %4990 = vmatprep.subr.bf16.mxu0 0
    %4991 = vmatpush1.bf16.msra.mxu0 %v4564
    %4992 = vmatprep.subr.bf16.mxu0 0
    %4993 = vmatpush1.bf16.msra.mxu0 %v4565
    %4994 = vmatprep.subr.bf16.mxu0 0
    %4995 = vmatpush1.bf16.msra.mxu0 %v4566
    %4996 = vmatprep.subr.bf16.mxu0 0
    %4997 = vmatpush1.bf16.msra.mxu0 %v4567
    %4998 = vmatprep.subr.bf16.mxu0 0
    %4999 = vmatpush1.bf16.msra.mxu0 %v4568
    %5000 = vmatprep.subr.bf16.mxu0 0
    %5001 = vmatpush1.bf16.msra.mxu0 %v4569
    %5002 = vmatprep.subr.bf16.mxu0 0
    %5003 = vmatpush1.bf16.msra.mxu0 %v4570
    %5004 = vmatprep.subr.bf16.mxu0 0
    %5005 = vmatpush1.bf16.msra.mxu0 %v4571
    %5006 = vmatprep.subr.bf16.mxu0 0
    %5007 = vmatpush1.bf16.msra.mxu0 %v4572
    %5008 = vmatprep.subr.bf16.mxu0 0
    %5009 = vmatpush1.bf16.msra.mxu0 %v4573
    %5010 = vmatprep.subr.bf16.mxu0 0
    %5011 = vmatpush1.bf16.msra.mxu0 0
    %5012 = vmatprep.subr.bf16.mxu0 0
    %5013 = vmatpush1.bf16.msra.mxu0 0
    %5014 = vmatprep.subr.bf16.mxu0 0
    %5015 = vmatpush1.bf16.msra.mxu0 0
    %5016 = vmatprep.subr.bf16.mxu0 0
    %5017 = vmatpush1.bf16.msra.mxu0 0
    %5018 = vmatprep.mubr.bf16.mxu0 %v4780
    %5019 = vmatmul.mubr.bf16.gmra.mrb[0].mxu0 %v4724
    %v5020 = vpop.f32.mrb[0].mxu0
    %v5021 = vadd.f32 %v4956, %v5020
    %v5022 = vpop.f32.mrb[0].mxu0
    %v5023 = vpop.f32.mrb[0].mxu0
    %v5024 = vadd.f32 %v4959, %v5023
    %v5025 = vpop.f32.mrb[0].mxu0
    %5026 = vmatprep.mubr.bf16.mxu0 %v4783
    %5027 = vmatmul.mubr.bf16.gmra.mrb[0].mxu0 %v4732
    %v5028 = vpop.f32.mrb[0].mxu0
    %v5029 = vadd.f32 %v4964, %v5028
    %v5030 = vpop.f32.mrb[0].mxu0
    %v5031 = vpop.f32.mrb[0].mxu0
    %v5032 = vadd.f32 %v4967, %v5031
    %v5033 = vpop.f32.mrb[0].mxu0
    %5034 = vmatprep.mubr.bf16.mxu0 %v4786
    %5035 = vmatmul.mubr.bf16.gmra.mrb[0].mxu0 %v4740
    %v5036 = vpop.f32.mrb[0].mxu0
    %v5037 = vadd.f32 %v4972, %v5036
    %v5038 = vpop.f32.mrb[0].mxu0
    %v5039 = vpop.f32.mrb[0].mxu0
    %v5040 = vadd.f32 %v4975, %v5039
    %v5041 = vpop.f32.mrb[0].mxu0
    %5042 = vmatprep.mubr.bf16.mxu0 %v4789
    %5043 = vmatmul.mubr.bf16.gmra.mrb[0].mxu0 %v4748
    %v5044 = vpop.f32.mrb[0].mxu0
    %v5045 = vadd.f32 %v4980, %v5044
    %v5046 = vpop.f32.mrb[0].mxu0
    %v5047 = vpop.f32.mrb[0].mxu0
    %v5048 = vadd.f32 %v4983, %v5047
    %v5049 = vpop.f32.mrb[0].mxu0
    %5050 = vdwg.mxu0
    %v5051 = vsel %vm2036, %v5021, 0.0
    %5052 = vadd.xlane.f32.xlu0 %v5051
    %v5053 = vpop.xlane.xlu0 %5052
    %v5054 = vsel %vm2036, %v5024, 0.0
    %5055 = vadd.xlane.f32.xlu0 %v5054
    %v5056 = vpop.xlane.xlu0 %5055
    %v5057 = vsel %vm2036, %v5029, 0.0
    %5058 = vadd.xlane.f32.xlu0 %v5057
    %v5059 = vpop.xlane.xlu0 %5058
    %v5060 = vsel %vm2036, %v5032, 0.0
    %5061 = vadd.xlane.f32.xlu0 %v5060
    %v5062 = vpop.xlane.xlu0 %5061
    %v5063 = vsel %vm2036, %v5037, 0.0
    %5064 = vadd.xlane.f32.xlu0 %v5063
    %v5065 = vpop.xlane.xlu0 %5064
    %v5066 = vsel %vm2036, %v5040, 0.0
    %5067 = vadd.xlane.f32.xlu0 %v5066
    %v5068 = vpop.xlane.xlu0 %5067
    %v5069 = vsel %vm2036, %v5045, 0.0
    %5070 = vadd.xlane.f32.xlu0 %v5069
    %v5071 = vpop.xlane.xlu0 %5070
    %v5072 = vsel %vm2036, %v5048, 0.0
    %5073 = vadd.xlane.f32.xlu0 %v5072
    %v5074 = vpop.xlane.xlu0 %5073
    %v5075 = vmul.f32 %v5021, %v5021
    %v5076 = vmul.f32 %v5024, %v5024
    %v5077 = vmul.f32 %v5029, %v5029
    %v5078 = vmul.f32 %v5032, %v5032
    %v5079 = vmul.f32 %v5037, %v5037
    %v5080 = vmul.f32 %v5040, %v5040
    %v5081 = vmul.f32 %v5045, %v5045
    %v5082 = vmul.f32 %v5048, %v5048
    %v5083 = vsel %vm2036, %v5075, 0.0
    %5084 = vadd.xlane.f32.xlu0 %v5083
    %v5085 = vpop.xlane.xlu0 %5084
    %v5086 = vsel %vm2036, %v5076, 0.0
    %5087 = vadd.xlane.f32.xlu0 %v5086
    %v5088 = vpop.xlane.xlu0 %5087
    %v5089 = vsel %vm2036, %v5077, 0.0
    %5090 = vadd.xlane.f32.xlu0 %v5089
    %v5091 = vpop.xlane.xlu0 %5090
    %v5092 = vsel %vm2036, %v5078, 0.0
    %5093 = vadd.xlane.f32.xlu0 %v5092
    %v5094 = vpop.xlane.xlu0 %5093
    %v5095 = vsel %vm2036, %v5079, 0.0
    %5096 = vadd.xlane.f32.xlu0 %v5095
    %v5097 = vpop.xlane.xlu0 %5096
    %v5098 = vsel %vm2036, %v5080, 0.0
    %5099 = vadd.xlane.f32.xlu0 %v5098
    %v5100 = vpop.xlane.xlu0 %5099
    %v5101 = vsel %vm2036, %v5081, 0.0
    %5102 = vadd.xlane.f32.xlu0 %v5101
    %v5103 = vpop.xlane.xlu0 %5102
    %v5104 = vsel %vm2036, %v5082, 0.0
    %5105 = vadd.xlane.f32.xlu0 %v5104
    %v5106 = vpop.xlane.xlu0 %5105
    %v5107 = vmul.f32 %v5053, 0.25
    %v5108 = vmul.f32 %v5056, 0.25
    %v5109 = vmul.f32 %v5059, 0.25
    %v5110 = vmul.f32 %v5062, 0.25
    %v5111 = vmul.f32 %v5065, 0.25
    %v5112 = vmul.f32 %v5068, 0.25
    %v5113 = vmul.f32 %v5071, 0.25
    %v5114 = vmul.f32 %v5074, 0.25
    %v5115 = vmul.f32 %v5085, 0.25
    %v5116 = vmul.f32 %v5088, 0.25
    %v5117 = vmul.f32 %v5091, 0.25
    %v5118 = vmul.f32 %v5094, 0.25
    %v5119 = vmul.f32 %v5097, 0.25
    %v5120 = vmul.f32 %v5100, 0.25
    %v5121 = vmul.f32 %v5103, 0.25
    %v5122 = vmul.f32 %v5106, 0.25
    %v5123 = vmul.f32 %v5107, %v5107
    %v5124 = vmul.f32 %v5108, %v5108
    %v5125 = vmul.f32 %v5109, %v5109
    %v5126 = vmul.f32 %v5110, %v5110
    %v5127 = vmul.f32 %v5111, %v5111
    %v5128 = vmul.f32 %v5112, %v5112
    %v5129 = vmul.f32 %v5113, %v5113
    %v5130 = vmul.f32 %v5114, %v5114
    %v5131 = vsub.f32 %v5115, %v5123
    %v5132 = vsub.f32 %v5116, %v5124
    %v5133 = vsub.f32 %v5117, %v5125
    %v5134 = vsub.f32 %v5118, %v5126
    %v5135 = vsub.f32 %v5119, %v5127
    %v5136 = vsub.f32 %v5120, %v5128
    %v5137 = vsub.f32 %v5121, %v5129
    %v5138 = vsub.f32 %v5122, %v5130
    %v5139 = vmax.f32 %v5131, 0.0
    %v5140 = vmax.f32 %v5132, 0.0
    %v5141 = vmax.f32 %v5133, 0.0
    %v5142 = vmax.f32 %v5134, 0.0
    %v5143 = vmax.f32 %v5135, 0.0
    %v5144 = vmax.f32 %v5136, 0.0
    %v5145 = vmax.f32 %v5137, 0.0
    %v5146 = vmax.f32 %v5138, 0.0
    %v5147 = vadd.f32 %v5139, 1e-05
    %v5148 = vadd.f32 %v5140, 1e-05
    %v5149 = vadd.f32 %v5141, 1e-05
    %v5150 = vadd.f32 %v5142, 1e-05
    %v5151 = vadd.f32 %v5143, 1e-05
    %v5152 = vadd.f32 %v5144, 1e-05
    %v5153 = vadd.f32 %v5145, 1e-05
    %v5154 = vadd.f32 %v5146, 1e-05
    %v5155 = vrsqrt.pop %v5147
    %v5156 = vrsqrt.pop %v5148
    %v5157 = vrsqrt.pop %v5149
    %v5158 = vrsqrt.pop %v5150
    %v5159 = vrsqrt.pop %v5151
    %v5160 = vrsqrt.pop %v5152
    %v5161 = vrsqrt.pop %v5153
    %v5162 = vrsqrt.pop %v5154
    %v5163 = vmul.f32 %v5155, %v4574
    %v5164 = vmul.f32 %v5156, %v4575
    %v5165 = vmul.f32 %v5157, %v4576
    %v5166 = vmul.f32 %v5158, %v4577
    %v5167 = vmul.f32 %v5159, %v4578
    %v5168 = vmul.f32 %v5160, %v4579
    %v5169 = vmul.f32 %v5161, %v4580
    %v5170 = vmul.f32 %v5162, %v4581
    %v5171 = vmul.f32 %v5107, %v5163
    %v5172 = vmul.f32 %v5108, %v5164
    %v5173 = vmul.f32 %v5109, %v5165
    %v5174 = vmul.f32 %v5110, %v5166
    %v5175 = vmul.f32 %v5111, %v5167
    %v5176 = vmul.f32 %v5112, %v5168
    %v5177 = vmul.f32 %v5113, %v5169
    %v5178 = vmul.f32 %v5114, %v5170
    %5187 = vrot.lane.b32.xlu0 %v5171, 1
    %v5188 = vpop.permute.xlu0 %5187
    %5189 = vrot.lane.b32.xlu0 %v5172, 1
    %v5190 = vpop.permute.xlu0 %5189
    %5191 = vrot.lane.b32.xlu0 %v5173, 1
    %v5192 = vpop.permute.xlu0 %5191
    %5193 = vrot.lane.b32.xlu0 %v5174, 1
    %v5194 = vpop.permute.xlu0 %5193
    %5195 = vrot.lane.b32.xlu0 %v5175, 1
    %v5196 = vpop.permute.xlu0 %5195
    %5197 = vrot.lane.b32.xlu0 %v5176, 1
    %v5198 = vpop.permute.xlu0 %5197
    %5199 = vrot.lane.b32.xlu0 %v5177, 1
    %v5200 = vpop.permute.xlu0 %5199
    %5201 = vrot.lane.b32.xlu0 %v5178, 1
    %v5202 = vpop.permute.xlu0 %5201
    %v5211 = vsub.f32 %v4574, %v5188
    %v5212 = vsub.f32 %v4575, %v5190
    %v5213 = vsub.f32 %v4576, %v5192
    %v5214 = vsub.f32 %v4577, %v5194
    %v5215 = vsub.f32 %v4578, %v5196
    %v5216 = vsub.f32 %v4579, %v5198
    %v5217 = vsub.f32 %v4580, %v5200
    %v5218 = vsub.f32 %v4581, %v5202
    %5220 = vset.pattern.permute.xlu0 1
    %5221 = vperm.xlu0 %5220, %v5163
    %v5222 = vpop.permute.xlu0 %5221
    %5225 = vset.pattern.permute.xlu0 1
    %5226 = vperm.xlu0 %5225, %v5164
    %v5227 = vpop.permute.xlu0 %5226
    %5230 = vset.pattern.permute.xlu0 1
    %5231 = vperm.xlu0 %5230, %v5165
    %v5232 = vpop.permute.xlu0 %5231
    %5235 = vset.pattern.permute.xlu0 1
    %5236 = vperm.xlu0 %5235, %v5166
    %v5237 = vpop.permute.xlu0 %5236
    %5240 = vset.pattern.permute.xlu0 1
    %5241 = vperm.xlu0 %5240, %v5167
    %v5242 = vpop.permute.xlu0 %5241
    %5245 = vset.pattern.permute.xlu0 1
    %5246 = vperm.xlu0 %5245, %v5168
    %v5247 = vpop.permute.xlu0 %5246
    %5250 = vset.pattern.permute.xlu0 1
    %5251 = vperm.xlu0 %5250, %v5169
    %v5252 = vpop.permute.xlu0 %5251
    %5255 = vset.pattern.permute.xlu0 1
    %5256 = vperm.xlu0 %5255, %v5170
    %v5257 = vpop.permute.xlu0 %5256
    %v5259 = vmul.f32 %v5021, %v5222
    %v5260 = vmul.f32 %v5024, %v5227
    %v5261 = vmul.f32 %v5029, %v5232
    %v5262 = vmul.f32 %v5032, %v5237
    %v5263 = vmul.f32 %v5037, %v5242
    %v5264 = vmul.f32 %v5040, %v5247
    %v5265 = vmul.f32 %v5045, %v5252
    %v5266 = vmul.f32 %v5048, %v5257
    %5268 = vset.pattern.permute.xlu0 2
    %5269 = vperm.xlu0 %5268, %v5211
    %v5270 = vpop.permute.xlu0 %5269
    %5273 = vset.pattern.permute.xlu0 2
    %5274 = vperm.xlu0 %5273, %v5212
    %v5275 = vpop.permute.xlu0 %5274
    %5278 = vset.pattern.permute.xlu0 2
    %5279 = vperm.xlu0 %5278, %v5213
    %v5280 = vpop.permute.xlu0 %5279
    %5283 = vset.pattern.permute.xlu0 2
    %5284 = vperm.xlu0 %5283, %v5214
    %v5285 = vpop.permute.xlu0 %5284
    %5288 = vset.pattern.permute.xlu0 2
    %5289 = vperm.xlu0 %5288, %v5215
    %v5290 = vpop.permute.xlu0 %5289
    %5293 = vset.pattern.permute.xlu0 2
    %5294 = vperm.xlu0 %5293, %v5216
    %v5295 = vpop.permute.xlu0 %5294
    %5298 = vset.pattern.permute.xlu0 2
    %5299 = vperm.xlu0 %5298, %v5217
    %v5300 = vpop.permute.xlu0 %5299
    %5303 = vset.pattern.permute.xlu0 2
    %5304 = vperm.xlu0 %5303, %v5218
    %v5305 = vpop.permute.xlu0 %5304
    %v5307 = vadd.f32 %v5259, %v5270
    %v5308 = vadd.f32 %v5260, %v5275
    %v5309 = vadd.f32 %v5261, %v5280
    %v5310 = vadd.f32 %v5262, %v5285
    %v5311 = vadd.f32 %v5263, %v5290
    %v5312 = vadd.f32 %v5264, %v5295
    %v5313 = vadd.f32 %v5265, %v5300
    %v5314 = vadd.f32 %v5266, %v5305
    %vm5315 = vcmp.gt.f32.partialorder %v5307, 0.0
    %vm5316 = vcmp.gt.f32.partialorder %v5308, 0.0
    %vm5317 = vcmp.gt.f32.partialorder %v5309, 0.0
    %vm5318 = vcmp.gt.f32.partialorder %v5310, 0.0
    %vm5319 = vcmp.gt.f32.partialorder %v5311, 0.0
    %vm5320 = vcmp.gt.f32.partialorder %v5312, 0.0
    %vm5321 = vcmp.gt.f32.partialorder %v5313, 0.0
    %vm5322 = vcmp.gt.f32.partialorder %v5314, 0.0
    %v5323 = vmul.f32 %v5307, 0.2
    %v5324 = vmul.f32 %v5308, 0.2
    %v5325 = vmul.f32 %v5309, 0.2
    %v5326 = vmul.f32 %v5310, 0.2
    %v5327 = vmul.f32 %v5311, 0.2
    %v5328 = vmul.f32 %v5312, 0.2
    %v5329 = vmul.f32 %v5313, 0.2
    %v5330 = vmul.f32 %v5314, 0.2
    %v5331 = vsel %vm5315, %v5307, %v5323
    %v5332 = vsel %vm5316, %v5308, %v5324
    %v5333 = vsel %vm5317, %v5309, %v5325
    %v5334 = vsel %vm5318, %v5310, %v5326
    %v5335 = vsel %vm5319, %v5311, %v5327
    %v5336 = vsel %vm5320, %v5312, %v5328
    %v5337 = vsel %vm5321, %v5313, %v5329
    %v5338 = vsel %vm5322, %v5314, %v5330
    %v5339 = vld [vmem:[%s20] sm:$0x3]
    %v5341 = vsel %vm3713, %v5331, 0
    %v5344 = vsel %vm3713, %v5332, 0
    %v5347 = vsel %vm3713, %v5333, 0
    %v5350 = vsel %vm3713, %v5334, 0
    %v5353 = vsel %vm3713, %v5335, 0
    %v5356 = vsel %vm3713, %v5336, 0
    %v5359 = vsel %vm3713, %v5337, 0
    %v5362 = vsel %vm3713, %v5338, 0
    %v5365 = vsel %vm3433, %v5339, 0
    %5367 = vmatprep.subr.mxu0 0.0
    %5368 = vmatpush1.msra.mxu0 %v5365
    %5369 = vmatprep.subr.mxu0 0.0
    %5370 = vmatpush1.msra.mxu0 0.0
    %5371 = vmatprep.subr.mxu0 0.0
    %5372 = vmatpush1.msra.mxu0 0.0
    %5373 = vmatprep.subr.mxu0 0.0
    %5374 = vmatpush1.msra.mxu0 0.0
    %5375 = vmatprep.subr.mxu0 0.0
    %5376 = vmatpush1.msra.mxu0 0.0
    %5377 = vmatprep.subr.mxu0 0.0
    %5378 = vmatpush1.msra.mxu0 0.0
    %5379 = vmatprep.subr.mxu0 0.0
    %5380 = vmatpush1.msra.mxu0 0.0
    %5381 = vmatprep.subr.mxu0 0.0
    %5382 = vmatpush1.msra.mxu0 0.0
    %5383 = vmatprep.subr.mxu0 0.0
    %5384 = vmatpush1.msra.mxu0 0.0
    %5385 = vmatprep.subr.mxu0 0.0
    %5386 = vmatpush1.msra.mxu0 0.0
    %5387 = vmatprep.subr.mxu0 0.0
    %5388 = vmatpush1.msra.mxu0 0.0
    %5389 = vmatprep.subr.mxu0 0.0
    %5390 = vmatpush1.msra.mxu0 0.0
    %5391 = vmatprep.subr.mxu0 0.0
    %5392 = vmatpush1.msra.mxu0 0.0
    %5393 = vmatprep.subr.mxu0 0.0
    %5394 = vmatpush1.msra.mxu0 0.0
    %5395 = vmatprep.subr.mxu0 0.0
    %5396 = vmatpush1.msra.mxu0 0.0
    %5397 = vmatprep.subr.mxu0 0.0
    %5398 = vmatpush1.msra.mxu0 0.0
    %5399 = vmatprep.subr.mxu0 0.0
    %5400 = vmatpush1.msra.mxu0 0.0
    %5401 = vmatprep.subr.mxu0 0.0
    %5402 = vmatpush1.msra.mxu0 0.0
    %5403 = vmatprep.subr.mxu0 0.0
    %5404 = vmatpush1.msra.mxu0 0.0
    %5405 = vmatprep.subr.mxu0 0.0
    %5406 = vmatpush1.msra.mxu0 0.0
    %5407 = vmatprep.subr.mxu0 0.0
    %5408 = vmatpush1.msra.mxu0 0.0
    %5409 = vmatprep.subr.mxu0 0.0
    %5410 = vmatpush1.msra.mxu0 0.0
    %5411 = vmatprep.subr.mxu0 0.0
    %5412 = vmatpush1.msra.mxu0 0.0
    %5413 = vmatprep.subr.mxu0 0.0
    %5414 = vmatpush1.msra.mxu0 0.0
    %5415 = vmatprep.subr.mxu0 0.0
    %5416 = vmatpush1.msra.mxu0 0.0
    %5417 = vmatprep.subr.mxu0 0.0
    %5418 = vmatpush1.msra.mxu0 0.0
    %5419 = vmatprep.subr.mxu0 0.0
    %5420 = vmatpush1.msra.mxu0 0.0
    %5421 = vmatprep.subr.mxu0 0.0
    %5422 = vmatpush1.msra.mxu0 0.0
    %5423 = vmatprep.subr.mxu0 0.0
    %5424 = vmatpush1.msra.mxu0 0.0
    %5425 = vmatprep.subr.mxu0 0.0
    %5426 = vmatpush1.msra.mxu0 0.0
    %5427 = vmatprep.subr.mxu0 0.0
    %5428 = vmatpush1.msra.mxu0 0.0
    %5429 = vmatprep.subr.mxu0 0.0
    %5430 = vmatpush1.msra.mxu0 0.0
    %5431 = vmatprep.mubr.f32.mxu0 0.0
    %5432 = vmatmul.mubr.f32.gmra.mrb[0].mxu0 %v5341
    %v5433 = vpop.f32.mrb[0].mxu0
    %v5434 = vadd.f32 0.0, %v5433
    %v5435 = vpop.f32.mrb[0].mxu0
    %5436 = vmatprep.mubr.f32.mxu0 0.0
    %5437 = vmatmul.mubr.f32.gmra.mrb[0].mxu0 %v5344
    %v5438 = vpop.f32.mrb[0].mxu0
    %v5439 = vadd.f32 0.0, %v5438
    %v5440 = vpop.f32.mrb[0].mxu0
    %5441 = vmatprep.mubr.f32.mxu0 0.0
    %5442 = vmatmul.mubr.f32.gmra.mrb[0].mxu0 %v5347
    %v5443 = vpop.f32.mrb[0].mxu0
    %v5444 = vadd.f32 0.0, %v5443
    %v5445 = vpop.f32.mrb[0].mxu0
    %5446 = vmatprep.mubr.f32.mxu0 0.0
    %5447 = vmatmul.mubr.f32.gmra.mrb[0].mxu0 %v5350
    %v5448 = vpop.f32.mrb[0].mxu0
    %v5449 = vadd.f32 0.0, %v5448
    %v5450 = vpop.f32.mrb[0].mxu0
    %5451 = vmatprep.mubr.f32.mxu0 0.0
    %5452 = vmatmul.mubr.f32.gmra.mrb[0].mxu0 %v5353
    %v5453 = vpop.f32.mrb[0].mxu0
    %v5454 = vadd.f32 0.0, %v5453
    %v5455 = vpop.f32.mrb[0].mxu0
    %5456 = vmatprep.mubr.f32.mxu0 0.0
    %5457 = vmatmul.mubr.f32.gmra.mrb[0].mxu0 %v5356
    %v5458 = vpop.f32.mrb[0].mxu0
    %v5459 = vadd.f32 0.0, %v5458
    %v5460 = vpop.f32.mrb[0].mxu0
    %5461 = vmatprep.mubr.f32.mxu0 0.0
    %5462 = vmatmul.mubr.f32.gmra.mrb[0].mxu0 %v5359
    %v5463 = vpop.f32.mrb[0].mxu0
    %v5464 = vadd.f32 0.0, %v5463
    %v5465 = vpop.f32.mrb[0].mxu0
    %5466 = vmatprep.mubr.f32.mxu0 0.0
    %5467 = vmatmul.mubr.f32.gmra.mrb[0].mxu0 %v5362
    %v5468 = vpop.f32.mrb[0].mxu0
    %v5469 = vadd.f32 0.0, %v5468
    %v5470 = vpop.f32.mrb[0].mxu0
    %5471 = vdwg.mxu0
    %5480 = vrot.lane.b32.xlu0 %v5434, 2
    %v5481 = vpop.permute.xlu0 %5480
    %5482 = vrot.lane.b32.xlu0 %v5439, 2
    %v5483 = vpop.permute.xlu0 %5482
    %5484 = vrot.lane.b32.xlu0 %v5444, 2
    %v5485 = vpop.permute.xlu0 %5484
    %5486 = vrot.lane.b32.xlu0 %v5449, 2
    %v5487 = vpop.permute.xlu0 %5486
    %5488 = vrot.lane.b32.xlu0 %v5454, 2
    %v5489 = vpop.permute.xlu0 %5488
    %5490 = vrot.lane.b32.xlu0 %v5459, 2
    %v5491 = vpop.permute.xlu0 %5490
    %5492 = vrot.lane.b32.xlu0 %v5464, 2
    %v5493 = vpop.permute.xlu0 %5492
    %5494 = vrot.lane.b32.xlu0 %v5469, 2
    %v5495 = vpop.permute.xlu0 %5494
    %5504 = vst.msk [vmem:[#allocation6] sm:$0xff] %vm3374, %v5481
    %5505 = vst.msk [vmem:[#allocation6 + $0x8] sm:$0xff] %vm3374, %v5483
    %5506 = vst.msk [vmem:[#allocation6 + $0x10] sm:$0xff] %vm3374, %v5485
    %5507 = vst.msk [vmem:[#allocation6 + $0x18] sm:$0xff] %vm3374, %v5487
    %5508 = vst.msk [vmem:[#allocation6 + $0x20] sm:$0xff] %vm3374, %v5489
    %5509 = vst.msk [vmem:[#allocation6 + $0x28] sm:$0xff] %vm3374, %v5491
    %5510 = vst.msk [vmem:[#allocation6 + $0x30] sm:$0xff] %vm3374, %v5493
    %5511 = vst.msk [vmem:[#allocation6 + $0x38] sm:$0xff] %vm3374, %v5495
    %5512 = vrot.lane.b32.xlu0 %v5331, 126
    %v5513 = vpop.permute.xlu0 %5512
    %5514 = vrot.lane.b32.xlu0 %v5332, 126
    %v5515 = vpop.permute.xlu0 %5514
    %5516 = vrot.lane.b32.xlu0 %v5333, 126
    %v5517 = vpop.permute.xlu0 %5516
    %5518 = vrot.lane.b32.xlu0 %v5334, 126
    %v5519 = vpop.permute.xlu0 %5518
    %5520 = vrot.lane.b32.xlu0 %v5335, 126
    %v5521 = vpop.permute.xlu0 %5520
    %5522 = vrot.lane.b32.xlu0 %v5336, 126
    %v5523 = vpop.permute.xlu0 %5522
    %5524 = vrot.lane.b32.xlu0 %v5337, 126
    %v5525 = vpop.permute.xlu0 %5524
    %5526 = vrot.lane.b32.xlu0 %v5338, 126
    %v5527 = vpop.permute.xlu0 %5526
    %v5528 = vsel %vm3713, %v5513, 0
    %v5530 = vsel %vm3713, %v5515, 0
    %v5532 = vsel %vm3713, %v5517, 0
    %v5534 = vsel %vm3713, %v5519, 0
    %v5536 = vsel %vm3713, %v5521, 0
    %v5538 = vsel %vm3713, %v5523, 0
    %v5540 = vsel %vm3713, %v5525, 0
    %v5542 = vsel %vm3713, %v5527, 0
    %5544 = vmatprep.subr.mxu0 0.0
    %5545 = vmatpush1.msra.mxu0 %v5365
    %5546 = vmatprep.subr.mxu0 0.0
    %5547 = vmatpush1.msra.mxu0 0.0
    %5548 = vmatprep.subr.mxu0 0.0
    %5549 = vmatpush1.msra.mxu0 0.0
    %5550 = vmatprep.subr.mxu0 0.0
    %5551 = vmatpush1.msra.mxu0 0.0
    %5552 = vmatprep.subr.mxu0 0.0
    %5553 = vmatpush1.msra.mxu0 0.0
    %5554 = vmatprep.subr.mxu0 0.0
    %5555 = vmatpush1.msra.mxu0 0.0
    %5556 = vmatprep.subr.mxu0 0.0
    %5557 = vmatpush1.msra.mxu0 0.0
    %5558 = vmatprep.subr.mxu0 0.0
    %5559 = vmatpush1.msra.mxu0 0.0
    %5560 = vmatprep.subr.mxu0 0.0
    %5561 = vmatpush1.msra.mxu0 0.0
    %5562 = vmatprep.subr.mxu0 0.0
    %5563 = vmatpush1.msra.mxu0 0.0
    %5564 = vmatprep.subr.mxu0 0.0
    %5565 = vmatpush1.msra.mxu0 0.0
    %5566 = vmatprep.subr.mxu0 0.0
    %5567 = vmatpush1.msra.mxu0 0.0
    %5568 = vmatprep.subr.mxu0 0.0
    %5569 = vmatpush1.msra.mxu0 0.0
    %5570 = vmatprep.subr.mxu0 0.0
    %5571 = vmatpush1.msra.mxu0 0.0
    %5572 = vmatprep.subr.mxu0 0.0
    %5573 = vmatpush1.msra.mxu0 0.0
    %5574 = vmatprep.subr.mxu0 0.0
    %5575 = vmatpush1.msra.mxu0 0.0
    %5576 = vmatprep.subr.mxu0 0.0
    %5577 = vmatpush1.msra.mxu0 0.0
    %5578 = vmatprep.subr.mxu0 0.0
    %5579 = vmatpush1.msra.mxu0 0.0
    %5580 = vmatprep.subr.mxu0 0.0
    %5581 = vmatpush1.msra.mxu0 0.0
    %5582 = vmatprep.subr.mxu0 0.0
    %5583 = vmatpush1.msra.mxu0 0.0
    %5584 = vmatprep.subr.mxu0 0.0
    %5585 = vmatpush1.msra.mxu0 0.0
    %5586 = vmatprep.subr.mxu0 0.0
    %5587 = vmatpush1.msra.mxu0 0.0
    %5588 = vmatprep.subr.mxu0 0.0
    %5589 = vmatpush1.msra.mxu0 0.0
    %5590 = vmatprep.subr.mxu0 0.0
    %5591 = vmatpush1.msra.mxu0 0.0
    %5592 = vmatprep.subr.mxu0 0.0
    %5593 = vmatpush1.msra.mxu0 0.0
    %5594 = vmatprep.subr.mxu0 0.0
    %5595 = vmatpush1.msra.mxu0 0.0
    %5596 = vmatprep.subr.mxu0 0.0
    %5597 = vmatpush1.msra.mxu0 0.0
    %5598 = vmatprep.subr.mxu0 0.0
    %5599 = vmatpush1.msra.mxu0 0.0
    %5600 = vmatprep.subr.mxu0 0.0
    %5601 = vmatpush1.msra.mxu0 0.0
    %5602 = vmatprep.subr.mxu0 0.0
    %5603 = vmatpush1.msra.mxu0 0.0
    %5604 = vmatprep.subr.mxu0 0.0
    %5605 = vmatpush1.msra.mxu0 0.0
    %5606 = vmatprep.subr.mxu0 0.0
    %5607 = vmatpush1.msra.mxu0 0.0
    %5608 = vmatprep.mubr.f32.mxu0 0.0
    %5609 = vmatmul.mubr.f32.gmra.mrb[0].mxu0 %v5528
    %v5610 = vpop.f32.mrb[0].mxu0
    %v5611 = vadd.f32 0.0, %v5610
    %v5612 = vpop.f32.mrb[0].mxu0
    %5613 = vmatprep.mubr.f32.mxu0 0.0
    %5614 = vmatmul.mubr.f32.gmra.mrb[0].mxu0 %v5530
    %v5615 = vpop.f32.mrb[0].mxu0
    %v5616 = vadd.f32 0.0, %v5615
    %v5617 = vpop.f32.mrb[0].mxu0
    %5618 = vmatprep.mubr.f32.mxu0 0.0
    %5619 = vmatmul.mubr.f32.gmra.mrb[0].mxu0 %v5532
    %v5620 = vpop.f32.mrb[0].mxu0
    %v5621 = vadd.f32 0.0, %v5620
    %v5622 = vpop.f32.mrb[0].mxu0
    %5623 = vmatprep.mubr.f32.mxu0 0.0
    %5624 = vmatmul.mubr.f32.gmra.mrb[0].mxu0 %v5534
    %v5625 = vpop.f32.mrb[0].mxu0
    %v5626 = vadd.f32 0.0, %v5625
    %v5627 = vpop.f32.mrb[0].mxu0
    %5628 = vmatprep.mubr.f32.mxu0 0.0
    %5629 = vmatmul.mubr.f32.gmra.mrb[0].mxu0 %v5536
    %v5630 = vpop.f32.mrb[0].mxu0
    %v5631 = vadd.f32 0.0, %v5630
    %v5632 = vpop.f32.mrb[0].mxu0
    %5633 = vmatprep.mubr.f32.mxu0 0.0
    %5634 = vmatmul.mubr.f32.gmra.mrb[0].mxu0 %v5538
    %v5635 = vpop.f32.mrb[0].mxu0
    %v5636 = vadd.f32 0.0, %v5635
    %v5637 = vpop.f32.mrb[0].mxu0
    %5638 = vmatprep.mubr.f32.mxu0 0.0
    %5639 = vmatmul.mubr.f32.gmra.mrb[0].mxu0 %v5540
    %v5640 = vpop.f32.mrb[0].mxu0
    %v5641 = vadd.f32 0.0, %v5640
    %v5642 = vpop.f32.mrb[0].mxu0
    %5643 = vmatprep.mubr.f32.mxu0 0.0
    %5644 = vmatmul.mubr.f32.gmra.mrb[0].mxu0 %v5542
    %v5645 = vpop.f32.mrb[0].mxu0
    %v5646 = vadd.f32 0.0, %v5645
    %v5647 = vpop.f32.mrb[0].mxu0
    %5648 = vdwg.mxu0
    %5657 = vrot.lane.b32.xlu0 %v5611, 10
    %v5658 = vpop.permute.xlu0 %5657
    %5659 = vrot.lane.b32.xlu0 %v5616, 10
    %v5660 = vpop.permute.xlu0 %5659
    %5661 = vrot.lane.b32.xlu0 %v5621, 10
    %v5662 = vpop.permute.xlu0 %5661
    %5663 = vrot.lane.b32.xlu0 %v5626, 10
    %v5664 = vpop.permute.xlu0 %5663
    %5665 = vrot.lane.b32.xlu0 %v5631, 10
    %v5666 = vpop.permute.xlu0 %5665
    %5667 = vrot.lane.b32.xlu0 %v5636, 10
    %v5668 = vpop.permute.xlu0 %5667
    %5669 = vrot.lane.b32.xlu0 %v5641, 10
    %v5670 = vpop.permute.xlu0 %5669
    %5671 = vrot.lane.b32.xlu0 %v5646, 10
    %v5672 = vpop.permute.xlu0 %5671
    %5681 = vst.msk [vmem:[#allocation6] sm:$0xff] %vm3407, %v5658
    %5682 = vst.msk [vmem:[#allocation6 + $0x8] sm:$0xff] %vm3407, %v5660
    %5683 = vst.msk [vmem:[#allocation6 + $0x10] sm:$0xff] %vm3407, %v5662
    %5684 = vst.msk [vmem:[#allocation6 + $0x18] sm:$0xff] %vm3407, %v5664
    %5685 = vst.msk [vmem:[#allocation6 + $0x20] sm:$0xff] %vm3407, %v5666
    %5686 = vst.msk [vmem:[#allocation6 + $0x28] sm:$0xff] %vm3407, %v5668
    %5687 = vst.msk [vmem:[#allocation6 + $0x30] sm:$0xff] %vm3407, %v5670
    %5688 = vst.msk [vmem:[#allocation6 + $0x38] sm:$0xff] %vm3407, %v5672
    %v5689 = vld [vmem:[#allocation6] sm:$0xff]
    %v5690 = vld [vmem:[#allocation6 + $0x8] sm:$0xff]
    %v5691 = vld [vmem:[#allocation6 + $0x10] sm:$0xff]
    %v5692 = vld [vmem:[#allocation6 + $0x18] sm:$0xff]
    %v5693 = vld [vmem:[#allocation6 + $0x20] sm:$0xff]
    %v5694 = vld [vmem:[#allocation6 + $0x28] sm:$0xff]
    %v5695 = vld [vmem:[#allocation6 + $0x30] sm:$0xff]
    %v5696 = vld [vmem:[#allocation6 + $0x38] sm:$0xff]
    %v5697 = vld [vmem:[#allocation6 + $0x40] sm:$0xff]
    %v5698 = vld [vmem:[#allocation6 + $0x48] sm:$0xff]
    %v5699 = vld [vmem:[#allocation6 + $0x50] sm:$0xff]
    %v5700 = vld [vmem:[#allocation6 + $0x58] sm:$0xff]
    %v5701 = vld [vmem:[#allocation6 + $0x60] sm:$0xff]
    %v5702 = vld [vmem:[#allocation6 + $0x68] sm:$0xff]
    %v5703 = vld [vmem:[#allocation6 + $0x70] sm:$0xff]
    %v5704 = vld [vmem:[#allocation6 + $0x78] sm:$0xff]
    %5721 = vrot.lane.b32.xlu0 %v5689, 124
    %v5722 = vpop.permute.xlu0 %5721
    %5723 = vrot.lane.b32.xlu0 %v5690, 124
    %v5724 = vpop.permute.xlu0 %5723
    %5725 = vrot.lane.b32.xlu0 %v5691, 124
    %v5726 = vpop.permute.xlu0 %5725
    %5727 = vrot.lane.b32.xlu0 %v5692, 124
    %v5728 = vpop.permute.xlu0 %5727
    %5729 = vrot.lane.b32.xlu0 %v5693, 124
    %v5730 = vpop.permute.xlu0 %5729
    %5731 = vrot.lane.b32.xlu0 %v5694, 124
    %v5732 = vpop.permute.xlu0 %5731
    %5733 = vrot.lane.b32.xlu0 %v5695, 124
    %v5734 = vpop.permute.xlu0 %5733
    %5735 = vrot.lane.b32.xlu0 %v5696, 124
    %v5736 = vpop.permute.xlu0 %5735
    %5737 = vrot.lane.b32.xlu0 %v5697, 124
    %v5738 = vpop.permute.xlu0 %5737
    %5739 = vrot.lane.b32.xlu0 %v5698, 124
    %v5740 = vpop.permute.xlu0 %5739
    %5741 = vrot.lane.b32.xlu0 %v5699, 124
    %v5742 = vpop.permute.xlu0 %5741
    %5743 = vrot.lane.b32.xlu0 %v5700, 124
    %v5744 = vpop.permute.xlu0 %5743
    %5745 = vrot.lane.b32.xlu0 %v5701, 124
    %v5746 = vpop.permute.xlu0 %5745
    %5747 = vrot.lane.b32.xlu0 %v5702, 124
    %v5748 = vpop.permute.xlu0 %5747
    %5749 = vrot.lane.b32.xlu0 %v5703, 124
    %v5750 = vpop.permute.xlu0 %5749
    %5751 = vrot.lane.b32.xlu0 %v5704, 124
    %v5752 = vpop.permute.xlu0 %5751
    %v5769 = vsel %vm2036, %v5689, %v5722
    %v5770 = vsel %vm2036, %v5690, %v5724
    %v5771 = vsel %vm2036, %v5691, %v5726
    %v5772 = vsel %vm2036, %v5692, %v5728
    %v5773 = vsel %vm2036, %v5693, %v5730
    %v5774 = vsel %vm2036, %v5694, %v5732
    %v5775 = vsel %vm2036, %v5695, %v5734
    %v5776 = vsel %vm2036, %v5696, %v5736
    %v5777 = vsel %vm2036, %v5697, %v5738
    %v5778 = vsel %vm2036, %v5698, %v5740
    %v5779 = vsel %vm2036, %v5699, %v5742
    %v5780 = vsel %vm2036, %v5700, %v5744
    %v5781 = vsel %vm2036, %v5701, %v5746
    %v5782 = vsel %vm2036, %v5702, %v5748
    %v5783 = vsel %vm2036, %v5703, %v5750
    %v5784 = vsel %vm2036, %v5704, %v5752
    %5785 = vrot.lane.b32.xlu0 %v5689, 127
    %v5786 = vpop.permute.xlu0 %5785
    %5787 = vrot.lane.b32.xlu0 %v5690, 127
    %v5788 = vpop.permute.xlu0 %5787
    %5789 = vrot.lane.b32.xlu0 %v5691, 127
    %v5790 = vpop.permute.xlu0 %5789
    %5791 = vrot.lane.b32.xlu0 %v5692, 127
    %v5792 = vpop.permute.xlu0 %5791
    %5793 = vrot.lane.b32.xlu0 %v5693, 127
    %v5794 = vpop.permute.xlu0 %5793
    %5795 = vrot.lane.b32.xlu0 %v5694, 127
    %v5796 = vpop.permute.xlu0 %5795
    %5797 = vrot.lane.b32.xlu0 %v5695, 127
    %v5798 = vpop.permute.xlu0 %5797
    %5799 = vrot.lane.b32.xlu0 %v5696, 127
    %v5800 = vpop.permute.xlu0 %5799
    %5801 = vrot.lane.b32.xlu0 %v5697, 127
    %v5802 = vpop.permute.xlu0 %5801
    %5803 = vrot.lane.b32.xlu0 %v5698, 127
    %v5804 = vpop.permute.xlu0 %5803
    %5805 = vrot.lane.b32.xlu0 %v5699, 127
    %v5806 = vpop.permute.xlu0 %5805
    %5807 = vrot.lane.b32.xlu0 %v5700, 127
    %v5808 = vpop.permute.xlu0 %5807
    %5809 = vrot.lane.b32.xlu0 %v5701, 127
    %v5810 = vpop.permute.xlu0 %5809
    %5811 = vrot.lane.b32.xlu0 %v5702, 127
    %v5812 = vpop.permute.xlu0 %5811
    %5813 = vrot.lane.b32.xlu0 %v5703, 127
    %v5814 = vpop.permute.xlu0 %5813
    %5815 = vrot.lane.b32.xlu0 %v5704, 127
    %v5816 = vpop.permute.xlu0 %5815
    %5833 = vrot.lane.b32.xlu0 %v5689, 123
    %v5834 = vpop.permute.xlu0 %5833
    %5835 = vrot.lane.b32.xlu0 %v5690, 123
    %v5836 = vpop.permute.xlu0 %5835
    %5837 = vrot.lane.b32.xlu0 %v5691, 123
    %v5838 = vpop.permute.xlu0 %5837
    %5839 = vrot.lane.b32.xlu0 %v5692, 123
    %v5840 = vpop.permute.xlu0 %5839
    %5841 = vrot.lane.b32.xlu0 %v5693, 123
    %v5842 = vpop.permute.xlu0 %5841
    %5843 = vrot.lane.b32.xlu0 %v5694, 123
    %v5844 = vpop.permute.xlu0 %5843
    %5845 = vrot.lane.b32.xlu0 %v5695, 123
    %v5846 = vpop.permute.xlu0 %5845
    %5847 = vrot.lane.b32.xlu0 %v5696, 123
    %v5848 = vpop.permute.xlu0 %5847
    %5849 = vrot.lane.b32.xlu0 %v5697, 123
    %v5850 = vpop.permute.xlu0 %5849
    %5851 = vrot.lane.b32.xlu0 %v5698, 123
    %v5852 = vpop.permute.xlu0 %5851
    %5853 = vrot.lane.b32.xlu0 %v5699, 123
    %v5854 = vpop.permute.xlu0 %5853
    %5855 = vrot.lane.b32.xlu0 %v5700, 123
    %v5856 = vpop.permute.xlu0 %5855
    %5857 = vrot.lane.b32.xlu0 %v5701, 123
    %v5858 = vpop.permute.xlu0 %5857
    %5859 = vrot.lane.b32.xlu0 %v5702, 123
    %v5860 = vpop.permute.xlu0 %5859
    %5861 = vrot.lane.b32.xlu0 %v5703, 123
    %v5862 = vpop.permute.xlu0 %5861
    %5863 = vrot.lane.b32.xlu0 %v5704, 123
    %v5864 = vpop.permute.xlu0 %5863
    %v5881 = vsel %vm2036, %v5786, %v5834
    %v5882 = vsel %vm2036, %v5788, %v5836
    %v5883 = vsel %vm2036, %v5790, %v5838
    %v5884 = vsel %vm2036, %v5792, %v5840
    %v5885 = vsel %vm2036, %v5794, %v5842
    %v5886 = vsel %vm2036, %v5796, %v5844
    %v5887 = vsel %vm2036, %v5798, %v5846
    %v5888 = vsel %vm2036, %v5800, %v5848
    %v5889 = vsel %vm2036, %v5802, %v5850
    %v5890 = vsel %vm2036, %v5804, %v5852
    %v5891 = vsel %vm2036, %v5806, %v5854
    %v5892 = vsel %vm2036, %v5808, %v5856
    %v5893 = vsel %vm2036, %v5810, %v5858
    %v5894 = vsel %vm2036, %v5812, %v5860
    %v5895 = vsel %vm2036, %v5814, %v5862
    %v5896 = vsel %vm2036, %v5816, %v5864
    %5897 = vrot.lane.b32.xlu0 %v5689, 126
    %v5898 = vpop.permute.xlu0 %5897
    %5899 = vrot.lane.b32.xlu0 %v5690, 126
    %v5900 = vpop.permute.xlu0 %5899
    %5901 = vrot.lane.b32.xlu0 %v5691, 126
    %v5902 = vpop.permute.xlu0 %5901
    %5903 = vrot.lane.b32.xlu0 %v5692, 126
    %v5904 = vpop.permute.xlu0 %5903
    %5905 = vrot.lane.b32.xlu0 %v5693, 126
    %v5906 = vpop.permute.xlu0 %5905
    %5907 = vrot.lane.b32.xlu0 %v5694, 126
    %v5908 = vpop.permute.xlu0 %5907
    %5909 = vrot.lane.b32.xlu0 %v5695, 126
    %v5910 = vpop.permute.xlu0 %5909
    %5911 = vrot.lane.b32.xlu0 %v5696, 126
    %v5912 = vpop.permute.xlu0 %5911
    %5913 = vrot.lane.b32.xlu0 %v5697, 126
    %v5914 = vpop.permute.xlu0 %5913
    %5915 = vrot.lane.b32.xlu0 %v5698, 126
    %v5916 = vpop.permute.xlu0 %5915
    %5917 = vrot.lane.b32.xlu0 %v5699, 126
    %v5918 = vpop.permute.xlu0 %5917
    %5919 = vrot.lane.b32.xlu0 %v5700, 126
    %v5920 = vpop.permute.xlu0 %5919
    %5921 = vrot.lane.b32.xlu0 %v5701, 126
    %v5922 = vpop.permute.xlu0 %5921
    %5923 = vrot.lane.b32.xlu0 %v5702, 126
    %v5924 = vpop.permute.xlu0 %5923
    %5925 = vrot.lane.b32.xlu0 %v5703, 126
    %v5926 = vpop.permute.xlu0 %5925
    %5927 = vrot.lane.b32.xlu0 %v5704, 126
    %v5928 = vpop.permute.xlu0 %5927
    %5945 = vrot.lane.b32.xlu0 %v5689, 122
    %v5946 = vpop.permute.xlu0 %5945
    %5947 = vrot.lane.b32.xlu0 %v5690, 122
    %v5948 = vpop.permute.xlu0 %5947
    %5949 = vrot.lane.b32.xlu0 %v5691, 122
    %v5950 = vpop.permute.xlu0 %5949
    %5951 = vrot.lane.b32.xlu0 %v5692, 122
    %v5952 = vpop.permute.xlu0 %5951
    %5953 = vrot.lane.b32.xlu0 %v5693, 122
    %v5954 = vpop.permute.xlu0 %5953
    %5955 = vrot.lane.b32.xlu0 %v5694, 122
    %v5956 = vpop.permute.xlu0 %5955
    %5957 = vrot.lane.b32.xlu0 %v5695, 122
    %v5958 = vpop.permute.xlu0 %5957
    %5959 = vrot.lane.b32.xlu0 %v5696, 122
    %v5960 = vpop.permute.xlu0 %5959
    %5961 = vrot.lane.b32.xlu0 %v5697, 122
    %v5962 = vpop.permute.xlu0 %5961
    %5963 = vrot.lane.b32.xlu0 %v5698, 122
    %v5964 = vpop.permute.xlu0 %5963
    %5965 = vrot.lane.b32.xlu0 %v5699, 122
    %v5966 = vpop.permute.xlu0 %5965
    %5967 = vrot.lane.b32.xlu0 %v5700, 122
    %v5968 = vpop.permute.xlu0 %5967
    %5969 = vrot.lane.b32.xlu0 %v5701, 122
    %v5970 = vpop.permute.xlu0 %5969
    %5971 = vrot.lane.b32.xlu0 %v5702, 122
    %v5972 = vpop.permute.xlu0 %5971
    %5973 = vrot.lane.b32.xlu0 %v5703, 122
    %v5974 = vpop.permute.xlu0 %5973
    %5975 = vrot.lane.b32.xlu0 %v5704, 122
    %v5976 = vpop.permute.xlu0 %5975
    %v5993 = vsel %vm2036, %v5898, %v5946
    %v5994 = vsel %vm2036, %v5900, %v5948
    %v5995 = vsel %vm2036, %v5902, %v5950
    %v5996 = vsel %vm2036, %v5904, %v5952
    %v5997 = vsel %vm2036, %v5906, %v5954
    %v5998 = vsel %vm2036, %v5908, %v5956
    %v5999 = vsel %vm2036, %v5910, %v5958
    %v6000 = vsel %vm2036, %v5912, %v5960
    %v6001 = vsel %vm2036, %v5914, %v5962
    %v6002 = vsel %vm2036, %v5916, %v5964
    %v6003 = vsel %vm2036, %v5918, %v5966
    %v6004 = vsel %vm2036, %v5920, %v5968
    %v6005 = vsel %vm2036, %v5922, %v5970
    %v6006 = vsel %vm2036, %v5924, %v5972
    %v6007 = vsel %vm2036, %v5926, %v5974
    %v6008 = vsel %vm2036, %v5928, %v5976
    %6009 = vrot.lane.b32.xlu0 %v5689, 125
    %v6010 = vpop.permute.xlu0 %6009
    %6011 = vrot.lane.b32.xlu0 %v5690, 125
    %v6012 = vpop.permute.xlu0 %6011
    %6013 = vrot.lane.b32.xlu0 %v5691, 125
    %v6014 = vpop.permute.xlu0 %6013
    %6015 = vrot.lane.b32.xlu0 %v5692, 125
    %v6016 = vpop.permute.xlu0 %6015
    %6017 = vrot.lane.b32.xlu0 %v5693, 125
    %v6018 = vpop.permute.xlu0 %6017
    %6019 = vrot.lane.b32.xlu0 %v5694, 125
    %v6020 = vpop.permute.xlu0 %6019
    %6021 = vrot.lane.b32.xlu0 %v5695, 125
    %v6022 = vpop.permute.xlu0 %6021
    %6023 = vrot.lane.b32.xlu0 %v5696, 125
    %v6024 = vpop.permute.xlu0 %6023
    %6025 = vrot.lane.b32.xlu0 %v5697, 125
    %v6026 = vpop.permute.xlu0 %6025
    %6027 = vrot.lane.b32.xlu0 %v5698, 125
    %v6028 = vpop.permute.xlu0 %6027
    %6029 = vrot.lane.b32.xlu0 %v5699, 125
    %v6030 = vpop.permute.xlu0 %6029
    %6031 = vrot.lane.b32.xlu0 %v5700, 125
    %v6032 = vpop.permute.xlu0 %6031
    %6033 = vrot.lane.b32.xlu0 %v5701, 125
    %v6034 = vpop.permute.xlu0 %6033
    %6035 = vrot.lane.b32.xlu0 %v5702, 125
    %v6036 = vpop.permute.xlu0 %6035
    %6037 = vrot.lane.b32.xlu0 %v5703, 125
    %v6038 = vpop.permute.xlu0 %6037
    %6039 = vrot.lane.b32.xlu0 %v5704, 125
    %v6040 = vpop.permute.xlu0 %6039
    %6057 = vrot.lane.b32.xlu0 %v5689, 121
    %v6058 = vpop.permute.xlu0 %6057
    %6059 = vrot.lane.b32.xlu0 %v5690, 121
    %v6060 = vpop.permute.xlu0 %6059
    %6061 = vrot.lane.b32.xlu0 %v5691, 121
    %v6062 = vpop.permute.xlu0 %6061
    %6063 = vrot.lane.b32.xlu0 %v5692, 121
    %v6064 = vpop.permute.xlu0 %6063
    %6065 = vrot.lane.b32.xlu0 %v5693, 121
    %v6066 = vpop.permute.xlu0 %6065
    %6067 = vrot.lane.b32.xlu0 %v5694, 121
    %v6068 = vpop.permute.xlu0 %6067
    %6069 = vrot.lane.b32.xlu0 %v5695, 121
    %v6070 = vpop.permute.xlu0 %6069
    %6071 = vrot.lane.b32.xlu0 %v5696, 121
    %v6072 = vpop.permute.xlu0 %6071
    %6073 = vrot.lane.b32.xlu0 %v5697, 121
    %v6074 = vpop.permute.xlu0 %6073
    %6075 = vrot.lane.b32.xlu0 %v5698, 121
    %v6076 = vpop.permute.xlu0 %6075
    %6077 = vrot.lane.b32.xlu0 %v5699, 121
    %v6078 = vpop.permute.xlu0 %6077
    %6079 = vrot.lane.b32.xlu0 %v5700, 121
    %v6080 = vpop.permute.xlu0 %6079
    %6081 = vrot.lane.b32.xlu0 %v5701, 121
    %v6082 = vpop.permute.xlu0 %6081
    %6083 = vrot.lane.b32.xlu0 %v5702, 121
    %v6084 = vpop.permute.xlu0 %6083
    %6085 = vrot.lane.b32.xlu0 %v5703, 121
    %v6086 = vpop.permute.xlu0 %6085
    %6087 = vrot.lane.b32.xlu0 %v5704, 121
    %v6088 = vpop.permute.xlu0 %6087
    %v6105 = vsel %vm2036, %v6010, %v6058
    %v6106 = vsel %vm2036, %v6012, %v6060
    %v6107 = vsel %vm2036, %v6014, %v6062
    %v6108 = vsel %vm2036, %v6016, %v6064
    %v6109 = vsel %vm2036, %v6018, %v6066
    %v6110 = vsel %vm2036, %v6020, %v6068
    %v6111 = vsel %vm2036, %v6022, %v6070
    %v6112 = vsel %vm2036, %v6024, %v6072
    %v6113 = vsel %vm2036, %v6026, %v6074
    %v6114 = vsel %vm2036, %v6028, %v6076
    %v6115 = vsel %vm2036, %v6030, %v6078
    %v6116 = vsel %vm2036, %v6032, %v6080
    %v6117 = vsel %vm2036, %v6034, %v6082
    %v6118 = vsel %vm2036, %v6036, %v6084
    %v6119 = vsel %vm2036, %v6038, %v6086
    %v6120 = vsel %vm2036, %v6040, %v6088
    %6121 = vrot.lane.b32.xlu0 %v5689, 120
    %v6122 = vpop.permute.xlu0 %6121
    %6123 = vrot.lane.b32.xlu0 %v5690, 120
    %v6124 = vpop.permute.xlu0 %6123
    %6125 = vrot.lane.b32.xlu0 %v5691, 120
    %v6126 = vpop.permute.xlu0 %6125
    %6127 = vrot.lane.b32.xlu0 %v5692, 120
    %v6128 = vpop.permute.xlu0 %6127
    %6129 = vrot.lane.b32.xlu0 %v5693, 120
    %v6130 = vpop.permute.xlu0 %6129
    %6131 = vrot.lane.b32.xlu0 %v5694, 120
    %v6132 = vpop.permute.xlu0 %6131
    %6133 = vrot.lane.b32.xlu0 %v5695, 120
    %v6134 = vpop.permute.xlu0 %6133
    %6135 = vrot.lane.b32.xlu0 %v5696, 120
    %v6136 = vpop.permute.xlu0 %6135
    %6137 = vrot.lane.b32.xlu0 %v5697, 120
    %v6138 = vpop.permute.xlu0 %6137
    %6139 = vrot.lane.b32.xlu0 %v5698, 120
    %v6140 = vpop.permute.xlu0 %6139
    %6141 = vrot.lane.b32.xlu0 %v5699, 120
    %v6142 = vpop.permute.xlu0 %6141
    %6143 = vrot.lane.b32.xlu0 %v5700, 120
    %v6144 = vpop.permute.xlu0 %6143
    %6145 = vrot.lane.b32.xlu0 %v5701, 120
    %v6146 = vpop.permute.xlu0 %6145
    %6147 = vrot.lane.b32.xlu0 %v5702, 120
    %v6148 = vpop.permute.xlu0 %6147
    %6149 = vrot.lane.b32.xlu0 %v5703, 120
    %v6150 = vpop.permute.xlu0 %6149
    %6151 = vrot.lane.b32.xlu0 %v5704, 120
    %v6152 = vpop.permute.xlu0 %6151
    %v6169 = vsel %vm2036, %v5722, %v6122
    %v6170 = vsel %vm2036, %v5724, %v6124
    %v6171 = vsel %vm2036, %v5726, %v6126
    %v6172 = vsel %vm2036, %v5728, %v6128
    %v6173 = vsel %vm2036, %v5730, %v6130
    %v6174 = vsel %vm2036, %v5732, %v6132
    %v6175 = vsel %vm2036, %v5734, %v6134
    %v6176 = vsel %vm2036, %v5736, %v6136
    %v6177 = vsel %vm2036, %v5738, %v6138
    %v6178 = vsel %vm2036, %v5740, %v6140
    %v6179 = vsel %vm2036, %v5742, %v6142
    %v6180 = vsel %vm2036, %v5744, %v6144
    %v6181 = vsel %vm2036, %v5746, %v6146
    %v6182 = vsel %vm2036, %v5748, %v6148
    %v6183 = vsel %vm2036, %v5750, %v6150
    %v6184 = vsel %vm2036, %v5752, %v6152
    %v6185 = vld [vmem:[#allocation15] sm:$0xff]
    %v6186 = vld [vmem:[#allocation15 + $0x8] sm:$0xff]
    %v6187 = vld [vmem:[#allocation15 + $0x10] sm:$0xf]
    %v6188 = vld [vmem:[#allocation15 + $0x14] sm:$0xff]
    %v6189 = vld [vmem:[#allocation15 + $0x1c] sm:$0xff]
    %v6190 = vld [vmem:[#allocation15 + $0x24] sm:$0xf]
    %v6191 = vld [vmem:[#allocation15 + $0x28] sm:$0xff]
    %v6192 = vld [vmem:[#allocation15 + $0x30] sm:$0xff]
    %v6193 = vld [vmem:[#allocation15 + $0x38] sm:$0xf]
    %v6194 = vld [vmem:[#allocation15 + $0x3c] sm:$0xff]
    %v6195 = vld [vmem:[#allocation15 + $0x44] sm:$0xff]
    %v6196 = vld [vmem:[#allocation15 + $0x4c] sm:$0xf]
    %v6197 = vld [vmem:[#allocation15 + $0x50] sm:$0xff]
    %v6198 = vld [vmem:[#allocation15 + $0x58] sm:$0xff]
    %v6199 = vld [vmem:[#allocation15 + $0x60] sm:$0xf]
    %v6200 = vld [vmem:[#allocation15 + $0x64] sm:$0xff]
    %v6201 = vld [vmem:[#allocation15 + $0x6c] sm:$0xff]
    %v6202 = vld [vmem:[#allocation15 + $0x74] sm:$0xf]
    %v6203 = vld [vmem:[#allocation15 + $0x78] sm:$0xff]
    %v6204 = vld [vmem:[#allocation15 + $0x80] sm:$0xff]
    %v6205 = vld [vmem:[#allocation15 + $0x88] sm:$0xf]
    %v6206 = vld [vmem:[#allocation15 + $0x8c] sm:$0xff]
    %v6207 = vld [vmem:[#allocation15 + $0x94] sm:$0xff]
    %v6208 = vld [vmem:[#allocation15 + $0x9c] sm:$0xf]
    %v6209 = vpack.c.bf16 %v5770, %v5769
    %v6210 = vpack.c.bf16 %v5772, %v5771
    %v6211 = vpack.c.bf16 %v5774, %v5773
    %v6212 = vpack.c.bf16 %v5776, %v5775
    %v6213 = vpack.c.bf16 %v5778, %v5777
    %v6214 = vpack.c.bf16 %v5780, %v5779
    %v6215 = vpack.c.bf16 %v5782, %v5781
    %v6216 = vpack.c.bf16 %v5784, %v5783
    %v6217 = vpack.c.bf16 %v5882, %v5881
    %v6218 = vpack.c.bf16 %v5884, %v5883
    %v6219 = vpack.c.bf16 %v5886, %v5885
    %v6220 = vpack.c.bf16 %v5888, %v5887
    %v6221 = vpack.c.bf16 %v5890, %v5889
    %v6222 = vpack.c.bf16 %v5892, %v5891
    %v6223 = vpack.c.bf16 %v5894, %v5893
    %v6224 = vpack.c.bf16 %v5896, %v5895
    %v6225 = vpack.c.bf16 %v5994, %v5993
    %v6226 = vpack.c.bf16 %v5996, %v5995
    %v6227 = vpack.c.bf16 %v5998, %v5997
    %v6228 = vpack.c.bf16 %v6000, %v5999
    %v6229 = vpack.c.bf16 %v6002, %v6001
    %v6230 = vpack.c.bf16 %v6004, %v6003
    %v6231 = vpack.c.bf16 %v6006, %v6005
    %v6232 = vpack.c.bf16 %v6008, %v6007
    %v6233 = vpack.c.bf16 %v6106, %v6105
    %v6234 = vpack.c.bf16 %v6108, %v6107
    %v6235 = vpack.c.bf16 %v6110, %v6109
    %v6236 = vpack.c.bf16 %v6112, %v6111
    %v6237 = vpack.c.bf16 %v6114, %v6113
    %v6238 = vpack.c.bf16 %v6116, %v6115
    %v6239 = vpack.c.bf16 %v6118, %v6117
    %v6240 = vpack.c.bf16 %v6120, %v6119
    %v6241 = vpack.c.bf16 %v6170, %v6169
    %v6242 = vpack.c.bf16 %v6172, %v6171
    %v6243 = vpack.c.bf16 %v6174, %v6173
    %v6244 = vpack.c.bf16 %v6176, %v6175
    %v6245 = vpack.c.bf16 %v6178, %v6177
    %v6246 = vpack.c.bf16 %v6180, %v6179
    %v6247 = vpack.c.bf16 %v6182, %v6181
    %v6248 = vpack.c.bf16 %v6184, %v6183
    %v6249 = vld [vmem:[%s10] sm:$0xff]
    %v6250 = vld [vmem:[%s10 + $0x8] sm:$0xff]
    %v6251 = vld [vmem:[%s10 + $0x10] sm:$0xff]
    %v6252 = vld [vmem:[%s10 + $0x18] sm:$0xff]
    %v6253 = vld [vmem:[%s10 + $0x20] sm:$0xff]
    %v6254 = vld [vmem:[%s10 + $0x28] sm:$0xff]
    %v6255 = vld [vmem:[%s10 + $0x30] sm:$0xff]
    %v6256 = vld [vmem:[%s10 + $0x38] sm:$0xff]
    %6258 = vset.pattern.permute.xlu0 0
    %6259 = vperm.xlu0 %6258, %v6249
    %v6260 = vpop.permute.xlu0 %6259
    %6263 = vset.pattern.permute.xlu0 0
    %6264 = vperm.xlu0 %6263, %v6250
    %v6265 = vpop.permute.xlu0 %6264
    %6268 = vset.pattern.permute.xlu0 0
    %6269 = vperm.xlu0 %6268, %v6251
    %v6270 = vpop.permute.xlu0 %6269
    %6273 = vset.pattern.permute.xlu0 0
    %6274 = vperm.xlu0 %6273, %v6252
    %v6275 = vpop.permute.xlu0 %6274
    %6278 = vset.pattern.permute.xlu0 0
    %6279 = vperm.xlu0 %6278, %v6253
    %v6280 = vpop.permute.xlu0 %6279
    %6283 = vset.pattern.permute.xlu0 0
    %6284 = vperm.xlu0 %6283, %v6254
    %v6285 = vpop.permute.xlu0 %6284
    %6288 = vset.pattern.permute.xlu0 0
    %6289 = vperm.xlu0 %6288, %v6255
    %v6290 = vpop.permute.xlu0 %6289
    %6293 = vset.pattern.permute.xlu0 0
    %6294 = vperm.xlu0 %6293, %v6256
    %v6295 = vpop.permute.xlu0 %6294
    %v6321 = vunpack.c.l.b16 %v6185
    %v6322 = vunpack.c.h.b16 %v6185
    %v6323 = vunpack.c.l.b16 %v6186
    %v6324 = vunpack.c.h.b16 %v6186
    %v6325 = vunpack.c.l.b16 %v6187
    %v6326 = vunpack.c.l.b16 %v6188
    %v6327 = vunpack.c.h.b16 %v6188
    %v6328 = vunpack.c.l.b16 %v6189
    %v6329 = vunpack.c.h.b16 %v6189
    %v6330 = vunpack.c.l.b16 %v6190
    %v6331 = vunpack.c.l.b16 %v6191
    %v6332 = vunpack.c.h.b16 %v6191
    %v6333 = vunpack.c.l.b16 %v6192
    %v6334 = vunpack.c.h.b16 %v6192
    %v6335 = vunpack.c.l.b16 %v6193
    %v6336 = vunpack.c.l.b16 %v6194
    %v6337 = vunpack.c.h.b16 %v6194
    %v6338 = vunpack.c.l.b16 %v6195
    %v6339 = vunpack.c.h.b16 %v6195
    %v6340 = vunpack.c.l.b16 %v6196
    %v6341 = vunpack.c.l.b16 %v6197
    %v6342 = vunpack.c.h.b16 %v6197
    %v6343 = vunpack.c.l.b16 %v6198
    %v6344 = vunpack.c.h.b16 %v6198
    %v6345 = vunpack.c.l.b16 %v6199
    %v6346 = vunpack.c.l.b16 %v6200
    %v6347 = vunpack.c.h.b16 %v6200
    %v6348 = vunpack.c.l.b16 %v6201
    %v6349 = vunpack.c.h.b16 %v6201
    %v6350 = vunpack.c.l.b16 %v6202
    %v6351 = vunpack.c.l.b16 %v6203
    %v6352 = vunpack.c.h.b16 %v6203
    %v6353 = vunpack.c.l.b16 %v6204
    %v6354 = vunpack.c.h.b16 %v6204
    %v6355 = vunpack.c.l.b16 %v6205
    %v6356 = vunpack.c.l.b16 %v6206
    %v6357 = vunpack.c.h.b16 %v6206
    %v6358 = vunpack.c.l.b16 %v6207
    %v6359 = vunpack.c.h.b16 %v6207
    %v6360 = vunpack.c.l.b16 %v6208
    %v6361 = vpack.c.b16 %v6326, %v6321
    %v6362 = vpack.c.b16 %v6327, %v6322
    %v6363 = vpack.c.b16 %v6328, %v6323
    %v6364 = vpack.c.b16 %v6329, %v6324
    %v6365 = vpack.c.b16 %v6330, %v6325
    %v6366 = vpack.c.b16 %v6336, %v6331
    %v6367 = vpack.c.b16 %v6337, %v6332
    %v6368 = vpack.c.b16 %v6338, %v6333
    %v6369 = vpack.c.b16 %v6339, %v6334
    %v6370 = vpack.c.b16 %v6340, %v6335
    %v6371 = vpack.c.b16 %v6346, %v6341
    %v6372 = vpack.c.b16 %v6347, %v6342
    %v6373 = vpack.c.b16 %v6348, %v6343
    %v6374 = vpack.c.b16 %v6349, %v6344
    %v6375 = vpack.c.b16 %v6350, %v6345
    %v6376 = vpack.c.b16 %v6356, %v6351
    %v6377 = vpack.c.b16 %v6357, %v6352
    %v6378 = vpack.c.b16 %v6358, %v6353
    %v6379 = vpack.c.b16 %v6359, %v6354
    %v6380 = vpack.c.b16 %v6360, %v6355
    %6401 = vmatprep.subr.bf16.mxu0 0
    %6402 = vmatpush1.bf16.msra.mxu0 %v6209
    %6403 = vmatprep.subr.bf16.mxu0 0
    %6404 = vmatpush1.bf16.msra.mxu0 %v6210
    %6405 = vmatprep.subr.bf16.mxu0 0
    %6406 = vmatpush1.bf16.msra.mxu0 %v6211
    %6407 = vmatprep.subr.bf16.mxu0 0
    %6408 = vmatpush1.bf16.msra.mxu0 %v6212
    %6409 = vmatprep.subr.bf16.mxu0 0
    %6410 = vmatpush1.bf16.msra.mxu0 %v6213
    %6411 = vmatprep.subr.bf16.mxu0 0
    %6412 = vmatpush1.bf16.msra.mxu0 %v6214
    %6413 = vmatprep.subr.bf16.mxu0 0
    %6414 = vmatpush1.bf16.msra.mxu0 %v6215
    %6415 = vmatprep.subr.bf16.mxu0 0
    %6416 = vmatpush1.bf16.msra.mxu0 %v6216
    %6417 = vmatprep.subr.bf16.mxu0 0
    %6418 = vmatpush1.bf16.msra.mxu0 %v6217
    %6419 = vmatprep.subr.bf16.mxu0 0
    %6420 = vmatpush1.bf16.msra.mxu0 %v6218
    %6421 = vmatprep.subr.bf16.mxu0 0
    %6422 = vmatpush1.bf16.msra.mxu0 %v6219
    %6423 = vmatprep.subr.bf16.mxu0 0
    %6424 = vmatpush1.bf16.msra.mxu0 %v6220
    %6425 = vmatprep.subr.bf16.mxu0 0
    %6426 = vmatpush1.bf16.msra.mxu0 %v6221
    %6427 = vmatprep.subr.bf16.mxu0 0
    %6428 = vmatpush1.bf16.msra.mxu0 %v6222
    %6429 = vmatprep.subr.bf16.mxu0 0
    %6430 = vmatpush1.bf16.msra.mxu0 %v6223
    %6431 = vmatprep.subr.bf16.mxu0 0
    %6432 = vmatpush1.bf16.msra.mxu0 %v6224
    %6433 = vmatprep.mubr.bf16.mxu0 %v6362
    %6434 = vmatmul.mubr.bf16.gmra.mrb[0].mxu0 %v6361
    %v6435 = vpop.f32.mrb[0].mxu0
    %v6436 = vadd.f32 %v6260, %v6435
    %v6437 = vpop.f32.mrb[0].mxu0
    %v6438 = vpop.f32.mrb[0].mxu0
    %v6439 = vadd.f32 %v6265, %v6438
    %v6440 = vpop.f32.mrb[0].mxu0
    %6441 = vmatprep.mubr.bf16.mxu0 %v6367
    %6442 = vmatmul.mubr.bf16.gmra.mrb[0].mxu0 %v6366
    %v6443 = vpop.f32.mrb[0].mxu0
    %v6444 = vadd.f32 %v6270, %v6443
    %v6445 = vpop.f32.mrb[0].mxu0
    %v6446 = vpop.f32.mrb[0].mxu0
    %v6447 = vadd.f32 %v6275, %v6446
    %v6448 = vpop.f32.mrb[0].mxu0
    %6449 = vmatprep.mubr.bf16.mxu0 %v6372
    %6450 = vmatmul.mubr.bf16.gmra.mrb[0].mxu0 %v6371
    %v6451 = vpop.f32.mrb[0].mxu0
    %v6452 = vadd.f32 %v6280, %v6451
    %v6453 = vpop.f32.mrb[0].mxu0
    %v6454 = vpop.f32.mrb[0].mxu0
    %v6455 = vadd.f32 %v6285, %v6454
    %v6456 = vpop.f32.mrb[0].mxu0
    %6457 = vmatprep.mubr.bf16.mxu0 %v6377
    %6458 = vmatmul.mubr.bf16.gmra.mrb[0].mxu0 %v6376
    %v6459 = vpop.f32.mrb[0].mxu0
    %v6460 = vadd.f32 %v6290, %v6459
    %v6461 = vpop.f32.mrb[0].mxu0
    %v6462 = vpop.f32.mrb[0].mxu0
    %v6463 = vadd.f32 %v6295, %v6462
    %v6464 = vpop.f32.mrb[0].mxu0
    %6465 = vdwg.mxu0
    %6466 = vmatprep.subr.bf16.mxu0 0
    %6467 = vmatpush1.bf16.msra.mxu0 %v6225
    %6468 = vmatprep.subr.bf16.mxu0 0
    %6469 = vmatpush1.bf16.msra.mxu0 %v6226
    %6470 = vmatprep.subr.bf16.mxu0 0
    %6471 = vmatpush1.bf16.msra.mxu0 %v6227
    %6472 = vmatprep.subr.bf16.mxu0 0
    %6473 = vmatpush1.bf16.msra.mxu0 %v6228
    %6474 = vmatprep.subr.bf16.mxu0 0
    %6475 = vmatpush1.bf16.msra.mxu0 %v6229
    %6476 = vmatprep.subr.bf16.mxu0 0
    %6477 = vmatpush1.bf16.msra.mxu0 %v6230
    %6478 = vmatprep.subr.bf16.mxu0 0
    %6479 = vmatpush1.bf16.msra.mxu0 %v6231
    %6480 = vmatprep.subr.bf16.mxu0 0
    %6481 = vmatpush1.bf16.msra.mxu0 %v6232
    %6482 = vmatprep.subr.bf16.mxu0 0
    %6483 = vmatpush1.bf16.msra.mxu0 %v6233
    %6484 = vmatprep.subr.bf16.mxu0 0
    %6485 = vmatpush1.bf16.msra.mxu0 %v6234
    %6486 = vmatprep.subr.bf16.mxu0 0
    %6487 = vmatpush1.bf16.msra.mxu0 %v6235
    %6488 = vmatprep.subr.bf16.mxu0 0
    %6489 = vmatpush1.bf16.msra.mxu0 %v6236
    %6490 = vmatprep.subr.bf16.mxu0 0
    %6491 = vmatpush1.bf16.msra.mxu0 %v6237
    %6492 = vmatprep.subr.bf16.mxu0 0
    %6493 = vmatpush1.bf16.msra.mxu0 %v6238
    %6494 = vmatprep.subr.bf16.mxu0 0
    %6495 = vmatpush1.bf16.msra.mxu0 %v6239
    %6496 = vmatprep.subr.bf16.mxu0 0
    %6497 = vmatpush1.bf16.msra.mxu0 %v6240
    %6498 = vmatprep.mubr.bf16.mxu0 %v6364
    %6499 = vmatmul.mubr.bf16.gmra.mrb[0].mxu0 %v6363
    %v6500 = vpop.f32.mrb[0].mxu0
    %v6501 = vadd.f32 %v6436, %v6500
    %v6502 = vpop.f32.mrb[0].mxu0
    %v6503 = vpop.f32.mrb[0].mxu0
    %v6504 = vadd.f32 %v6439, %v6503
    %v6505 = vpop.f32.mrb[0].mxu0
    %6506 = vmatprep.mubr.bf16.mxu0 %v6369
    %6507 = vmatmul.mubr.bf16.gmra.mrb[0].mxu0 %v6368
    %v6508 = vpop.f32.mrb[0].mxu0
    %v6509 = vadd.f32 %v6444, %v6508
    %v6510 = vpop.f32.mrb[0].mxu0
    %v6511 = vpop.f32.mrb[0].mxu0
    %v6512 = vadd.f32 %v6447, %v6511
    %v6513 = vpop.f32.mrb[0].mxu0
    %6514 = vmatprep.mubr.bf16.mxu0 %v6374
    %6515 = vmatmul.mubr.bf16.gmra.mrb[0].mxu0 %v6373
    %v6516 = vpop.f32.mrb[0].mxu0
    %v6517 = vadd.f32 %v6452, %v6516
    %v6518 = vpop.f32.mrb[0].mxu0
    %v6519 = vpop.f32.mrb[0].mxu0
    %v6520 = vadd.f32 %v6455, %v6519
    %v6521 = vpop.f32.mrb[0].mxu0
    %6522 = vmatprep.mubr.bf16.mxu0 %v6379
    %6523 = vmatmul.mubr.bf16.gmra.mrb[0].mxu0 %v6378
    %v6524 = vpop.f32.mrb[0].mxu0
    %v6525 = vadd.f32 %v6460, %v6524
    %v6526 = vpop.f32.mrb[0].mxu0
    %v6527 = vpop.f32.mrb[0].mxu0
    %v6528 = vadd.f32 %v6463, %v6527
    %v6529 = vpop.f32.mrb[0].mxu0
    %6530 = vdwg.mxu0
    %6531 = vmatprep.subr.bf16.mxu0 0
    %6532 = vmatpush1.bf16.msra.mxu0 %v6241
    %6533 = vmatprep.subr.bf16.mxu0 0
    %6534 = vmatpush1.bf16.msra.mxu0 %v6242
    %6535 = vmatprep.subr.bf16.mxu0 0
    %6536 = vmatpush1.bf16.msra.mxu0 %v6243
    %6537 = vmatprep.subr.bf16.mxu0 0
    %6538 = vmatpush1.bf16.msra.mxu0 %v6244
    %6539 = vmatprep.subr.bf16.mxu0 0
    %6540 = vmatpush1.bf16.msra.mxu0 %v6245
    %6541 = vmatprep.subr.bf16.mxu0 0
    %6542 = vmatpush1.bf16.msra.mxu0 %v6246
    %6543 = vmatprep.subr.bf16.mxu0 0
    %6544 = vmatpush1.bf16.msra.mxu0 %v6247
    %6545 = vmatprep.subr.bf16.mxu0 0
    %6546 = vmatpush1.bf16.msra.mxu0 %v6248
    %6547 = vmatprep.subr.bf16.mxu0 0
    %6548 = vmatpush1.bf16.msra.mxu0 0
    %6549 = vmatprep.subr.bf16.mxu0 0
    %6550 = vmatpush1.bf16.msra.mxu0 0
    %6551 = vmatprep.subr.bf16.mxu0 0
    %6552 = vmatpush1.bf16.msra.mxu0 0
    %6553 = vmatprep.subr.bf16.mxu0 0
    %6554 = vmatpush1.bf16.msra.mxu0 0
    %6555 = vmatprep.subr.bf16.mxu0 0
    %6556 = vmatpush1.bf16.msra.mxu0 0
    %6557 = vmatprep.subr.bf16.mxu0 0
    %6558 = vmatpush1.bf16.msra.mxu0 0
    %6559 = vmatprep.subr.bf16.mxu0 0
    %6560 = vmatpush1.bf16.msra.mxu0 0
    %6561 = vmatprep.subr.bf16.mxu0 0
    %6562 = vmatpush1.bf16.msra.mxu0 0
    %6563 = vmatprep.mubr.bf16.mxu0 0
    %6564 = vmatmul.mubr.bf16.gmra.mrb[0].mxu0 %v6365
    %v6565 = vpop.f32.mrb[0].mxu0
    %v6566 = vadd.f32 %v6501, %v6565
    %v6567 = vpop.f32.mrb[0].mxu0
    %v6568 = vpop.f32.mrb[0].mxu0
    %v6569 = vadd.f32 %v6504, %v6568
    %v6570 = vpop.f32.mrb[0].mxu0
    %6571 = vmatprep.mubr.bf16.mxu0 0
    %6572 = vmatmul.mubr.bf16.gmra.mrb[0].mxu0 %v6370
    %v6573 = vpop.f32.mrb[0].mxu0
    %v6574 = vadd.f32 %v6509, %v6573
    %v6575 = vpop.f32.mrb[0].mxu0
    %v6576 = vpop.f32.mrb[0].mxu0
    %v6577 = vadd.f32 %v6512, %v6576
    %v6578 = vpop.f32.mrb[0].mxu0
    %6579 = vmatprep.mubr.bf16.mxu0 0
    %6580 = vmatmul.mubr.bf16.gmra.mrb[0].mxu0 %v6375
    %v6581 = vpop.f32.mrb[0].mxu0
    %v6582 = vadd.f32 %v6517, %v6581
    %v6583 = vpop.f32.mrb[0].mxu0
    %v6584 = vpop.f32.mrb[0].mxu0
    %v6585 = vadd.f32 %v6520, %v6584
    %v6586 = vpop.f32.mrb[0].mxu0
    %6587 = vmatprep.mubr.bf16.mxu0 0
    %6588 = vmatmul.mubr.bf16.gmra.mrb[0].mxu0 %v6380
    %v6589 = vpop.f32.mrb[0].mxu0
    %v6590 = vadd.f32 %v6525, %v6589
    %v6591 = vpop.f32.mrb[0].mxu0
    %v6592 = vpop.f32.mrb[0].mxu0
    %v6593 = vadd.f32 %v6528, %v6592
    %v6594 = vpop.f32.mrb[0].mxu0
    %6595 = vdwg.mxu0
    %v6596 = vsel %vm991, %v6566, 0.0
    %6597 = vadd.xlane.f32.xlu0 %v6596
    %v6598 = vpop.xlane.xlu0 %6597
    %v6599 = vsel %vm991, %v6569, 0.0
    %6600 = vadd.xlane.f32.xlu0 %v6599
    %v6601 = vpop.xlane.xlu0 %6600
    %v6602 = vsel %vm991, %v6574, 0.0
    %6603 = vadd.xlane.f32.xlu0 %v6602
    %v6604 = vpop.xlane.xlu0 %6603
    %v6605 = vsel %vm991, %v6577, 0.0
    %6606 = vadd.xlane.f32.xlu0 %v6605
    %v6607 = vpop.xlane.xlu0 %6606
    %v6608 = vsel %vm991, %v6582, 0.0
    %6609 = vadd.xlane.f32.xlu0 %v6608
    %v6610 = vpop.xlane.xlu0 %6609
    %v6611 = vsel %vm991, %v6585, 0.0
    %6612 = vadd.xlane.f32.xlu0 %v6611
    %v6613 = vpop.xlane.xlu0 %6612
    %v6614 = vsel %vm991, %v6590, 0.0
    %6615 = vadd.xlane.f32.xlu0 %v6614
    %v6616 = vpop.xlane.xlu0 %6615
    %v6617 = vsel %vm991, %v6593, 0.0
    %6618 = vadd.xlane.f32.xlu0 %v6617
    %v6619 = vpop.xlane.xlu0 %6618
    %v6620 = vmul.f32 %v6566, %v6566
    %v6621 = vmul.f32 %v6569, %v6569
    %v6622 = vmul.f32 %v6574, %v6574
    %v6623 = vmul.f32 %v6577, %v6577
    %v6624 = vmul.f32 %v6582, %v6582
    %v6625 = vmul.f32 %v6585, %v6585
    %v6626 = vmul.f32 %v6590, %v6590
    %v6627 = vmul.f32 %v6593, %v6593
    %v6628 = vsel %vm991, %v6620, 0.0
    %6629 = vadd.xlane.f32.xlu0 %v6628
    %v6630 = vpop.xlane.xlu0 %6629
    %v6631 = vsel %vm991, %v6621, 0.0
    %6632 = vadd.xlane.f32.xlu0 %v6631
    %v6633 = vpop.xlane.xlu0 %6632
    %v6634 = vsel %vm991, %v6622, 0.0
    %6635 = vadd.xlane.f32.xlu0 %v6634
    %v6636 = vpop.xlane.xlu0 %6635
    %v6637 = vsel %vm991, %v6623, 0.0
    %6638 = vadd.xlane.f32.xlu0 %v6637
    %v6639 = vpop.xlane.xlu0 %6638
    %v6640 = vsel %vm991, %v6624, 0.0
    %6641 = vadd.xlane.f32.xlu0 %v6640
    %v6642 = vpop.xlane.xlu0 %6641
    %v6643 = vsel %vm991, %v6625, 0.0
    %6644 = vadd.xlane.f32.xlu0 %v6643
    %v6645 = vpop.xlane.xlu0 %6644
    %v6646 = vsel %vm991, %v6626, 0.0
    %6647 = vadd.xlane.f32.xlu0 %v6646
    %v6648 = vpop.xlane.xlu0 %6647
    %v6649 = vsel %vm991, %v6627, 0.0
    %6650 = vadd.xlane.f32.xlu0 %v6649
    %v6651 = vpop.xlane.xlu0 %6650
    %v6652 = vmul.f32 %v6598, 0.125
    %v6653 = vmul.f32 %v6601, 0.125
    %v6654 = vmul.f32 %v6604, 0.125
    %v6655 = vmul.f32 %v6607, 0.125
    %v6656 = vmul.f32 %v6610, 0.125
    %v6657 = vmul.f32 %v6613, 0.125
    %v6658 = vmul.f32 %v6616, 0.125
    %v6659 = vmul.f32 %v6619, 0.125
    %v6660 = vmul.f32 %v6630, 0.125
    %v6661 = vmul.f32 %v6633, 0.125
    %v6662 = vmul.f32 %v6636, 0.125
    %v6663 = vmul.f32 %v6639, 0.125
    %v6664 = vmul.f32 %v6642, 0.125
    %v6665 = vmul.f32 %v6645, 0.125
    %v6666 = vmul.f32 %v6648, 0.125
    %v6667 = vmul.f32 %v6651, 0.125
    %v6668 = vmul.f32 %v6652, %v6652
    %v6669 = vmul.f32 %v6653, %v6653
    %v6670 = vmul.f32 %v6654, %v6654
    %v6671 = vmul.f32 %v6655, %v6655
    %v6672 = vmul.f32 %v6656, %v6656
    %v6673 = vmul.f32 %v6657, %v6657
    %v6674 = vmul.f32 %v6658, %v6658
    %v6675 = vmul.f32 %v6659, %v6659
    %v6676 = vsub.f32 %v6660, %v6668
    %v6677 = vsub.f32 %v6661, %v6669
    %v6678 = vsub.f32 %v6662, %v6670
    %v6679 = vsub.f32 %v6663, %v6671
    %v6680 = vsub.f32 %v6664, %v6672
    %v6681 = vsub.f32 %v6665, %v6673
    %v6682 = vsub.f32 %v6666, %v6674
    %v6683 = vsub.f32 %v6667, %v6675
    %v6684 = vmax.f32 %v6676, 0.0
    %v6685 = vmax.f32 %v6677, 0.0
    %v6686 = vmax.f32 %v6678, 0.0
    %v6687 = vmax.f32 %v6679, 0.0
    %v6688 = vmax.f32 %v6680, 0.0
    %v6689 = vmax.f32 %v6681, 0.0
    %v6690 = vmax.f32 %v6682, 0.0
    %v6691 = vmax.f32 %v6683, 0.0
    %v6692 = vadd.f32 %v6684, 1e-05
    %v6693 = vadd.f32 %v6685, 1e-05
    %v6694 = vadd.f32 %v6686, 1e-05
    %v6695 = vadd.f32 %v6687, 1e-05
    %v6696 = vadd.f32 %v6688, 1e-05
    %v6697 = vadd.f32 %v6689, 1e-05
    %v6698 = vadd.f32 %v6690, 1e-05
    %v6699 = vadd.f32 %v6691, 1e-05
    %v6700 = vrsqrt.pop %v6692
    %v6701 = vrsqrt.pop %v6693
    %v6702 = vrsqrt.pop %v6694
    %v6703 = vrsqrt.pop %v6695
    %v6704 = vrsqrt.pop %v6696
    %v6705 = vrsqrt.pop %v6697
    %v6706 = vrsqrt.pop %v6698
    %v6707 = vrsqrt.pop %v6699
    %v6708 = vmul.f32 %v6700, %v6249
    %v6709 = vmul.f32 %v6701, %v6250
    %v6710 = vmul.f32 %v6702, %v6251
    %v6711 = vmul.f32 %v6703, %v6252
    %v6712 = vmul.f32 %v6704, %v6253
    %v6713 = vmul.f32 %v6705, %v6254
    %v6714 = vmul.f32 %v6706, %v6255
    %v6715 = vmul.f32 %v6707, %v6256
    %v6716 = vmul.f32 %v6652, %v6708
    %v6717 = vmul.f32 %v6653, %v6709
    %v6718 = vmul.f32 %v6654, %v6710
    %v6719 = vmul.f32 %v6655, %v6711
    %v6720 = vmul.f32 %v6656, %v6712
    %v6721 = vmul.f32 %v6657, %v6713
    %v6722 = vmul.f32 %v6658, %v6714
    %v6723 = vmul.f32 %v6659, %v6715
    %6732 = vrot.lane.b32.xlu0 %v6716, 1
    %v6733 = vpop.permute.xlu0 %6732
    %6734 = vrot.lane.b32.xlu0 %v6717, 1
    %v6735 = vpop.permute.xlu0 %6734
    %6736 = vrot.lane.b32.xlu0 %v6718, 1
    %v6737 = vpop.permute.xlu0 %6736
    %6738 = vrot.lane.b32.xlu0 %v6719, 1
    %v6739 = vpop.permute.xlu0 %6738
    %6740 = vrot.lane.b32.xlu0 %v6720, 1
    %v6741 = vpop.permute.xlu0 %6740
    %6742 = vrot.lane.b32.xlu0 %v6721, 1
    %v6743 = vpop.permute.xlu0 %6742
    %6744 = vrot.lane.b32.xlu0 %v6722, 1
    %v6745 = vpop.permute.xlu0 %6744
    %6746 = vrot.lane.b32.xlu0 %v6723, 1
    %v6747 = vpop.permute.xlu0 %6746
    %v6756 = vsub.f32 %v6249, %v6733
    %v6757 = vsub.f32 %v6250, %v6735
    %v6758 = vsub.f32 %v6251, %v6737
    %v6759 = vsub.f32 %v6252, %v6739
    %v6760 = vsub.f32 %v6253, %v6741
    %v6761 = vsub.f32 %v6254, %v6743
    %v6762 = vsub.f32 %v6255, %v6745
    %v6763 = vsub.f32 %v6256, %v6747
    %6765 = vset.pattern.permute.xlu0 1
    %6766 = vperm.xlu0 %6765, %v6708
    %v6767 = vpop.permute.xlu0 %6766
    %6770 = vset.pattern.permute.xlu0 1
    %6771 = vperm.xlu0 %6770, %v6709
    %v6772 = vpop.permute.xlu0 %6771
    %6775 = vset.pattern.permute.xlu0 1
    %6776 = vperm.xlu0 %6775, %v6710
    %v6777 = vpop.permute.xlu0 %6776
    %6780 = vset.pattern.permute.xlu0 1
    %6781 = vperm.xlu0 %6780, %v6711
    %v6782 = vpop.permute.xlu0 %6781
    %6785 = vset.pattern.permute.xlu0 1
    %6786 = vperm.xlu0 %6785, %v6712
    %v6787 = vpop.permute.xlu0 %6786
    %6790 = vset.pattern.permute.xlu0 1
    %6791 = vperm.xlu0 %6790, %v6713
    %v6792 = vpop.permute.xlu0 %6791
    %6795 = vset.pattern.permute.xlu0 1
    %6796 = vperm.xlu0 %6795, %v6714
    %v6797 = vpop.permute.xlu0 %6796
    %6800 = vset.pattern.permute.xlu0 1
    %6801 = vperm.xlu0 %6800, %v6715
    %v6802 = vpop.permute.xlu0 %6801
    %v6804 = vmul.f32 %v6566, %v6767
    %v6805 = vmul.f32 %v6569, %v6772
    %v6806 = vmul.f32 %v6574, %v6777
    %v6807 = vmul.f32 %v6577, %v6782
    %v6808 = vmul.f32 %v6582, %v6787
    %v6809 = vmul.f32 %v6585, %v6792
    %v6810 = vmul.f32 %v6590, %v6797
    %v6811 = vmul.f32 %v6593, %v6802
    %6813 = vset.pattern.permute.xlu0 2
    %6814 = vperm.xlu0 %6813, %v6756
    %v6815 = vpop.permute.xlu0 %6814
    %6818 = vset.pattern.permute.xlu0 2
    %6819 = vperm.xlu0 %6818, %v6757
    %v6820 = vpop.permute.xlu0 %6819
    %6823 = vset.pattern.permute.xlu0 2
    %6824 = vperm.xlu0 %6823, %v6758
    %v6825 = vpop.permute.xlu0 %6824
    %6828 = vset.pattern.permute.xlu0 2
    %6829 = vperm.xlu0 %6828, %v6759
    %v6830 = vpop.permute.xlu0 %6829
    %6833 = vset.pattern.permute.xlu0 2
    %6834 = vperm.xlu0 %6833, %v6760
    %v6835 = vpop.permute.xlu0 %6834
    %6838 = vset.pattern.permute.xlu0 2
    %6839 = vperm.xlu0 %6838, %v6761
    %v6840 = vpop.permute.xlu0 %6839
    %6843 = vset.pattern.permute.xlu0 2
    %6844 = vperm.xlu0 %6843, %v6762
    %v6845 = vpop.permute.xlu0 %6844
    %6848 = vset.pattern.permute.xlu0 2
    %6849 = vperm.xlu0 %6848, %v6763
    %v6850 = vpop.permute.xlu0 %6849
    %v6852 = vadd.f32 %v6804, %v6815
    %v6853 = vadd.f32 %v6805, %v6820
    %v6854 = vadd.f32 %v6806, %v6825
    %v6855 = vadd.f32 %v6807, %v6830
    %v6856 = vadd.f32 %v6808, %v6835
    %v6857 = vadd.f32 %v6809, %v6840
    %v6858 = vadd.f32 %v6810, %v6845
    %v6859 = vadd.f32 %v6811, %v6850
    %vm6860 = vcmp.gt.f32.partialorder %v6852, 0.0
    %vm6861 = vcmp.gt.f32.partialorder %v6853, 0.0
    %vm6862 = vcmp.gt.f32.partialorder %v6854, 0.0
    %vm6863 = vcmp.gt.f32.partialorder %v6855, 0.0
    %vm6864 = vcmp.gt.f32.partialorder %v6856, 0.0
    %vm6865 = vcmp.gt.f32.partialorder %v6857, 0.0
    %vm6866 = vcmp.gt.f32.partialorder %v6858, 0.0
    %vm6867 = vcmp.gt.f32.partialorder %v6859, 0.0
    %v6868 = vmul.f32 %v6852, 0.01
    %v6869 = vmul.f32 %v6853, 0.01
    %v6870 = vmul.f32 %v6854, 0.01
    %v6871 = vmul.f32 %v6855, 0.01
    %v6872 = vmul.f32 %v6856, 0.01
    %v6873 = vmul.f32 %v6857, 0.01
    %v6874 = vmul.f32 %v6858, 0.01
    %v6875 = vmul.f32 %v6859, 0.01
    %v6876 = vsel %vm6860, %v6852, %v6868
    %v6877 = vsel %vm6861, %v6853, %v6869
    %v6878 = vsel %vm6862, %v6854, %v6870
    %v6879 = vsel %vm6863, %v6855, %v6871
    %v6880 = vsel %vm6864, %v6856, %v6872
    %v6881 = vsel %vm6865, %v6857, %v6873
    %v6882 = vsel %vm6866, %v6858, %v6874
    %v6883 = vsel %vm6867, %v6859, %v6875
    %v6884 = vld [vmem:[%s21] sm:$0xf]
    %v6886 = vsel %vm2036, %v6876, 0
    %v6889 = vsel %vm2036, %v6877, 0
    %v6892 = vsel %vm2036, %v6878, 0
    %v6895 = vsel %vm2036, %v6879, 0
    %v6898 = vsel %vm2036, %v6880, 0
    %v6901 = vsel %vm2036, %v6881, 0
    %v6904 = vsel %vm2036, %v6882, 0
    %v6907 = vsel %vm2036, %v6883, 0
    %v6910 = vsel %vm1406, %v6884, 0
    %6912 = vmatprep.subr.mxu0 0.0
    %6913 = vmatpush1.msra.mxu0 %v6910
    %6914 = vmatprep.subr.mxu0 0.0
    %6915 = vmatpush1.msra.mxu0 0.0
    %6916 = vmatprep.subr.mxu0 0.0
    %6917 = vmatpush1.msra.mxu0 0.0
    %6918 = vmatprep.subr.mxu0 0.0
    %6919 = vmatpush1.msra.mxu0 0.0
    %6920 = vmatprep.subr.mxu0 0.0
    %6921 = vmatpush1.msra.mxu0 0.0
    %6922 = vmatprep.subr.mxu0 0.0
    %6923 = vmatpush1.msra.mxu0 0.0
    %6924 = vmatprep.subr.mxu0 0.0
    %6925 = vmatpush1.msra.mxu0 0.0
    %6926 = vmatprep.subr.mxu0 0.0
    %6927 = vmatpush1.msra.mxu0 0.0
    %6928 = vmatprep.subr.mxu0 0.0
    %6929 = vmatpush1.msra.mxu0 0.0
    %6930 = vmatprep.subr.mxu0 0.0
    %6931 = vmatpush1.msra.mxu0 0.0
    %6932 = vmatprep.subr.mxu0 0.0
    %6933 = vmatpush1.msra.mxu0 0.0
    %6934 = vmatprep.subr.mxu0 0.0
    %6935 = vmatpush1.msra.mxu0 0.0
    %6936 = vmatprep.subr.mxu0 0.0
    %6937 = vmatpush1.msra.mxu0 0.0
    %6938 = vmatprep.subr.mxu0 0.0
    %6939 = vmatpush1.msra.mxu0 0.0
    %6940 = vmatprep.subr.mxu0 0.0
    %6941 = vmatpush1.msra.mxu0 0.0
    %6942 = vmatprep.subr.mxu0 0.0
    %6943 = vmatpush1.msra.mxu0 0.0
    %6944 = vmatprep.subr.mxu0 0.0
    %6945 = vmatpush1.msra.mxu0 0.0
    %6946 = vmatprep.subr.mxu0 0.0
    %6947 = vmatpush1.msra.mxu0 0.0
    %6948 = vmatprep.subr.mxu0 0.0
    %6949 = vmatpush1.msra.mxu0 0.0
    %6950 = vmatprep.subr.mxu0 0.0
    %6951 = vmatpush1.msra.mxu0 0.0
    %6952 = vmatprep.subr.mxu0 0.0
    %6953 = vmatpush1.msra.mxu0 0.0
    %6954 = vmatprep.subr.mxu0 0.0
    %6955 = vmatpush1.msra.mxu0 0.0
    %6956 = vmatprep.subr.mxu0 0.0
    %6957 = vmatpush1.msra.mxu0 0.0
    %6958 = vmatprep.subr.mxu0 0.0
    %6959 = vmatpush1.msra.mxu0 0.0
    %6960 = vmatprep.subr.mxu0 0.0
    %6961 = vmatpush1.msra.mxu0 0.0
    %6962 = vmatprep.subr.mxu0 0.0
    %6963 = vmatpush1.msra.mxu0 0.0
    %6964 = vmatprep.subr.mxu0 0.0
    %6965 = vmatpush1.msra.mxu0 0.0
    %6966 = vmatprep.subr.mxu0 0.0
    %6967 = vmatpush1.msra.mxu0 0.0
    %6968 = vmatprep.subr.mxu0 0.0
    %6969 = vmatpush1.msra.mxu0 0.0
    %6970 = vmatprep.subr.mxu0 0.0
    %6971 = vmatpush1.msra.mxu0 0.0
    %6972 = vmatprep.subr.mxu0 0.0
    %6973 = vmatpush1.msra.mxu0 0.0
    %6974 = vmatprep.subr.mxu0 0.0
    %6975 = vmatpush1.msra.mxu0 0.0
    %6976 = vmatprep.mubr.f32.mxu0 0.0
    %6977 = vmatmul.mubr.f32.gmra.mrb[0].mxu0 %v6886
    %v6978 = vpop.f32.mrb[0].mxu0
    %v6979 = vadd.f32 0.0, %v6978
    %v6980 = vpop.f32.mrb[0].mxu0
    %6981 = vmatprep.mubr.f32.mxu0 0.0
    %6982 = vmatmul.mubr.f32.gmra.mrb[0].mxu0 %v6889
    %v6983 = vpop.f32.mrb[0].mxu0
    %v6984 = vadd.f32 0.0, %v6983
    %v6985 = vpop.f32.mrb[0].mxu0
    %6986 = vmatprep.mubr.f32.mxu0 0.0
    %6987 = vmatmul.mubr.f32.gmra.mrb[0].mxu0 %v6892
    %v6988 = vpop.f32.mrb[0].mxu0
    %v6989 = vadd.f32 0.0, %v6988
    %v6990 = vpop.f32.mrb[0].mxu0
    %6991 = vmatprep.mubr.f32.mxu0 0.0
    %6992 = vmatmul.mubr.f32.gmra.mrb[0].mxu0 %v6895
    %v6993 = vpop.f32.mrb[0].mxu0
    %v6994 = vadd.f32 0.0, %v6993
    %v6995 = vpop.f32.mrb[0].mxu0
    %6996 = vmatprep.mubr.f32.mxu0 0.0
    %6997 = vmatmul.mubr.f32.gmra.mrb[0].mxu0 %v6898
    %v6998 = vpop.f32.mrb[0].mxu0
    %v6999 = vadd.f32 0.0, %v6998
    %v7000 = vpop.f32.mrb[0].mxu0
    %7001 = vmatprep.mubr.f32.mxu0 0.0
    %7002 = vmatmul.mubr.f32.gmra.mrb[0].mxu0 %v6901
    %v7003 = vpop.f32.mrb[0].mxu0
    %v7004 = vadd.f32 0.0, %v7003
    %v7005 = vpop.f32.mrb[0].mxu0
    %7006 = vmatprep.mubr.f32.mxu0 0.0
    %7007 = vmatmul.mubr.f32.gmra.mrb[0].mxu0 %v6904
    %v7008 = vpop.f32.mrb[0].mxu0
    %v7009 = vadd.f32 0.0, %v7008
    %v7010 = vpop.f32.mrb[0].mxu0
    %7011 = vmatprep.mubr.f32.mxu0 0.0
    %7012 = vmatmul.mubr.f32.gmra.mrb[0].mxu0 %v6907
    %v7013 = vpop.f32.mrb[0].mxu0
    %v7014 = vadd.f32 0.0, %v7013
    %v7015 = vpop.f32.mrb[0].mxu0
    %7016 = vdwg.mxu0
    %7025 = vrot.lane.b32.xlu0 %v6979, 2
    %v7026 = vpop.permute.xlu0 %7025
    %7027 = vrot.lane.b32.xlu0 %v6984, 2
    %v7028 = vpop.permute.xlu0 %7027
    %7029 = vrot.lane.b32.xlu0 %v6989, 2
    %v7030 = vpop.permute.xlu0 %7029
    %7031 = vrot.lane.b32.xlu0 %v6994, 2
    %v7032 = vpop.permute.xlu0 %7031
    %7033 = vrot.lane.b32.xlu0 %v6999, 2
    %v7034 = vpop.permute.xlu0 %7033
    %7035 = vrot.lane.b32.xlu0 %v7004, 2
    %v7036 = vpop.permute.xlu0 %7035
    %7037 = vrot.lane.b32.xlu0 %v7009, 2
    %v7038 = vpop.permute.xlu0 %7037
    %7039 = vrot.lane.b32.xlu0 %v7014, 2
    %v7040 = vpop.permute.xlu0 %7039
    %7049 = vst.msk [vmem:[#allocation7] sm:$0xff] %vm1764, %v7026
    %7050 = vst.msk [vmem:[#allocation7 + $0x8] sm:$0xff] %vm1764, %v7028
    %7051 = vst.msk [vmem:[#allocation7 + $0x10] sm:$0xff] %vm1764, %v7030
    %7052 = vst.msk [vmem:[#allocation7 + $0x18] sm:$0xff] %vm1764, %v7032
    %7053 = vst.msk [vmem:[#allocation7 + $0x20] sm:$0xff] %vm1764, %v7034
    %7054 = vst.msk [vmem:[#allocation7 + $0x28] sm:$0xff] %vm1764, %v7036
    %7055 = vst.msk [vmem:[#allocation7 + $0x30] sm:$0xff] %vm1764, %v7038
    %7056 = vst.msk [vmem:[#allocation7 + $0x38] sm:$0xff] %vm1764, %v7040
    %7057 = vrot.lane.b32.xlu0 %v6876, 124
    %v7058 = vpop.permute.xlu0 %7057
    %7059 = vrot.lane.b32.xlu0 %v6877, 124
    %v7060 = vpop.permute.xlu0 %7059
    %7061 = vrot.lane.b32.xlu0 %v6878, 124
    %v7062 = vpop.permute.xlu0 %7061
    %7063 = vrot.lane.b32.xlu0 %v6879, 124
    %v7064 = vpop.permute.xlu0 %7063
    %7065 = vrot.lane.b32.xlu0 %v6880, 124
    %v7066 = vpop.permute.xlu0 %7065
    %7067 = vrot.lane.b32.xlu0 %v6881, 124
    %v7068 = vpop.permute.xlu0 %7067
    %7069 = vrot.lane.b32.xlu0 %v6882, 124
    %v7070 = vpop.permute.xlu0 %7069
    %7071 = vrot.lane.b32.xlu0 %v6883, 124
    %v7072 = vpop.permute.xlu0 %7071
    %v7073 = vsel %vm2036, %v7058, 0
    %v7075 = vsel %vm2036, %v7060, 0
    %v7077 = vsel %vm2036, %v7062, 0
    %v7079 = vsel %vm2036, %v7064, 0
    %v7081 = vsel %vm2036, %v7066, 0
    %v7083 = vsel %vm2036, %v7068, 0
    %v7085 = vsel %vm2036, %v7070, 0
    %v7087 = vsel %vm2036, %v7072, 0
    %7089 = vmatprep.subr.mxu0 0.0
    %7090 = vmatpush1.msra.mxu0 %v6910
    %7091 = vmatprep.subr.mxu0 0.0
    %7092 = vmatpush1.msra.mxu0 0.0
    %7093 = vmatprep.subr.mxu0 0.0
    %7094 = vmatpush1.msra.mxu0 0.0
    %7095 = vmatprep.subr.mxu0 0.0
    %7096 = vmatpush1.msra.mxu0 0.0
    %7097 = vmatprep.subr.mxu0 0.0
    %7098 = vmatpush1.msra.mxu0 0.0
    %7099 = vmatprep.subr.mxu0 0.0
    %7100 = vmatpush1.msra.mxu0 0.0
    %7101 = vmatprep.subr.mxu0 0.0
    %7102 = vmatpush1.msra.mxu0 0.0
    %7103 = vmatprep.subr.mxu0 0.0
    %7104 = vmatpush1.msra.mxu0 0.0
    %7105 = vmatprep.subr.mxu0 0.0
    %7106 = vmatpush1.msra.mxu0 0.0
    %7107 = vmatprep.subr.mxu0 0.0
    %7108 = vmatpush1.msra.mxu0 0.0
    %7109 = vmatprep.subr.mxu0 0.0
    %7110 = vmatpush1.msra.mxu0 0.0
    %7111 = vmatprep.subr.mxu0 0.0
    %7112 = vmatpush1.msra.mxu0 0.0
    %7113 = vmatprep.subr.mxu0 0.0
    %7114 = vmatpush1.msra.mxu0 0.0
    %7115 = vmatprep.subr.mxu0 0.0
    %7116 = vmatpush1.msra.mxu0 0.0
    %7117 = vmatprep.subr.mxu0 0.0
    %7118 = vmatpush1.msra.mxu0 0.0
    %7119 = vmatprep.subr.mxu0 0.0
    %7120 = vmatpush1.msra.mxu0 0.0
    %7121 = vmatprep.subr.mxu0 0.0
    %7122 = vmatpush1.msra.mxu0 0.0
    %7123 = vmatprep.subr.mxu0 0.0
    %7124 = vmatpush1.msra.mxu0 0.0
    %7125 = vmatprep.subr.mxu0 0.0
    %7126 = vmatpush1.msra.mxu0 0.0
    %7127 = vmatprep.subr.mxu0 0.0
    %7128 = vmatpush1.msra.mxu0 0.0
    %7129 = vmatprep.subr.mxu0 0.0
    %7130 = vmatpush1.msra.mxu0 0.0
    %7131 = vmatprep.subr.mxu0 0.0
    %7132 = vmatpush1.msra.mxu0 0.0
    %7133 = vmatprep.subr.mxu0 0.0
    %7134 = vmatpush1.msra.mxu0 0.0
    %7135 = vmatprep.subr.mxu0 0.0
    %7136 = vmatpush1.msra.mxu0 0.0
    %7137 = vmatprep.subr.mxu0 0.0
    %7138 = vmatpush1.msra.mxu0 0.0
    %7139 = vmatprep.subr.mxu0 0.0
    %7140 = vmatpush1.msra.mxu0 0.0
    %7141 = vmatprep.subr.mxu0 0.0
    %7142 = vmatpush1.msra.mxu0 0.0
    %7143 = vmatprep.subr.mxu0 0.0
    %7144 = vmatpush1.msra.mxu0 0.0
    %7145 = vmatprep.subr.mxu0 0.0
    %7146 = vmatpush1.msra.mxu0 0.0
    %7147 = vmatprep.subr.mxu0 0.0
    %7148 = vmatpush1.msra.mxu0 0.0
    %7149 = vmatprep.subr.mxu0 0.0
    %7150 = vmatpush1.msra.mxu0 0.0
    %7151 = vmatprep.subr.mxu0 0.0
    %7152 = vmatpush1.msra.mxu0 0.0
    %7153 = vmatprep.mubr.f32.mxu0 0.0
    %7154 = vmatmul.mubr.f32.gmra.mrb[0].mxu0 %v7073
    %v7155 = vpop.f32.mrb[0].mxu0
    %v7156 = vadd.f32 0.0, %v7155
    %v7157 = vpop.f32.mrb[0].mxu0
    %7158 = vmatprep.mubr.f32.mxu0 0.0
    %7159 = vmatmul.mubr.f32.gmra.mrb[0].mxu0 %v7075
    %v7160 = vpop.f32.mrb[0].mxu0
    %v7161 = vadd.f32 0.0, %v7160
    %v7162 = vpop.f32.mrb[0].mxu0
    %7163 = vmatprep.mubr.f32.mxu0 0.0
    %7164 = vmatmul.mubr.f32.gmra.mrb[0].mxu0 %v7077
    %v7165 = vpop.f32.mrb[0].mxu0
    %v7166 = vadd.f32 0.0, %v7165
    %v7167 = vpop.f32.mrb[0].mxu0
    %7168 = vmatprep.mubr.f32.mxu0 0.0
    %7169 = vmatmul.mubr.f32.gmra.mrb[0].mxu0 %v7079
    %v7170 = vpop.f32.mrb[0].mxu0
    %v7171 = vadd.f32 0.0, %v7170
    %v7172 = vpop.f32.mrb[0].mxu0
    %7173 = vmatprep.mubr.f32.mxu0 0.0
    %7174 = vmatmul.mubr.f32.gmra.mrb[0].mxu0 %v7081
    %v7175 = vpop.f32.mrb[0].mxu0
    %v7176 = vadd.f32 0.0, %v7175
    %v7177 = vpop.f32.mrb[0].mxu0
    %7178 = vmatprep.mubr.f32.mxu0 0.0
    %7179 = vmatmul.mubr.f32.gmra.mrb[0].mxu0 %v7083
    %v7180 = vpop.f32.mrb[0].mxu0
    %v7181 = vadd.f32 0.0, %v7180
    %v7182 = vpop.f32.mrb[0].mxu0
    %7183 = vmatprep.mubr.f32.mxu0 0.0
    %7184 = vmatmul.mubr.f32.gmra.mrb[0].mxu0 %v7085
    %v7185 = vpop.f32.mrb[0].mxu0
    %v7186 = vadd.f32 0.0, %v7185
    %v7187 = vpop.f32.mrb[0].mxu0
    %7188 = vmatprep.mubr.f32.mxu0 0.0
    %7189 = vmatmul.mubr.f32.gmra.mrb[0].mxu0 %v7087
    %v7190 = vpop.f32.mrb[0].mxu0
    %v7191 = vadd.f32 0.0, %v7190
    %v7192 = vpop.f32.mrb[0].mxu0
    %7193 = vdwg.mxu0
    %7202 = vrot.lane.b32.xlu0 %v7156, 14
    %v7203 = vpop.permute.xlu0 %7202
    %7204 = vrot.lane.b32.xlu0 %v7161, 14
    %v7205 = vpop.permute.xlu0 %7204
    %7206 = vrot.lane.b32.xlu0 %v7166, 14
    %v7207 = vpop.permute.xlu0 %7206
    %7208 = vrot.lane.b32.xlu0 %v7171, 14
    %v7209 = vpop.permute.xlu0 %7208
    %7210 = vrot.lane.b32.xlu0 %v7176, 14
    %v7211 = vpop.permute.xlu0 %7210
    %7212 = vrot.lane.b32.xlu0 %v7181, 14
    %v7213 = vpop.permute.xlu0 %7212
    %7214 = vrot.lane.b32.xlu0 %v7186, 14
    %v7215 = vpop.permute.xlu0 %7214
    %7216 = vrot.lane.b32.xlu0 %v7191, 14
    %v7217 = vpop.permute.xlu0 %7216
    %7226 = vst.msk [vmem:[#allocation7] sm:$0xff] %vm1789, %v7203
    %7227 = vst.msk [vmem:[#allocation7 + $0x8] sm:$0xff] %vm1789, %v7205
    %7228 = vst.msk [vmem:[#allocation7 + $0x10] sm:$0xff] %vm1789, %v7207
    %7229 = vst.msk [vmem:[#allocation7 + $0x18] sm:$0xff] %vm1789, %v7209
    %7230 = vst.msk [vmem:[#allocation7 + $0x20] sm:$0xff] %vm1789, %v7211
    %7231 = vst.msk [vmem:[#allocation7 + $0x28] sm:$0xff] %vm1789, %v7213
    %7232 = vst.msk [vmem:[#allocation7 + $0x30] sm:$0xff] %vm1789, %v7215
    %7233 = vst.msk [vmem:[#allocation7 + $0x38] sm:$0xff] %vm1789, %v7217
    %v7234 = vld [vmem:[#allocation7] sm:$0xff]
    %v7235 = vld [vmem:[#allocation7 + $0x8] sm:$0xff]
    %v7236 = vld [vmem:[#allocation7 + $0x10] sm:$0xff]
    %v7237 = vld [vmem:[#allocation7 + $0x18] sm:$0xff]
    %v7238 = vld [vmem:[#allocation7 + $0x20] sm:$0xff]
    %v7239 = vld [vmem:[#allocation7 + $0x28] sm:$0xff]
    %v7240 = vld [vmem:[#allocation7 + $0x30] sm:$0xff]
    %v7241 = vld [vmem:[#allocation7 + $0x38] sm:$0xff]
    %v7242 = vld [vmem:[#allocation7 + $0x40] sm:$0xff]
    %v7243 = vld [vmem:[#allocation7 + $0x48] sm:$0xff]
    %v7244 = vld [vmem:[#allocation7 + $0x50] sm:$0xff]
    %v7245 = vld [vmem:[#allocation7 + $0x58] sm:$0xff]
    %v7246 = vld [vmem:[#allocation7 + $0x60] sm:$0xff]
    %v7247 = vld [vmem:[#allocation7 + $0x68] sm:$0xff]
    %7262 = vrot.lane.b32.xlu0 %v7234, 124
    %v7263 = vpop.permute.xlu0 %7262
    %7264 = vrot.lane.b32.xlu0 %v7235, 124
    %v7265 = vpop.permute.xlu0 %7264
    %7266 = vrot.lane.b32.xlu0 %v7236, 124
    %v7267 = vpop.permute.xlu0 %7266
    %7268 = vrot.lane.b32.xlu0 %v7237, 124
    %v7269 = vpop.permute.xlu0 %7268
    %7270 = vrot.lane.b32.xlu0 %v7238, 124
    %v7271 = vpop.permute.xlu0 %7270
    %7272 = vrot.lane.b32.xlu0 %v7239, 124
    %v7273 = vpop.permute.xlu0 %7272
    %7274 = vrot.lane.b32.xlu0 %v7240, 124
    %v7275 = vpop.permute.xlu0 %7274
    %7276 = vrot.lane.b32.xlu0 %v7241, 124
    %v7277 = vpop.permute.xlu0 %7276
    %7278 = vrot.lane.b32.xlu0 %v7242, 124
    %v7279 = vpop.permute.xlu0 %7278
    %7280 = vrot.lane.b32.xlu0 %v7243, 124
    %v7281 = vpop.permute.xlu0 %7280
    %7282 = vrot.lane.b32.xlu0 %v7244, 124
    %v7283 = vpop.permute.xlu0 %7282
    %7284 = vrot.lane.b32.xlu0 %v7245, 124
    %v7285 = vpop.permute.xlu0 %7284
    %7286 = vrot.lane.b32.xlu0 %v7246, 124
    %v7287 = vpop.permute.xlu0 %7286
    %7288 = vrot.lane.b32.xlu0 %v7247, 124
    %v7289 = vpop.permute.xlu0 %7288
    %v7304 = vsel %vm991, %v7234, %v7263
    %v7305 = vsel %vm991, %v7235, %v7265
    %v7306 = vsel %vm991, %v7236, %v7267
    %v7307 = vsel %vm991, %v7237, %v7269
    %v7308 = vsel %vm991, %v7238, %v7271
    %v7309 = vsel %vm991, %v7239, %v7273
    %v7310 = vsel %vm991, %v7240, %v7275
    %v7311 = vsel %vm991, %v7241, %v7277
    %v7312 = vsel %vm991, %v7242, %v7279
    %v7313 = vsel %vm991, %v7243, %v7281
    %v7314 = vsel %vm991, %v7244, %v7283
    %v7315 = vsel %vm991, %v7245, %v7285
    %v7316 = vsel %vm991, %v7246, %v7287
    %v7317 = vsel %vm991, %v7247, %v7289
    %7318 = vrot.lane.b32.xlu0 %v7234, 127
    %v7319 = vpop.permute.xlu0 %7318
    %7320 = vrot.lane.b32.xlu0 %v7235, 127
    %v7321 = vpop.permute.xlu0 %7320
    %7322 = vrot.lane.b32.xlu0 %v7236, 127
    %v7323 = vpop.permute.xlu0 %7322
    %7324 = vrot.lane.b32.xlu0 %v7237, 127
    %v7325 = vpop.permute.xlu0 %7324
    %7326 = vrot.lane.b32.xlu0 %v7238, 127
    %v7327 = vpop.permute.xlu0 %7326
    %7328 = vrot.lane.b32.xlu0 %v7239, 127
    %v7329 = vpop.permute.xlu0 %7328
    %7330 = vrot.lane.b32.xlu0 %v7240, 127
    %v7331 = vpop.permute.xlu0 %7330
    %7332 = vrot.lane.b32.xlu0 %v7241, 127
    %v7333 = vpop.permute.xlu0 %7332
    %7334 = vrot.lane.b32.xlu0 %v7242, 127
    %v7335 = vpop.permute.xlu0 %7334
    %7336 = vrot.lane.b32.xlu0 %v7243, 127
    %v7337 = vpop.permute.xlu0 %7336
    %7338 = vrot.lane.b32.xlu0 %v7244, 127
    %v7339 = vpop.permute.xlu0 %7338
    %7340 = vrot.lane.b32.xlu0 %v7245, 127
    %v7341 = vpop.permute.xlu0 %7340
    %7342 = vrot.lane.b32.xlu0 %v7246, 127
    %v7343 = vpop.permute.xlu0 %7342
    %7344 = vrot.lane.b32.xlu0 %v7247, 127
    %v7345 = vpop.permute.xlu0 %7344
    %7360 = vrot.lane.b32.xlu0 %v7234, 123
    %v7361 = vpop.permute.xlu0 %7360
    %7362 = vrot.lane.b32.xlu0 %v7235, 123
    %v7363 = vpop.permute.xlu0 %7362
    %7364 = vrot.lane.b32.xlu0 %v7236, 123
    %v7365 = vpop.permute.xlu0 %7364
    %7366 = vrot.lane.b32.xlu0 %v7237, 123
    %v7367 = vpop.permute.xlu0 %7366
    %7368 = vrot.lane.b32.xlu0 %v7238, 123
    %v7369 = vpop.permute.xlu0 %7368
    %7370 = vrot.lane.b32.xlu0 %v7239, 123
    %v7371 = vpop.permute.xlu0 %7370
    %7372 = vrot.lane.b32.xlu0 %v7240, 123
    %v7373 = vpop.permute.xlu0 %7372
    %7374 = vrot.lane.b32.xlu0 %v7241, 123
    %v7375 = vpop.permute.xlu0 %7374
    %7376 = vrot.lane.b32.xlu0 %v7242, 123
    %v7377 = vpop.permute.xlu0 %7376
    %7378 = vrot.lane.b32.xlu0 %v7243, 123
    %v7379 = vpop.permute.xlu0 %7378
    %7380 = vrot.lane.b32.xlu0 %v7244, 123
    %v7381 = vpop.permute.xlu0 %7380
    %7382 = vrot.lane.b32.xlu0 %v7245, 123
    %v7383 = vpop.permute.xlu0 %7382
    %7384 = vrot.lane.b32.xlu0 %v7246, 123
    %v7385 = vpop.permute.xlu0 %7384
    %7386 = vrot.lane.b32.xlu0 %v7247, 123
    %v7387 = vpop.permute.xlu0 %7386
    %v7402 = vsel %vm991, %v7319, %v7361
    %v7403 = vsel %vm991, %v7321, %v7363
    %v7404 = vsel %vm991, %v7323, %v7365
    %v7405 = vsel %vm991, %v7325, %v7367
    %v7406 = vsel %vm991, %v7327, %v7369
    %v7407 = vsel %vm991, %v7329, %v7371
    %v7408 = vsel %vm991, %v7331, %v7373
    %v7409 = vsel %vm991, %v7333, %v7375
    %v7410 = vsel %vm991, %v7335, %v7377
    %v7411 = vsel %vm991, %v7337, %v7379
    %v7412 = vsel %vm991, %v7339, %v7381
    %v7413 = vsel %vm991, %v7341, %v7383
    %v7414 = vsel %vm991, %v7343, %v7385
    %v7415 = vsel %vm991, %v7345, %v7387
    %7416 = vrot.lane.b32.xlu0 %v7234, 126
    %v7417 = vpop.permute.xlu0 %7416
    %7418 = vrot.lane.b32.xlu0 %v7235, 126
    %v7419 = vpop.permute.xlu0 %7418
    %7420 = vrot.lane.b32.xlu0 %v7236, 126
    %v7421 = vpop.permute.xlu0 %7420
    %7422 = vrot.lane.b32.xlu0 %v7237, 126
    %v7423 = vpop.permute.xlu0 %7422
    %7424 = vrot.lane.b32.xlu0 %v7238, 126
    %v7425 = vpop.permute.xlu0 %7424
    %7426 = vrot.lane.b32.xlu0 %v7239, 126
    %v7427 = vpop.permute.xlu0 %7426
    %7428 = vrot.lane.b32.xlu0 %v7240, 126
    %v7429 = vpop.permute.xlu0 %7428
    %7430 = vrot.lane.b32.xlu0 %v7241, 126
    %v7431 = vpop.permute.xlu0 %7430
    %7432 = vrot.lane.b32.xlu0 %v7242, 126
    %v7433 = vpop.permute.xlu0 %7432
    %7434 = vrot.lane.b32.xlu0 %v7243, 126
    %v7435 = vpop.permute.xlu0 %7434
    %7436 = vrot.lane.b32.xlu0 %v7244, 126
    %v7437 = vpop.permute.xlu0 %7436
    %7438 = vrot.lane.b32.xlu0 %v7245, 126
    %v7439 = vpop.permute.xlu0 %7438
    %7440 = vrot.lane.b32.xlu0 %v7246, 126
    %v7441 = vpop.permute.xlu0 %7440
    %7442 = vrot.lane.b32.xlu0 %v7247, 126
    %v7443 = vpop.permute.xlu0 %7442
    %7458 = vrot.lane.b32.xlu0 %v7234, 122
    %v7459 = vpop.permute.xlu0 %7458
    %7460 = vrot.lane.b32.xlu0 %v7235, 122
    %v7461 = vpop.permute.xlu0 %7460
    %7462 = vrot.lane.b32.xlu0 %v7236, 122
    %v7463 = vpop.permute.xlu0 %7462
    %7464 = vrot.lane.b32.xlu0 %v7237, 122
    %v7465 = vpop.permute.xlu0 %7464
    %7466 = vrot.lane.b32.xlu0 %v7238, 122
    %v7467 = vpop.permute.xlu0 %7466
    %7468 = vrot.lane.b32.xlu0 %v7239, 122
    %v7469 = vpop.permute.xlu0 %7468
    %7470 = vrot.lane.b32.xlu0 %v7240, 122
    %v7471 = vpop.permute.xlu0 %7470
    %7472 = vrot.lane.b32.xlu0 %v7241, 122
    %v7473 = vpop.permute.xlu0 %7472
    %7474 = vrot.lane.b32.xlu0 %v7242, 122
    %v7475 = vpop.permute.xlu0 %7474
    %7476 = vrot.lane.b32.xlu0 %v7243, 122
    %v7477 = vpop.permute.xlu0 %7476
    %7478 = vrot.lane.b32.xlu0 %v7244, 122
    %v7479 = vpop.permute.xlu0 %7478
    %7480 = vrot.lane.b32.xlu0 %v7245, 122
    %v7481 = vpop.permute.xlu0 %7480
    %7482 = vrot.lane.b32.xlu0 %v7246, 122
    %v7483 = vpop.permute.xlu0 %7482
    %7484 = vrot.lane.b32.xlu0 %v7247, 122
    %v7485 = vpop.permute.xlu0 %7484
    %v7500 = vsel %vm991, %v7417, %v7459
    %v7501 = vsel %vm991, %v7419, %v7461
    %v7502 = vsel %vm991, %v7421, %v7463
    %v7503 = vsel %vm991, %v7423, %v7465
    %v7504 = vsel %vm991, %v7425, %v7467
    %v7505 = vsel %vm991, %v7427, %v7469
    %v7506 = vsel %vm991, %v7429, %v7471
    %v7507 = vsel %vm991, %v7431, %v7473
    %v7508 = vsel %vm991, %v7433, %v7475
    %v7509 = vsel %vm991, %v7435, %v7477
    %v7510 = vsel %vm991, %v7437, %v7479
    %v7511 = vsel %vm991, %v7439, %v7481
    %v7512 = vsel %vm991, %v7441, %v7483
    %v7513 = vsel %vm991, %v7443, %v7485
    %7514 = vrot.lane.b32.xlu0 %v7234, 125
    %v7515 = vpop.permute.xlu0 %7514
    %7516 = vrot.lane.b32.xlu0 %v7235, 125
    %v7517 = vpop.permute.xlu0 %7516
    %7518 = vrot.lane.b32.xlu0 %v7236, 125
    %v7519 = vpop.permute.xlu0 %7518
    %7520 = vrot.lane.b32.xlu0 %v7237, 125
    %v7521 = vpop.permute.xlu0 %7520
    %7522 = vrot.lane.b32.xlu0 %v7238, 125
    %v7523 = vpop.permute.xlu0 %7522
    %7524 = vrot.lane.b32.xlu0 %v7239, 125
    %v7525 = vpop.permute.xlu0 %7524
    %7526 = vrot.lane.b32.xlu0 %v7240, 125
    %v7527 = vpop.permute.xlu0 %7526
    %7528 = vrot.lane.b32.xlu0 %v7241, 125
    %v7529 = vpop.permute.xlu0 %7528
    %7530 = vrot.lane.b32.xlu0 %v7242, 125
    %v7531 = vpop.permute.xlu0 %7530
    %7532 = vrot.lane.b32.xlu0 %v7243, 125
    %v7533 = vpop.permute.xlu0 %7532
    %7534 = vrot.lane.b32.xlu0 %v7244, 125
    %v7535 = vpop.permute.xlu0 %7534
    %7536 = vrot.lane.b32.xlu0 %v7245, 125
    %v7537 = vpop.permute.xlu0 %7536
    %7538 = vrot.lane.b32.xlu0 %v7246, 125
    %v7539 = vpop.permute.xlu0 %7538
    %7540 = vrot.lane.b32.xlu0 %v7247, 125
    %v7541 = vpop.permute.xlu0 %7540
    %7556 = vrot.lane.b32.xlu0 %v7234, 121
    %v7557 = vpop.permute.xlu0 %7556
    %7558 = vrot.lane.b32.xlu0 %v7235, 121
    %v7559 = vpop.permute.xlu0 %7558
    %7560 = vrot.lane.b32.xlu0 %v7236, 121
    %v7561 = vpop.permute.xlu0 %7560
    %7562 = vrot.lane.b32.xlu0 %v7237, 121
    %v7563 = vpop.permute.xlu0 %7562
    %7564 = vrot.lane.b32.xlu0 %v7238, 121
    %v7565 = vpop.permute.xlu0 %7564
    %7566 = vrot.lane.b32.xlu0 %v7239, 121
    %v7567 = vpop.permute.xlu0 %7566
    %7568 = vrot.lane.b32.xlu0 %v7240, 121
    %v7569 = vpop.permute.xlu0 %7568
    %7570 = vrot.lane.b32.xlu0 %v7241, 121
    %v7571 = vpop.permute.xlu0 %7570
    %7572 = vrot.lane.b32.xlu0 %v7242, 121
    %v7573 = vpop.permute.xlu0 %7572
    %7574 = vrot.lane.b32.xlu0 %v7243, 121
    %v7575 = vpop.permute.xlu0 %7574
    %7576 = vrot.lane.b32.xlu0 %v7244, 121
    %v7577 = vpop.permute.xlu0 %7576
    %7578 = vrot.lane.b32.xlu0 %v7245, 121
    %v7579 = vpop.permute.xlu0 %7578
    %7580 = vrot.lane.b32.xlu0 %v7246, 121
    %v7581 = vpop.permute.xlu0 %7580
    %7582 = vrot.lane.b32.xlu0 %v7247, 121
    %v7583 = vpop.permute.xlu0 %7582
    %v7598 = vsel %vm991, %v7515, %v7557
    %v7599 = vsel %vm991, %v7517, %v7559
    %v7600 = vsel %vm991, %v7519, %v7561
    %v7601 = vsel %vm991, %v7521, %v7563
    %v7602 = vsel %vm991, %v7523, %v7565
    %v7603 = vsel %vm991, %v7525, %v7567
    %v7604 = vsel %vm991, %v7527, %v7569
    %v7605 = vsel %vm991, %v7529, %v7571
    %v7606 = vsel %vm991, %v7531, %v7573
    %v7607 = vsel %vm991, %v7533, %v7575
    %v7608 = vsel %vm991, %v7535, %v7577
    %v7609 = vsel %vm991, %v7537, %v7579
    %v7610 = vsel %vm991, %v7539, %v7581
    %v7611 = vsel %vm991, %v7541, %v7583
    %7612 = vrot.lane.b32.xlu0 %v7234, 120
    %v7613 = vpop.permute.xlu0 %7612
    %7614 = vrot.lane.b32.xlu0 %v7235, 120
    %v7615 = vpop.permute.xlu0 %7614
    %7616 = vrot.lane.b32.xlu0 %v7236, 120
    %v7617 = vpop.permute.xlu0 %7616
    %7618 = vrot.lane.b32.xlu0 %v7237, 120
    %v7619 = vpop.permute.xlu0 %7618
    %7620 = vrot.lane.b32.xlu0 %v7238, 120
    %v7621 = vpop.permute.xlu0 %7620
    %7622 = vrot.lane.b32.xlu0 %v7239, 120
    %v7623 = vpop.permute.xlu0 %7622
    %7624 = vrot.lane.b32.xlu0 %v7240, 120
    %v7625 = vpop.permute.xlu0 %7624
    %7626 = vrot.lane.b32.xlu0 %v7241, 120
    %v7627 = vpop.permute.xlu0 %7626
    %7628 = vrot.lane.b32.xlu0 %v7242, 120
    %v7629 = vpop.permute.xlu0 %7628
    %7630 = vrot.lane.b32.xlu0 %v7243, 120
    %v7631 = vpop.permute.xlu0 %7630
    %7632 = vrot.lane.b32.xlu0 %v7244, 120
    %v7633 = vpop.permute.xlu0 %7632
    %7634 = vrot.lane.b32.xlu0 %v7245, 120
    %v7635 = vpop.permute.xlu0 %7634
    %7636 = vrot.lane.b32.xlu0 %v7246, 120
    %v7637 = vpop.permute.xlu0 %7636
    %7638 = vrot.lane.b32.xlu0 %v7247, 120
    %v7639 = vpop.permute.xlu0 %7638
    %v7654 = vsel %vm991, %v7263, %v7613
    %v7655 = vsel %vm991, %v7265, %v7615
    %v7656 = vsel %vm991, %v7267, %v7617
    %v7657 = vsel %vm991, %v7269, %v7619
    %v7658 = vsel %vm991, %v7271, %v7621
    %v7659 = vsel %vm991, %v7273, %v7623
    %v7660 = vsel %vm991, %v7275, %v7625
    %v7661 = vsel %vm991, %v7277, %v7627
    %v7662 = vsel %vm991, %v7279, %v7629
    %v7663 = vsel %vm991, %v7281, %v7631
    %v7664 = vsel %vm991, %v7283, %v7633
    %v7665 = vsel %vm991, %v7285, %v7635
    %v7666 = vsel %vm991, %v7287, %v7637
    %v7667 = vsel %vm991, %v7289, %v7639
    %v7668 = vld [vmem:[#allocation16] sm:$0xff]
    %v7669 = vld [vmem:[#allocation16 + $0x8] sm:$0xff]
    %v7670 = vld [vmem:[#allocation16 + $0x10] sm:$0xf]
    %v7671 = vld [vmem:[#allocation16 + $0x14] sm:$0xff]
    %v7672 = vld [vmem:[#allocation16 + $0x1c] sm:$0xff]
    %v7673 = vld [vmem:[#allocation16 + $0x24] sm:$0xf]
    %v7674 = vld [vmem:[#allocation16 + $0x28] sm:$0xff]
    %v7675 = vld [vmem:[#allocation16 + $0x30] sm:$0xff]
    %v7676 = vld [vmem:[#allocation16 + $0x38] sm:$0xf]
    %v7677 = vld [vmem:[#allocation16 + $0x3c] sm:$0xff]
    %v7678 = vld [vmem:[#allocation16 + $0x44] sm:$0xff]
    %v7679 = vld [vmem:[#allocation16 + $0x4c] sm:$0xf]
    %v7680 = vld [vmem:[#allocation16 + $0x50] sm:$0xff]
    %v7681 = vld [vmem:[#allocation16 + $0x58] sm:$0xff]
    %v7682 = vld [vmem:[#allocation16 + $0x60] sm:$0xf]
    %v7683 = vld [vmem:[#allocation16 + $0x64] sm:$0xff]
    %v7684 = vld [vmem:[#allocation16 + $0x6c] sm:$0xff]
    %v7685 = vld [vmem:[#allocation16 + $0x74] sm:$0xf]
    %v7686 = vpack.c.bf16 %v7305, %v7304
    %v7687 = vpack.c.bf16 %v7307, %v7306
    %v7688 = vpack.c.bf16 %v7309, %v7308
    %v7689 = vpack.c.bf16 %v7311, %v7310
    %v7690 = vpack.c.bf16 %v7313, %v7312
    %v7691 = vpack.c.bf16 %v7315, %v7314
    %v7692 = vpack.c.bf16 %v7317, %v7316
    %v7693 = vpack.c.bf16 %v7403, %v7402
    %v7694 = vpack.c.bf16 %v7405, %v7404
    %v7695 = vpack.c.bf16 %v7407, %v7406
    %v7696 = vpack.c.bf16 %v7409, %v7408
    %v7697 = vpack.c.bf16 %v7411, %v7410
    %v7698 = vpack.c.bf16 %v7413, %v7412
    %v7699 = vpack.c.bf16 %v7415, %v7414
    %v7700 = vpack.c.bf16 %v7501, %v7500
    %v7701 = vpack.c.bf16 %v7503, %v7502
    %v7702 = vpack.c.bf16 %v7505, %v7504
    %v7703 = vpack.c.bf16 %v7507, %v7506
    %v7704 = vpack.c.bf16 %v7509, %v7508
    %v7705 = vpack.c.bf16 %v7511, %v7510
    %v7706 = vpack.c.bf16 %v7513, %v7512
    %v7707 = vpack.c.bf16 %v7599, %v7598
    %v7708 = vpack.c.bf16 %v7601, %v7600
    %v7709 = vpack.c.bf16 %v7603, %v7602
    %v7710 = vpack.c.bf16 %v7605, %v7604
    %v7711 = vpack.c.bf16 %v7607, %v7606
    %v7712 = vpack.c.bf16 %v7609, %v7608
    %v7713 = vpack.c.bf16 %v7611, %v7610
    %v7714 = vpack.c.bf16 %v7655, %v7654
    %v7715 = vpack.c.bf16 %v7657, %v7656
    %v7716 = vpack.c.bf16 %v7659, %v7658
    %v7717 = vpack.c.bf16 %v7661, %v7660
    %v7718 = vpack.c.bf16 %v7663, %v7662
    %v7719 = vpack.c.bf16 %v7665, %v7664
    %v7720 = vpack.c.bf16 %v7667, %v7666
    %v7721 = vld [vmem:[%s12] sm:$0xff]
    %v7722 = vld [vmem:[%s12 + $0x8] sm:$0xff]
    %v7723 = vld [vmem:[%s12 + $0x10] sm:$0xff]
    %v7724 = vld [vmem:[%s12 + $0x18] sm:$0xff]
    %v7725 = vld [vmem:[%s12 + $0x20] sm:$0xff]
    %v7726 = vld [vmem:[%s12 + $0x28] sm:$0xff]
    %7728 = vset.pattern.permute.xlu0 0
    %7729 = vperm.xlu0 %7728, %v7721
    %v7730 = vpop.permute.xlu0 %7729
    %7733 = vset.pattern.permute.xlu0 0
    %7734 = vperm.xlu0 %7733, %v7722
    %v7735 = vpop.permute.xlu0 %7734
    %7738 = vset.pattern.permute.xlu0 0
    %7739 = vperm.xlu0 %7738, %v7723
    %v7740 = vpop.permute.xlu0 %7739
    %7743 = vset.pattern.permute.xlu0 0
    %7744 = vperm.xlu0 %7743, %v7724
    %v7745 = vpop.permute.xlu0 %7744
    %7748 = vset.pattern.permute.xlu0 0
    %7749 = vperm.xlu0 %7748, %v7725
    %v7750 = vpop.permute.xlu0 %7749
    %7753 = vset.pattern.permute.xlu0 0
    %7754 = vperm.xlu0 %7753, %v7726
    %v7755 = vpop.permute.xlu0 %7754
    %v7775 = vunpack.c.l.b16 %v7668
    %v7776 = vunpack.c.h.b16 %v7668
    %v7777 = vunpack.c.l.b16 %v7669
    %v7778 = vunpack.c.h.b16 %v7669
    %v7779 = vunpack.c.l.b16 %v7670
    %v7780 = vunpack.c.l.b16 %v7671
    %v7781 = vunpack.c.h.b16 %v7671
    %v7782 = vunpack.c.l.b16 %v7672
    %v7783 = vunpack.c.h.b16 %v7672
    %v7784 = vunpack.c.l.b16 %v7673
    %v7785 = vunpack.c.l.b16 %v7674
    %v7786 = vunpack.c.h.b16 %v7674
    %v7787 = vunpack.c.l.b16 %v7675
    %v7788 = vunpack.c.h.b16 %v7675
    %v7789 = vunpack.c.l.b16 %v7676
    %v7790 = vunpack.c.l.b16 %v7677
    %v7791 = vunpack.c.h.b16 %v7677
    %v7792 = vunpack.c.l.b16 %v7678
    %v7793 = vunpack.c.h.b16 %v7678
    %v7794 = vunpack.c.l.b16 %v7679
    %v7795 = vunpack.c.l.b16 %v7680
    %v7796 = vunpack.c.h.b16 %v7680
    %v7797 = vunpack.c.l.b16 %v7681
    %v7798 = vunpack.c.h.b16 %v7681
    %v7799 = vunpack.c.l.b16 %v7682
    %v7800 = vunpack.c.l.b16 %v7683
    %v7801 = vunpack.c.h.b16 %v7683
    %v7802 = vunpack.c.l.b16 %v7684
    %v7803 = vunpack.c.h.b16 %v7684
    %v7804 = vunpack.c.l.b16 %v7685
    %v7805 = vpack.c.b16 %v7780, %v7775
    %v7806 = vpack.c.b16 %v7781, %v7776
    %v7807 = vpack.c.b16 %v7782, %v7777
    %v7808 = vpack.c.b16 %v7783, %v7778
    %v7809 = vpack.c.b16 %v7784, %v7779
    %v7810 = vpack.c.b16 %v7790, %v7785
    %v7811 = vpack.c.b16 %v7791, %v7786
    %v7812 = vpack.c.b16 %v7792, %v7787
    %v7813 = vpack.c.b16 %v7793, %v7788
    %v7814 = vpack.c.b16 %v7794, %v7789
    %v7815 = vpack.c.b16 %v7800, %v7795
    %v7816 = vpack.c.b16 %v7801, %v7796
    %v7817 = vpack.c.b16 %v7802, %v7797
    %v7818 = vpack.c.b16 %v7803, %v7798
    %v7819 = vpack.c.b16 %v7804, %v7799
    %vm7832 = vcmask 392192
    %v7834 = vsel %vm7832, %v7809, 0
    %v7837 = vsel %vm7832, %v7814, 0
    %v7840 = vsel %vm7832, %v7819, 0
    %7842 = vmatprep.subr.bf16.mxu0 0
    %7843 = vmatpush1.bf16.msra.mxu0 %v7686
    %7844 = vmatprep.subr.bf16.mxu0 0
    %7845 = vmatpush1.bf16.msra.mxu0 %v7687
    %7846 = vmatprep.subr.bf16.mxu0 0
    %7847 = vmatpush1.bf16.msra.mxu0 %v7688
    %7848 = vmatprep.subr.bf16.mxu0 0
    %7849 = vmatpush1.bf16.msra.mxu0 %v7689
    %7850 = vmatprep.subr.bf16.mxu0 0
    %7851 = vmatpush1.bf16.msra.mxu0 %v7690
    %7852 = vmatprep.subr.bf16.mxu0 0
    %7853 = vmatpush1.bf16.msra.mxu0 %v7691
    %7854 = vmatprep.subr.bf16.mxu0 0
    %7855 = vmatpush1.bf16.msra.mxu0 %v7692
    %7856 = vmatprep.subr.bf16.mxu0 0
    %7857 = vmatpush1.bf16.msra.mxu0 %v7693
    %7858 = vmatprep.subr.bf16.mxu0 0
    %7859 = vmatpush1.bf16.msra.mxu0 %v7694
    %7860 = vmatprep.subr.bf16.mxu0 0
    %7861 = vmatpush1.bf16.msra.mxu0 %v7695
    %7862 = vmatprep.subr.bf16.mxu0 0
    %7863 = vmatpush1.bf16.msra.mxu0 %v7696
    %7864 = vmatprep.subr.bf16.mxu0 0
    %7865 = vmatpush1.bf16.msra.mxu0 %v7697
    %7866 = vmatprep.subr.bf16.mxu0 0
    %7867 = vmatpush1.bf16.msra.mxu0 %v7698
    %7868 = vmatprep.subr.bf16.mxu0 0
    %7869 = vmatpush1.bf16.msra.mxu0 %v7699
    %7870 = vmatprep.subr.bf16.mxu0 0
    %7871 = vmatpush1.bf16.msra.mxu0 %v7700
    %7872 = vmatprep.subr.bf16.mxu0 0
    %7873 = vmatpush1.bf16.msra.mxu0 %v7701
    %7874 = vmatprep.mubr.bf16.mxu0 %v7806
    %7875 = vmatmul.mubr.bf16.gmra.mrb[0].mxu0 %v7805
    %v7876 = vpop.f32.mrb[0].mxu0
    %v7877 = vadd.f32 %v7730, %v7876
    %v7878 = vpop.f32.mrb[0].mxu0
    %v7879 = vpop.f32.mrb[0].mxu0
    %v7880 = vadd.f32 %v7735, %v7879
    %v7881 = vpop.f32.mrb[0].mxu0
    %7882 = vmatprep.mubr.bf16.mxu0 %v7811
    %7883 = vmatmul.mubr.bf16.gmra.mrb[0].mxu0 %v7810
    %v7884 = vpop.f32.mrb[0].mxu0
    %v7885 = vadd.f32 %v7740, %v7884
    %v7886 = vpop.f32.mrb[0].mxu0
    %v7887 = vpop.f32.mrb[0].mxu0
    %v7888 = vadd.f32 %v7745, %v7887
    %v7889 = vpop.f32.mrb[0].mxu0
    %7890 = vmatprep.mubr.bf16.mxu0 %v7816
    %7891 = vmatmul.mubr.bf16.gmra.mrb[0].mxu0 %v7815
    %v7892 = vpop.f32.mrb[0].mxu0
    %v7893 = vadd.f32 %v7750, %v7892
    %v7894 = vpop.f32.mrb[0].mxu0
    %v7895 = vpop.f32.mrb[0].mxu0
    %v7896 = vadd.f32 %v7755, %v7895
    %v7897 = vpop.f32.mrb[0].mxu0
    %7898 = vdwg.mxu0
    %7899 = vmatprep.subr.bf16.mxu0 0
    %7900 = vmatpush1.bf16.msra.mxu0 %v7702
    %7901 = vmatprep.subr.bf16.mxu0 0
    %7902 = vmatpush1.bf16.msra.mxu0 %v7703
    %7903 = vmatprep.subr.bf16.mxu0 0
    %7904 = vmatpush1.bf16.msra.mxu0 %v7704
    %7905 = vmatprep.subr.bf16.mxu0 0
    %7906 = vmatpush1.bf16.msra.mxu0 %v7705
    %7907 = vmatprep.subr.bf16.mxu0 0
    %7908 = vmatpush1.bf16.msra.mxu0 %v7706
    %7909 = vmatprep.subr.bf16.mxu0 0
    %7910 = vmatpush1.bf16.msra.mxu0 %v7707
    %7911 = vmatprep.subr.bf16.mxu0 0
    %7912 = vmatpush1.bf16.msra.mxu0 %v7708
    %7913 = vmatprep.subr.bf16.mxu0 0
    %7914 = vmatpush1.bf16.msra.mxu0 %v7709
    %7915 = vmatprep.subr.bf16.mxu0 0
    %7916 = vmatpush1.bf16.msra.mxu0 %v7710
    %7917 = vmatprep.subr.bf16.mxu0 0
    %7918 = vmatpush1.bf16.msra.mxu0 %v7711
    %7919 = vmatprep.subr.bf16.mxu0 0
    %7920 = vmatpush1.bf16.msra.mxu0 %v7712
    %7921 = vmatprep.subr.bf16.mxu0 0
    %7922 = vmatpush1.bf16.msra.mxu0 %v7713
    %7923 = vmatprep.subr.bf16.mxu0 0
    %7924 = vmatpush1.bf16.msra.mxu0 %v7714
    %7925 = vmatprep.subr.bf16.mxu0 0
    %7926 = vmatpush1.bf16.msra.mxu0 %v7715
    %7927 = vmatprep.subr.bf16.mxu0 0
    %7928 = vmatpush1.bf16.msra.mxu0 %v7716
    %7929 = vmatprep.subr.bf16.mxu0 0
    %7930 = vmatpush1.bf16.msra.mxu0 %v7717
    %7931 = vmatprep.mubr.bf16.mxu0 %v7808
    %7932 = vmatmul.mubr.bf16.gmra.mrb[0].mxu0 %v7807
    %v7933 = vpop.f32.mrb[0].mxu0
    %v7934 = vadd.f32 %v7877, %v7933
    %v7935 = vpop.f32.mrb[0].mxu0
    %v7936 = vpop.f32.mrb[0].mxu0
    %v7937 = vadd.f32 %v7880, %v7936
    %v7938 = vpop.f32.mrb[0].mxu0
    %7939 = vmatprep.mubr.bf16.mxu0 %v7813
    %7940 = vmatmul.mubr.bf16.gmra.mrb[0].mxu0 %v7812
    %v7941 = vpop.f32.mrb[0].mxu0
    %v7942 = vadd.f32 %v7885, %v7941
    %v7943 = vpop.f32.mrb[0].mxu0
    %v7944 = vpop.f32.mrb[0].mxu0
    %v7945 = vadd.f32 %v7888, %v7944
    %v7946 = vpop.f32.mrb[0].mxu0
    %7947 = vmatprep.mubr.bf16.mxu0 %v7818
    %7948 = vmatmul.mubr.bf16.gmra.mrb[0].mxu0 %v7817
    %v7949 = vpop.f32.mrb[0].mxu0
    %v7950 = vadd.f32 %v7893, %v7949
    %v7951 = vpop.f32.mrb[0].mxu0
    %v7952 = vpop.f32.mrb[0].mxu0
    %v7953 = vadd.f32 %v7896, %v7952
    %v7954 = vpop.f32.mrb[0].mxu0
    %7955 = vdwg.mxu0
    %7956 = vmatprep.subr.bf16.mxu0 0
    %7957 = vmatpush1.bf16.msra.mxu0 %v7718
    %7958 = vmatprep.subr.bf16.mxu0 0
    %7959 = vmatpush1.bf16.msra.mxu0 %v7719
    %7960 = vmatprep.subr.bf16.mxu0 0
    %7961 = vmatpush1.bf16.msra.mxu0 %v7720
    %7962 = vmatprep.subr.bf16.mxu0 0
    %7963 = vmatpush1.bf16.msra.mxu0 0
    %7964 = vmatprep.subr.bf16.mxu0 0
    %7965 = vmatpush1.bf16.msra.mxu0 0
    %7966 = vmatprep.subr.bf16.mxu0 0
    %7967 = vmatpush1.bf16.msra.mxu0 0
    %7968 = vmatprep.subr.bf16.mxu0 0
    %7969 = vmatpush1.bf16.msra.mxu0 0
    %7970 = vmatprep.subr.bf16.mxu0 0
    %7971 = vmatpush1.bf16.msra.mxu0 0
    %7972 = vmatprep.subr.bf16.mxu0 0
    %7973 = vmatpush1.bf16.msra.mxu0 0
    %7974 = vmatprep.subr.bf16.mxu0 0
    %7975 = vmatpush1.bf16.msra.mxu0 0
    %7976 = vmatprep.subr.bf16.mxu0 0
    %7977 = vmatpush1.bf16.msra.mxu0 0
    %7978 = vmatprep.subr.bf16.mxu0 0
    %7979 = vmatpush1.bf16.msra.mxu0 0
    %7980 = vmatprep.subr.bf16.mxu0 0
    %7981 = vmatpush1.bf16.msra.mxu0 0
    %7982 = vmatprep.subr.bf16.mxu0 0
    %7983 = vmatpush1.bf16.msra.mxu0 0
    %7984 = vmatprep.subr.bf16.mxu0 0
    %7985 = vmatpush1.bf16.msra.mxu0 0
    %7986 = vmatprep.subr.bf16.mxu0 0
    %7987 = vmatpush1.bf16.msra.mxu0 0
    %7988 = vmatprep.mubr.bf16.mxu0 0
    %7989 = vmatmul.mubr.bf16.gmra.mrb[0].mxu0 %v7834
    %v7990 = vpop.f32.mrb[0].mxu0
    %v7991 = vadd.f32 %v7934, %v7990
    %v7992 = vpop.f32.mrb[0].mxu0
    %v7993 = vpop.f32.mrb[0].mxu0
    %v7994 = vadd.f32 %v7937, %v7993
    %v7995 = vpop.f32.mrb[0].mxu0
    %7996 = vmatprep.mubr.bf16.mxu0 0
    %7997 = vmatmul.mubr.bf16.gmra.mrb[0].mxu0 %v7837
    %v7998 = vpop.f32.mrb[0].mxu0
    %v7999 = vadd.f32 %v7942, %v7998
    %v8000 = vpop.f32.mrb[0].mxu0
    %v8001 = vpop.f32.mrb[0].mxu0
    %v8002 = vadd.f32 %v7945, %v8001
    %v8003 = vpop.f32.mrb[0].mxu0
    %8004 = vmatprep.mubr.bf16.mxu0 0
    %8005 = vmatmul.mubr.bf16.gmra.mrb[0].mxu0 %v7840
    %v8006 = vpop.f32.mrb[0].mxu0
    %v8007 = vadd.f32 %v7950, %v8006
    %v8008 = vpop.f32.mrb[0].mxu0
    %v8009 = vpop.f32.mrb[0].mxu0
    %v8010 = vadd.f32 %v7953, %v8009
    %v8011 = vpop.f32.mrb[0].mxu0
    %8012 = vdwg.mxu0
    %v8013 = vsel %vm166, %v7991, 0.0
    %8014 = vadd.xlane.f32.xlu0 %v8013
    %v8015 = vpop.xlane.xlu0 %8014
    %v8016 = vsel %vm166, %v7994, 0.0
    %8017 = vadd.xlane.f32.xlu0 %v8016
    %v8018 = vpop.xlane.xlu0 %8017
    %v8019 = vsel %vm166, %v7999, 0.0
    %8020 = vadd.xlane.f32.xlu0 %v8019
    %v8021 = vpop.xlane.xlu0 %8020
    %v8022 = vsel %vm166, %v8002, 0.0
    %8023 = vadd.xlane.f32.xlu0 %v8022
    %v8024 = vpop.xlane.xlu0 %8023
    %v8025 = vsel %vm166, %v8007, 0.0
    %8026 = vadd.xlane.f32.xlu0 %v8025
    %v8027 = vpop.xlane.xlu0 %8026
    %v8028 = vsel %vm166, %v8010, 0.0
    %8029 = vadd.xlane.f32.xlu0 %v8028
    %v8030 = vpop.xlane.xlu0 %8029
    %v8031 = vmul.f32 %v7991, %v7991
    %v8032 = vmul.f32 %v7994, %v7994
    %v8033 = vmul.f32 %v7999, %v7999
    %v8034 = vmul.f32 %v8002, %v8002
    %v8035 = vmul.f32 %v8007, %v8007
    %v8036 = vmul.f32 %v8010, %v8010
    %v8037 = vsel %vm166, %v8031, 0.0
    %8038 = vadd.xlane.f32.xlu0 %v8037
    %v8039 = vpop.xlane.xlu0 %8038
    %v8040 = vsel %vm166, %v8032, 0.0
    %8041 = vadd.xlane.f32.xlu0 %v8040
    %v8042 = vpop.xlane.xlu0 %8041
    %v8043 = vsel %vm166, %v8033, 0.0
    %8044 = vadd.xlane.f32.xlu0 %v8043
    %v8045 = vpop.xlane.xlu0 %8044
    %v8046 = vsel %vm166, %v8034, 0.0
    %8047 = vadd.xlane.f32.xlu0 %v8046
    %v8048 = vpop.xlane.xlu0 %8047
    %v8049 = vsel %vm166, %v8035, 0.0
    %8050 = vadd.xlane.f32.xlu0 %v8049
    %v8051 = vpop.xlane.xlu0 %8050
    %v8052 = vsel %vm166, %v8036, 0.0
    %8053 = vadd.xlane.f32.xlu0 %v8052
    %v8054 = vpop.xlane.xlu0 %8053
    %v8055 = vmul.f32 %v8015, 0.0625
    %v8056 = vmul.f32 %v8018, 0.0625
    %v8057 = vmul.f32 %v8021, 0.0625
    %v8058 = vmul.f32 %v8024, 0.0625
    %v8059 = vmul.f32 %v8027, 0.0625
    %v8060 = vmul.f32 %v8030, 0.0625
    %v8061 = vmul.f32 %v8039, 0.0625
    %v8062 = vmul.f32 %v8042, 0.0625
    %v8063 = vmul.f32 %v8045, 0.0625
    %v8064 = vmul.f32 %v8048, 0.0625
    %v8065 = vmul.f32 %v8051, 0.0625
    %v8066 = vmul.f32 %v8054, 0.0625
    %v8067 = vmul.f32 %v8055, %v8055
    %v8068 = vmul.f32 %v8056, %v8056
    %v8069 = vmul.f32 %v8057, %v8057
    %v8070 = vmul.f32 %v8058, %v8058
    %v8071 = vmul.f32 %v8059, %v8059
    %v8072 = vmul.f32 %v8060, %v8060
    %v8073 = vsub.f32 %v8061, %v8067
    %v8074 = vsub.f32 %v8062, %v8068
    %v8075 = vsub.f32 %v8063, %v8069
    %v8076 = vsub.f32 %v8064, %v8070
    %v8077 = vsub.f32 %v8065, %v8071
    %v8078 = vsub.f32 %v8066, %v8072
    %v8079 = vmax.f32 %v8073, 0.0
    %v8080 = vmax.f32 %v8074, 0.0
    %v8081 = vmax.f32 %v8075, 0.0
    %v8082 = vmax.f32 %v8076, 0.0
    %v8083 = vmax.f32 %v8077, 0.0
    %v8084 = vmax.f32 %v8078, 0.0
    %v8085 = vadd.f32 %v8079, 1e-05
    %v8086 = vadd.f32 %v8080, 1e-05
    %v8087 = vadd.f32 %v8081, 1e-05
    %v8088 = vadd.f32 %v8082, 1e-05
    %v8089 = vadd.f32 %v8083, 1e-05
    %v8090 = vadd.f32 %v8084, 1e-05
    %v8091 = vrsqrt.pop %v8085
    %v8092 = vrsqrt.pop %v8086
    %v8093 = vrsqrt.pop %v8087
    %v8094 = vrsqrt.pop %v8088
    %v8095 = vrsqrt.pop %v8089
    %v8096 = vrsqrt.pop %v8090
    %v8097 = vmul.f32 %v8091, %v7721
    %v8098 = vmul.f32 %v8092, %v7722
    %v8099 = vmul.f32 %v8093, %v7723
    %v8100 = vmul.f32 %v8094, %v7724
    %v8101 = vmul.f32 %v8095, %v7725
    %v8102 = vmul.f32 %v8096, %v7726
    %v8103 = vmul.f32 %v8055, %v8097
    %v8104 = vmul.f32 %v8056, %v8098
    %v8105 = vmul.f32 %v8057, %v8099
    %v8106 = vmul.f32 %v8058, %v8100
    %v8107 = vmul.f32 %v8059, %v8101
    %v8108 = vmul.f32 %v8060, %v8102
    %8115 = vrot.lane.b32.xlu0 %v8103, 1
    %v8116 = vpop.permute.xlu0 %8115
    %8117 = vrot.lane.b32.xlu0 %v8104, 1
    %v8118 = vpop.permute.xlu0 %8117
    %8119 = vrot.lane.b32.xlu0 %v8105, 1
    %v8120 = vpop.permute.xlu0 %8119
    %8121 = vrot.lane.b32.xlu0 %v8106, 1
    %v8122 = vpop.permute.xlu0 %8121
    %8123 = vrot.lane.b32.xlu0 %v8107, 1
    %v8124 = vpop.permute.xlu0 %8123
    %8125 = vrot.lane.b32.xlu0 %v8108, 1
    %v8126 = vpop.permute.xlu0 %8125
    %v8133 = vsub.f32 %v7721, %v8116
    %v8134 = vsub.f32 %v7722, %v8118
    %v8135 = vsub.f32 %v7723, %v8120
    %v8136 = vsub.f32 %v7724, %v8122
    %v8137 = vsub.f32 %v7725, %v8124
    %v8138 = vsub.f32 %v7726, %v8126
    %8140 = vset.pattern.permute.xlu0 1
    %8141 = vperm.xlu0 %8140, %v8097
    %v8142 = vpop.permute.xlu0 %8141
    %8145 = vset.pattern.permute.xlu0 1
    %8146 = vperm.xlu0 %8145, %v8098
    %v8147 = vpop.permute.xlu0 %8146
    %8150 = vset.pattern.permute.xlu0 1
    %8151 = vperm.xlu0 %8150, %v8099
    %v8152 = vpop.permute.xlu0 %8151
    %8155 = vset.pattern.permute.xlu0 1
    %8156 = vperm.xlu0 %8155, %v8100
    %v8157 = vpop.permute.xlu0 %8156
    %8160 = vset.pattern.permute.xlu0 1
    %8161 = vperm.xlu0 %8160, %v8101
    %v8162 = vpop.permute.xlu0 %8161
    %8165 = vset.pattern.permute.xlu0 1
    %8166 = vperm.xlu0 %8165, %v8102
    %v8167 = vpop.permute.xlu0 %8166
    %v8169 = vmul.f32 %v7991, %v8142
    %v8170 = vmul.f32 %v7994, %v8147
    %v8171 = vmul.f32 %v7999, %v8152
    %v8172 = vmul.f32 %v8002, %v8157
    %v8173 = vmul.f32 %v8007, %v8162
    %v8174 = vmul.f32 %v8010, %v8167
    %8176 = vset.pattern.permute.xlu0 2
    %8177 = vperm.xlu0 %8176, %v8133
    %v8178 = vpop.permute.xlu0 %8177
    %8181 = vset.pattern.permute.xlu0 2
    %8182 = vperm.xlu0 %8181, %v8134
    %v8183 = vpop.permute.xlu0 %8182
    %8186 = vset.pattern.permute.xlu0 2
    %8187 = vperm.xlu0 %8186, %v8135
    %v8188 = vpop.permute.xlu0 %8187
    %8191 = vset.pattern.permute.xlu0 2
    %8192 = vperm.xlu0 %8191, %v8136
    %v8193 = vpop.permute.xlu0 %8192
    %8196 = vset.pattern.permute.xlu0 2
    %8197 = vperm.xlu0 %8196, %v8137
    %v8198 = vpop.permute.xlu0 %8197
    %8201 = vset.pattern.permute.xlu0 2
    %8202 = vperm.xlu0 %8201, %v8138
    %v8203 = vpop.permute.xlu0 %8202
    %v8205 = vadd.f32 %v8169, %v8178
    %v8206 = vadd.f32 %v8170, %v8183
    %v8207 = vadd.f32 %v8171, %v8188
    %v8208 = vadd.f32 %v8172, %v8193
    %v8209 = vadd.f32 %v8173, %v8198
    %v8210 = vadd.f32 %v8174, %v8203
    %vm8211 = vcmp.gt.f32.partialorder %v8205, 0.0
    %vm8212 = vcmp.gt.f32.partialorder %v8206, 0.0
    %vm8213 = vcmp.gt.f32.partialorder %v8207, 0.0
    %vm8214 = vcmp.gt.f32.partialorder %v8208, 0.0
    %vm8215 = vcmp.gt.f32.partialorder %v8209, 0.0
    %vm8216 = vcmp.gt.f32.partialorder %v8210, 0.0
    %v8217 = vmul.f32 %v8205, 0.01
    %v8218 = vmul.f32 %v8206, 0.01
    %v8219 = vmul.f32 %v8207, 0.01
    %v8220 = vmul.f32 %v8208, 0.01
    %v8221 = vmul.f32 %v8209, 0.01
    %v8222 = vmul.f32 %v8210, 0.01
    %v8223 = vsel %vm8211, %v8205, %v8217
    %v8224 = vsel %vm8212, %v8206, %v8218
    %v8225 = vsel %vm8213, %v8207, %v8219
    %v8226 = vsel %vm8214, %v8208, %v8220
    %v8227 = vsel %vm8215, %v8209, %v8221
    %v8228 = vsel %vm8216, %v8210, %v8222
    %v8229 = vld [vmem:[%s22] sm:$0xff]
    %v8231 = vsel %vm991, %v8223, 0
    %v8234 = vsel %vm991, %v8224, 0
    %v8237 = vsel %vm991, %v8225, 0
    %v8240 = vsel %vm991, %v8226, 0
    %v8243 = vsel %vm991, %v8227, 0
    %v8246 = vsel %vm991, %v8228, 0
    %8248 = vmatprep.subr.mxu0 0.0
    %8249 = vmatpush1.msra.mxu0 %v8229
    %8250 = vmatprep.subr.mxu0 0.0
    %8251 = vmatpush1.msra.mxu0 0.0
    %8252 = vmatprep.subr.mxu0 0.0
    %8253 = vmatpush1.msra.mxu0 0.0
    %8254 = vmatprep.subr.mxu0 0.0
    %8255 = vmatpush1.msra.mxu0 0.0
    %8256 = vmatprep.subr.mxu0 0.0
    %8257 = vmatpush1.msra.mxu0 0.0
    %8258 = vmatprep.subr.mxu0 0.0
    %8259 = vmatpush1.msra.mxu0 0.0
    %8260 = vmatprep.subr.mxu0 0.0
    %8261 = vmatpush1.msra.mxu0 0.0
    %8262 = vmatprep.subr.mxu0 0.0
    %8263 = vmatpush1.msra.mxu0 0.0
    %8264 = vmatprep.subr.mxu0 0.0
    %8265 = vmatpush1.msra.mxu0 0.0
    %8266 = vmatprep.subr.mxu0 0.0
    %8267 = vmatpush1.msra.mxu0 0.0
    %8268 = vmatprep.subr.mxu0 0.0
    %8269 = vmatpush1.msra.mxu0 0.0
    %8270 = vmatprep.subr.mxu0 0.0
    %8271 = vmatpush1.msra.mxu0 0.0
    %8272 = vmatprep.subr.mxu0 0.0
    %8273 = vmatpush1.msra.mxu0 0.0
    %8274 = vmatprep.subr.mxu0 0.0
    %8275 = vmatpush1.msra.mxu0 0.0
    %8276 = vmatprep.subr.mxu0 0.0
    %8277 = vmatpush1.msra.mxu0 0.0
    %8278 = vmatprep.subr.mxu0 0.0
    %8279 = vmatpush1.msra.mxu0 0.0
    %8280 = vmatprep.subr.mxu0 0.0
    %8281 = vmatpush1.msra.mxu0 0.0
    %8282 = vmatprep.subr.mxu0 0.0
    %8283 = vmatpush1.msra.mxu0 0.0
    %8284 = vmatprep.subr.mxu0 0.0
    %8285 = vmatpush1.msra.mxu0 0.0
    %8286 = vmatprep.subr.mxu0 0.0
    %8287 = vmatpush1.msra.mxu0 0.0
    %8288 = vmatprep.subr.mxu0 0.0
    %8289 = vmatpush1.msra.mxu0 0.0
    %8290 = vmatprep.subr.mxu0 0.0
    %8291 = vmatpush1.msra.mxu0 0.0
    %8292 = vmatprep.subr.mxu0 0.0
    %8293 = vmatpush1.msra.mxu0 0.0
    %8294 = vmatprep.subr.mxu0 0.0
    %8295 = vmatpush1.msra.mxu0 0.0
    %8296 = vmatprep.subr.mxu0 0.0
    %8297 = vmatpush1.msra.mxu0 0.0
    %8298 = vmatprep.subr.mxu0 0.0
    %8299 = vmatpush1.msra.mxu0 0.0
    %8300 = vmatprep.subr.mxu0 0.0
    %8301 = vmatpush1.msra.mxu0 0.0
    %8302 = vmatprep.subr.mxu0 0.0
    %8303 = vmatpush1.msra.mxu0 0.0
    %8304 = vmatprep.subr.mxu0 0.0
    %8305 = vmatpush1.msra.mxu0 0.0
    %8306 = vmatprep.subr.mxu0 0.0
    %8307 = vmatpush1.msra.mxu0 0.0
    %8308 = vmatprep.subr.mxu0 0.0
    %8309 = vmatpush1.msra.mxu0 0.0
    %8310 = vmatprep.subr.mxu0 0.0
    %8311 = vmatpush1.msra.mxu0 0.0
    %8312 = vmatprep.mubr.f32.mxu0 0.0
    %8313 = vmatmul.mubr.f32.gmra.mrb[0].mxu0 %v8231
    %v8314 = vpop.f32.mrb[0].mxu0
    %v8315 = vadd.f32 0.0, %v8314
    %v8316 = vpop.f32.mrb[0].mxu0
    %8317 = vmatprep.mubr.f32.mxu0 0.0
    %8318 = vmatmul.mubr.f32.gmra.mrb[0].mxu0 %v8234
    %v8319 = vpop.f32.mrb[0].mxu0
    %v8320 = vadd.f32 0.0, %v8319
    %v8321 = vpop.f32.mrb[0].mxu0
    %8322 = vmatprep.mubr.f32.mxu0 0.0
    %8323 = vmatmul.mubr.f32.gmra.mrb[0].mxu0 %v8237
    %v8324 = vpop.f32.mrb[0].mxu0
    %v8325 = vadd.f32 0.0, %v8324
    %v8326 = vpop.f32.mrb[0].mxu0
    %8327 = vmatprep.mubr.f32.mxu0 0.0
    %8328 = vmatmul.mubr.f32.gmra.mrb[0].mxu0 %v8240
    %v8329 = vpop.f32.mrb[0].mxu0
    %v8330 = vadd.f32 0.0, %v8329
    %v8331 = vpop.f32.mrb[0].mxu0
    %8332 = vmatprep.mubr.f32.mxu0 0.0
    %8333 = vmatmul.mubr.f32.gmra.mrb[0].mxu0 %v8243
    %v8334 = vpop.f32.mrb[0].mxu0
    %v8335 = vadd.f32 0.0, %v8334
    %v8336 = vpop.f32.mrb[0].mxu0
    %8337 = vmatprep.mubr.f32.mxu0 0.0
    %8338 = vmatmul.mubr.f32.gmra.mrb[0].mxu0 %v8246
    %v8339 = vpop.f32.mrb[0].mxu0
    %v8340 = vadd.f32 0.0, %v8339
    %v8341 = vpop.f32.mrb[0].mxu0
    %8342 = vdwg.mxu0
    %8349 = vrot.lane.b32.xlu0 %v8315, 2
    %v8350 = vpop.permute.xlu0 %8349
    %8351 = vrot.lane.b32.xlu0 %v8320, 2
    %v8352 = vpop.permute.xlu0 %8351
    %8353 = vrot.lane.b32.xlu0 %v8325, 2
    %v8354 = vpop.permute.xlu0 %8353
    %8355 = vrot.lane.b32.xlu0 %v8330, 2
    %v8356 = vpop.permute.xlu0 %8355
    %8357 = vrot.lane.b32.xlu0 %v8335, 2
    %v8358 = vpop.permute.xlu0 %8357
    %8359 = vrot.lane.b32.xlu0 %v8340, 2
    %v8360 = vpop.permute.xlu0 %8359
    %8367 = vst.msk [vmem:[#allocation8] sm:$0xff] %vm803, %v8350
    %8368 = vst.msk [vmem:[#allocation8 + $0x8] sm:$0xff] %vm803, %v8352
    %8369 = vst.msk [vmem:[#allocation8 + $0x10] sm:$0xff] %vm803, %v8354
    %8370 = vst.msk [vmem:[#allocation8 + $0x18] sm:$0xff] %vm803, %v8356
    %8371 = vst.msk [vmem:[#allocation8 + $0x20] sm:$0xff] %vm803, %v8358
    %8372 = vst.msk [vmem:[#allocation8 + $0x28] sm:$0xff] %vm803, %v8360
    %8373 = vrot.lane.b32.xlu0 %v8223, 120
    %v8374 = vpop.permute.xlu0 %8373
    %8375 = vrot.lane.b32.xlu0 %v8224, 120
    %v8376 = vpop.permute.xlu0 %8375
    %8377 = vrot.lane.b32.xlu0 %v8225, 120
    %v8378 = vpop.permute.xlu0 %8377
    %8379 = vrot.lane.b32.xlu0 %v8226, 120
    %v8380 = vpop.permute.xlu0 %8379
    %8381 = vrot.lane.b32.xlu0 %v8227, 120
    %v8382 = vpop.permute.xlu0 %8381
    %8383 = vrot.lane.b32.xlu0 %v8228, 120
    %v8384 = vpop.permute.xlu0 %8383
    %v8385 = vsel %vm991, %v8374, 0
    %v8387 = vsel %vm991, %v8376, 0
    %v8389 = vsel %vm991, %v8378, 0
    %v8391 = vsel %vm991, %v8380, 0
    %v8393 = vsel %vm991, %v8382, 0
    %v8395 = vsel %vm991, %v8384, 0
    %8397 = vmatprep.subr.mxu0 0.0
    %8398 = vmatpush1.msra.mxu0 %v8229
    %8399 = vmatprep.subr.mxu0 0.0
    %8400 = vmatpush1.msra.mxu0 0.0
    %8401 = vmatprep.subr.mxu0 0.0
    %8402 = vmatpush1.msra.mxu0 0.0
    %8403 = vmatprep.subr.mxu0 0.0
    %8404 = vmatpush1.msra.mxu0 0.0
    %8405 = vmatprep.subr.mxu0 0.0
    %8406 = vmatpush1.msra.mxu0 0.0
    %8407 = vmatprep.subr.mxu0 0.0
    %8408 = vmatpush1.msra.mxu0 0.0
    %8409 = vmatprep.subr.mxu0 0.0
    %8410 = vmatpush1.msra.mxu0 0.0
    %8411 = vmatprep.subr.mxu0 0.0
    %8412 = vmatpush1.msra.mxu0 0.0
    %8413 = vmatprep.subr.mxu0 0.0
    %8414 = vmatpush1.msra.mxu0 0.0
    %8415 = vmatprep.subr.mxu0 0.0
    %8416 = vmatpush1.msra.mxu0 0.0
    %8417 = vmatprep.subr.mxu0 0.0
    %8418 = vmatpush1.msra.mxu0 0.0
    %8419 = vmatprep.subr.mxu0 0.0
    %8420 = vmatpush1.msra.mxu0 0.0
    %8421 = vmatprep.subr.mxu0 0.0
    %8422 = vmatpush1.msra.mxu0 0.0
    %8423 = vmatprep.subr.mxu0 0.0
    %8424 = vmatpush1.msra.mxu0 0.0
    %8425 = vmatprep.subr.mxu0 0.0
    %8426 = vmatpush1.msra.mxu0 0.0
    %8427 = vmatprep.subr.mxu0 0.0
    %8428 = vmatpush1.msra.mxu0 0.0
    %8429 = vmatprep.subr.mxu0 0.0
    %8430 = vmatpush1.msra.mxu0 0.0
    %8431 = vmatprep.subr.mxu0 0.0
    %8432 = vmatpush1.msra.mxu0 0.0
    %8433 = vmatprep.subr.mxu0 0.0
    %8434 = vmatpush1.msra.mxu0 0.0
    %8435 = vmatprep.subr.mxu0 0.0
    %8436 = vmatpush1.msra.mxu0 0.0
    %8437 = vmatprep.subr.mxu0 0.0
    %8438 = vmatpush1.msra.mxu0 0.0
    %8439 = vmatprep.subr.mxu0 0.0
    %8440 = vmatpush1.msra.mxu0 0.0
    %8441 = vmatprep.subr.mxu0 0.0
    %8442 = vmatpush1.msra.mxu0 0.0
    %8443 = vmatprep.subr.mxu0 0.0
    %8444 = vmatpush1.msra.mxu0 0.0
    %8445 = vmatprep.subr.mxu0 0.0
    %8446 = vmatpush1.msra.mxu0 0.0
    %8447 = vmatprep.subr.mxu0 0.0
    %8448 = vmatpush1.msra.mxu0 0.0
    %8449 = vmatprep.subr.mxu0 0.0
    %8450 = vmatpush1.msra.mxu0 0.0
    %8451 = vmatprep.subr.mxu0 0.0
    %8452 = vmatpush1.msra.mxu0 0.0
    %8453 = vmatprep.subr.mxu0 0.0
    %8454 = vmatpush1.msra.mxu0 0.0
    %8455 = vmatprep.subr.mxu0 0.0
    %8456 = vmatpush1.msra.mxu0 0.0
    %8457 = vmatprep.subr.mxu0 0.0
    %8458 = vmatpush1.msra.mxu0 0.0
    %8459 = vmatprep.subr.mxu0 0.0
    %8460 = vmatpush1.msra.mxu0 0.0
    %8461 = vmatprep.mubr.f32.mxu0 0.0
    %8462 = vmatmul.mubr.f32.gmra.mrb[0].mxu0 %v8385
    %v8463 = vpop.f32.mrb[0].mxu0
    %v8464 = vadd.f32 0.0, %v8463
    %v8465 = vpop.f32.mrb[0].mxu0
    %8466 = vmatprep.mubr.f32.mxu0 0.0
    %8467 = vmatmul.mubr.f32.gmra.mrb[0].mxu0 %v8387
    %v8468 = vpop.f32.mrb[0].mxu0
    %v8469 = vadd.f32 0.0, %v8468
    %v8470 = vpop.f32.mrb[0].mxu0
    %8471 = vmatprep.mubr.f32.mxu0 0.0
    %8472 = vmatmul.mubr.f32.gmra.mrb[0].mxu0 %v8389
    %v8473 = vpop.f32.mrb[0].mxu0
    %v8474 = vadd.f32 0.0, %v8473
    %v8475 = vpop.f32.mrb[0].mxu0
    %8476 = vmatprep.mubr.f32.mxu0 0.0
    %8477 = vmatmul.mubr.f32.gmra.mrb[0].mxu0 %v8391
    %v8478 = vpop.f32.mrb[0].mxu0
    %v8479 = vadd.f32 0.0, %v8478
    %v8480 = vpop.f32.mrb[0].mxu0
    %8481 = vmatprep.mubr.f32.mxu0 0.0
    %8482 = vmatmul.mubr.f32.gmra.mrb[0].mxu0 %v8393
    %v8483 = vpop.f32.mrb[0].mxu0
    %v8484 = vadd.f32 0.0, %v8483
    %v8485 = vpop.f32.mrb[0].mxu0
    %8486 = vmatprep.mubr.f32.mxu0 0.0
    %8487 = vmatmul.mubr.f32.gmra.mrb[0].mxu0 %v8395
    %v8488 = vpop.f32.mrb[0].mxu0
    %v8489 = vadd.f32 0.0, %v8488
    %v8490 = vpop.f32.mrb[0].mxu0
    %8491 = vdwg.mxu0
    %8498 = vrot.lane.b32.xlu0 %v8464, 22
    %v8499 = vpop.permute.xlu0 %8498
    %8500 = vrot.lane.b32.xlu0 %v8469, 22
    %v8501 = vpop.permute.xlu0 %8500
    %8502 = vrot.lane.b32.xlu0 %v8474, 22
    %v8503 = vpop.permute.xlu0 %8502
    %8504 = vrot.lane.b32.xlu0 %v8479, 22
    %v8505 = vpop.permute.xlu0 %8504
    %8506 = vrot.lane.b32.xlu0 %v8484, 22
    %v8507 = vpop.permute.xlu0 %8506
    %8508 = vrot.lane.b32.xlu0 %v8489, 22
    %v8509 = vpop.permute.xlu0 %8508
    %8516 = vst.msk [vmem:[#allocation8] sm:$0xff] %vm816, %v8499
    %8517 = vst.msk [vmem:[#allocation8 + $0x8] sm:$0xff] %vm816, %v8501
    %8518 = vst.msk [vmem:[#allocation8 + $0x10] sm:$0xff] %vm816, %v8503
    %8519 = vst.msk [vmem:[#allocation8 + $0x18] sm:$0xff] %vm816, %v8505
    %8520 = vst.msk [vmem:[#allocation8 + $0x20] sm:$0xff] %vm816, %v8507
    %8521 = vst.msk [vmem:[#allocation8 + $0x28] sm:$0xff] %vm816, %v8509
    %v8522 = vld [vmem:[#allocation8] sm:$0xff]
    %v8523 = vld [vmem:[#allocation8 + $0x8] sm:$0xff]
    %v8524 = vld [vmem:[#allocation8 + $0x10] sm:$0xff]
    %v8525 = vld [vmem:[#allocation8 + $0x18] sm:$0xff]
    %v8526 = vld [vmem:[#allocation8 + $0x20] sm:$0xff]
    %v8527 = vld [vmem:[#allocation8 + $0x28] sm:$0xff]
    %v8528 = vld [vmem:[#allocation8 + $0x30] sm:$0xff]
    %v8529 = vld [vmem:[#allocation8 + $0x38] sm:$0xff]
    %v8530 = vld [vmem:[#allocation8 + $0x40] sm:$0xff]
    %8540 = vrot.lane.b32.xlu0 %v8522, 124
    %v8541 = vpop.permute.xlu0 %8540
    %8542 = vrot.lane.b32.xlu0 %v8523, 124
    %v8543 = vpop.permute.xlu0 %8542
    %8544 = vrot.lane.b32.xlu0 %v8524, 124
    %v8545 = vpop.permute.xlu0 %8544
    %8546 = vrot.lane.b32.xlu0 %v8525, 124
    %v8547 = vpop.permute.xlu0 %8546
    %8548 = vrot.lane.b32.xlu0 %v8526, 124
    %v8549 = vpop.permute.xlu0 %8548
    %8550 = vrot.lane.b32.xlu0 %v8527, 124
    %v8551 = vpop.permute.xlu0 %8550
    %8552 = vrot.lane.b32.xlu0 %v8528, 124
    %v8553 = vpop.permute.xlu0 %8552
    %8554 = vrot.lane.b32.xlu0 %v8529, 124
    %v8555 = vpop.permute.xlu0 %8554
    %8556 = vrot.lane.b32.xlu0 %v8530, 124
    %v8557 = vpop.permute.xlu0 %8556
    %v8567 = vsel %vm166, %v8522, %v8541
    %v8568 = vsel %vm166, %v8523, %v8543
    %v8569 = vsel %vm166, %v8524, %v8545
    %v8570 = vsel %vm166, %v8525, %v8547
    %v8571 = vsel %vm166, %v8526, %v8549
    %v8572 = vsel %vm166, %v8527, %v8551
    %v8573 = vsel %vm166, %v8528, %v8553
    %v8574 = vsel %vm166, %v8529, %v8555
    %v8575 = vsel %vm166, %v8530, %v8557
    %8576 = vrot.lane.b32.xlu0 %v8522, 127
    %v8577 = vpop.permute.xlu0 %8576
    %8578 = vrot.lane.b32.xlu0 %v8523, 127
    %v8579 = vpop.permute.xlu0 %8578
    %8580 = vrot.lane.b32.xlu0 %v8524, 127
    %v8581 = vpop.permute.xlu0 %8580
    %8582 = vrot.lane.b32.xlu0 %v8525, 127
    %v8583 = vpop.permute.xlu0 %8582
    %8584 = vrot.lane.b32.xlu0 %v8526, 127
    %v8585 = vpop.permute.xlu0 %8584
    %8586 = vrot.lane.b32.xlu0 %v8527, 127
    %v8587 = vpop.permute.xlu0 %8586
    %8588 = vrot.lane.b32.xlu0 %v8528, 127
    %v8589 = vpop.permute.xlu0 %8588
    %8590 = vrot.lane.b32.xlu0 %v8529, 127
    %v8591 = vpop.permute.xlu0 %8590
    %8592 = vrot.lane.b32.xlu0 %v8530, 127
    %v8593 = vpop.permute.xlu0 %8592
    %8603 = vrot.lane.b32.xlu0 %v8522, 123
    %v8604 = vpop.permute.xlu0 %8603
    %8605 = vrot.lane.b32.xlu0 %v8523, 123
    %v8606 = vpop.permute.xlu0 %8605
    %8607 = vrot.lane.b32.xlu0 %v8524, 123
    %v8608 = vpop.permute.xlu0 %8607
    %8609 = vrot.lane.b32.xlu0 %v8525, 123
    %v8610 = vpop.permute.xlu0 %8609
    %8611 = vrot.lane.b32.xlu0 %v8526, 123
    %v8612 = vpop.permute.xlu0 %8611
    %8613 = vrot.lane.b32.xlu0 %v8527, 123
    %v8614 = vpop.permute.xlu0 %8613
    %8615 = vrot.lane.b32.xlu0 %v8528, 123
    %v8616 = vpop.permute.xlu0 %8615
    %8617 = vrot.lane.b32.xlu0 %v8529, 123
    %v8618 = vpop.permute.xlu0 %8617
    %8619 = vrot.lane.b32.xlu0 %v8530, 123
    %v8620 = vpop.permute.xlu0 %8619
    %v8630 = vsel %vm166, %v8577, %v8604
    %v8631 = vsel %vm166, %v8579, %v8606
    %v8632 = vsel %vm166, %v8581, %v8608
    %v8633 = vsel %vm166, %v8583, %v8610
    %v8634 = vsel %vm166, %v8585, %v8612
    %v8635 = vsel %vm166, %v8587, %v8614
    %v8636 = vsel %vm166, %v8589, %v8616
    %v8637 = vsel %vm166, %v8591, %v8618
    %v8638 = vsel %vm166, %v8593, %v8620
    %8639 = vrot.lane.b32.xlu0 %v8522, 126
    %v8640 = vpop.permute.xlu0 %8639
    %8641 = vrot.lane.b32.xlu0 %v8523, 126
    %v8642 = vpop.permute.xlu0 %8641
    %8643 = vrot.lane.b32.xlu0 %v8524, 126
    %v8644 = vpop.permute.xlu0 %8643
    %8645 = vrot.lane.b32.xlu0 %v8525, 126
    %v8646 = vpop.permute.xlu0 %8645
    %8647 = vrot.lane.b32.xlu0 %v8526, 126
    %v8648 = vpop.permute.xlu0 %8647
    %8649 = vrot.lane.b32.xlu0 %v8527, 126
    %v8650 = vpop.permute.xlu0 %8649
    %8651 = vrot.lane.b32.xlu0 %v8528, 126
    %v8652 = vpop.permute.xlu0 %8651
    %8653 = vrot.lane.b32.xlu0 %v8529, 126
    %v8654 = vpop.permute.xlu0 %8653
    %8655 = vrot.lane.b32.xlu0 %v8530, 126
    %v8656 = vpop.permute.xlu0 %8655
    %8666 = vrot.lane.b32.xlu0 %v8522, 122
    %v8667 = vpop.permute.xlu0 %8666
    %8668 = vrot.lane.b32.xlu0 %v8523, 122
    %v8669 = vpop.permute.xlu0 %8668
    %8670 = vrot.lane.b32.xlu0 %v8524, 122
    %v8671 = vpop.permute.xlu0 %8670
    %8672 = vrot.lane.b32.xlu0 %v8525, 122
    %v8673 = vpop.permute.xlu0 %8672
    %8674 = vrot.lane.b32.xlu0 %v8526, 122
    %v8675 = vpop.permute.xlu0 %8674
    %8676 = vrot.lane.b32.xlu0 %v8527, 122
    %v8677 = vpop.permute.xlu0 %8676
    %8678 = vrot.lane.b32.xlu0 %v8528, 122
    %v8679 = vpop.permute.xlu0 %8678
    %8680 = vrot.lane.b32.xlu0 %v8529, 122
    %v8681 = vpop.permute.xlu0 %8680
    %8682 = vrot.lane.b32.xlu0 %v8530, 122
    %v8683 = vpop.permute.xlu0 %8682
    %v8693 = vsel %vm166, %v8640, %v8667
    %v8694 = vsel %vm166, %v8642, %v8669
    %v8695 = vsel %vm166, %v8644, %v8671
    %v8696 = vsel %vm166, %v8646, %v8673
    %v8697 = vsel %vm166, %v8648, %v8675
    %v8698 = vsel %vm166, %v8650, %v8677
    %v8699 = vsel %vm166, %v8652, %v8679
    %v8700 = vsel %vm166, %v8654, %v8681
    %v8701 = vsel %vm166, %v8656, %v8683
    %8702 = vrot.lane.b32.xlu0 %v8522, 125
    %v8703 = vpop.permute.xlu0 %8702
    %8704 = vrot.lane.b32.xlu0 %v8523, 125
    %v8705 = vpop.permute.xlu0 %8704
    %8706 = vrot.lane.b32.xlu0 %v8524, 125
    %v8707 = vpop.permute.xlu0 %8706
    %8708 = vrot.lane.b32.xlu0 %v8525, 125
    %v8709 = vpop.permute.xlu0 %8708
    %8710 = vrot.lane.b32.xlu0 %v8526, 125
    %v8711 = vpop.permute.xlu0 %8710
    %8712 = vrot.lane.b32.xlu0 %v8527, 125
    %v8713 = vpop.permute.xlu0 %8712
    %8714 = vrot.lane.b32.xlu0 %v8528, 125
    %v8715 = vpop.permute.xlu0 %8714
    %8716 = vrot.lane.b32.xlu0 %v8529, 125
    %v8717 = vpop.permute.xlu0 %8716
    %8718 = vrot.lane.b32.xlu0 %v8530, 125
    %v8719 = vpop.permute.xlu0 %8718
    %8729 = vrot.lane.b32.xlu0 %v8522, 121
    %v8730 = vpop.permute.xlu0 %8729
    %8731 = vrot.lane.b32.xlu0 %v8523, 121
    %v8732 = vpop.permute.xlu0 %8731
    %8733 = vrot.lane.b32.xlu0 %v8524, 121
    %v8734 = vpop.permute.xlu0 %8733
    %8735 = vrot.lane.b32.xlu0 %v8525, 121
    %v8736 = vpop.permute.xlu0 %8735
    %8737 = vrot.lane.b32.xlu0 %v8526, 121
    %v8738 = vpop.permute.xlu0 %8737
    %8739 = vrot.lane.b32.xlu0 %v8527, 121
    %v8740 = vpop.permute.xlu0 %8739
    %8741 = vrot.lane.b32.xlu0 %v8528, 121
    %v8742 = vpop.permute.xlu0 %8741
    %8743 = vrot.lane.b32.xlu0 %v8529, 121
    %v8744 = vpop.permute.xlu0 %8743
    %8745 = vrot.lane.b32.xlu0 %v8530, 121
    %v8746 = vpop.permute.xlu0 %8745
    %v8756 = vsel %vm166, %v8703, %v8730
    %v8757 = vsel %vm166, %v8705, %v8732
    %v8758 = vsel %vm166, %v8707, %v8734
    %v8759 = vsel %vm166, %v8709, %v8736
    %v8760 = vsel %vm166, %v8711, %v8738
    %v8761 = vsel %vm166, %v8713, %v8740
    %v8762 = vsel %vm166, %v8715, %v8742
    %v8763 = vsel %vm166, %v8717, %v8744
    %v8764 = vsel %vm166, %v8719, %v8746
    %8765 = vrot.lane.b32.xlu0 %v8522, 120
    %v8766 = vpop.permute.xlu0 %8765
    %8767 = vrot.lane.b32.xlu0 %v8523, 120
    %v8768 = vpop.permute.xlu0 %8767
    %8769 = vrot.lane.b32.xlu0 %v8524, 120
    %v8770 = vpop.permute.xlu0 %8769
    %8771 = vrot.lane.b32.xlu0 %v8525, 120
    %v8772 = vpop.permute.xlu0 %8771
    %8773 = vrot.lane.b32.xlu0 %v8526, 120
    %v8774 = vpop.permute.xlu0 %8773
    %8775 = vrot.lane.b32.xlu0 %v8527, 120
    %v8776 = vpop.permute.xlu0 %8775
    %8777 = vrot.lane.b32.xlu0 %v8528, 120
    %v8778 = vpop.permute.xlu0 %8777
    %8779 = vrot.lane.b32.xlu0 %v8529, 120
    %v8780 = vpop.permute.xlu0 %8779
    %8781 = vrot.lane.b32.xlu0 %v8530, 120
    %v8782 = vpop.permute.xlu0 %8781
    %v8792 = vsel %vm166, %v8541, %v8766
    %v8793 = vsel %vm166, %v8543, %v8768
    %v8794 = vsel %vm166, %v8545, %v8770
    %v8795 = vsel %vm166, %v8547, %v8772
    %v8796 = vsel %vm166, %v8549, %v8774
    %v8797 = vsel %vm166, %v8551, %v8776
    %v8798 = vsel %vm166, %v8553, %v8778
    %v8799 = vsel %vm166, %v8555, %v8780
    %v8800 = vsel %vm166, %v8557, %v8782
    %v8801 = vld [vmem:[#allocation18] sm:$0xff]
    %v8802 = vld [vmem:[#allocation18 + $0x8] sm:$0xf]
    %v8803 = vld [vmem:[#allocation18 + $0xc] sm:$0xff]
    %v8804 = vld [vmem:[#allocation18 + $0x14] sm:$0xf]
    %v8805 = vld [vmem:[#allocation18 + $0x18] sm:$0xff]
    %v8806 = vld [vmem:[#allocation18 + $0x20] sm:$0xf]
    %v8807 = vpack.c.bf16 %v8568, %v8567
    %v8808 = vpack.c.bf16 %v8570, %v8569
    %v8809 = vpack.c.bf16 %v8572, %v8571
    %v8810 = vpack.c.bf16 %v8574, %v8573
    %v8811 = vpack.c.bf16 %v8630, %v8575
    %v8812 = vpack.c.bf16 %v8632, %v8631
    %v8813 = vpack.c.bf16 %v8634, %v8633
    %v8814 = vpack.c.bf16 %v8636, %v8635
    %v8815 = vpack.c.bf16 %v8638, %v8637
    %v8816 = vpack.c.bf16 %v8694, %v8693
    %v8817 = vpack.c.bf16 %v8696, %v8695
    %v8818 = vpack.c.bf16 %v8698, %v8697
    %v8819 = vpack.c.bf16 %v8700, %v8699
    %v8820 = vpack.c.bf16 %v8756, %v8701
    %v8821 = vpack.c.bf16 %v8758, %v8757
    %v8822 = vpack.c.bf16 %v8760, %v8759
    %v8823 = vpack.c.bf16 %v8762, %v8761
    %v8824 = vpack.c.bf16 %v8764, %v8763
    %v8825 = vpack.c.bf16 %v8793, %v8792
    %v8826 = vpack.c.bf16 %v8795, %v8794
    %v8827 = vpack.c.bf16 %v8797, %v8796
    %v8828 = vpack.c.bf16 %v8799, %v8798
    %v8829 = vpack.c.bf16 %v8800, %v8800
    %v8830 = vld [vmem:[%s14] sm:$0xff]
    %v8831 = vld [vmem:[%s14 + $0x8] sm:$0xff]
    %v8832 = vld [vmem:[%s14 + $0x10] sm:$0xff]
    %8834 = vset.pattern.permute.xlu0 0
    %8835 = vperm.xlu0 %8834, %v8830
    %v8836 = vpop.permute.xlu0 %8835
    %8839 = vset.pattern.permute.xlu0 0
    %8840 = vperm.xlu0 %8839, %v8831
    %v8841 = vpop.permute.xlu0 %8840
    %8844 = vset.pattern.permute.xlu0 0
    %8845 = vperm.xlu0 %8844, %v8832
    %v8846 = vpop.permute.xlu0 %8845
    %v8854 = vunpack.c.l.b16 %v8801
    %v8855 = vunpack.c.h.b16 %v8801
    %v8856 = vunpack.c.l.b16 %v8802
    %v8857 = vunpack.c.l.b16 %v8803
    %v8858 = vunpack.c.h.b16 %v8803
    %v8859 = vunpack.c.l.b16 %v8804
    %v8860 = vunpack.c.l.b16 %v8805
    %v8861 = vunpack.c.h.b16 %v8805
    %v8862 = vunpack.c.l.b16 %v8806
    %v8863 = vpack.c.b16 %v8857, %v8854
    %v8864 = vpack.c.b16 %v8858, %v8855
    %v8865 = vpack.c.b16 %v8859, %v8856
    %v8866 = vpack.c.b16 %v8860, %v8860
    %v8867 = vpack.c.b16 %v8861, %v8861
    %v8868 = vpack.c.b16 %v8862, %v8862
    %v8874 = vsel %vm1396, %v8865, 0
    %v8877 = vsel %vm1396, %v8868, 0
    %v8880 = vsel %vm1406, %v8829, 0
    %8882 = vmatprep.subr.bf16.mxu0 0
    %8883 = vmatpush1.bf16.msra.mxu0 %v8807
    %8884 = vmatprep.subr.bf16.mxu0 0
    %8885 = vmatpush1.bf16.msra.mxu0 %v8808
    %8886 = vmatprep.subr.bf16.mxu0 0
    %8887 = vmatpush1.bf16.msra.mxu0 %v8809
    %8888 = vmatprep.subr.bf16.mxu0 0
    %8889 = vmatpush1.bf16.msra.mxu0 %v8810
    %8890 = vmatprep.subr.bf16.mxu0 0
    %8891 = vmatpush1.bf16.msra.mxu0 %v8811
    %8892 = vmatprep.subr.bf16.mxu0 0
    %8893 = vmatpush1.bf16.msra.mxu0 %v8812
    %8894 = vmatprep.subr.bf16.mxu0 0
    %8895 = vmatpush1.bf16.msra.mxu0 %v8813
    %8896 = vmatprep.subr.bf16.mxu0 0
    %8897 = vmatpush1.bf16.msra.mxu0 %v8814
    %8898 = vmatprep.subr.bf16.mxu0 0
    %8899 = vmatpush1.bf16.msra.mxu0 %v8815
    %8900 = vmatprep.subr.bf16.mxu0 0
    %8901 = vmatpush1.bf16.msra.mxu0 %v8816
    %8902 = vmatprep.subr.bf16.mxu0 0
    %8903 = vmatpush1.bf16.msra.mxu0 %v8817
    %8904 = vmatprep.subr.bf16.mxu0 0
    %8905 = vmatpush1.bf16.msra.mxu0 %v8818
    %8906 = vmatprep.subr.bf16.mxu0 0
    %8907 = vmatpush1.bf16.msra.mxu0 %v8819
    %8908 = vmatprep.subr.bf16.mxu0 0
    %8909 = vmatpush1.bf16.msra.mxu0 %v8820
    %8910 = vmatprep.subr.bf16.mxu0 0
    %8911 = vmatpush1.bf16.msra.mxu0 %v8821
    %8912 = vmatprep.subr.bf16.mxu0 0
    %8913 = vmatpush1.bf16.msra.mxu0 %v8822
    %8914 = vmatprep.mubr.bf16.mxu0 %v8864
    %8915 = vmatmul.mubr.bf16.gmra.mrb[0].mxu0 %v8863
    %v8916 = vpop.f32.mrb[0].mxu0
    %v8917 = vadd.f32 %v8836, %v8916
    %v8918 = vpop.f32.mrb[0].mxu0
    %v8919 = vpop.f32.mrb[0].mxu0
    %v8920 = vadd.f32 %v8841, %v8919
    %v8921 = vpop.f32.mrb[0].mxu0
    %8922 = vmatprep.mubr.bf16.mxu0 %v8867
    %8923 = vmatmul.mubr.bf16.gmra.mrb[0].mxu0 %v8866
    %v8924 = vpop.f32.mrb[0].mxu0
    %v8925 = vadd.f32 %v8846, %v8924
    %v8926 = vpop.f32.mrb[0].mxu0
    %v8927 = vpop.f32.mrb[0].mxu0
    %v8928 = vpop.f32.mrb[0].mxu0
    %8929 = vdwg.mxu0
    %8930 = vmatprep.subr.bf16.mxu0 0
    %8931 = vmatpush1.bf16.msra.mxu0 %v8823
    %8932 = vmatprep.subr.bf16.mxu0 0
    %8933 = vmatpush1.bf16.msra.mxu0 %v8824
    %8934 = vmatprep.subr.bf16.mxu0 0
    %8935 = vmatpush1.bf16.msra.mxu0 %v8825
    %8936 = vmatprep.subr.bf16.mxu0 0
    %8937 = vmatpush1.bf16.msra.mxu0 %v8826
    %8938 = vmatprep.subr.bf16.mxu0 0
    %8939 = vmatpush1.bf16.msra.mxu0 %v8827
    %8940 = vmatprep.subr.bf16.mxu0 0
    %8941 = vmatpush1.bf16.msra.mxu0 %v8828
    %8942 = vmatprep.subr.bf16.mxu0 0
    %8943 = vmatpush1.bf16.msra.mxu0 %v8880
    %8944 = vmatprep.subr.bf16.mxu0 0
    %8945 = vmatpush1.bf16.msra.mxu0 0
    %8946 = vmatprep.subr.bf16.mxu0 0
    %8947 = vmatpush1.bf16.msra.mxu0 0
    %8948 = vmatprep.subr.bf16.mxu0 0
    %8949 = vmatpush1.bf16.msra.mxu0 0
    %8950 = vmatprep.subr.bf16.mxu0 0
    %8951 = vmatpush1.bf16.msra.mxu0 0
    %8952 = vmatprep.subr.bf16.mxu0 0
    %8953 = vmatpush1.bf16.msra.mxu0 0
    %8954 = vmatprep.subr.bf16.mxu0 0
    %8955 = vmatpush1.bf16.msra.mxu0 0
    %8956 = vmatprep.subr.bf16.mxu0 0
    %8957 = vmatpush1.bf16.msra.mxu0 0
    %8958 = vmatprep.subr.bf16.mxu0 0
    %8959 = vmatpush1.bf16.msra.mxu0 0
    %8960 = vmatprep.subr.bf16.mxu0 0
    %8961 = vmatpush1.bf16.msra.mxu0 0
    %8962 = vmatprep.mubr.bf16.mxu0 0
    %8963 = vmatmul.mubr.bf16.gmra.mrb[0].mxu0 %v8874
    %v8964 = vpop.f32.mrb[0].mxu0
    %v8965 = vadd.f32 %v8917, %v8964
    %v8966 = vpop.f32.mrb[0].mxu0
    %v8967 = vpop.f32.mrb[0].mxu0
    %v8968 = vadd.f32 %v8920, %v8967
    %v8969 = vpop.f32.mrb[0].mxu0
    %8970 = vmatprep.mubr.bf16.mxu0 0
    %8971 = vmatmul.mubr.bf16.gmra.mrb[0].mxu0 %v8877
    %v8972 = vpop.f32.mrb[0].mxu0
    %v8973 = vadd.f32 %v8925, %v8972
    %v8974 = vpop.f32.mrb[0].mxu0
    %v8975 = vpop.f32.mrb[0].mxu0
    %v8976 = vpop.f32.mrb[0].mxu0
    %8977 = vdwg.mxu0
    %v8978 = vsel %vm157, %v8965, 0.0
    %8979 = vadd.xlane.f32.xlu0 %v8978
    %v8980 = vpop.xlane.xlu0 %8979
    %v8981 = vsel %vm157, %v8968, 0.0
    %8982 = vadd.xlane.f32.xlu0 %v8981
    %v8983 = vpop.xlane.xlu0 %8982
    %v8984 = vsel %vm157, %v8973, 0.0
    %8985 = vadd.xlane.f32.xlu0 %v8984
    %v8986 = vpop.xlane.xlu0 %8985
    %v8987 = vmul.f32 %v8965, %v8965
    %v8988 = vmul.f32 %v8968, %v8968
    %v8989 = vmul.f32 %v8973, %v8973
    %v8990 = vsel %vm157, %v8987, 0.0
    %8991 = vadd.xlane.f32.xlu0 %v8990
    %v8992 = vpop.xlane.xlu0 %8991
    %v8993 = vsel %vm157, %v8988, 0.0
    %8994 = vadd.xlane.f32.xlu0 %v8993
    %v8995 = vpop.xlane.xlu0 %8994
    %v8996 = vsel %vm157, %v8989, 0.0
    %8997 = vadd.xlane.f32.xlu0 %v8996
    %v8998 = vpop.xlane.xlu0 %8997
    %v8999 = vmul.f32 %v8980, 0.03125
    %v9000 = vmul.f32 %v8983, 0.03125
    %v9001 = vmul.f32 %v8986, 0.03125
    %v9002 = vmul.f32 %v8992, 0.03125
    %v9003 = vmul.f32 %v8995, 0.03125
    %v9004 = vmul.f32 %v8998, 0.03125
    %v9005 = vmul.f32 %v8999, %v8999
    %v9006 = vmul.f32 %v9000, %v9000
    %v9007 = vmul.f32 %v9001, %v9001
    %v9008 = vsub.f32 %v9002, %v9005
    %v9009 = vsub.f32 %v9003, %v9006
    %v9010 = vsub.f32 %v9004, %v9007
    %v9011 = vmax.f32 %v9008, 0.0
    %v9012 = vmax.f32 %v9009, 0.0
    %v9013 = vmax.f32 %v9010, 0.0
    %v9014 = vadd.f32 %v9011, 1e-05
    %v9015 = vadd.f32 %v9012, 1e-05
    %v9016 = vadd.f32 %v9013, 1e-05
    %v9017 = vrsqrt.pop %v9014
    %v9018 = vrsqrt.pop %v9015
    %v9019 = vrsqrt.pop %v9016
    %v9020 = vmul.f32 %v9017, %v8830
    %v9021 = vmul.f32 %v9018, %v8831
    %v9022 = vmul.f32 %v9019, %v8832
    %v9023 = vmul.f32 %v8999, %v9020
    %v9024 = vmul.f32 %v9000, %v9021
    %v9025 = vmul.f32 %v9001, %v9022
    %9029 = vrot.lane.b32.xlu0 %v9023, 1
    %v9030 = vpop.permute.xlu0 %9029
    %9031 = vrot.lane.b32.xlu0 %v9024, 1
    %v9032 = vpop.permute.xlu0 %9031
    %9033 = vrot.lane.b32.xlu0 %v9025, 1
    %v9034 = vpop.permute.xlu0 %9033
    %v9038 = vsub.f32 %v8830, %v9030
    %v9039 = vsub.f32 %v8831, %v9032
    %v9040 = vsub.f32 %v8832, %v9034
    %9042 = vset.pattern.permute.xlu0 1
    %9043 = vperm.xlu0 %9042, %v9020
    %v9044 = vpop.permute.xlu0 %9043
    %9047 = vset.pattern.permute.xlu0 1
    %9048 = vperm.xlu0 %9047, %v9021
    %v9049 = vpop.permute.xlu0 %9048
    %9052 = vset.pattern.permute.xlu0 1
    %9053 = vperm.xlu0 %9052, %v9022
    %v9054 = vpop.permute.xlu0 %9053
    %v9056 = vmul.f32 %v8965, %v9044
    %v9057 = vmul.f32 %v8968, %v9049
    %v9058 = vmul.f32 %v8973, %v9054
    %9060 = vset.pattern.permute.xlu0 2
    %9061 = vperm.xlu0 %9060, %v9038
    %v9062 = vpop.permute.xlu0 %9061
    %9065 = vset.pattern.permute.xlu0 2
    %9066 = vperm.xlu0 %9065, %v9039
    %v9067 = vpop.permute.xlu0 %9066
    %9070 = vset.pattern.permute.xlu0 2
    %9071 = vperm.xlu0 %9070, %v9040
    %v9072 = vpop.permute.xlu0 %9071
    %v9074 = vadd.f32 %v9056, %v9062
    %v9075 = vadd.f32 %v9057, %v9067
    %v9076 = vadd.f32 %v9058, %v9072
    %vm9077 = vcmp.gt.f32.partialorder %v9074, 0.0
    %vm9078 = vcmp.gt.f32.partialorder %v9075, 0.0
    %vm9079 = vcmp.gt.f32.partialorder %v9076, 0.0
    %v9080 = vmul.f32 %v9074, 0.01
    %v9081 = vmul.f32 %v9075, 0.01
    %v9082 = vmul.f32 %v9076, 0.01
    %v9083 = vsel %vm9077, %v9074, %v9080
    %v9084 = vsel %vm9078, %v9075, %v9081
    %v9085 = vsel %vm9079, %v9076, %v9082
    %v9086 = vld [vmem:[%s15] sm:$0x1]
    %9088 = vset.pattern.permute.xlu0 24
    %9089 = vperm.xlu0 %9088, %v9086
    %v9090 = vpop.permute.xlu0 %9089
    %v9092 = vlaneseq
    %v9093 = vshrl.u32 %v9092, 7
    %v9094 = vsub.s32 0, %v9093
    %v9095 = vrot.slane %v9090, %v9094
    %v9096 = vmul.f32 %v9095, %v208
    %v9097 = vsel %vm183, %v9086, 0
    %9099 = vmatprep.subr.mxu0 0.0
    %9100 = vmatpush1.msra.mxu0 %v9083
    %9101 = vmatprep.subr.mxu0 0.0
    %9102 = vmatpush1.msra.mxu0 %v9084
    %9103 = vmatprep.subr.mxu0 0.0
    %9104 = vmatpush1.msra.mxu0 %v9085
    %9105 = vmatprep.subr.mxu0 0.0
    %9106 = vmatpush1.msra.mxu0 0.0
    %9107 = vmatprep.subr.mxu0 0.0
    %9108 = vmatpush1.msra.mxu0 0.0
    %9109 = vmatprep.subr.mxu0 0.0
    %9110 = vmatpush1.msra.mxu0 0.0
    %9111 = vmatprep.subr.mxu0 0.0
    %9112 = vmatpush1.msra.mxu0 0.0
    %9113 = vmatprep.subr.mxu0 0.0
    %9114 = vmatpush1.msra.mxu0 0.0
    %9115 = vmatprep.subr.mxu0 0.0
    %9116 = vmatpush1.msra.mxu0 0.0
    %9117 = vmatprep.subr.mxu0 0.0
    %9118 = vmatpush1.msra.mxu0 0.0
    %9119 = vmatprep.subr.mxu0 0.0
    %9120 = vmatpush1.msra.mxu0 0.0
    %9121 = vmatprep.subr.mxu0 0.0
    %9122 = vmatpush1.msra.mxu0 0.0
    %9123 = vmatprep.subr.mxu0 0.0
    %9124 = vmatpush1.msra.mxu0 0.0
    %9125 = vmatprep.subr.mxu0 0.0
    %9126 = vmatpush1.msra.mxu0 0.0
    %9127 = vmatprep.subr.mxu0 0.0
    %9128 = vmatpush1.msra.mxu0 0.0
    %9129 = vmatprep.subr.mxu0 0.0
    %9130 = vmatpush1.msra.mxu0 0.0
    %9131 = vmatprep.subr.mxu0 0.0
    %9132 = vmatpush1.msra.mxu0 0.0
    %9133 = vmatprep.subr.mxu0 0.0
    %9134 = vmatpush1.msra.mxu0 0.0
    %9135 = vmatprep.subr.mxu0 0.0
    %9136 = vmatpush1.msra.mxu0 0.0
    %9137 = vmatprep.subr.mxu0 0.0
    %9138 = vmatpush1.msra.mxu0 0.0
    %9139 = vmatprep.subr.mxu0 0.0
    %9140 = vmatpush1.msra.mxu0 0.0
    %9141 = vmatprep.subr.mxu0 0.0
    %9142 = vmatpush1.msra.mxu0 0.0
    %9143 = vmatprep.subr.mxu0 0.0
    %9144 = vmatpush1.msra.mxu0 0.0
    %9145 = vmatprep.subr.mxu0 0.0
    %9146 = vmatpush1.msra.mxu0 0.0
    %9147 = vmatprep.subr.mxu0 0.0
    %9148 = vmatpush1.msra.mxu0 0.0
    %9149 = vmatprep.subr.mxu0 0.0
    %9150 = vmatpush1.msra.mxu0 0.0
    %9151 = vmatprep.subr.mxu0 0.0
    %9152 = vmatpush1.msra.mxu0 0.0
    %9153 = vmatprep.subr.mxu0 0.0
    %9154 = vmatpush1.msra.mxu0 0.0
    %9155 = vmatprep.subr.mxu0 0.0
    %9156 = vmatpush1.msra.mxu0 0.0
    %9157 = vmatprep.subr.mxu0 0.0
    %9158 = vmatpush1.msra.mxu0 0.0
    %9159 = vmatprep.subr.mxu0 0.0
    %9160 = vmatpush1.msra.mxu0 0.0
    %9161 = vmatprep.subr.mxu0 0.0
    %9162 = vmatpush1.msra.mxu0 0.0
    %9163 = vmatprep.mubr.f32.mxu0 0.0
    %9164 = vmatmul.mubr.f32.gmra.mrb[0].mxu0 %v9097
    %v9165 = vpop.f32.mrb[0].mxu0
    %v9166 = vadd.f32 %v9096, %v9165
    %v9167 = vpop.f32.mrb[0].mxu0
    %9168 = vdwg.mxu0
    %v9169 = vld [vmem:[#allocation9] sm:$0x1]
    %9171 = vset.pattern.permute.xlu0 0
    %9172 = vperm.xlu0 %9171, %v9169
    %v9173 = vpop.permute.xlu0 %9172
    %v9175 = vlaneseq
    %v9176 = vshrl.u32 %v9175, 7
    %v9177 = vsub.s32 0, %v9176
    %v9178 = vrot.slane %v9173, %v9177
    %v9179 = vadd.f32 %v9166, %v9178
    %v9180 = vtanh.pop %v9179
    %vm9181 = vcmask 253952
    %9182 = vst.msk [vmem:[#allocation19] sm:$0x1] %vm9181, %v9180
    // Predicated region
    $region114: #{tpu_custom_call.1} parent=1 // pred_check
      _
    $region115: #{tpu_custom_call.1} parent=1 // pred_check_branch
      %9184 = sbr.rel (0) target = $region117
    $region116: #{tpu_custom_call.1} parent=1 // pred_region
      %s9186 = ssub.s32 16, 16
      %9187 = vsyncadd [#allocation12], %s9186
      %s9189 = sshll.u32 [#allocation19], 4
      %s9190 = int_to_ptr.vmem [resolvable:$true] %s9189
      %9192 = dma.vmem_to_hbm [thread:$0]  %s9190, 16, %s23, [#allocation12]
    $region117: #{tpu_custom_call.1} parent=1 // pred_fallthru
      _
    // Predicated region
    $region118: #{tpu_custom_call.1} parent=1 // pred_check
      _
    $region119: #{tpu_custom_call.1} parent=1 // pred_check_branch
      %9194 = sbr.rel (0) target = $region121
    $region120: #{tpu_custom_call.1} parent=1 // pred_region
      %9195 = dma.done [#allocation12], 16
    $region121: #{tpu_custom_call.1} parent=1 // pred_fallthru
      _
    %9196 = vsyncpa [#allocation11], 1
    %9197 = vsyncpa [#allocation14], 1
    %9198 = vsyncpa [#allocation17], 1
    %9199 = vsyncpa [#allocation12], 1

</llo_original>
